<compile_context>
chip_gen: v6e
topology: v6e:2x2x1
jax: 0.10.0
libtpu: 0.0.40
codegen_flags: <defaults>
</compile_context>

<pallas_src>
import jax
import jax.numpy as jnp
from jax.experimental import pallas as pl
from jax.experimental.pallas import tpu as pltpu


_DEFAULT_VMEM_LIMIT = 32 * 1024 * 1024


# ---------------------------------------------------------------------------
# small traced helpers used inside kernel bodies
# ---------------------------------------------------------------------------
def _tap_slice(x, kh, kw, Ho, Wo, stride):
    """Shifted (and, for stride>1, strided) view of a padded (C, Hp, Wp) plane."""
    C = x.shape[0]
    if stride == 1:
        return x[:, kh:kh + Ho, kw:kw + Wo]
    return jax.lax.slice(
        x, (0, kh, kw),
        (C, kh + (Ho - 1) * stride + 1, kw + (Wo - 1) * stride + 1),
        (1, stride, stride))


def _dw_taps_real(xp, wr, wi, K, Ho, Wo, stride):
    """Depthwise complex conv with real-only input (imag == 0 after Real2Complex)."""
    C = xp.shape[0]
    acc_r = jnp.zeros((C, Ho, Wo), jnp.float32)
    acc_i = jnp.zeros((C, Ho, Wo), jnp.float32)
    for kh in range(K):
        for kw in range(K):
            patch = _tap_slice(xp, kh, kw, Ho, Wo, stride)
            acc_r = acc_r + patch * wr[:, kh:kh + 1, kw:kw + 1]
            acc_i = acc_i + patch * wi[:, kh:kh + 1, kw:kw + 1]
    return acc_r, acc_i


def _dw_taps_cplx(xr, xi, wr, wi, K, Ho, Wo):
    """Depthwise complex conv, stride 1, complex input (padded planes)."""
    C = xr.shape[0]
    acc_r = jnp.zeros((C, Ho, Wo), jnp.float32)
    acc_i = jnp.zeros((C, Ho, Wo), jnp.float32)
    for kh in range(K):
        for kw in range(K):
            pr = xr[:, kh:kh + Ho, kw:kw + Wo]
            pi = xi[:, kh:kh + Ho, kw:kw + Wo]
            fr = wr[:, kh:kh + 1, kw:kw + 1]
            fi = wi[:, kh:kh + 1, kw:kw + 1]
            acc_r = acc_r + pr * fr - pi * fi
            acc_i = acc_i + pr * fi + pi * fr
    return acc_r, acc_i


def _pointwise_cplx(xr, xi, pwr_ref, pwi_ref, c_in, c_out):
    """1x1 complex conv as SMEM-scalar * plane VPU FMAs (no MXU, no concats)."""
    plane = xr.shape[1:]
    yr_rows, yi_rows = [], []
    for co in range(c_out):
        ar = jnp.zeros(plane, jnp.float32)
        ai = jnp.zeros(plane, jnp.float32)
        for ci in range(c_in):
            wr_s = pwr_ref[ci, co]
            wi_s = pwi_ref[ci, co]
            xr_c = xr[ci]
            xi_c = xi[ci]
            ar = ar + xr_c * wr_s - xi_c * wi_s
            ai = ai + xr_c * wi_s + xi_c * wr_s
        yr_rows.append(ar)
        yi_rows.append(ai)
    return jnp.stack(yr_rows, axis=0), jnp.stack(yi_rows, axis=0)


def _bn_batch_stats(yr, yi):
    """Per-batch partial sums for complex BN: [sum_r, sum_i, sum_rr, sum_ii, sum_ri, 0,0,0]."""
    c = yr.shape[0]

    def psum(v):
        return jnp.sum(jnp.sum(v, axis=2), axis=1, keepdims=True)      # (C, 1)

    return jnp.concatenate(
        [psum(yr), psum(yi), psum(yr * yr), psum(yi * yi), psum(yr * yi),
         jnp.zeros((c, 3), jnp.float32)], axis=1)                       # (C, 8)


# ---------------------------------------------------------------------------
# stage 1: depthwise cplx conv (real input) + pointwise cplx conv + BN1 partial stats
# ---------------------------------------------------------------------------
def dw_pw_stats_stage1(x, dw_r, dw_i, pw_r, pw_i, stride, padding,
                       vmem_limit=_DEFAULT_VMEM_LIMIT):
    N, C, H, W = x.shape
    K = dw_r.shape[-1]
    Hp, Wp = H + 2 * padding, W + 2 * padding
    H1 = (Hp - K) // stride + 1
    W1 = (Wp - K) // stride + 1
    Cm = pw_r.shape[1]

    def kernel(x_ref, dwr_ref, dwi_ref, pwr_ref, pwi_ref,
               or_ref, oi_ref, st_ref, *pads):
        xin = x_ref[...].astype(jnp.float32)                 # (C, H, W)
        if padding > 0:
            pad_ref = pads[0]
            # fully re-initialised every grid step -> safe if grid is split across cores
            pad_ref[...] = jnp.zeros_like(pad_ref)
            pad_ref[:, padding:padding + H, padding:padding + W] = xin
            xp = pad_ref[...]
        else:
            xp = xin
        wr = dwr_ref[...].astype(jnp.float32)                # (C, K, K)
        wi = dwi_ref[...].astype(jnp.float32)
        dr, di = _dw_taps_real(xp, wr, wi, K, H1, W1, stride)
        yr, yi = _pointwise_cplx(dr, di, pwr_ref, pwi_ref, C, Cm)
        or_ref[...] = yr.astype(or_ref.dtype)
        oi_ref[...] = yi.astype(oi_ref.dtype)
        st_ref[...] = _bn_batch_stats(yr, yi)

    scratch = [pltpu.VMEM((C, Hp, Wp), jnp.float32)] if padding > 0 else []
    smem_r = pl.BlockSpec(memory_space=pltpu.MemorySpace.SMEM)
    smem_i = pl.BlockSpec(memory_space=pltpu.MemorySpace.SMEM)

    return pl.pallas_call(
        kernel,
        out_shape=(jax.ShapeDtypeStruct((Cm, N, H1, W1), x.dtype),
                   jax.ShapeDtypeStruct((Cm, N, H1, W1), x.dtype),
                   jax.ShapeDtypeStruct((N, Cm, 8), jnp.float32)),
        grid=(N,),
        in_specs=[pl.BlockSpec((None, C, H, W), lambda n: (n, 0, 0, 0)),
                  pl.BlockSpec((C, K, K), lambda n: (0, 0, 0)),
                  pl.BlockSpec((C, K, K), lambda n: (0, 0, 0)),
                  smem_r, smem_i],
        out_specs=(pl.BlockSpec((Cm, None, H1, W1), lambda n: (0, n, 0, 0)),
                   pl.BlockSpec((Cm, None, H1, W1), lambda n: (0, n, 0, 0)),
                   pl.BlockSpec((None, Cm, 8), lambda n: (n, 0, 0))),
        scratch_shapes=scratch,
        compiler_params=pltpu.CompilerParams(
            dimension_semantics=("parallel",),
            vmem_limit_bytes=vmem_limit),
    )(x, dw_r, dw_i, pw_r, pw_i)


# ---------------------------------------------------------------------------
# stage 2: BN1 apply + adaptive modReLU + depthwise cplx conv + pointwise cplx conv
#          + BN2 partial stats  (zero padding re-applied AFTER the nonlinearity,
#          exactly as PyTorch does, via a padded VMEM scratch)
# ---------------------------------------------------------------------------
def bn_modrelu_dw_pw_stats_stage2(xr, xi, coef, dw_r, dw_i, pw_r, pw_i, padding,
                                  vmem_limit=_DEFAULT_VMEM_LIMIT):
    C, N, H1, W1 = xr.shape
    K = dw_r.shape[-1]
    Hp, Wp = H1 + 2 * padding, W1 + 2 * padding
    H2, W2 = Hp - K + 1, Wp - K + 1
    Cout = pw_r.shape[1]

    def kernel(xr_ref, xi_ref, prm_ref, dwr_ref, dwi_ref, pwr_ref, pwi_ref,
               or_ref, oi_ref, st_ref, *pads):
        a = xr_ref[...].astype(jnp.float32)                  # (C, H1, W1)
        b = xi_ref[...].astype(jnp.float32)
        prm = prm_ref[...].astype(jnp.float32)               # (C, 9, 1)
        # fold of centering + 2x2 whitening + 2x2 affine
        cr = a - prm[:, 0:1]
        ci = b - prm[:, 1:2]
        zr = cr * prm[:, 2:3] + ci * prm[:, 3:4] + prm[:, 6:7]
        zi = cr * prm[:, 4:5] + ci * prm[:, 5:6] + prm[:, 7:8]
        # modReLU: relu(|z| + t) * z / |z|, |z| clamped at 1e-5 (cplxmodule)
        sq = zr * zr + zi * zi
        inv = jax.lax.rsqrt(jnp.maximum(sq, 1e-10))
        scale = jnp.maximum(1.0 + prm[:, 8:9] * inv, 0.0)
        zr = zr * scale
        zi = zi * scale
        if padding > 0:
            pr_ref, pi_ref = pads
            pr_ref[...] = jnp.zeros_like(pr_ref)
            pi_ref[...] = jnp.zeros_like(pi_ref)
            pr_ref[:, padding:padding + H1, padding:padding + W1] = zr
            pi_ref[:, padding:padding + H1, padding:padding + W1] = zi
            zr = pr_ref[...]
            zi = pi_ref[...]
        wr = dwr_ref[...].astype(jnp.float32)
        wi = dwi_ref[...].astype(jnp.float32)
        dr, di = _dw_taps_cplx(zr, zi, wr, wi, K, H2, W2)
        yr, yi = _pointwise_cplx(dr, di, pwr_ref, pwi_ref, C, Cout)
        or_ref[...] = yr.astype(or_ref.dtype)
        oi_ref[...] = yi.astype(oi_ref.dtype)
        st_ref[...] = _bn_batch_stats(yr, yi)

    scratch = ([pltpu.VMEM((C, Hp, Wp), jnp.float32),
                pltpu.VMEM((C, Hp, Wp), jnp.float32)] if padding > 0 else [])
    smem_r = pl.BlockSpec(memory_space=pltpu.MemorySpace.SMEM)
    smem_i = pl.BlockSpec(memory_space=pltpu.MemorySpace.SMEM)

    return pl.pallas_call(
        kernel,
        out_shape=(jax.ShapeDtypeStruct((Cout, N, H2, W2), xr.dtype),
                   jax.ShapeDtypeStruct((Cout, N, H2, W2), xr.dtype),
                   jax.ShapeDtypeStruct((N, Cout, 8), jnp.float32)),
        grid=(N,),
        in_specs=[pl.BlockSpec((C, None, H1, W1), lambda n: (0, n, 0, 0)),
                  pl.BlockSpec((C, None, H1, W1), lambda n: (0, n, 0, 0)),
                  pl.BlockSpec((C, 9, 1), lambda n: (0, 0, 0)),
                  pl.BlockSpec((C, K, K), lambda n: (0, 0, 0)),
                  pl.BlockSpec((C, K, K), lambda n: (0, 0, 0)),
                  smem_r, smem_i],
        out_specs=(pl.BlockSpec((Cout, None, H2, W2), lambda n: (0, n, 0, 0)),
                   pl.BlockSpec((Cout, None, H2, W2), lambda n: (0, n, 0, 0)),
                   pl.BlockSpec((None, Cout, 8), lambda n: (n, 0, 0))),
        scratch_shapes=scratch,
        compiler_params=pltpu.CompilerParams(
            dimension_semantics=("parallel",),
            vmem_limit_bytes=vmem_limit),
    )(xr, xi, coef, dw_r, dw_i, pw_r, pw_i)


# ---------------------------------------------------------------------------
# stage 3: BN2 apply + TakeNorm(|z|), lane-dense, writing the NCHW layout directly
# ---------------------------------------------------------------------------
def bn_abs_stage3(xr_flat, xi_flat, coef, N, HW, out_dtype,
                  vmem_limit=_DEFAULT_VMEM_LIMIT):
    Cout = xr_flat.shape[0]            # xr_flat/xi_flat: (Cout, N*HW) channel-major

    def kernel(xr_ref, xi_ref, prm_ref, o_ref):
        a = xr_ref[...].astype(jnp.float32)
        b = xi_ref[...].astype(jnp.float32)
        prm = prm_ref[...].astype(jnp.float32)               # (Cout, 9)
        cr = a - prm[:, 0:1]
        ci = b - prm[:, 1:2]
        zr = cr * prm[:, 2:3] + ci * prm[:, 3:4] + prm[:, 6:7]
        zi = cr * prm[:, 4:5] + ci * prm[:, 5:6] + prm[:, 7:8]
        sq = zr * zr + zi * zi
        # |z| = sq * rsqrt(sq): keeps the transcendental on the EUP slot
        o_ref[...] = (sq * jax.lax.rsqrt(jnp.maximum(sq, 1e-24))).astype(o_ref.dtype)

    cp = pltpu.CompilerParams(dimension_semantics=("parallel",),
                              vmem_limit_bytes=vmem_limit)
    if HW % 128 == 0:
        out = pl.pallas_call(
            kernel,
            out_shape=jax.ShapeDtypeStruct((N, Cout, HW), out_dtype),
            grid=(N,),
            in_specs=[pl.BlockSpec((Cout, HW), lambda n: (0, n)),
                      pl.BlockSpec((Cout, HW), lambda n: (0, n)),
                      pl.BlockSpec((Cout, 9), lambda n: (0, 0))],
            out_specs=pl.BlockSpec((None, Cout, HW), lambda n: (n, 0, 0)),
            compiler_params=cp,
        )(xr_flat, xi_flat, coef)
        return out, True
    # Fallback (HW not a lane multiple): one full-array block, channel-major output;
    # the wrapper performs the final transpose with XLA.
    # TODO(synk): tile the lane axis here for very large N*HW.
    out = pl.pallas_call(
        kernel,
        out_shape=jax.ShapeDtypeStruct((Cout, N * HW), out_dtype),
        grid=(1,),
        in_specs=[pl.BlockSpec((Cout, N * HW), lambda i: (0, 0)),
                  pl.BlockSpec((Cout, N * HW), lambda i: (0, 0)),
                  pl.BlockSpec((Cout, 9), lambda i: (0, 0))],
        out_specs=pl.BlockSpec((Cout, N * HW), lambda i: (0, 0)),
        compiler_params=cp,
    )(xr_flat, xi_flat, coef)
    return out, False


# ---------------------------------------------------------------------------
# fold centering + 2x2 whitening + 2x2 affine (+ modReLU threshold) into one
# per-channel affine map.  rows: [mr, mi, a_rr, a_ri, a_ir, a_ii, br, bi, thr]
# ---------------------------------------------------------------------------
def cplx_bn_coeffs(stats, count, bn_weight, bn_bias, thr=0.0, eps=1e-5):
    cnt = jnp.asarray(count, jnp.float32)
    mr = stats[:, 0] / cnt
    mi = stats[:, 1] / cnt
    vrr = stats[:, 2] / cnt - mr * mr + eps
    vii = stats[:, 3] / cnt - mi * mi + eps
    vri = stats[:, 4] / cnt - mr * mi
    sqrdet = jnp.sqrt(vrr * vii - vri * vri)
    denom = sqrdet * jnp.sqrt(vrr + 2.0 * sqrdet + vii)
    p = (vii + sqrdet) / denom
    q = -vri / denom
    s = (vrr + sqrdet) / denom
    w00, w01 = bn_weight[0, 0], bn_weight[0, 1]
    w10, w11 = bn_weight[1, 0], bn_weight[1, 1]
    a_rr = w00 * p + w01 * q
    a_ri = w00 * q + w01 * s
    a_ir = w10 * p + w11 * q
    a_ii = w10 * q + w11 * s
    thr_col = jnp.broadcast_to(jnp.asarray(thr, jnp.float32), mr.shape)
    coef = jnp.stack([mr, mi, a_rr, a_ri, a_ir, a_ii,
                      bn_bias[0], bn_bias[1], thr_col], axis=1)
    return coef.astype(jnp.float32)                          # (C, 9)


# ---------------------------------------------------------------------------
# full CplxSepConv forward (Pallas path)
# ---------------------------------------------------------------------------
def cplx_sep_conv_forward(x_nchw, params, kernel_size, stride, padding,
                          vmem_limit=_DEFAULT_VMEM_LIMIT):
    N, C, H, W = x_nchw.shape
    K = kernel_size

    # stage 1: Real2Complex (imag==0) + depthwise#1 + pointwise#1 + BN1 partial stats
    yr1, yi1, st1 = dw_pw_stats_stage1(
        x_nchw, params["dw1_r"], params["dw1_i"],
        params["pw1_r"], params["pw1_i"], stride, padding, vmem_limit)
    _, _, H1, W1 = yr1.shape
    coef1 = cplx_bn_coeffs(st1.sum(axis=0), N * H1 * W1,
                           params["bn1_w"], params["bn1_b"],
                           thr=params["modrelu_thr"])[:, :, None]        # (C, 9, 1)

    # stage 2: BN1 + modReLU + depthwise#2 + pointwise#2 + BN2 partial stats
    yr2, yi2, st2 = bn_modrelu_dw_pw_stats_stage2(
        yr1, yi1, coef1, params["dw2_r"], params["dw2_i"],
        params["pw2_r"], params["pw2_i"], padding, vmem_limit)
    Cout, _, H2, W2 = yr2.shape
    coef2 = cplx_bn_coeffs(st2.sum(axis=0), N * H2 * W2,
                           params["bn2_w"], params["bn2_b"], thr=0.0)    # (Cout, 9)

    # stage 3: BN2 apply + |z|, lane-dense (wrapper reshapes are contiguous -> free)
    out, nchw = bn_abs_stage3(yr2.reshape(Cout, N * H2 * W2),
                              yi2.reshape(Cout, N * H2 * W2),
                              coef2, N, H2 * W2, x_nchw.dtype, vmem_limit)
    if nchw:
        return out.reshape(N, Cout, H2, W2)
    return out.reshape(Cout, N, H2, W2).transpose(1, 0, 2, 3)


# ---------------------------------------------------------------------------
# pure-JAX reference (same math, XLA conv) for a sanity check
# ---------------------------------------------------------------------------
def _ref_dw_conv(xr, xi, wr, wi, stride, padding):
    C = xr.shape[-1]
    K = wr.shape[-1]

    def conv(x, w):                       # w: (C, K, K)
        k = jnp.transpose(w, (1, 2, 0)).reshape(K, K, 1, C)
        return jax.lax.conv_general_dilated(
            x, k, window_strides=(stride, stride),
            padding=[(padding, padding), (padding, padding)],
            dimension_numbers=("NHWC", "HWIO", "NHWC"),
            feature_group_count=C)

    return conv(xr, wr) - conv(xi, wi), conv(xr, wi) + conv(xi, wr)


def _ref_bn(xr, xi, w, b, eps=1e-5):
    mr, mi = xr.mean(0), xi.mean(0)
    cr, ci = xr - mr, xi - mi
    vrr = (cr * cr).mean(0) + eps
    vii = (ci * ci).mean(0) + eps
    vri = (cr * ci).mean(0)
    sqrdet = jnp.sqrt(vrr * vii - vri * vri)
    denom = sqrdet * jnp.sqrt(vrr + 2.0 * sqrdet + vii)
    p, q, s = (vii + sqrdet) / denom, -vri / denom, (vrr + sqrdet) / denom
    yr, yi = cr * p + ci * q, cr * q + ci * s
    return yr * w[0, 0] + yi * w[0, 1] + b[0], yr * w[1, 0] + yi * w[1, 1] + b[1]


def _ref_forward(x_nchw, params, stride, padding):
    x = jnp.transpose(x_nchw, (0, 2, 3, 1))
    xr, xi = x, jnp.zeros_like(x)
    xr, xi = _ref_dw_conv(xr, xi, params["dw1_r"], params["dw1_i"], stride, padding)
    N, H1, W1, C = xr.shape
    xr, xi = xr.reshape(-1, C), xi.reshape(-1, C)
    xr, xi = (xr @ params["pw1_r"] - xi @ params["pw1_i"],
              xr @ params["pw1_i"] + xi @ params["pw1_r"])
    xr, xi = _ref_bn(xr, xi, params["bn1_w"], params["bn1_b"])
    mod = jnp.maximum(jnp.sqrt(xr * xr + xi * xi), 1e-5)
    scale = jnp.maximum(mod + params["modrelu_thr"], 0.0) / mod
    xr, xi = xr * scale, xi * scale
    xr, xi = xr.reshape(N, H1, W1, C), xi.reshape(N, H1, W1, C)
    xr, xi = _ref_dw_conv(xr, xi, params["dw2_r"], params["dw2_i"], 1, padding)
    N, H2, W2, C = xr.shape
    xr, xi = xr.reshape(-1, C), xi.reshape(-1, C)
    xr, xi = (xr @ params["pw2_r"] - xi @ params["pw2_i"],
              xr @ params["pw2_i"] + xi @ params["pw2_r"])
    xr, xi = _ref_bn(xr, xi, params["bn2_w"], params["bn2_b"])
    out = jnp.sqrt(xr * xr + xi * xi).reshape(N, H2, W2, -1)
    return jnp.transpose(out, (0, 3, 1, 2))


if __name__ == "__main__":
    C_in, C_out, K, STRIDE, PAD = 4, 8, 3, 1, 1
    N, H, W = 2, 16, 16

    key = jax.random.PRNGKey(0)
    ks = jax.random.split(key, 16)

    def nrm(k, shape, s=0.1):
        return s * jax.random.normal(k, shape, jnp.float32)

    eye_in = (jnp.eye(2, dtype=jnp.float32)[:, :, None] *
              jnp.ones((1, 1, C_in), jnp.float32)) / jnp.sqrt(2.0)
    eye_out = (jnp.eye(2, dtype=jnp.float32)[:, :, None] *
               jnp.ones((1, 1, C_out), jnp.float32)) / jnp.sqrt(2.0)

    params = dict(
        dw1_r=nrm(ks[0], (C_in, K, K)), dw1_i=nrm(ks[1], (C_in, K, K)),
        pw1_r=nrm(ks[2], (C_in, C_in), 0.3), pw1_i=nrm(ks[3], (C_in, C_in), 0.3),
        bn1_w=eye_in + nrm(ks[4], (2, 2, C_in), 0.05),
        bn1_b=nrm(ks[5], (2, C_in), 0.05),
        modrelu_thr=nrm(ks[6], (), 0.05),          # CplxAdaptiveModReLU() -> scalar
        dw2_r=nrm(ks[7], (C_in, K, K)), dw2_i=nrm(ks[8], (C_in, K, K)),
        pw2_r=nrm(ks[9], (C_in, C_out), 0.3), pw2_i=nrm(ks[10], (C_in, C_out), 0.3),
        bn2_w=eye_out + nrm(ks[11], (2, 2, C_out), 0.05),
        bn2_b=nrm(ks[12], (2, C_out), 0.05),
    )

    x = jax.random.normal(ks[13], (N, C_in, H, W), jnp.float32)

    fwd = jax.jit(lambda xx, pp: cplx_sep_conv_forward(xx, pp, K, STRIDE, PAD))
    out = jax.block_until_ready(fwd(x, params))

    ref = jax.block_until_ready(_ref_forward(x, params, STRIDE, PAD))
    assert out.shape == (N, C_out, H, W), out.shape
    assert jnp.allclose(out, ref, rtol=2e-3, atol=2e-3), \
        float(jnp.max(jnp.abs(out - ref)))

    print("KERNEL_OK")
</pallas_src>

<mosaic_0001>
module attributes {stable_mosaic.version = 11 : i64} {
  func.func @kernel(%arg0: i32, %arg1: memref<1x4x16x16xf32, #tpu.memory_space<vmem>>, %arg2: memref<4x3x3xf32, #tpu.memory_space<vmem>>, %arg3: memref<4x3x3xf32, #tpu.memory_space<vmem>>, %arg4: memref<4x4xf32, #tpu.memory_space<smem>>, %arg5: memref<4x4xf32, #tpu.memory_space<smem>>, %arg6: memref<4x1x16x16xf32, #tpu.memory_space<vmem>>, %arg7: memref<4x1x16x16xf32, #tpu.memory_space<vmem>>, %arg8: memref<1x4x8xf32, #tpu.memory_space<vmem>>, %arg9: memref<4x18x18xf32, #tpu.memory_space<vmem>>) attributes {dimension_semantics = [#tpu.dimension_semantics<parallel>], iteration_bounds = array<i64: 2>, scalar_prefetch = 0 : i64, scratch_operands = 1 : i64, tpu.core_type = #tpu.core_type<tc>, window_params = [{transform_indices = @transform_0, window_bounds = array<i64: 1, 4, 16, 16>}, {pipeline_mode = #tpu.pipeline_mode<synchronous>, transform_indices = @transform_1, window_bounds = array<i64: 4, 3, 3>}, {pipeline_mode = #tpu.pipeline_mode<synchronous>, transform_indices = @transform_2, window_bounds = array<i64: 4, 3, 3>}, {transform_indices = @transform_3, window_bounds = array<i64: 4, 4>}, {transform_indices = @transform_4, window_bounds = array<i64: 4, 4>}, {transform_indices = @transform_5, window_bounds = array<i64: 4, 1, 16, 16>}, {transform_indices = @transform_6, window_bounds = array<i64: 4, 1, 16, 16>}, {transform_indices = @transform_7, window_bounds = array<i64: 1, 4, 8>}]} {
    %c0 = arith.constant 0 : index
    %c0_0 = arith.constant 0 : index
    %c0_1 = arith.constant 0 : index
    %c0_2 = arith.constant 0 : index
    %0 = vector.load %arg1[%c0, %c0_0, %c0_1, %c0_2] : memref<1x4x16x16xf32, #tpu.memory_space<vmem>>, vector<1x4x16x16xf32>
    %1 = vector.shape_cast %0 : vector<1x4x16x16xf32> to vector<4x16x16xf32>
    %cst = arith.constant 0.000000e+00 : f32
    %2 = vector.broadcast %cst : f32 to vector<4x18x18xf32>
    %c0_3 = arith.constant 0 : index
    %c0_4 = arith.constant 0 : index
    %c0_5 = arith.constant 0 : index
    %3 = vector.load %arg9[%c0_3, %c0_4, %c0_5] : memref<4x18x18xf32, #tpu.memory_space<vmem>>, vector<4x18x18xf32>
    tpu.vector_store %arg9[%c0_3, %c0_4, %c0_5], %2 {strides = array<i32>} : memref<4x18x18xf32, #tpu.memory_space<vmem>>, vector<4x18x18xf32>,
    %c0_6 = arith.constant 0 : index
    %c1 = arith.constant 1 : index
    %c1_7 = arith.constant 1 : index
    %4 = vector.load %arg9[%c0_6, %c1, %c1_7] : memref<4x18x18xf32, #tpu.memory_space<vmem>>, vector<4x16x16xf32>
    tpu.vector_store %arg9[%c0_6, %c1, %c1_7], %1 {strides = array<i32>} : memref<4x18x18xf32, #tpu.memory_space<vmem>>, vector<4x16x16xf32>,
    %c0_8 = arith.constant 0 : index
    %c0_9 = arith.constant 0 : index
    %c0_10 = arith.constant 0 : index
    %5 = vector.load %arg9[%c0_8, %c0_9, %c0_10] : memref<4x18x18xf32, #tpu.memory_space<vmem>>, vector<4x18x18xf32>
    %c0_11 = arith.constant 0 : index
    %c0_12 = arith.constant 0 : index
    %c0_13 = arith.constant 0 : index
    %6 = vector.load %arg2[%c0_11, %c0_12, %c0_13] : memref<4x3x3xf32, #tpu.memory_space<vmem>>, vector<4x3x3xf32>
    %c0_14 = arith.constant 0 : index
    %c0_15 = arith.constant 0 : index
    %c0_16 = arith.constant 0 : index
    %7 = vector.load %arg3[%c0_14, %c0_15, %c0_16] : memref<4x3x3xf32, #tpu.memory_space<vmem>>, vector<4x3x3xf32>
    %cst_17 = arith.constant 0.000000e+00 : f32
    %8 = vector.broadcast %cst_17 : f32 to vector<4x16x16xf32>
    %cst_18 = arith.constant 0.000000e+00 : f32
    %9 = vector.broadcast %cst_18 : f32 to vector<4x16x16xf32>
    %10 = vector.extract_strided_slice %5 {offsets = [0, 0, 0], sizes = [4, 16, 16], strides = [1, 1, 1]} : vector<4x18x18xf32> to vector<4x16x16xf32>
    %11 = vector.extract_strided_slice %6 {offsets = [0, 0, 0], sizes = [4, 1, 1], strides = [1, 1, 1]} : vector<4x3x3xf32> to vector<4x1x1xf32>
    %12 = vector.broadcast %11 : vector<4x1x1xf32> to vector<4x16x16xf32>
    %13 = arith.mulf %10, %12 : vector<4x16x16xf32>
    %14 = arith.addf %8, %13 : vector<4x16x16xf32>
    %15 = vector.extract_strided_slice %7 {offsets = [0, 0, 0], sizes = [4, 1, 1], strides = [1, 1, 1]} : vector<4x3x3xf32> to vector<4x1x1xf32>
    %16 = vector.broadcast %15 : vector<4x1x1xf32> to vector<4x16x16xf32>
    %17 = arith.mulf %10, %16 : vector<4x16x16xf32>
    %18 = arith.addf %9, %17 : vector<4x16x16xf32>
    %19 = vector.extract_strided_slice %5 {offsets = [0, 0, 1], sizes = [4, 16, 16], strides = [1, 1, 1]} : vector<4x18x18xf32> to vector<4x16x16xf32>
    %20 = vector.extract_strided_slice %6 {offsets = [0, 0, 1], sizes = [4, 1, 1], strides = [1, 1, 1]} : vector<4x3x3xf32> to vector<4x1x1xf32>
    %21 = vector.broadcast %20 : vector<4x1x1xf32> to vector<4x16x16xf32>
    %22 = arith.mulf %19, %21 : vector<4x16x16xf32>
    %23 = arith.addf %14, %22 : vector<4x16x16xf32>
    %24 = vector.extract_strided_slice %7 {offsets = [0, 0, 1], sizes = [4, 1, 1], strides = [1, 1, 1]} : vector<4x3x3xf32> to vector<4x1x1xf32>
    %25 = vector.broadcast %24 : vector<4x1x1xf32> to vector<4x16x16xf32>
    %26 = arith.mulf %19, %25 : vector<4x16x16xf32>
    %27 = arith.addf %18, %26 : vector<4x16x16xf32>
    %28 = vector.extract_strided_slice %5 {offsets = [0, 0, 2], sizes = [4, 16, 16], strides = [1, 1, 1]} : vector<4x18x18xf32> to vector<4x16x16xf32>
    %29 = vector.extract_strided_slice %6 {offsets = [0, 0, 2], sizes = [4, 1, 1], strides = [1, 1, 1]} : vector<4x3x3xf32> to vector<4x1x1xf32>
    %30 = vector.broadcast %29 : vector<4x1x1xf32> to vector<4x16x16xf32>
    %31 = arith.mulf %28, %30 : vector<4x16x16xf32>
    %32 = arith.addf %23, %31 : vector<4x16x16xf32>
    %33 = vector.extract_strided_slice %7 {offsets = [0, 0, 2], sizes = [4, 1, 1], strides = [1, 1, 1]} : vector<4x3x3xf32> to vector<4x1x1xf32>
    %34 = vector.broadcast %33 : vector<4x1x1xf32> to vector<4x16x16xf32>
    %35 = arith.mulf %28, %34 : vector<4x16x16xf32>
    %36 = arith.addf %27, %35 : vector<4x16x16xf32>
    %37 = vector.extract_strided_slice %5 {offsets = [0, 1, 0], sizes = [4, 16, 16], strides = [1, 1, 1]} : vector<4x18x18xf32> to vector<4x16x16xf32>
    %38 = vector.extract_strided_slice %6 {offsets = [0, 1, 0], sizes = [4, 1, 1], strides = [1, 1, 1]} : vector<4x3x3xf32> to vector<4x1x1xf32>
    %39 = vector.broadcast %38 : vector<4x1x1xf32> to vector<4x16x16xf32>
    %40 = arith.mulf %37, %39 : vector<4x16x16xf32>
    %41 = arith.addf %32, %40 : vector<4x16x16xf32>
    %42 = vector.extract_strided_slice %7 {offsets = [0, 1, 0], sizes = [4, 1, 1], strides = [1, 1, 1]} : vector<4x3x3xf32> to vector<4x1x1xf32>
    %43 = vector.broadcast %42 : vector<4x1x1xf32> to vector<4x16x16xf32>
    %44 = arith.mulf %37, %43 : vector<4x16x16xf32>
    %45 = arith.addf %36, %44 : vector<4x16x16xf32>
    %46 = vector.extract_strided_slice %5 {offsets = [0, 1, 1], sizes = [4, 16, 16], strides = [1, 1, 1]} : vector<4x18x18xf32> to vector<4x16x16xf32>
    %47 = vector.extract_strided_slice %6 {offsets = [0, 1, 1], sizes = [4, 1, 1], strides = [1, 1, 1]} : vector<4x3x3xf32> to vector<4x1x1xf32>
    %48 = vector.broadcast %47 : vector<4x1x1xf32> to vector<4x16x16xf32>
    %49 = arith.mulf %46, %48 : vector<4x16x16xf32>
    %50 = arith.addf %41, %49 : vector<4x16x16xf32>
    %51 = vector.extract_strided_slice %7 {offsets = [0, 1, 1], sizes = [4, 1, 1], strides = [1, 1, 1]} : vector<4x3x3xf32> to vector<4x1x1xf32>
    %52 = vector.broadcast %51 : vector<4x1x1xf32> to vector<4x16x16xf32>
    %53 = arith.mulf %46, %52 : vector<4x16x16xf32>
    %54 = arith.addf %45, %53 : vector<4x16x16xf32>
    %55 = vector.extract_strided_slice %5 {offsets = [0, 1, 2], sizes = [4, 16, 16], strides = [1, 1, 1]} : vector<4x18x18xf32> to vector<4x16x16xf32>
    %56 = vector.extract_strided_slice %6 {offsets = [0, 1, 2], sizes = [4, 1, 1], strides = [1, 1, 1]} : vector<4x3x3xf32> to vector<4x1x1xf32>
    %57 = vector.broadcast %56 : vector<4x1x1xf32> to vector<4x16x16xf32>
    %58 = arith.mulf %55, %57 : vector<4x16x16xf32>
    %59 = arith.addf %50, %58 : vector<4x16x16xf32>
    %60 = vector.extract_strided_slice %7 {offsets = [0, 1, 2], sizes = [4, 1, 1], strides = [1, 1, 1]} : vector<4x3x3xf32> to vector<4x1x1xf32>
    %61 = vector.broadcast %60 : vector<4x1x1xf32> to vector<4x16x16xf32>
    %62 = arith.mulf %55, %61 : vector<4x16x16xf32>
    %63 = arith.addf %54, %62 : vector<4x16x16xf32>
    %64 = vector.extract_strided_slice %5 {offsets = [0, 2, 0], sizes = [4, 16, 16], strides = [1, 1, 1]} : vector<4x18x18xf32> to vector<4x16x16xf32>
    %65 = vector.extract_strided_slice %6 {offsets = [0, 2, 0], sizes = [4, 1, 1], strides = [1, 1, 1]} : vector<4x3x3xf32> to vector<4x1x1xf32>
    %66 = vector.broadcast %65 : vector<4x1x1xf32> to vector<4x16x16xf32>
    %67 = arith.mulf %64, %66 : vector<4x16x16xf32>
    %68 = arith.addf %59, %67 : vector<4x16x16xf32>
    %69 = vector.extract_strided_slice %7 {offsets = [0, 2, 0], sizes = [4, 1, 1], strides = [1, 1, 1]} : vector<4x3x3xf32> to vector<4x1x1xf32>
    %70 = vector.broadcast %69 : vector<4x1x1xf32> to vector<4x16x16xf32>
    %71 = arith.mulf %64, %70 : vector<4x16x16xf32>
    %72 = arith.addf %63, %71 : vector<4x16x16xf32>
    %73 = vector.extract_strided_slice %5 {offsets = [0, 2, 1], sizes = [4, 16, 16], strides = [1, 1, 1]} : vector<4x18x18xf32> to vector<4x16x16xf32>
    %74 = vector.extract_strided_slice %6 {offsets = [0, 2, 1], sizes = [4, 1, 1], strides = [1, 1, 1]} : vector<4x3x3xf32> to vector<4x1x1xf32>
    %75 = vector.broadcast %74 : vector<4x1x1xf32> to vector<4x16x16xf32>
    %76 = arith.mulf %73, %75 : vector<4x16x16xf32>
    %77 = arith.addf %68, %76 : vector<4x16x16xf32>
    %78 = vector.extract_strided_slice %7 {offsets = [0, 2, 1], sizes = [4, 1, 1], strides = [1, 1, 1]} : vector<4x3x3xf32> to vector<4x1x1xf32>
    %79 = vector.broadcast %78 : vector<4x1x1xf32> to vector<4x16x16xf32>
    %80 = arith.mulf %73, %79 : vector<4x16x16xf32>
    %81 = arith.addf %72, %80 : vector<4x16x16xf32>
    %82 = vector.extract_strided_slice %5 {offsets = [0, 2, 2], sizes = [4, 16, 16], strides = [1, 1, 1]} : vector<4x18x18xf32> to vector<4x16x16xf32>
    %83 = vector.extract_strided_slice %6 {offsets = [0, 2, 2], sizes = [4, 1, 1], strides = [1, 1, 1]} : vector<4x3x3xf32> to vector<4x1x1xf32>
    %84 = vector.broadcast %83 : vector<4x1x1xf32> to vector<4x16x16xf32>
    %85 = arith.mulf %82, %84 : vector<4x16x16xf32>
    %86 = arith.addf %77, %85 : vector<4x16x16xf32>
    %87 = vector.extract_strided_slice %7 {offsets = [0, 2, 2], sizes = [4, 1, 1], strides = [1, 1, 1]} : vector<4x3x3xf32> to vector<4x1x1xf32>
    %88 = vector.broadcast %87 : vector<4x1x1xf32> to vector<4x16x16xf32>
    %89 = arith.mulf %82, %88 : vector<4x16x16xf32>
    %90 = arith.addf %81, %89 : vector<4x16x16xf32>
    %cst_19 = arith.constant 0.000000e+00 : f32
    %91 = vector.broadcast %cst_19 : f32 to vector<16x16xf32>
    %cst_20 = arith.constant 0.000000e+00 : f32
    %92 = vector.broadcast %cst_20 : f32 to vector<16x16xf32>
    %c0_21 = arith.constant 0 : index
    %c0_22 = arith.constant 0 : index
    %93 = memref.load %arg4[%c0_21, %c0_22] : memref<4x4xf32, #tpu.memory_space<smem>>
    %c0_23 = arith.constant 0 : index
    %c0_24 = arith.constant 0 : index
    %94 = memref.load %arg5[%c0_23, %c0_24] : memref<4x4xf32, #tpu.memory_space<smem>>
    %95 = vector.extract_strided_slice %86 {offsets = [0, 0, 0], sizes = [1, 16, 16], strides = [1, 1, 1]} : vector<4x16x16xf32> to vector<1x16x16xf32>
    %96 = vector.shape_cast %95 : vector<1x16x16xf32> to vector<16x16xf32>
    %97 = vector.extract_strided_slice %90 {offsets = [0, 0, 0], sizes = [1, 16, 16], strides = [1, 1, 1]} : vector<4x16x16xf32> to vector<1x16x16xf32>
    %98 = vector.shape_cast %97 : vector<1x16x16xf32> to vector<16x16xf32>
    %99 = vector.broadcast %93 : f32 to vector<16x16xf32>
    %100 = arith.mulf %96, %99 : vector<16x16xf32>
    %101 = arith.addf %91, %100 : vector<16x16xf32>
    %102 = vector.broadcast %94 : f32 to vector<16x16xf32>
    %103 = arith.mulf %98, %102 : vector<16x16xf32>
    %104 = arith.subf %101, %103 : vector<16x16xf32>
    %105 = vector.broadcast %94 : f32 to vector<16x16xf32>
    %106 = arith.mulf %96, %105 : vector<16x16xf32>
    %107 = arith.addf %92, %106 : vector<16x16xf32>
    %108 = vector.broadcast %93 : f32 to vector<16x16xf32>
    %109 = arith.mulf %98, %108 : vector<16x16xf32>
    %110 = arith.addf %107, %109 : vector<16x16xf32>
    %c1_25 = arith.constant 1 : index
    %c0_26 = arith.constant 0 : index
    %111 = memref.load %arg4[%c1_25, %c0_26] : memref<4x4xf32, #tpu.memory_space<smem>>
    %c1_27 = arith.constant 1 : index
    %c0_28 = arith.constant 0 : index
    %112 = memref.load %arg5[%c1_27, %c0_28] : memref<4x4xf32, #tpu.memory_space<smem>>
    %113 = vector.extract_strided_slice %86 {offsets = [1, 0, 0], sizes = [1, 16, 16], strides = [1, 1, 1]} : vector<4x16x16xf32> to vector<1x16x16xf32>
    %114 = vector.shape_cast %113 : vector<1x16x16xf32> to vector<16x16xf32>
    %115 = vector.extract_strided_slice %90 {offsets = [1, 0, 0], sizes = [1, 16, 16], strides = [1, 1, 1]} : vector<4x16x16xf32> to vector<1x16x16xf32>
    %116 = vector.shape_cast %115 : vector<1x16x16xf32> to vector<16x16xf32>
    %117 = vector.broadcast %111 : f32 to vector<16x16xf32>
    %118 = arith.mulf %114, %117 : vector<16x16xf32>
    %119 = arith.addf %104, %118 : vector<16x16xf32>
    %120 = vector.broadcast %112 : f32 to vector<16x16xf32>
    %121 = arith.mulf %116, %120 : vector<16x16xf32>
    %122 = arith.subf %119, %121 : vector<16x16xf32>
    %123 = vector.broadcast %112 : f32 to vector<16x16xf32>
    %124 = arith.mulf %114, %123 : vector<16x16xf32>
    %125 = arith.addf %110, %124 : vector<16x16xf32>
    %126 = vector.broadcast %111 : f32 to vector<16x16xf32>
    %127 = arith.mulf %116, %126 : vector<16x16xf32>
    %128 = arith.addf %125, %127 : vector<16x16xf32>
    %c2 = arith.constant 2 : index
    %c0_29 = arith.constant 0 : index
    %129 = memref.load %arg4[%c2, %c0_29] : memref<4x4xf32, #tpu.memory_space<smem>>
    %c2_30 = arith.constant 2 : index
    %c0_31 = arith.constant 0 : index
    %130 = memref.load %arg5[%c2_30, %c0_31] : memref<4x4xf32, #tpu.memory_space<smem>>
    %131 = vector.extract_strided_slice %86 {offsets = [2, 0, 0], sizes = [1, 16, 16], strides = [1, 1, 1]} : vector<4x16x16xf32> to vector<1x16x16xf32>
    %132 = vector.shape_cast %131 : vector<1x16x16xf32> to vector<16x16xf32>
    %133 = vector.extract_strided_slice %90 {offsets = [2, 0, 0], sizes = [1, 16, 16], strides = [1, 1, 1]} : vector<4x16x16xf32> to vector<1x16x16xf32>
    %134 = vector.shape_cast %133 : vector<1x16x16xf32> to vector<16x16xf32>
    %135 = vector.broadcast %129 : f32 to vector<16x16xf32>
    %136 = arith.mulf %132, %135 : vector<16x16xf32>
    %137 = arith.addf %122, %136 : vector<16x16xf32>
    %138 = vector.broadcast %130 : f32 to vector<16x16xf32>
    %139 = arith.mulf %134, %138 : vector<16x16xf32>
    %140 = arith.subf %137, %139 : vector<16x16xf32>
    %141 = vector.broadcast %130 : f32 to vector<16x16xf32>
    %142 = arith.mulf %132, %141 : vector<16x16xf32>
    %143 = arith.addf %128, %142 : vector<16x16xf32>
    %144 = vector.broadcast %129 : f32 to vector<16x16xf32>
    %145 = arith.mulf %134, %144 : vector<16x16xf32>
    %146 = arith.addf %143, %145 : vector<16x16xf32>
    %c3 = arith.constant 3 : index
    %c0_32 = arith.constant 0 : index
    %147 = memref.load %arg4[%c3, %c0_32] : memref<4x4xf32, #tpu.memory_space<smem>>
    %c3_33 = arith.constant 3 : index
    %c0_34 = arith.constant 0 : index
    %148 = memref.load %arg5[%c3_33, %c0_34] : memref<4x4xf32, #tpu.memory_space<smem>>
    %149 = vector.extract_strided_slice %86 {offsets = [3, 0, 0], sizes = [1, 16, 16], strides = [1, 1, 1]} : vector<4x16x16xf32> to vector<1x16x16xf32>
    %150 = vector.shape_cast %149 : vector<1x16x16xf32> to vector<16x16xf32>
    %151 = vector.extract_strided_slice %90 {offsets = [3, 0, 0], sizes = [1, 16, 16], strides = [1, 1, 1]} : vector<4x16x16xf32> to vector<1x16x16xf32>
    %152 = vector.shape_cast %151 : vector<1x16x16xf32> to vector<16x16xf32>
    %153 = vector.broadcast %147 : f32 to vector<16x16xf32>
    %154 = arith.mulf %150, %153 : vector<16x16xf32>
    %155 = arith.addf %140, %154 : vector<16x16xf32>
    %156 = vector.broadcast %148 : f32 to vector<16x16xf32>
    %157 = arith.mulf %152, %156 : vector<16x16xf32>
    %158 = arith.subf %155, %157 : vector<16x16xf32>
    %159 = vector.broadcast %148 : f32 to vector<16x16xf32>
    %160 = arith.mulf %150, %159 : vector<16x16xf32>
    %161 = arith.addf %146, %160 : vector<16x16xf32>
    %162 = vector.broadcast %147 : f32 to vector<16x16xf32>
    %163 = arith.mulf %152, %162 : vector<16x16xf32>
    %164 = arith.addf %161, %163 : vector<16x16xf32>
    %cst_35 = arith.constant 0.000000e+00 : f32
    %165 = vector.broadcast %cst_35 : f32 to vector<16x16xf32>
    %cst_36 = arith.constant 0.000000e+00 : f32
    %166 = vector.broadcast %cst_36 : f32 to vector<16x16xf32>
    %c0_37 = arith.constant 0 : index
    %c1_38 = arith.constant 1 : index
    %167 = memref.load %arg4[%c0_37, %c1_38] : memref<4x4xf32, #tpu.memory_space<smem>>
    %c0_39 = arith.constant 0 : index
    %c1_40 = arith.constant 1 : index
    %168 = memref.load %arg5[%c0_39, %c1_40] : memref<4x4xf32, #tpu.memory_space<smem>>
    %169 = vector.extract_strided_slice %86 {offsets = [0, 0, 0], sizes = [1, 16, 16], strides = [1, 1, 1]} : vector<4x16x16xf32> to vector<1x16x16xf32>
    %170 = vector.shape_cast %169 : vector<1x16x16xf32> to vector<16x16xf32>
    %171 = vector.extract_strided_slice %90 {offsets = [0, 0, 0], sizes = [1, 16, 16], strides = [1, 1, 1]} : vector<4x16x16xf32> to vector<1x16x16xf32>
    %172 = vector.shape_cast %171 : vector<1x16x16xf32> to vector<16x16xf32>
    %173 = vector.broadcast %167 : f32 to vector<16x16xf32>
    %174 = arith.mulf %170, %173 : vector<16x16xf32>
    %175 = arith.addf %165, %174 : vector<16x16xf32>
    %176 = vector.broadcast %168 : f32 to vector<16x16xf32>
    %177 = arith.mulf %172, %176 : vector<16x16xf32>
    %178 = arith.subf %175, %177 : vector<16x16xf32>
    %179 = vector.broadcast %168 : f32 to vector<16x16xf32>
    %180 = arith.mulf %170, %179 : vector<16x16xf32>
    %181 = arith.addf %166, %180 : vector<16x16xf32>
    %182 = vector.broadcast %167 : f32 to vector<16x16xf32>
    %183 = arith.mulf %172, %182 : vector<16x16xf32>
    %184 = arith.addf %181, %183 : vector<16x16xf32>
    %c1_41 = arith.constant 1 : index
    %c1_42 = arith.constant 1 : index
    %185 = memref.load %arg4[%c1_41, %c1_42] : memref<4x4xf32, #tpu.memory_space<smem>>
    %c1_43 = arith.constant 1 : index
    %c1_44 = arith.constant 1 : index
    %186 = memref.load %arg5[%c1_43, %c1_44] : memref<4x4xf32, #tpu.memory_space<smem>>
    %187 = vector.extract_strided_slice %86 {offsets = [1, 0, 0], sizes = [1, 16, 16], strides = [1, 1, 1]} : vector<4x16x16xf32> to vector<1x16x16xf32>
    %188 = vector.shape_cast %187 : vector<1x16x16xf32> to vector<16x16xf32>
    %189 = vector.extract_strided_slice %90 {offsets = [1, 0, 0], sizes = [1, 16, 16], strides = [1, 1, 1]} : vector<4x16x16xf32> to vector<1x16x16xf32>
    %190 = vector.shape_cast %189 : vector<1x16x16xf32> to vector<16x16xf32>
    %191 = vector.broadcast %185 : f32 to vector<16x16xf32>
    %192 = arith.mulf %188, %191 : vector<16x16xf32>
    %193 = arith.addf %178, %192 : vector<16x16xf32>
    %194 = vector.broadcast %186 : f32 to vector<16x16xf32>
    %195 = arith.mulf %190, %194 : vector<16x16xf32>
    %196 = arith.subf %193, %195 : vector<16x16xf32>
    %197 = vector.broadcast %186 : f32 to vector<16x16xf32>
    %198 = arith.mulf %188, %197 : vector<16x16xf32>
    %199 = arith.addf %184, %198 : vector<16x16xf32>
    %200 = vector.broadcast %185 : f32 to vector<16x16xf32>
    %201 = arith.mulf %190, %200 : vector<16x16xf32>
    %202 = arith.addf %199, %201 : vector<16x16xf32>
    %c2_45 = arith.constant 2 : index
    %c1_46 = arith.constant 1 : index
    %203 = memref.load %arg4[%c2_45, %c1_46] : memref<4x4xf32, #tpu.memory_space<smem>>
    %c2_47 = arith.constant 2 : index
    %c1_48 = arith.constant 1 : index
    %204 = memref.load %arg5[%c2_47, %c1_48] : memref<4x4xf32, #tpu.memory_space<smem>>
    %205 = vector.extract_strided_slice %86 {offsets = [2, 0, 0], sizes = [1, 16, 16], strides = [1, 1, 1]} : vector<4x16x16xf32> to vector<1x16x16xf32>
    %206 = vector.shape_cast %205 : vector<1x16x16xf32> to vector<16x16xf32>
    %207 = vector.extract_strided_slice %90 {offsets = [2, 0, 0], sizes = [1, 16, 16], strides = [1, 1, 1]} : vector<4x16x16xf32> to vector<1x16x16xf32>
    %208 = vector.shape_cast %207 : vector<1x16x16xf32> to vector<16x16xf32>
    %209 = vector.broadcast %203 : f32 to vector<16x16xf32>
    %210 = arith.mulf %206, %209 : vector<16x16xf32>
    %211 = arith.addf %196, %210 : vector<16x16xf32>
    %212 = vector.broadcast %204 : f32 to vector<16x16xf32>
    %213 = arith.mulf %208, %212 : vector<16x16xf32>
    %214 = arith.subf %211, %213 : vector<16x16xf32>
    %215 = vector.broadcast %204 : f32 to vector<16x16xf32>
    %216 = arith.mulf %206, %215 : vector<16x16xf32>
    %217 = arith.addf %202, %216 : vector<16x16xf32>
    %218 = vector.broadcast %203 : f32 to vector<16x16xf32>
    %219 = arith.mulf %208, %218 : vector<16x16xf32>
    %220 = arith.addf %217, %219 : vector<16x16xf32>
    %c3_49 = arith.constant 3 : index
    %c1_50 = arith.constant 1 : index
    %221 = memref.load %arg4[%c3_49, %c1_50] : memref<4x4xf32, #tpu.memory_space<smem>>
    %c3_51 = arith.constant 3 : index
    %c1_52 = arith.constant 1 : index
    %222 = memref.load %arg5[%c3_51, %c1_52] : memref<4x4xf32, #tpu.memory_space<smem>>
    %223 = vector.extract_strided_slice %86 {offsets = [3, 0, 0], sizes = [1, 16, 16], strides = [1, 1, 1]} : vector<4x16x16xf32> to vector<1x16x16xf32>
    %224 = vector.shape_cast %223 : vector<1x16x16xf32> to vector<16x16xf32>
    %225 = vector.extract_strided_slice %90 {offsets = [3, 0, 0], sizes = [1, 16, 16], strides = [1, 1, 1]} : vector<4x16x16xf32> to vector<1x16x16xf32>
    %226 = vector.shape_cast %225 : vector<1x16x16xf32> to vector<16x16xf32>
    %227 = vector.broadcast %221 : f32 to vector<16x16xf32>
    %228 = arith.mulf %224, %227 : vector<16x16xf32>
    %229 = arith.addf %214, %228 : vector<16x16xf32>
    %230 = vector.broadcast %222 : f32 to vector<16x16xf32>
    %231 = arith.mulf %226, %230 : vector<16x16xf32>
    %232 = arith.subf %229, %231 : vector<16x16xf32>
    %233 = vector.broadcast %222 : f32 to vector<16x16xf32>
    %234 = arith.mulf %224, %233 : vector<16x16xf32>
    %235 = arith.addf %220, %234 : vector<16x16xf32>
    %236 = vector.broadcast %221 : f32 to vector<16x16xf32>
    %237 = arith.mulf %226, %236 : vector<16x16xf32>
    %238 = arith.addf %235, %237 : vector<16x16xf32>
    %cst_53 = arith.constant 0.000000e+00 : f32
    %239 = vector.broadcast %cst_53 : f32 to vector<16x16xf32>
    %cst_54 = arith.constant 0.000000e+00 : f32
    %240 = vector.broadcast %cst_54 : f32 to vector<16x16xf32>
    %c0_55 = arith.constant 0 : index
    %c2_56 = arith.constant 2 : index
    %241 = memref.load %arg4[%c0_55, %c2_56] : memref<4x4xf32, #tpu.memory_space<smem>>
    %c0_57 = arith.constant 0 : index
    %c2_58 = arith.constant 2 : index
    %242 = memref.load %arg5[%c0_57, %c2_58] : memref<4x4xf32, #tpu.memory_space<smem>>
    %243 = vector.extract_strided_slice %86 {offsets = [0, 0, 0], sizes = [1, 16, 16], strides = [1, 1, 1]} : vector<4x16x16xf32> to vector<1x16x16xf32>
    %244 = vector.shape_cast %243 : vector<1x16x16xf32> to vector<16x16xf32>
    %245 = vector.extract_strided_slice %90 {offsets = [0, 0, 0], sizes = [1, 16, 16], strides = [1, 1, 1]} : vector<4x16x16xf32> to vector<1x16x16xf32>
    %246 = vector.shape_cast %245 : vector<1x16x16xf32> to vector<16x16xf32>
    %247 = vector.broadcast %241 : f32 to vector<16x16xf32>
    %248 = arith.mulf %244, %247 : vector<16x16xf32>
    %249 = arith.addf %239, %248 : vector<16x16xf32>
    %250 = vector.broadcast %242 : f32 to vector<16x16xf32>
    %251 = arith.mulf %246, %250 : vector<16x16xf32>
    %252 = arith.subf %249, %251 : vector<16x16xf32>
    %253 = vector.broadcast %242 : f32 to vector<16x16xf32>
    %254 = arith.mulf %244, %253 : vector<16x16xf32>
    %255 = arith.addf %240, %254 : vector<16x16xf32>
    %256 = vector.broadcast %241 : f32 to vector<16x16xf32>
    %257 = arith.mulf %246, %256 : vector<16x16xf32>
    %258 = arith.addf %255, %257 : vector<16x16xf32>
    %c1_59 = arith.constant 1 : index
    %c2_60 = arith.constant 2 : index
    %259 = memref.load %arg4[%c1_59, %c2_60] : memref<4x4xf32, #tpu.memory_space<smem>>
    %c1_61 = arith.constant 1 : index
    %c2_62 = arith.constant 2 : index
    %260 = memref.load %arg5[%c1_61, %c2_62] : memref<4x4xf32, #tpu.memory_space<smem>>
    %261 = vector.extract_strided_slice %86 {offsets = [1, 0, 0], sizes = [1, 16, 16], strides = [1, 1, 1]} : vector<4x16x16xf32> to vector<1x16x16xf32>
    %262 = vector.shape_cast %261 : vector<1x16x16xf32> to vector<16x16xf32>
    %263 = vector.extract_strided_slice %90 {offsets = [1, 0, 0], sizes = [1, 16, 16], strides = [1, 1, 1]} : vector<4x16x16xf32> to vector<1x16x16xf32>
    %264 = vector.shape_cast %263 : vector<1x16x16xf32> to vector<16x16xf32>
    %265 = vector.broadcast %259 : f32 to vector<16x16xf32>
    %266 = arith.mulf %262, %265 : vector<16x16xf32>
    %267 = arith.addf %252, %266 : vector<16x16xf32>
    %268 = vector.broadcast %260 : f32 to vector<16x16xf32>
    %269 = arith.mulf %264, %268 : vector<16x16xf32>
    %270 = arith.subf %267, %269 : vector<16x16xf32>
    %271 = vector.broadcast %260 : f32 to vector<16x16xf32>
    %272 = arith.mulf %262, %271 : vector<16x16xf32>
    %273 = arith.addf %258, %272 : vector<16x16xf32>
    %274 = vector.broadcast %259 : f32 to vector<16x16xf32>
    %275 = arith.mulf %264, %274 : vector<16x16xf32>
    %276 = arith.addf %273, %275 : vector<16x16xf32>
    %c2_63 = arith.constant 2 : index
    %c2_64 = arith.constant 2 : index
    %277 = memref.load %arg4[%c2_63, %c2_64] : memref<4x4xf32, #tpu.memory_space<smem>>
    %c2_65 = arith.constant 2 : index
    %c2_66 = arith.constant 2 : index
    %278 = memref.load %arg5[%c2_65, %c2_66] : memref<4x4xf32, #tpu.memory_space<smem>>
    %279 = vector.extract_strided_slice %86 {offsets = [2, 0, 0], sizes = [1, 16, 16], strides = [1, 1, 1]} : vector<4x16x16xf32> to vector<1x16x16xf32>
    %280 = vector.shape_cast %279 : vector<1x16x16xf32> to vector<16x16xf32>
    %281 = vector.extract_strided_slice %90 {offsets = [2, 0, 0], sizes = [1, 16, 16], strides = [1, 1, 1]} : vector<4x16x16xf32> to vector<1x16x16xf32>
    %282 = vector.shape_cast %281 : vector<1x16x16xf32> to vector<16x16xf32>
    %283 = vector.broadcast %277 : f32 to vector<16x16xf32>
    %284 = arith.mulf %280, %283 : vector<16x16xf32>
    %285 = arith.addf %270, %284 : vector<16x16xf32>
    %286 = vector.broadcast %278 : f32 to vector<16x16xf32>
    %287 = arith.mulf %282, %286 : vector<16x16xf32>
    %288 = arith.subf %285, %287 : vector<16x16xf32>
    %289 = vector.broadcast %278 : f32 to vector<16x16xf32>
    %290 = arith.mulf %280, %289 : vector<16x16xf32>
    %291 = arith.addf %276, %290 : vector<16x16xf32>
    %292 = vector.broadcast %277 : f32 to vector<16x16xf32>
    %293 = arith.mulf %282, %292 : vector<16x16xf32>
    %294 = arith.addf %291, %293 : vector<16x16xf32>
    %c3_67 = arith.constant 3 : index
    %c2_68 = arith.constant 2 : index
    %295 = memref.load %arg4[%c3_67, %c2_68] : memref<4x4xf32, #tpu.memory_space<smem>>
    %c3_69 = arith.constant 3 : index
    %c2_70 = arith.constant 2 : index
    %296 = memref.load %arg5[%c3_69, %c2_70] : memref<4x4xf32, #tpu.memory_space<smem>>
    %297 = vector.extract_strided_slice %86 {offsets = [3, 0, 0], sizes = [1, 16, 16], strides = [1, 1, 1]} : vector<4x16x16xf32> to vector<1x16x16xf32>
    %298 = vector.shape_cast %297 : vector<1x16x16xf32> to vector<16x16xf32>
    %299 = vector.extract_strided_slice %90 {offsets = [3, 0, 0], sizes = [1, 16, 16], strides = [1, 1, 1]} : vector<4x16x16xf32> to vector<1x16x16xf32>
    %300 = vector.shape_cast %299 : vector<1x16x16xf32> to vector<16x16xf32>
    %301 = vector.broadcast %295 : f32 to vector<16x16xf32>
    %302 = arith.mulf %298, %301 : vector<16x16xf32>
    %303 = arith.addf %288, %302 : vector<16x16xf32>
    %304 = vector.broadcast %296 : f32 to vector<16x16xf32>
    %305 = arith.mulf %300, %304 : vector<16x16xf32>
    %306 = arith.subf %303, %305 : vector<16x16xf32>
    %307 = vector.broadcast %296 : f32 to vector<16x16xf32>
    %308 = arith.mulf %298, %307 : vector<16x16xf32>
    %309 = arith.addf %294, %308 : vector<16x16xf32>
    %310 = vector.broadcast %295 : f32 to vector<16x16xf32>
    %311 = arith.mulf %300, %310 : vector<16x16xf32>
    %312 = arith.addf %309, %311 : vector<16x16xf32>
    %cst_71 = arith.constant 0.000000e+00 : f32
    %313 = vector.broadcast %cst_71 : f32 to vector<16x16xf32>
    %cst_72 = arith.constant 0.000000e+00 : f32
    %314 = vector.broadcast %cst_72 : f32 to vector<16x16xf32>
    %c0_73 = arith.constant 0 : index
    %c3_74 = arith.constant 3 : index
    %315 = memref.load %arg4[%c0_73, %c3_74] : memref<4x4xf32, #tpu.memory_space<smem>>
    %c0_75 = arith.constant 0 : index
    %c3_76 = arith.constant 3 : index
    %316 = memref.load %arg5[%c0_75, %c3_76] : memref<4x4xf32, #tpu.memory_space<smem>>
    %317 = vector.extract_strided_slice %86 {offsets = [0, 0, 0], sizes = [1, 16, 16], strides = [1, 1, 1]} : vector<4x16x16xf32> to vector<1x16x16xf32>
    %318 = vector.shape_cast %317 : vector<1x16x16xf32> to vector<16x16xf32>
    %319 = vector.extract_strided_slice %90 {offsets = [0, 0, 0], sizes = [1, 16, 16], strides = [1, 1, 1]} : vector<4x16x16xf32> to vector<1x16x16xf32>
    %320 = vector.shape_cast %319 : vector<1x16x16xf32> to vector<16x16xf32>
    %321 = vector.broadcast %315 : f32 to vector<16x16xf32>
    %322 = arith.mulf %318, %321 : vector<16x16xf32>
    %323 = arith.addf %313, %322 : vector<16x16xf32>
    %324 = vector.broadcast %316 : f32 to vector<16x16xf32>
    %325 = arith.mulf %320, %324 : vector<16x16xf32>
    %326 = arith.subf %323, %325 : vector<16x16xf32>
    %327 = vector.broadcast %316 : f32 to vector<16x16xf32>
    %328 = arith.mulf %318, %327 : vector<16x16xf32>
    %329 = arith.addf %314, %328 : vector<16x16xf32>
    %330 = vector.broadcast %315 : f32 to vector<16x16xf32>
    %331 = arith.mulf %320, %330 : vector<16x16xf32>
    %332 = arith.addf %329, %331 : vector<16x16xf32>
    %c1_77 = arith.constant 1 : index
    %c3_78 = arith.constant 3 : index
    %333 = memref.load %arg4[%c1_77, %c3_78] : memref<4x4xf32, #tpu.memory_space<smem>>
    %c1_79 = arith.constant 1 : index
    %c3_80 = arith.constant 3 : index
    %334 = memref.load %arg5[%c1_79, %c3_80] : memref<4x4xf32, #tpu.memory_space<smem>>
    %335 = vector.extract_strided_slice %86 {offsets = [1, 0, 0], sizes = [1, 16, 16], strides = [1, 1, 1]} : vector<4x16x16xf32> to vector<1x16x16xf32>
    %336 = vector.shape_cast %335 : vector<1x16x16xf32> to vector<16x16xf32>
    %337 = vector.extract_strided_slice %90 {offsets = [1, 0, 0], sizes = [1, 16, 16], strides = [1, 1, 1]} : vector<4x16x16xf32> to vector<1x16x16xf32>
    %338 = vector.shape_cast %337 : vector<1x16x16xf32> to vector<16x16xf32>
    %339 = vector.broadcast %333 : f32 to vector<16x16xf32>
    %340 = arith.mulf %336, %339 : vector<16x16xf32>
    %341 = arith.addf %326, %340 : vector<16x16xf32>
    %342 = vector.broadcast %334 : f32 to vector<16x16xf32>
    %343 = arith.mulf %338, %342 : vector<16x16xf32>
    %344 = arith.subf %341, %343 : vector<16x16xf32>
    %345 = vector.broadcast %334 : f32 to vector<16x16xf32>
    %346 = arith.mulf %336, %345 : vector<16x16xf32>
    %347 = arith.addf %332, %346 : vector<16x16xf32>
    %348 = vector.broadcast %333 : f32 to vector<16x16xf32>
    %349 = arith.mulf %338, %348 : vector<16x16xf32>
    %350 = arith.addf %347, %349 : vector<16x16xf32>
    %c2_81 = arith.constant 2 : index
    %c3_82 = arith.constant 3 : index
    %351 = memref.load %arg4[%c2_81, %c3_82] : memref<4x4xf32, #tpu.memory_space<smem>>
    %c2_83 = arith.constant 2 : index
    %c3_84 = arith.constant 3 : index
    %352 = memref.load %arg5[%c2_83, %c3_84] : memref<4x4xf32, #tpu.memory_space<smem>>
    %353 = vector.extract_strided_slice %86 {offsets = [2, 0, 0], sizes = [1, 16, 16], strides = [1, 1, 1]} : vector<4x16x16xf32> to vector<1x16x16xf32>
    %354 = vector.shape_cast %353 : vector<1x16x16xf32> to vector<16x16xf32>
    %355 = vector.extract_strided_slice %90 {offsets = [2, 0, 0], sizes = [1, 16, 16], strides = [1, 1, 1]} : vector<4x16x16xf32> to vector<1x16x16xf32>
    %356 = vector.shape_cast %355 : vector<1x16x16xf32> to vector<16x16xf32>
    %357 = vector.broadcast %351 : f32 to vector<16x16xf32>
    %358 = arith.mulf %354, %357 : vector<16x16xf32>
    %359 = arith.addf %344, %358 : vector<16x16xf32>
    %360 = vector.broadcast %352 : f32 to vector<16x16xf32>
    %361 = arith.mulf %356, %360 : vector<16x16xf32>
    %362 = arith.subf %359, %361 : vector<16x16xf32>
    %363 = vector.broadcast %352 : f32 to vector<16x16xf32>
    %364 = arith.mulf %354, %363 : vector<16x16xf32>
    %365 = arith.addf %350, %364 : vector<16x16xf32>
    %366 = vector.broadcast %351 : f32 to vector<16x16xf32>
    %367 = arith.mulf %356, %366 : vector<16x16xf32>
    %368 = arith.addf %365, %367 : vector<16x16xf32>
    %c3_85 = arith.constant 3 : index
    %c3_86 = arith.constant 3 : index
    %369 = memref.load %arg4[%c3_85, %c3_86] : memref<4x4xf32, #tpu.memory_space<smem>>
    %c3_87 = arith.constant 3 : index
    %c3_88 = arith.constant 3 : index
    %370 = memref.load %arg5[%c3_87, %c3_88] : memref<4x4xf32, #tpu.memory_space<smem>>
    %371 = vector.extract_strided_slice %86 {offsets = [3, 0, 0], sizes = [1, 16, 16], strides = [1, 1, 1]} : vector<4x16x16xf32> to vector<1x16x16xf32>
    %372 = vector.shape_cast %371 : vector<1x16x16xf32> to vector<16x16xf32>
    %373 = vector.extract_strided_slice %90 {offsets = [3, 0, 0], sizes = [1, 16, 16], strides = [1, 1, 1]} : vector<4x16x16xf32> to vector<1x16x16xf32>
    %374 = vector.shape_cast %373 : vector<1x16x16xf32> to vector<16x16xf32>
    %375 = vector.broadcast %369 : f32 to vector<16x16xf32>
    %376 = arith.mulf %372, %375 : vector<16x16xf32>
    %377 = arith.addf %362, %376 : vector<16x16xf32>
    %378 = vector.broadcast %370 : f32 to vector<16x16xf32>
    %379 = arith.mulf %374, %378 : vector<16x16xf32>
    %380 = arith.subf %377, %379 : vector<16x16xf32>
    %381 = vector.broadcast %370 : f32 to vector<16x16xf32>
    %382 = arith.mulf %372, %381 : vector<16x16xf32>
    %383 = arith.addf %368, %382 : vector<16x16xf32>
    %384 = vector.broadcast %369 : f32 to vector<16x16xf32>
    %385 = arith.mulf %374, %384 : vector<16x16xf32>
    %386 = arith.addf %383, %385 : vector<16x16xf32>
    %387 = vector.shape_cast %158 : vector<16x16xf32> to vector<1x16x16xf32>
    %388 = vector.shape_cast %232 : vector<16x16xf32> to vector<1x16x16xf32>
    %389 = vector.shape_cast %306 : vector<16x16xf32> to vector<1x16x16xf32>
    %390 = vector.shape_cast %380 : vector<16x16xf32> to vector<1x16x16xf32>
    %391 = tpu.concatenate %387, %388, %389, %390 in 0 : vector<1x16x16xf32>, vector<1x16x16xf32>, vector<1x16x16xf32>, vector<1x16x16xf32> -> vector<4x16x16xf32>
    %392 = vector.shape_cast %164 : vector<16x16xf32> to vector<1x16x16xf32>
    %393 = vector.shape_cast %238 : vector<16x16xf32> to vector<1x16x16xf32>
    %394 = vector.shape_cast %312 : vector<16x16xf32> to vector<1x16x16xf32>
    %395 = vector.shape_cast %386 : vector<16x16xf32> to vector<1x16x16xf32>
    %396 = tpu.concatenate %392, %393, %394, %395 in 0 : vector<1x16x16xf32>, vector<1x16x16xf32>, vector<1x16x16xf32>, vector<1x16x16xf32> -> vector<4x16x16xf32>
    %c0_89 = arith.constant 0 : index
    %c0_90 = arith.constant 0 : index
    %c0_91 = arith.constant 0 : index
    %c0_92 = arith.constant 0 : index
    %397 = vector.load %arg6[%c0_89, %c0_90, %c0_91, %c0_92] : memref<4x1x16x16xf32, #tpu.memory_space<vmem>>, vector<4x1x16x16xf32>
    %398 = vector.shape_cast %397 : vector<4x1x16x16xf32> to vector<4x16x16xf32>
    %399 = vector.shape_cast %391 : vector<4x16x16xf32> to vector<4x1x16x16xf32>
    tpu.vector_store %arg6[%c0_89, %c0_90, %c0_91, %c0_92], %399 {strides = array<i32>} : memref<4x1x16x16xf32, #tpu.memory_space<vmem>>, vector<4x1x16x16xf32>,
    %c0_93 = arith.constant 0 : index
    %c0_94 = arith.constant 0 : index
    %c0_95 = arith.constant 0 : index
    %c0_96 = arith.constant 0 : index
    %400 = vector.load %arg7[%c0_93, %c0_94, %c0_95, %c0_96] : memref<4x1x16x16xf32, #tpu.memory_space<vmem>>, vector<4x1x16x16xf32>
    %401 = vector.shape_cast %400 : vector<4x1x16x16xf32> to vector<4x16x16xf32>
    %402 = vector.shape_cast %396 : vector<4x16x16xf32> to vector<4x1x16x16xf32>
    tpu.vector_store %arg7[%c0_93, %c0_94, %c0_95, %c0_96], %402 {strides = array<i32>} : memref<4x1x16x16xf32, #tpu.memory_space<vmem>>, vector<4x1x16x16xf32>,
    %cst_97 = arith.constant dense<0.000000e+00> : vector<4x16xf32>
    %403 = vector.multi_reduction <add>, %391, %cst_97 [2] : vector<4x16x16xf32> to vector<4x16xf32>
    %cst_98 = arith.constant dense<0.000000e+00> : vector<4xf32>
    %404 = vector.multi_reduction <add>, %403, %cst_98 [1] : vector<4x16xf32> to vector<4xf32>
    %405 = vector.shape_cast %404 : vector<4xf32> to vector<4x1xf32>
    %cst_99 = arith.constant dense<0.000000e+00> : vector<4x16xf32>
    %406 = vector.multi_reduction <add>, %396, %cst_99 [2] : vector<4x16x16xf32> to vector<4x16xf32>
    %cst_100 = arith.constant dense<0.000000e+00> : vector<4xf32>
    %407 = vector.multi_reduction <add>, %406, %cst_100 [1] : vector<4x16xf32> to vector<4xf32>
    %408 = vector.shape_cast %407 : vector<4xf32> to vector<4x1xf32>
    %409 = arith.mulf %391, %391 : vector<4x16x16xf32>
    %cst_101 = arith.constant dense<0.000000e+00> : vector<4x16xf32>
    %410 = vector.multi_reduction <add>, %409, %cst_101 [2] : vector<4x16x16xf32> to vector<4x16xf32>
    %cst_102 = arith.constant dense<0.000000e+00> : vector<4xf32>
    %411 = vector.multi_reduction <add>, %410, %cst_102 [1] : vector<4x16xf32> to vector<4xf32>
    %412 = vector.shape_cast %411 : vector<4xf32> to vector<4x1xf32>
    %413 = arith.mulf %396, %396 : vector<4x16x16xf32>
    %cst_103 = arith.constant dense<0.000000e+00> : vector<4x16xf32>
    %414 = vector.multi_reduction <add>, %413, %cst_103 [2] : vector<4x16x16xf32> to vector<4x16xf32>
    %cst_104 = arith.constant dense<0.000000e+00> : vector<4xf32>
    %415 = vector.multi_reduction <add>, %414, %cst_104 [1] : vector<4x16xf32> to vector<4xf32>
    %416 = vector.shape_cast %415 : vector<4xf32> to vector<4x1xf32>
    %417 = arith.mulf %391, %396 : vector<4x16x16xf32>
    %cst_105 = arith.constant dense<0.000000e+00> : vector<4x16xf32>
    %418 = vector.multi_reduction <add>, %417, %cst_105 [2] : vector<4x16x16xf32> to vector<4x16xf32>
    %cst_106 = arith.constant dense<0.000000e+00> : vector<4xf32>
    %419 = vector.multi_reduction <add>, %418, %cst_106 [1] : vector<4x16xf32> to vector<4xf32>
    %420 = vector.shape_cast %419 : vector<4xf32> to vector<4x1xf32>
    %cst_107 = arith.constant 0.000000e+00 : f32
    %421 = vector.broadcast %cst_107 : f32 to vector<4x3xf32>
    %422 = tpu.concatenate %405, %408, %412, %416, %420, %421 in 1 : vector<4x1xf32>, vector<4x1xf32>, vector<4x1xf32>, vector<4x1xf32>, vector<4x1xf32>, vector<4x3xf32> -> vector<4x8xf32>
    %c0_108 = arith.constant 0 : index
    %c0_109 = arith.constant 0 : index
    %c0_110 = arith.constant 0 : index
    %423 = vector.load %arg8[%c0_108, %c0_109, %c0_110] : memref<1x4x8xf32, #tpu.memory_space<vmem>>, vector<1x4x8xf32>
    %424 = vector.shape_cast %423 : vector<1x4x8xf32> to vector<4x8xf32>
    %425 = vector.shape_cast %422 : vector<4x8xf32> to vector<1x4x8xf32>
    tpu.vector_store %arg8[%c0_108, %c0_109, %c0_110], %425 {strides = array<i32>} : memref<1x4x8xf32, #tpu.memory_space<vmem>>, vector<1x4x8xf32>,
    return
  }
  func.func @transform_0(%arg0: i32) -> (i32, i32, i32, i32) {
    %c0_i32 = arith.constant 0 : i32
    %c0_i32_0 = arith.constant 0 : i32
    %c0_i32_1 = arith.constant 0 : i32
    %c0_i32_2 = arith.constant 0 : i32
    return %arg0, %c0_i32, %c0_i32_0, %c0_i32_1 : i32, i32, i32, i32
  }
  func.func @transform_1(%arg0: i32) -> (i32, i32, i32) {
    %c0_i32 = arith.constant 0 : i32
    %c0_i32_0 = arith.constant 0 : i32
    %c0_i32_1 = arith.constant 0 : i32
    %c0_i32_2 = arith.constant 0 : i32
    return %c0_i32, %c0_i32_0, %c0_i32_1 : i32, i32, i32
  }
  func.func @transform_2(%arg0: i32) -> (i32, i32, i32) {
    %c0_i32 = arith.constant 0 : i32
    %c0_i32_0 = arith.constant 0 : i32
    %c0_i32_1 = arith.constant 0 : i32
    %c0_i32_2 = arith.constant 0 : i32
    return %c0_i32, %c0_i32_0, %c0_i32_1 : i32, i32, i32
  }
  func.func @transform_3(%arg0: i32) -> (i32, i32) {
    %c0_i32 = arith.constant 0 : i32
    %c0_i32_0 = arith.constant 0 : i32
    %c0_i32_1 = arith.constant 0 : i32
    return %c0_i32, %c0_i32_0 : i32, i32
  }
  func.func @transform_4(%arg0: i32) -> (i32, i32) {
    %c0_i32 = arith.constant 0 : i32
    %c0_i32_0 = arith.constant 0 : i32
    %c0_i32_1 = arith.constant 0 : i32
    return %c0_i32, %c0_i32_0 : i32, i32
  }
  func.func @transform_5(%arg0: i32) -> (i32, i32, i32, i32) {
    %c0_i32 = arith.constant 0 : i32
    %c0_i32_0 = arith.constant 0 : i32
    %c0_i32_1 = arith.constant 0 : i32
    %c0_i32_2 = arith.constant 0 : i32
    return %c0_i32, %arg0, %c0_i32_0, %c0_i32_1 : i32, i32, i32, i32
  }
  func.func @transform_6(%arg0: i32) -> (i32, i32, i32, i32) {
    %c0_i32 = arith.constant 0 : i32
    %c0_i32_0 = arith.constant 0 : i32
    %c0_i32_1 = arith.constant 0 : i32
    %c0_i32_2 = arith.constant 0 : i32
    return %c0_i32, %arg0, %c0_i32_0, %c0_i32_1 : i32, i32, i32, i32
  }
  func.func @transform_7(%arg0: i32) -> (i32, i32, i32) {
    %c0_i32 = arith.constant 0 : i32
    %c0_i32_0 = arith.constant 0 : i32
    %c0_i32_1 = arith.constant 0 : i32
    return %arg0, %c0_i32, %c0_i32_0 : i32, i32, i32
  }
}

module attributes {stable_mosaic.version = 11 : i64} {
  func.func @kernel(%arg0: i32, %arg1: memref<4x1x16x16xf32, #tpu.memory_space<vmem>>, %arg2: memref<4x1x16x16xf32, #tpu.memory_space<vmem>>, %arg3: memref<4x9x1xf32, #tpu.memory_space<vmem>>, %arg4: memref<4x3x3xf32, #tpu.memory_space<vmem>>, %arg5: memref<4x3x3xf32, #tpu.memory_space<vmem>>, %arg6: memref<4x8xf32, #tpu.memory_space<smem>>, %arg7: memref<4x8xf32, #tpu.memory_space<smem>>, %arg8: memref<8x1x16x16xf32, #tpu.memory_space<vmem>>, %arg9: memref<8x1x16x16xf32, #tpu.memory_space<vmem>>, %arg10: memref<1x8x8xf32, #tpu.memory_space<vmem>>, %arg11: memref<4x18x18xf32, #tpu.memory_space<vmem>>, %arg12: memref<4x18x18xf32, #tpu.memory_space<vmem>>) attributes {dimension_semantics = [#tpu.dimension_semantics<parallel>], iteration_bounds = array<i64: 2>, scalar_prefetch = 0 : i64, scratch_operands = 2 : i64, tpu.core_type = #tpu.core_type<tc>, window_params = [{transform_indices = @transform_0, window_bounds = array<i64: 4, 1, 16, 16>}, {transform_indices = @transform_1, window_bounds = array<i64: 4, 1, 16, 16>}, {pipeline_mode = #tpu.pipeline_mode<synchronous>, transform_indices = @transform_2, window_bounds = array<i64: 4, 9, 1>}, {pipeline_mode = #tpu.pipeline_mode<synchronous>, transform_indices = @transform_3, window_bounds = array<i64: 4, 3, 3>}, {pipeline_mode = #tpu.pipeline_mode<synchronous>, transform_indices = @transform_4, window_bounds = array<i64: 4, 3, 3>}, {transform_indices = @transform_5, window_bounds = array<i64: 4, 8>}, {transform_indices = @transform_6, window_bounds = array<i64: 4, 8>}, {transform_indices = @transform_7, window_bounds = array<i64: 8, 1, 16, 16>}, {transform_indices = @transform_8, window_bounds = array<i64: 8, 1, 16, 16>}, {transform_indices = @transform_9, window_bounds = array<i64: 1, 8, 8>}]} {
    %c0 = arith.constant 0 : index
    %c0_0 = arith.constant 0 : index
    %c0_1 = arith.constant 0 : index
    %c0_2 = arith.constant 0 : index
    %0 = vector.load %arg1[%c0, %c0_0, %c0_1, %c0_2] : memref<4x1x16x16xf32, #tpu.memory_space<vmem>>, vector<4x1x16x16xf32>
    %1 = vector.shape_cast %0 : vector<4x1x16x16xf32> to vector<4x16x16xf32>
    %c0_3 = arith.constant 0 : index
    %c0_4 = arith.constant 0 : index
    %c0_5 = arith.constant 0 : index
    %c0_6 = arith.constant 0 : index
    %2 = vector.load %arg2[%c0_3, %c0_4, %c0_5, %c0_6] : memref<4x1x16x16xf32, #tpu.memory_space<vmem>>, vector<4x1x16x16xf32>
    %3 = vector.shape_cast %2 : vector<4x1x16x16xf32> to vector<4x16x16xf32>
    %c0_7 = arith.constant 0 : index
    %c0_8 = arith.constant 0 : index
    %c0_9 = arith.constant 0 : index
    %4 = vector.load %arg3[%c0_7, %c0_8, %c0_9] : memref<4x9x1xf32, #tpu.memory_space<vmem>>, vector<4x9x1xf32>
    %5 = vector.extract_strided_slice %4 {offsets = [0, 0, 0], sizes = [4, 1, 1], strides = [1, 1, 1]} : vector<4x9x1xf32> to vector<4x1x1xf32>
    %6 = vector.broadcast %5 : vector<4x1x1xf32> to vector<4x16x16xf32>
    %7 = arith.subf %1, %6 : vector<4x16x16xf32>
    %8 = vector.extract_strided_slice %4 {offsets = [0, 1, 0], sizes = [4, 1, 1], strides = [1, 1, 1]} : vector<4x9x1xf32> to vector<4x1x1xf32>
    %9 = vector.broadcast %8 : vector<4x1x1xf32> to vector<4x16x16xf32>
    %10 = arith.subf %3, %9 : vector<4x16x16xf32>
    %11 = vector.extract_strided_slice %4 {offsets = [0, 2, 0], sizes = [4, 1, 1], strides = [1, 1, 1]} : vector<4x9x1xf32> to vector<4x1x1xf32>
    %12 = vector.broadcast %11 : vector<4x1x1xf32> to vector<4x16x16xf32>
    %13 = arith.mulf %7, %12 : vector<4x16x16xf32>
    %14 = vector.extract_strided_slice %4 {offsets = [0, 3, 0], sizes = [4, 1, 1], strides = [1, 1, 1]} : vector<4x9x1xf32> to vector<4x1x1xf32>
    %15 = vector.broadcast %14 : vector<4x1x1xf32> to vector<4x16x16xf32>
    %16 = arith.mulf %10, %15 : vector<4x16x16xf32>
    %17 = arith.addf %13, %16 : vector<4x16x16xf32>
    %18 = vector.extract_strided_slice %4 {offsets = [0, 6, 0], sizes = [4, 1, 1], strides = [1, 1, 1]} : vector<4x9x1xf32> to vector<4x1x1xf32>
    %19 = vector.broadcast %18 : vector<4x1x1xf32> to vector<4x16x16xf32>
    %20 = arith.addf %17, %19 : vector<4x16x16xf32>
    %21 = vector.extract_strided_slice %4 {offsets = [0, 4, 0], sizes = [4, 1, 1], strides = [1, 1, 1]} : vector<4x9x1xf32> to vector<4x1x1xf32>
    %22 = vector.broadcast %21 : vector<4x1x1xf32> to vector<4x16x16xf32>
    %23 = arith.mulf %7, %22 : vector<4x16x16xf32>
    %24 = vector.extract_strided_slice %4 {offsets = [0, 5, 0], sizes = [4, 1, 1], strides = [1, 1, 1]} : vector<4x9x1xf32> to vector<4x1x1xf32>
    %25 = vector.broadcast %24 : vector<4x1x1xf32> to vector<4x16x16xf32>
    %26 = arith.mulf %10, %25 : vector<4x16x16xf32>
    %27 = arith.addf %23, %26 : vector<4x16x16xf32>
    %28 = vector.extract_strided_slice %4 {offsets = [0, 7, 0], sizes = [4, 1, 1], strides = [1, 1, 1]} : vector<4x9x1xf32> to vector<4x1x1xf32>
    %29 = vector.broadcast %28 : vector<4x1x1xf32> to vector<4x16x16xf32>
    %30 = arith.addf %27, %29 : vector<4x16x16xf32>
    %31 = arith.mulf %20, %20 : vector<4x16x16xf32>
    %32 = arith.mulf %30, %30 : vector<4x16x16xf32>
    %33 = arith.addf %31, %32 : vector<4x16x16xf32>
    %cst = arith.constant 1.000000e-10 : f32
    %34 = vector.broadcast %cst : f32 to vector<4x16x16xf32>
    %35 = arith.maximumf %33, %34 : vector<4x16x16xf32>
    %36 = math.rsqrt %35 : vector<4x16x16xf32>
    %37 = vector.extract_strided_slice %4 {offsets = [0, 8, 0], sizes = [4, 1, 1], strides = [1, 1, 1]} : vector<4x9x1xf32> to vector<4x1x1xf32>
    %38 = vector.broadcast %37 : vector<4x1x1xf32> to vector<4x16x16xf32>
    %39 = arith.mulf %38, %36 : vector<4x16x16xf32>
    %cst_10 = arith.constant 1.000000e+00 : f32
    %40 = vector.broadcast %cst_10 : f32 to vector<4x16x16xf32>
    %41 = arith.addf %40, %39 : vector<4x16x16xf32>
    %cst_11 = arith.constant 0.000000e+00 : f32
    %42 = vector.broadcast %cst_11 : f32 to vector<4x16x16xf32>
    %43 = arith.maximumf %41, %42 : vector<4x16x16xf32>
    %44 = arith.mulf %20, %43 : vector<4x16x16xf32>
    %45 = arith.mulf %30, %43 : vector<4x16x16xf32>
    %cst_12 = arith.constant 0.000000e+00 : f32
    %46 = vector.broadcast %cst_12 : f32 to vector<4x18x18xf32>
    %c0_13 = arith.constant 0 : index
    %c0_14 = arith.constant 0 : index
    %c0_15 = arith.constant 0 : index
    %47 = vector.load %arg11[%c0_13, %c0_14, %c0_15] : memref<4x18x18xf32, #tpu.memory_space<vmem>>, vector<4x18x18xf32>
    tpu.vector_store %arg11[%c0_13, %c0_14, %c0_15], %46 {strides = array<i32>} : memref<4x18x18xf32, #tpu.memory_space<vmem>>, vector<4x18x18xf32>,
    %cst_16 = arith.constant 0.000000e+00 : f32
    %48 = vector.broadcast %cst_16 : f32 to vector<4x18x18xf32>
    %c0_17 = arith.constant 0 : index
    %c0_18 = arith.constant 0 : index
    %c0_19 = arith.constant 0 : index
    %49 = vector.load %arg12[%c0_17, %c0_18, %c0_19] : memref<4x18x18xf32, #tpu.memory_space<vmem>>, vector<4x18x18xf32>
    tpu.vector_store %arg12[%c0_17, %c0_18, %c0_19], %48 {strides = array<i32>} : memref<4x18x18xf32, #tpu.memory_space<vmem>>, vector<4x18x18xf32>,
    %c0_20 = arith.constant 0 : index
    %c1 = arith.constant 1 : index
    %c1_21 = arith.constant 1 : index
    %50 = vector.load %arg11[%c0_20, %c1, %c1_21] : memref<4x18x18xf32, #tpu.memory_space<vmem>>, vector<4x16x16xf32>
    tpu.vector_store %arg11[%c0_20, %c1, %c1_21], %44 {strides = array<i32>} : memref<4x18x18xf32, #tpu.memory_space<vmem>>, vector<4x16x16xf32>,
    %c0_22 = arith.constant 0 : index
    %c1_23 = arith.constant 1 : index
    %c1_24 = arith.constant 1 : index
    %51 = vector.load %arg12[%c0_22, %c1_23, %c1_24] : memref<4x18x18xf32, #tpu.memory_space<vmem>>, vector<4x16x16xf32>
    tpu.vector_store %arg12[%c0_22, %c1_23, %c1_24], %45 {strides = array<i32>} : memref<4x18x18xf32, #tpu.memory_space<vmem>>, vector<4x16x16xf32>,
    %c0_25 = arith.constant 0 : index
    %c0_26 = arith.constant 0 : index
    %c0_27 = arith.constant 0 : index
    %52 = vector.load %arg11[%c0_25, %c0_26, %c0_27] : memref<4x18x18xf32, #tpu.memory_space<vmem>>, vector<4x18x18xf32>
    %c0_28 = arith.constant 0 : index
    %c0_29 = arith.constant 0 : index
    %c0_30 = arith.constant 0 : index
    %53 = vector.load %arg12[%c0_28, %c0_29, %c0_30] : memref<4x18x18xf32, #tpu.memory_space<vmem>>, vector<4x18x18xf32>
    %c0_31 = arith.constant 0 : index
    %c0_32 = arith.constant 0 : index
    %c0_33 = arith.constant 0 : index
    %54 = vector.load %arg4[%c0_31, %c0_32, %c0_33] : memref<4x3x3xf32, #tpu.memory_space<vmem>>, vector<4x3x3xf32>
    %c0_34 = arith.constant 0 : index
    %c0_35 = arith.constant 0 : index
    %c0_36 = arith.constant 0 : index
    %55 = vector.load %arg5[%c0_34, %c0_35, %c0_36] : memref<4x3x3xf32, #tpu.memory_space<vmem>>, vector<4x3x3xf32>
    %cst_37 = arith.constant 0.000000e+00 : f32
    %56 = vector.broadcast %cst_37 : f32 to vector<4x16x16xf32>
    %cst_38 = arith.constant 0.000000e+00 : f32
    %57 = vector.broadcast %cst_38 : f32 to vector<4x16x16xf32>
    %58 = vector.extract_strided_slice %52 {offsets = [0, 0, 0], sizes = [4, 16, 16], strides = [1, 1, 1]} : vector<4x18x18xf32> to vector<4x16x16xf32>
    %59 = vector.extract_strided_slice %53 {offsets = [0, 0, 0], sizes = [4, 16, 16], strides = [1, 1, 1]} : vector<4x18x18xf32> to vector<4x16x16xf32>
    %60 = vector.extract_strided_slice %54 {offsets = [0, 0, 0], sizes = [4, 1, 1], strides = [1, 1, 1]} : vector<4x3x3xf32> to vector<4x1x1xf32>
    %61 = vector.extract_strided_slice %55 {offsets = [0, 0, 0], sizes = [4, 1, 1], strides = [1, 1, 1]} : vector<4x3x3xf32> to vector<4x1x1xf32>
    %62 = vector.broadcast %60 : vector<4x1x1xf32> to vector<4x16x16xf32>
    %63 = arith.mulf %58, %62 : vector<4x16x16xf32>
    %64 = arith.addf %56, %63 : vector<4x16x16xf32>
    %65 = vector.broadcast %61 : vector<4x1x1xf32> to vector<4x16x16xf32>
    %66 = arith.mulf %59, %65 : vector<4x16x16xf32>
    %67 = arith.subf %64, %66 : vector<4x16x16xf32>
    %68 = vector.broadcast %61 : vector<4x1x1xf32> to vector<4x16x16xf32>
    %69 = arith.mulf %58, %68 : vector<4x16x16xf32>
    %70 = arith.addf %57, %69 : vector<4x16x16xf32>
    %71 = vector.broadcast %60 : vector<4x1x1xf32> to vector<4x16x16xf32>
    %72 = arith.mulf %59, %71 : vector<4x16x16xf32>
    %73 = arith.addf %70, %72 : vector<4x16x16xf32>
    %74 = vector.extract_strided_slice %52 {offsets = [0, 0, 1], sizes = [4, 16, 16], strides = [1, 1, 1]} : vector<4x18x18xf32> to vector<4x16x16xf32>
    %75 = vector.extract_strided_slice %53 {offsets = [0, 0, 1], sizes = [4, 16, 16], strides = [1, 1, 1]} : vector<4x18x18xf32> to vector<4x16x16xf32>
    %76 = vector.extract_strided_slice %54 {offsets = [0, 0, 1], sizes = [4, 1, 1], strides = [1, 1, 1]} : vector<4x3x3xf32> to vector<4x1x1xf32>
    %77 = vector.extract_strided_slice %55 {offsets = [0, 0, 1], sizes = [4, 1, 1], strides = [1, 1, 1]} : vector<4x3x3xf32> to vector<4x1x1xf32>
    %78 = vector.broadcast %76 : vector<4x1x1xf32> to vector<4x16x16xf32>
    %79 = arith.mulf %74, %78 : vector<4x16x16xf32>
    %80 = arith.addf %67, %79 : vector<4x16x16xf32>
    %81 = vector.broadcast %77 : vector<4x1x1xf32> to vector<4x16x16xf32>
    %82 = arith.mulf %75, %81 : vector<4x16x16xf32>
    %83 = arith.subf %80, %82 : vector<4x16x16xf32>
    %84 = vector.broadcast %77 : vector<4x1x1xf32> to vector<4x16x16xf32>
    %85 = arith.mulf %74, %84 : vector<4x16x16xf32>
    %86 = arith.addf %73, %85 : vector<4x16x16xf32>
    %87 = vector.broadcast %76 : vector<4x1x1xf32> to vector<4x16x16xf32>
    %88 = arith.mulf %75, %87 : vector<4x16x16xf32>
    %89 = arith.addf %86, %88 : vector<4x16x16xf32>
    %90 = vector.extract_strided_slice %52 {offsets = [0, 0, 2], sizes = [4, 16, 16], strides = [1, 1, 1]} : vector<4x18x18xf32> to vector<4x16x16xf32>
    %91 = vector.extract_strided_slice %53 {offsets = [0, 0, 2], sizes = [4, 16, 16], strides = [1, 1, 1]} : vector<4x18x18xf32> to vector<4x16x16xf32>
    %92 = vector.extract_strided_slice %54 {offsets = [0, 0, 2], sizes = [4, 1, 1], strides = [1, 1, 1]} : vector<4x3x3xf32> to vector<4x1x1xf32>
    %93 = vector.extract_strided_slice %55 {offsets = [0, 0, 2], sizes = [4, 1, 1], strides = [1, 1, 1]} : vector<4x3x3xf32> to vector<4x1x1xf32>
    %94 = vector.broadcast %92 : vector<4x1x1xf32> to vector<4x16x16xf32>
    %95 = arith.mulf %90, %94 : vector<4x16x16xf32>
    %96 = arith.addf %83, %95 : vector<4x16x16xf32>
    %97 = vector.broadcast %93 : vector<4x1x1xf32> to vector<4x16x16xf32>
    %98 = arith.mulf %91, %97 : vector<4x16x16xf32>
    %99 = arith.subf %96, %98 : vector<4x16x16xf32>
    %100 = vector.broadcast %93 : vector<4x1x1xf32> to vector<4x16x16xf32>
    %101 = arith.mulf %90, %100 : vector<4x16x16xf32>
    %102 = arith.addf %89, %101 : vector<4x16x16xf32>
    %103 = vector.broadcast %92 : vector<4x1x1xf32> to vector<4x16x16xf32>
    %104 = arith.mulf %91, %103 : vector<4x16x16xf32>
    %105 = arith.addf %102, %104 : vector<4x16x16xf32>
    %106 = vector.extract_strided_slice %52 {offsets = [0, 1, 0], sizes = [4, 16, 16], strides = [1, 1, 1]} : vector<4x18x18xf32> to vector<4x16x16xf32>
    %107 = vector.extract_strided_slice %53 {offsets = [0, 1, 0], sizes = [4, 16, 16], strides = [1, 1, 1]} : vector<4x18x18xf32> to vector<4x16x16xf32>
    %108 = vector.extract_strided_slice %54 {offsets = [0, 1, 0], sizes = [4, 1, 1], strides = [1, 1, 1]} : vector<4x3x3xf32> to vector<4x1x1xf32>
    %109 = vector.extract_strided_slice %55 {offsets = [0, 1, 0], sizes = [4, 1, 1], strides = [1, 1, 1]} : vector<4x3x3xf32> to vector<4x1x1xf32>
    %110 = vector.broadcast %108 : vector<4x1x1xf32> to vector<4x16x16xf32>
    %111 = arith.mulf %106, %110 : vector<4x16x16xf32>
    %112 = arith.addf %99, %111 : vector<4x16x16xf32>
    %113 = vector.broadcast %109 : vector<4x1x1xf32> to vector<4x16x16xf32>
    %114 = arith.mulf %107, %113 : vector<4x16x16xf32>
    %115 = arith.subf %112, %114 : vector<4x16x16xf32>
    %116 = vector.broadcast %109 : vector<4x1x1xf32> to vector<4x16x16xf32>
    %117 = arith.mulf %106, %116 : vector<4x16x16xf32>
    %118 = arith.addf %105, %117 : vector<4x16x16xf32>
    %119 = vector.broadcast %108 : vector<4x1x1xf32> to vector<4x16x16xf32>
    %120 = arith.mulf %107, %119 : vector<4x16x16xf32>
    %121 = arith.addf %118, %120 : vector<4x16x16xf32>
    %122 = vector.extract_strided_slice %52 {offsets = [0, 1, 1], sizes = [4, 16, 16], strides = [1, 1, 1]} : vector<4x18x18xf32> to vector<4x16x16xf32>
    %123 = vector.extract_strided_slice %53 {offsets = [0, 1, 1], sizes = [4, 16, 16], strides = [1, 1, 1]} : vector<4x18x18xf32> to vector<4x16x16xf32>
    %124 = vector.extract_strided_slice %54 {offsets = [0, 1, 1], sizes = [4, 1, 1], strides = [1, 1, 1]} : vector<4x3x3xf32> to vector<4x1x1xf32>
    %125 = vector.extract_strided_slice %55 {offsets = [0, 1, 1], sizes = [4, 1, 1], strides = [1, 1, 1]} : vector<4x3x3xf32> to vector<4x1x1xf32>
    %126 = vector.broadcast %124 : vector<4x1x1xf32> to vector<4x16x16xf32>
    %127 = arith.mulf %122, %126 : vector<4x16x16xf32>
    %128 = arith.addf %115, %127 : vector<4x16x16xf32>
    %129 = vector.broadcast %125 : vector<4x1x1xf32> to vector<4x16x16xf32>
    %130 = arith.mulf %123, %129 : vector<4x16x16xf32>
    %131 = arith.subf %128, %130 : vector<4x16x16xf32>
    %132 = vector.broadcast %125 : vector<4x1x1xf32> to vector<4x16x16xf32>
    %133 = arith.mulf %122, %132 : vector<4x16x16xf32>
    %134 = arith.addf %121, %133 : vector<4x16x16xf32>
    %135 = vector.broadcast %124 : vector<4x1x1xf32> to vector<4x16x16xf32>
    %136 = arith.mulf %123, %135 : vector<4x16x16xf32>
    %137 = arith.addf %134, %136 : vector<4x16x16xf32>
    %138 = vector.extract_strided_slice %52 {offsets = [0, 1, 2], sizes = [4, 16, 16], strides = [1, 1, 1]} : vector<4x18x18xf32> to vector<4x16x16xf32>
    %139 = vector.extract_strided_slice %53 {offsets = [0, 1, 2], sizes = [4, 16, 16], strides = [1, 1, 1]} : vector<4x18x18xf32> to vector<4x16x16xf32>
    %140 = vector.extract_strided_slice %54 {offsets = [0, 1, 2], sizes = [4, 1, 1], strides = [1, 1, 1]} : vector<4x3x3xf32> to vector<4x1x1xf32>
    %141 = vector.extract_strided_slice %55 {offsets = [0, 1, 2], sizes = [4, 1, 1], strides = [1, 1, 1]} : vector<4x3x3xf32> to vector<4x1x1xf32>
    %142 = vector.broadcast %140 : vector<4x1x1xf32> to vector<4x16x16xf32>
    %143 = arith.mulf %138, %142 : vector<4x16x16xf32>
    %144 = arith.addf %131, %143 : vector<4x16x16xf32>
    %145 = vector.broadcast %141 : vector<4x1x1xf32> to vector<4x16x16xf32>
    %146 = arith.mulf %139, %145 : vector<4x16x16xf32>
    %147 = arith.subf %144, %146 : vector<4x16x16xf32>
    %148 = vector.broadcast %141 : vector<4x1x1xf32> to vector<4x16x16xf32>
    %149 = arith.mulf %138, %148 : vector<4x16x16xf32>
    %150 = arith.addf %137, %149 : vector<4x16x16xf32>
    %151 = vector.broadcast %140 : vector<4x1x1xf32> to vector<4x16x16xf32>
    %152 = arith.mulf %139, %151 : vector<4x16x16xf32>
    %153 = arith.addf %150, %152 : vector<4x16x16xf32>
    %154 = vector.extract_strided_slice %52 {offsets = [0, 2, 0], sizes = [4, 16, 16], strides = [1, 1, 1]} : vector<4x18x18xf32> to vector<4x16x16xf32>
    %155 = vector.extract_strided_slice %53 {offsets = [0, 2, 0], sizes = [4, 16, 16], strides = [1, 1, 1]} : vector<4x18x18xf32> to vector<4x16x16xf32>
    %156 = vector.extract_strided_slice %54 {offsets = [0, 2, 0], sizes = [4, 1, 1], strides = [1, 1, 1]} : vector<4x3x3xf32> to vector<4x1x1xf32>
    %157 = vector.extract_strided_slice %55 {offsets = [0, 2, 0], sizes = [4, 1, 1], strides = [1, 1, 1]} : vector<4x3x3xf32> to vector<4x1x1xf32>
    %158 = vector.broadcast %156 : vector<4x1x1xf32> to vector<4x16x16xf32>
    %159 = arith.mulf %154, %158 : vector<4x16x16xf32>
    %160 = arith.addf %147, %159 : vector<4x16x16xf32>
    %161 = vector.broadcast %157 : vector<4x1x1xf32> to vector<4x16x16xf32>
    %162 = arith.mulf %155, %161 : vector<4x16x16xf32>
    %163 = arith.subf %160, %162 : vector<4x16x16xf32>
    %164 = vector.broadcast %157 : vector<4x1x1xf32> to vector<4x16x16xf32>
    %165 = arith.mulf %154, %164 : vector<4x16x16xf32>
    %166 = arith.addf %153, %165 : vector<4x16x16xf32>
    %167 = vector.broadcast %156 : vector<4x1x1xf32> to vector<4x16x16xf32>
    %168 = arith.mulf %155, %167 : vector<4x16x16xf32>
    %169 = arith.addf %166, %168 : vector<4x16x16xf32>
    %170 = vector.extract_strided_slice %52 {offsets = [0, 2, 1], sizes = [4, 16, 16], strides = [1, 1, 1]} : vector<4x18x18xf32> to vector<4x16x16xf32>
    %171 = vector.extract_strided_slice %53 {offsets = [0, 2, 1], sizes = [4, 16, 16], strides = [1, 1, 1]} : vector<4x18x18xf32> to vector<4x16x16xf32>
    %172 = vector.extract_strided_slice %54 {offsets = [0, 2, 1], sizes = [4, 1, 1], strides = [1, 1, 1]} : vector<4x3x3xf32> to vector<4x1x1xf32>
    %173 = vector.extract_strided_slice %55 {offsets = [0, 2, 1], sizes = [4, 1, 1], strides = [1, 1, 1]} : vector<4x3x3xf32> to vector<4x1x1xf32>
    %174 = vector.broadcast %172 : vector<4x1x1xf32> to vector<4x16x16xf32>
    %175 = arith.mulf %170, %174 : vector<4x16x16xf32>
    %176 = arith.addf %163, %175 : vector<4x16x16xf32>
    %177 = vector.broadcast %173 : vector<4x1x1xf32> to vector<4x16x16xf32>
    %178 = arith.mulf %171, %177 : vector<4x16x16xf32>
    %179 = arith.subf %176, %178 : vector<4x16x16xf32>
    %180 = vector.broadcast %173 : vector<4x1x1xf32> to vector<4x16x16xf32>
    %181 = arith.mulf %170, %180 : vector<4x16x16xf32>
    %182 = arith.addf %169, %181 : vector<4x16x16xf32>
    %183 = vector.broadcast %172 : vector<4x1x1xf32> to vector<4x16x16xf32>
    %184 = arith.mulf %171, %183 : vector<4x16x16xf32>
    %185 = arith.addf %182, %184 : vector<4x16x16xf32>
    %186 = vector.extract_strided_slice %52 {offsets = [0, 2, 2], sizes = [4, 16, 16], strides = [1, 1, 1]} : vector<4x18x18xf32> to vector<4x16x16xf32>
    %187 = vector.extract_strided_slice %53 {offsets = [0, 2, 2], sizes = [4, 16, 16], strides = [1, 1, 1]} : vector<4x18x18xf32> to vector<4x16x16xf32>
    %188 = vector.extract_strided_slice %54 {offsets = [0, 2, 2], sizes = [4, 1, 1], strides = [1, 1, 1]} : vector<4x3x3xf32> to vector<4x1x1xf32>
    %189 = vector.extract_strided_slice %55 {offsets = [0, 2, 2], sizes = [4, 1, 1], strides = [1, 1, 1]} : vector<4x3x3xf32> to vector<4x1x1xf32>
    %190 = vector.broadcast %188 : vector<4x1x1xf32> to vector<4x16x16xf32>
    %191 = arith.mulf %186, %190 : vector<4x16x16xf32>
    %192 = arith.addf %179, %191 : vector<4x16x16xf32>
    %193 = vector.broadcast %189 : vector<4x1x1xf32> to vector<4x16x16xf32>
    %194 = arith.mulf %187, %193 : vector<4x16x16xf32>
    %195 = arith.subf %192, %194 : vector<4x16x16xf32>
    %196 = vector.broadcast %189 : vector<4x1x1xf32> to vector<4x16x16xf32>
    %197 = arith.mulf %186, %196 : vector<4x16x16xf32>
    %198 = arith.addf %185, %197 : vector<4x16x16xf32>
    %199 = vector.broadcast %188 : vector<4x1x1xf32> to vector<4x16x16xf32>
    %200 = arith.mulf %187, %199 : vector<4x16x16xf32>
    %201 = arith.addf %198, %200 : vector<4x16x16xf32>
    %cst_39 = arith.constant 0.000000e+00 : f32
    %202 = vector.broadcast %cst_39 : f32 to vector<16x16xf32>
    %cst_40 = arith.constant 0.000000e+00 : f32
    %203 = vector.broadcast %cst_40 : f32 to vector<16x16xf32>
    %c0_41 = arith.constant 0 : index
    %c0_42 = arith.constant 0 : index
    %204 = memref.load %arg6[%c0_41, %c0_42] : memref<4x8xf32, #tpu.memory_space<smem>>
    %c0_43 = arith.constant 0 : index
    %c0_44 = arith.constant 0 : index
    %205 = memref.load %arg7[%c0_43, %c0_44] : memref<4x8xf32, #tpu.memory_space<smem>>
    %206 = vector.extract_strided_slice %195 {offsets = [0, 0, 0], sizes = [1, 16, 16], strides = [1, 1, 1]} : vector<4x16x16xf32> to vector<1x16x16xf32>
    %207 = vector.shape_cast %206 : vector<1x16x16xf32> to vector<16x16xf32>
    %208 = vector.extract_strided_slice %201 {offsets = [0, 0, 0], sizes = [1, 16, 16], strides = [1, 1, 1]} : vector<4x16x16xf32> to vector<1x16x16xf32>
    %209 = vector.shape_cast %208 : vector<1x16x16xf32> to vector<16x16xf32>
    %210 = vector.broadcast %204 : f32 to vector<16x16xf32>
    %211 = arith.mulf %207, %210 : vector<16x16xf32>
    %212 = arith.addf %202, %211 : vector<16x16xf32>
    %213 = vector.broadcast %205 : f32 to vector<16x16xf32>
    %214 = arith.mulf %209, %213 : vector<16x16xf32>
    %215 = arith.subf %212, %214 : vector<16x16xf32>
    %216 = vector.broadcast %205 : f32 to vector<16x16xf32>
    %217 = arith.mulf %207, %216 : vector<16x16xf32>
    %218 = arith.addf %203, %217 : vector<16x16xf32>
    %219 = vector.broadcast %204 : f32 to vector<16x16xf32>
    %220 = arith.mulf %209, %219 : vector<16x16xf32>
    %221 = arith.addf %218, %220 : vector<16x16xf32>
    %c1_45 = arith.constant 1 : index
    %c0_46 = arith.constant 0 : index
    %222 = memref.load %arg6[%c1_45, %c0_46] : memref<4x8xf32, #tpu.memory_space<smem>>
    %c1_47 = arith.constant 1 : index
    %c0_48 = arith.constant 0 : index
    %223 = memref.load %arg7[%c1_47, %c0_48] : memref<4x8xf32, #tpu.memory_space<smem>>
    %224 = vector.extract_strided_slice %195 {offsets = [1, 0, 0], sizes = [1, 16, 16], strides = [1, 1, 1]} : vector<4x16x16xf32> to vector<1x16x16xf32>
    %225 = vector.shape_cast %224 : vector<1x16x16xf32> to vector<16x16xf32>
    %226 = vector.extract_strided_slice %201 {offsets = [1, 0, 0], sizes = [1, 16, 16], strides = [1, 1, 1]} : vector<4x16x16xf32> to vector<1x16x16xf32>
    %227 = vector.shape_cast %226 : vector<1x16x16xf32> to vector<16x16xf32>
    %228 = vector.broadcast %222 : f32 to vector<16x16xf32>
    %229 = arith.mulf %225, %228 : vector<16x16xf32>
    %230 = arith.addf %215, %229 : vector<16x16xf32>
    %231 = vector.broadcast %223 : f32 to vector<16x16xf32>
    %232 = arith.mulf %227, %231 : vector<16x16xf32>
    %233 = arith.subf %230, %232 : vector<16x16xf32>
    %234 = vector.broadcast %223 : f32 to vector<16x16xf32>
    %235 = arith.mulf %225, %234 : vector<16x16xf32>
    %236 = arith.addf %221, %235 : vector<16x16xf32>
    %237 = vector.broadcast %222 : f32 to vector<16x16xf32>
    %238 = arith.mulf %227, %237 : vector<16x16xf32>
    %239 = arith.addf %236, %238 : vector<16x16xf32>
    %c2 = arith.constant 2 : index
    %c0_49 = arith.constant 0 : index
    %240 = memref.load %arg6[%c2, %c0_49] : memref<4x8xf32, #tpu.memory_space<smem>>
    %c2_50 = arith.constant 2 : index
    %c0_51 = arith.constant 0 : index
    %241 = memref.load %arg7[%c2_50, %c0_51] : memref<4x8xf32, #tpu.memory_space<smem>>
    %242 = vector.extract_strided_slice %195 {offsets = [2, 0, 0], sizes = [1, 16, 16], strides = [1, 1, 1]} : vector<4x16x16xf32> to vector<1x16x16xf32>
    %243 = vector.shape_cast %242 : vector<1x16x16xf32> to vector<16x16xf32>
    %244 = vector.extract_strided_slice %201 {offsets = [2, 0, 0], sizes = [1, 16, 16], strides = [1, 1, 1]} : vector<4x16x16xf32> to vector<1x16x16xf32>
    %245 = vector.shape_cast %244 : vector<1x16x16xf32> to vector<16x16xf32>
    %246 = vector.broadcast %240 : f32 to vector<16x16xf32>
    %247 = arith.mulf %243, %246 : vector<16x16xf32>
    %248 = arith.addf %233, %247 : vector<16x16xf32>
    %249 = vector.broadcast %241 : f32 to vector<16x16xf32>
    %250 = arith.mulf %245, %249 : vector<16x16xf32>
    %251 = arith.subf %248, %250 : vector<16x16xf32>
    %252 = vector.broadcast %241 : f32 to vector<16x16xf32>
    %253 = arith.mulf %243, %252 : vector<16x16xf32>
    %254 = arith.addf %239, %253 : vector<16x16xf32>
    %255 = vector.broadcast %240 : f32 to vector<16x16xf32>
    %256 = arith.mulf %245, %255 : vector<16x16xf32>
    %257 = arith.addf %254, %256 : vector<16x16xf32>
    %c3 = arith.constant 3 : index
    %c0_52 = arith.constant 0 : index
    %258 = memref.load %arg6[%c3, %c0_52] : memref<4x8xf32, #tpu.memory_space<smem>>
    %c3_53 = arith.constant 3 : index
    %c0_54 = arith.constant 0 : index
    %259 = memref.load %arg7[%c3_53, %c0_54] : memref<4x8xf32, #tpu.memory_space<smem>>
    %260 = vector.extract_strided_slice %195 {offsets = [3, 0, 0], sizes = [1, 16, 16], strides = [1, 1, 1]} : vector<4x16x16xf32> to vector<1x16x16xf32>
    %261 = vector.shape_cast %260 : vector<1x16x16xf32> to vector<16x16xf32>
    %262 = vector.extract_strided_slice %201 {offsets = [3, 0, 0], sizes = [1, 16, 16], strides = [1, 1, 1]} : vector<4x16x16xf32> to vector<1x16x16xf32>
    %263 = vector.shape_cast %262 : vector<1x16x16xf32> to vector<16x16xf32>
    %264 = vector.broadcast %258 : f32 to vector<16x16xf32>
    %265 = arith.mulf %261, %264 : vector<16x16xf32>
    %266 = arith.addf %251, %265 : vector<16x16xf32>
    %267 = vector.broadcast %259 : f32 to vector<16x16xf32>
    %268 = arith.mulf %263, %267 : vector<16x16xf32>
    %269 = arith.subf %266, %268 : vector<16x16xf32>
    %270 = vector.broadcast %259 : f32 to vector<16x16xf32>
    %271 = arith.mulf %261, %270 : vector<16x16xf32>
    %272 = arith.addf %257, %271 : vector<16x16xf32>
    %273 = vector.broadcast %258 : f32 to vector<16x16xf32>
    %274 = arith.mulf %263, %273 : vector<16x16xf32>
    %275 = arith.addf %272, %274 : vector<16x16xf32>
    %cst_55 = arith.constant 0.000000e+00 : f32
    %276 = vector.broadcast %cst_55 : f32 to vector<16x16xf32>
    %cst_56 = arith.constant 0.000000e+00 : f32
    %277 = vector.broadcast %cst_56 : f32 to vector<16x16xf32>
    %c0_57 = arith.constant 0 : index
    %c1_58 = arith.constant 1 : index
    %278 = memref.load %arg6[%c0_57, %c1_58] : memref<4x8xf32, #tpu.memory_space<smem>>
    %c0_59 = arith.constant 0 : index
    %c1_60 = arith.constant 1 : index
    %279 = memref.load %arg7[%c0_59, %c1_60] : memref<4x8xf32, #tpu.memory_space<smem>>
    %280 = vector.extract_strided_slice %195 {offsets = [0, 0, 0], sizes = [1, 16, 16], strides = [1, 1, 1]} : vector<4x16x16xf32> to vector<1x16x16xf32>
    %281 = vector.shape_cast %280 : vector<1x16x16xf32> to vector<16x16xf32>
    %282 = vector.extract_strided_slice %201 {offsets = [0, 0, 0], sizes = [1, 16, 16], strides = [1, 1, 1]} : vector<4x16x16xf32> to vector<1x16x16xf32>
    %283 = vector.shape_cast %282 : vector<1x16x16xf32> to vector<16x16xf32>
    %284 = vector.broadcast %278 : f32 to vector<16x16xf32>
    %285 = arith.mulf %281, %284 : vector<16x16xf32>
    %286 = arith.addf %276, %285 : vector<16x16xf32>
    %287 = vector.broadcast %279 : f32 to vector<16x16xf32>
    %288 = arith.mulf %283, %287 : vector<16x16xf32>
    %289 = arith.subf %286, %288 : vector<16x16xf32>
    %290 = vector.broadcast %279 : f32 to vector<16x16xf32>
    %291 = arith.mulf %281, %290 : vector<16x16xf32>
    %292 = arith.addf %277, %291 : vector<16x16xf32>
    %293 = vector.broadcast %278 : f32 to vector<16x16xf32>
    %294 = arith.mulf %283, %293 : vector<16x16xf32>
    %295 = arith.addf %292, %294 : vector<16x16xf32>
    %c1_61 = arith.constant 1 : index
    %c1_62 = arith.constant 1 : index
    %296 = memref.load %arg6[%c1_61, %c1_62] : memref<4x8xf32, #tpu.memory_space<smem>>
    %c1_63 = arith.constant 1 : index
    %c1_64 = arith.constant 1 : index
    %297 = memref.load %arg7[%c1_63, %c1_64] : memref<4x8xf32, #tpu.memory_space<smem>>
    %298 = vector.extract_strided_slice %195 {offsets = [1, 0, 0], sizes = [1, 16, 16], strides = [1, 1, 1]} : vector<4x16x16xf32> to vector<1x16x16xf32>
    %299 = vector.shape_cast %298 : vector<1x16x16xf32> to vector<16x16xf32>
    %300 = vector.extract_strided_slice %201 {offsets = [1, 0, 0], sizes = [1, 16, 16], strides = [1, 1, 1]} : vector<4x16x16xf32> to vector<1x16x16xf32>
    %301 = vector.shape_cast %300 : vector<1x16x16xf32> to vector<16x16xf32>
    %302 = vector.broadcast %296 : f32 to vector<16x16xf32>
    %303 = arith.mulf %299, %302 : vector<16x16xf32>
    %304 = arith.addf %289, %303 : vector<16x16xf32>
    %305 = vector.broadcast %297 : f32 to vector<16x16xf32>
    %306 = arith.mulf %301, %305 : vector<16x16xf32>
    %307 = arith.subf %304, %306 : vector<16x16xf32>
    %308 = vector.broadcast %297 : f32 to vector<16x16xf32>
    %309 = arith.mulf %299, %308 : vector<16x16xf32>
    %310 = arith.addf %295, %309 : vector<16x16xf32>
    %311 = vector.broadcast %296 : f32 to vector<16x16xf32>
    %312 = arith.mulf %301, %311 : vector<16x16xf32>
    %313 = arith.addf %310, %312 : vector<16x16xf32>
    %c2_65 = arith.constant 2 : index
    %c1_66 = arith.constant 1 : index
    %314 = memref.load %arg6[%c2_65, %c1_66] : memref<4x8xf32, #tpu.memory_space<smem>>
    %c2_67 = arith.constant 2 : index
    %c1_68 = arith.constant 1 : index
    %315 = memref.load %arg7[%c2_67, %c1_68] : memref<4x8xf32, #tpu.memory_space<smem>>
    %316 = vector.extract_strided_slice %195 {offsets = [2, 0, 0], sizes = [1, 16, 16], strides = [1, 1, 1]} : vector<4x16x16xf32> to vector<1x16x16xf32>
    %317 = vector.shape_cast %316 : vector<1x16x16xf32> to vector<16x16xf32>
    %318 = vector.extract_strided_slice %201 {offsets = [2, 0, 0], sizes = [1, 16, 16], strides = [1, 1, 1]} : vector<4x16x16xf32> to vector<1x16x16xf32>
    %319 = vector.shape_cast %318 : vector<1x16x16xf32> to vector<16x16xf32>
    %320 = vector.broadcast %314 : f32 to vector<16x16xf32>
    %321 = arith.mulf %317, %320 : vector<16x16xf32>
    %322 = arith.addf %307, %321 : vector<16x16xf32>
    %323 = vector.broadcast %315 : f32 to vector<16x16xf32>
    %324 = arith.mulf %319, %323 : vector<16x16xf32>
    %325 = arith.subf %322, %324 : vector<16x16xf32>
    %326 = vector.broadcast %315 : f32 to vector<16x16xf32>
    %327 = arith.mulf %317, %326 : vector<16x16xf32>
    %328 = arith.addf %313, %327 : vector<16x16xf32>
    %329 = vector.broadcast %314 : f32 to vector<16x16xf32>
    %330 = arith.mulf %319, %329 : vector<16x16xf32>
    %331 = arith.addf %328, %330 : vector<16x16xf32>
    %c3_69 = arith.constant 3 : index
    %c1_70 = arith.constant 1 : index
    %332 = memref.load %arg6[%c3_69, %c1_70] : memref<4x8xf32, #tpu.memory_space<smem>>
    %c3_71 = arith.constant 3 : index
    %c1_72 = arith.constant 1 : index
    %333 = memref.load %arg7[%c3_71, %c1_72] : memref<4x8xf32, #tpu.memory_space<smem>>
    %334 = vector.extract_strided_slice %195 {offsets = [3, 0, 0], sizes = [1, 16, 16], strides = [1, 1, 1]} : vector<4x16x16xf32> to vector<1x16x16xf32>
    %335 = vector.shape_cast %334 : vector<1x16x16xf32> to vector<16x16xf32>
    %336 = vector.extract_strided_slice %201 {offsets = [3, 0, 0], sizes = [1, 16, 16], strides = [1, 1, 1]} : vector<4x16x16xf32> to vector<1x16x16xf32>
    %337 = vector.shape_cast %336 : vector<1x16x16xf32> to vector<16x16xf32>
    %338 = vector.broadcast %332 : f32 to vector<16x16xf32>
    %339 = arith.mulf %335, %338 : vector<16x16xf32>
    %340 = arith.addf %325, %339 : vector<16x16xf32>
    %341 = vector.broadcast %333 : f32 to vector<16x16xf32>
    %342 = arith.mulf %337, %341 : vector<16x16xf32>
    %343 = arith.subf %340, %342 : vector<16x16xf32>
    %344 = vector.broadcast %333 : f32 to vector<16x16xf32>
    %345 = arith.mulf %335, %344 : vector<16x16xf32>
    %346 = arith.addf %331, %345 : vector<16x16xf32>
    %347 = vector.broadcast %332 : f32 to vector<16x16xf32>
    %348 = arith.mulf %337, %347 : vector<16x16xf32>
    %349 = arith.addf %346, %348 : vector<16x16xf32>
    %cst_73 = arith.constant 0.000000e+00 : f32
    %350 = vector.broadcast %cst_73 : f32 to vector<16x16xf32>
    %cst_74 = arith.constant 0.000000e+00 : f32
    %351 = vector.broadcast %cst_74 : f32 to vector<16x16xf32>
    %c0_75 = arith.constant 0 : index
    %c2_76 = arith.constant 2 : index
    %352 = memref.load %arg6[%c0_75, %c2_76] : memref<4x8xf32, #tpu.memory_space<smem>>
    %c0_77 = arith.constant 0 : index
    %c2_78 = arith.constant 2 : index
    %353 = memref.load %arg7[%c0_77, %c2_78] : memref<4x8xf32, #tpu.memory_space<smem>>
    %354 = vector.extract_strided_slice %195 {offsets = [0, 0, 0], sizes = [1, 16, 16], strides = [1, 1, 1]} : vector<4x16x16xf32> to vector<1x16x16xf32>
    %355 = vector.shape_cast %354 : vector<1x16x16xf32> to vector<16x16xf32>
    %356 = vector.extract_strided_slice %201 {offsets = [0, 0, 0], sizes = [1, 16, 16], strides = [1, 1, 1]} : vector<4x16x16xf32> to vector<1x16x16xf32>
    %357 = vector.shape_cast %356 : vector<1x16x16xf32> to vector<16x16xf32>
    %358 = vector.broadcast %352 : f32 to vector<16x16xf32>
    %359 = arith.mulf %355, %358 : vector<16x16xf32>
    %360 = arith.addf %350, %359 : vector<16x16xf32>
    %361 = vector.broadcast %353 : f32 to vector<16x16xf32>
    %362 = arith.mulf %357, %361 : vector<16x16xf32>
    %363 = arith.subf %360, %362 : vector<16x16xf32>
    %364 = vector.broadcast %353 : f32 to vector<16x16xf32>
    %365 = arith.mulf %355, %364 : vector<16x16xf32>
    %366 = arith.addf %351, %365 : vector<16x16xf32>
    %367 = vector.broadcast %352 : f32 to vector<16x16xf32>
    %368 = arith.mulf %357, %367 : vector<16x16xf32>
    %369 = arith.addf %366, %368 : vector<16x16xf32>
    %c1_79 = arith.constant 1 : index
    %c2_80 = arith.constant 2 : index
    %370 = memref.load %arg6[%c1_79, %c2_80] : memref<4x8xf32, #tpu.memory_space<smem>>
    %c1_81 = arith.constant 1 : index
    %c2_82 = arith.constant 2 : index
    %371 = memref.load %arg7[%c1_81, %c2_82] : memref<4x8xf32, #tpu.memory_space<smem>>
    %372 = vector.extract_strided_slice %195 {offsets = [1, 0, 0], sizes = [1, 16, 16], strides = [1, 1, 1]} : vector<4x16x16xf32> to vector<1x16x16xf32>
    %373 = vector.shape_cast %372 : vector<1x16x16xf32> to vector<16x16xf32>
    %374 = vector.extract_strided_slice %201 {offsets = [1, 0, 0], sizes = [1, 16, 16], strides = [1, 1, 1]} : vector<4x16x16xf32> to vector<1x16x16xf32>
    %375 = vector.shape_cast %374 : vector<1x16x16xf32> to vector<16x16xf32>
    %376 = vector.broadcast %370 : f32 to vector<16x16xf32>
    %377 = arith.mulf %373, %376 : vector<16x16xf32>
    %378 = arith.addf %363, %377 : vector<16x16xf32>
    %379 = vector.broadcast %371 : f32 to vector<16x16xf32>
    %380 = arith.mulf %375, %379 : vector<16x16xf32>
    %381 = arith.subf %378, %380 : vector<16x16xf32>
    %382 = vector.broadcast %371 : f32 to vector<16x16xf32>
    %383 = arith.mulf %373, %382 : vector<16x16xf32>
    %384 = arith.addf %369, %383 : vector<16x16xf32>
    %385 = vector.broadcast %370 : f32 to vector<16x16xf32>
    %386 = arith.mulf %375, %385 : vector<16x16xf32>
    %387 = arith.addf %384, %386 : vector<16x16xf32>
    %c2_83 = arith.constant 2 : index
    %c2_84 = arith.constant 2 : index
    %388 = memref.load %arg6[%c2_83, %c2_84] : memref<4x8xf32, #tpu.memory_space<smem>>
    %c2_85 = arith.constant 2 : index
    %c2_86 = arith.constant 2 : index
    %389 = memref.load %arg7[%c2_85, %c2_86] : memref<4x8xf32, #tpu.memory_space<smem>>
    %390 = vector.extract_strided_slice %195 {offsets = [2, 0, 0], sizes = [1, 16, 16], strides = [1, 1, 1]} : vector<4x16x16xf32> to vector<1x16x16xf32>
    %391 = vector.shape_cast %390 : vector<1x16x16xf32> to vector<16x16xf32>
    %392 = vector.extract_strided_slice %201 {offsets = [2, 0, 0], sizes = [1, 16, 16], strides = [1, 1, 1]} : vector<4x16x16xf32> to vector<1x16x16xf32>
    %393 = vector.shape_cast %392 : vector<1x16x16xf32> to vector<16x16xf32>
    %394 = vector.broadcast %388 : f32 to vector<16x16xf32>
    %395 = arith.mulf %391, %394 : vector<16x16xf32>
    %396 = arith.addf %381, %395 : vector<16x16xf32>
    %397 = vector.broadcast %389 : f32 to vector<16x16xf32>
    %398 = arith.mulf %393, %397 : vector<16x16xf32>
    %399 = arith.subf %396, %398 : vector<16x16xf32>
    %400 = vector.broadcast %389 : f32 to vector<16x16xf32>
    %401 = arith.mulf %391, %400 : vector<16x16xf32>
    %402 = arith.addf %387, %401 : vector<16x16xf32>
    %403 = vector.broadcast %388 : f32 to vector<16x16xf32>
    %404 = arith.mulf %393, %403 : vector<16x16xf32>
    %405 = arith.addf %402, %404 : vector<16x16xf32>
    %c3_87 = arith.constant 3 : index
    %c2_88 = arith.constant 2 : index
    %406 = memref.load %arg6[%c3_87, %c2_88] : memref<4x8xf32, #tpu.memory_space<smem>>
    %c3_89 = arith.constant 3 : index
    %c2_90 = arith.constant 2 : index
    %407 = memref.load %arg7[%c3_89, %c2_90] : memref<4x8xf32, #tpu.memory_space<smem>>
    %408 = vector.extract_strided_slice %195 {offsets = [3, 0, 0], sizes = [1, 16, 16], strides = [1, 1, 1]} : vector<4x16x16xf32> to vector<1x16x16xf32>
    %409 = vector.shape_cast %408 : vector<1x16x16xf32> to vector<16x16xf32>
    %410 = vector.extract_strided_slice %201 {offsets = [3, 0, 0], sizes = [1, 16, 16], strides = [1, 1, 1]} : vector<4x16x16xf32> to vector<1x16x16xf32>
    %411 = vector.shape_cast %410 : vector<1x16x16xf32> to vector<16x16xf32>
    %412 = vector.broadcast %406 : f32 to vector<16x16xf32>
    %413 = arith.mulf %409, %412 : vector<16x16xf32>
    %414 = arith.addf %399, %413 : vector<16x16xf32>
    %415 = vector.broadcast %407 : f32 to vector<16x16xf32>
    %416 = arith.mulf %411, %415 : vector<16x16xf32>
    %417 = arith.subf %414, %416 : vector<16x16xf32>
    %418 = vector.broadcast %407 : f32 to vector<16x16xf32>
    %419 = arith.mulf %409, %418 : vector<16x16xf32>
    %420 = arith.addf %405, %419 : vector<16x16xf32>
    %421 = vector.broadcast %406 : f32 to vector<16x16xf32>
    %422 = arith.mulf %411, %421 : vector<16x16xf32>
    %423 = arith.addf %420, %422 : vector<16x16xf32>
    %cst_91 = arith.constant 0.000000e+00 : f32
    %424 = vector.broadcast %cst_91 : f32 to vector<16x16xf32>
    %cst_92 = arith.constant 0.000000e+00 : f32
    %425 = vector.broadcast %cst_92 : f32 to vector<16x16xf32>
    %c0_93 = arith.constant 0 : index
    %c3_94 = arith.constant 3 : index
    %426 = memref.load %arg6[%c0_93, %c3_94] : memref<4x8xf32, #tpu.memory_space<smem>>
    %c0_95 = arith.constant 0 : index
    %c3_96 = arith.constant 3 : index
    %427 = memref.load %arg7[%c0_95, %c3_96] : memref<4x8xf32, #tpu.memory_space<smem>>
    %428 = vector.extract_strided_slice %195 {offsets = [0, 0, 0], sizes = [1, 16, 16], strides = [1, 1, 1]} : vector<4x16x16xf32> to vector<1x16x16xf32>
    %429 = vector.shape_cast %428 : vector<1x16x16xf32> to vector<16x16xf32>
    %430 = vector.extract_strided_slice %201 {offsets = [0, 0, 0], sizes = [1, 16, 16], strides = [1, 1, 1]} : vector<4x16x16xf32> to vector<1x16x16xf32>
    %431 = vector.shape_cast %430 : vector<1x16x16xf32> to vector<16x16xf32>
    %432 = vector.broadcast %426 : f32 to vector<16x16xf32>
    %433 = arith.mulf %429, %432 : vector<16x16xf32>
    %434 = arith.addf %424, %433 : vector<16x16xf32>
    %435 = vector.broadcast %427 : f32 to vector<16x16xf32>
    %436 = arith.mulf %431, %435 : vector<16x16xf32>
    %437 = arith.subf %434, %436 : vector<16x16xf32>
    %438 = vector.broadcast %427 : f32 to vector<16x16xf32>
    %439 = arith.mulf %429, %438 : vector<16x16xf32>
    %440 = arith.addf %425, %439 : vector<16x16xf32>
    %441 = vector.broadcast %426 : f32 to vector<16x16xf32>
    %442 = arith.mulf %431, %441 : vector<16x16xf32>
    %443 = arith.addf %440, %442 : vector<16x16xf32>
    %c1_97 = arith.constant 1 : index
    %c3_98 = arith.constant 3 : index
    %444 = memref.load %arg6[%c1_97, %c3_98] : memref<4x8xf32, #tpu.memory_space<smem>>
    %c1_99 = arith.constant 1 : index
    %c3_100 = arith.constant 3 : index
    %445 = memref.load %arg7[%c1_99, %c3_100] : memref<4x8xf32, #tpu.memory_space<smem>>
    %446 = vector.extract_strided_slice %195 {offsets = [1, 0, 0], sizes = [1, 16, 16], strides = [1, 1, 1]} : vector<4x16x16xf32> to vector<1x16x16xf32>
    %447 = vector.shape_cast %446 : vector<1x16x16xf32> to vector<16x16xf32>
    %448 = vector.extract_strided_slice %201 {offsets = [1, 0, 0], sizes = [1, 16, 16], strides = [1, 1, 1]} : vector<4x16x16xf32> to vector<1x16x16xf32>
    %449 = vector.shape_cast %448 : vector<1x16x16xf32> to vector<16x16xf32>
    %450 = vector.broadcast %444 : f32 to vector<16x16xf32>
    %451 = arith.mulf %447, %450 : vector<16x16xf32>
    %452 = arith.addf %437, %451 : vector<16x16xf32>
    %453 = vector.broadcast %445 : f32 to vector<16x16xf32>
    %454 = arith.mulf %449, %453 : vector<16x16xf32>
    %455 = arith.subf %452, %454 : vector<16x16xf32>
    %456 = vector.broadcast %445 : f32 to vector<16x16xf32>
    %457 = arith.mulf %447, %456 : vector<16x16xf32>
    %458 = arith.addf %443, %457 : vector<16x16xf32>
    %459 = vector.broadcast %444 : f32 to vector<16x16xf32>
    %460 = arith.mulf %449, %459 : vector<16x16xf32>
    %461 = arith.addf %458, %460 : vector<16x16xf32>
    %c2_101 = arith.constant 2 : index
    %c3_102 = arith.constant 3 : index
    %462 = memref.load %arg6[%c2_101, %c3_102] : memref<4x8xf32, #tpu.memory_space<smem>>
    %c2_103 = arith.constant 2 : index
    %c3_104 = arith.constant 3 : index
    %463 = memref.load %arg7[%c2_103, %c3_104] : memref<4x8xf32, #tpu.memory_space<smem>>
    %464 = vector.extract_strided_slice %195 {offsets = [2, 0, 0], sizes = [1, 16, 16], strides = [1, 1, 1]} : vector<4x16x16xf32> to vector<1x16x16xf32>
    %465 = vector.shape_cast %464 : vector<1x16x16xf32> to vector<16x16xf32>
    %466 = vector.extract_strided_slice %201 {offsets = [2, 0, 0], sizes = [1, 16, 16], strides = [1, 1, 1]} : vector<4x16x16xf32> to vector<1x16x16xf32>
    %467 = vector.shape_cast %466 : vector<1x16x16xf32> to vector<16x16xf32>
    %468 = vector.broadcast %462 : f32 to vector<16x16xf32>
    %469 = arith.mulf %465, %468 : vector<16x16xf32>
    %470 = arith.addf %455, %469 : vector<16x16xf32>
    %471 = vector.broadcast %463 : f32 to vector<16x16xf32>
    %472 = arith.mulf %467, %471 : vector<16x16xf32>
    %473 = arith.subf %470, %472 : vector<16x16xf32>
    %474 = vector.broadcast %463 : f32 to vector<16x16xf32>
    %475 = arith.mulf %465, %474 : vector<16x16xf32>
    %476 = arith.addf %461, %475 : vector<16x16xf32>
    %477 = vector.broadcast %462 : f32 to vector<16x16xf32>
    %478 = arith.mulf %467, %477 : vector<16x16xf32>
    %479 = arith.addf %476, %478 : vector<16x16xf32>
    %c3_105 = arith.constant 3 : index
    %c3_106 = arith.constant 3 : index
    %480 = memref.load %arg6[%c3_105, %c3_106] : memref<4x8xf32, #tpu.memory_space<smem>>
    %c3_107 = arith.constant 3 : index
    %c3_108 = arith.constant 3 : index
    %481 = memref.load %arg7[%c3_107, %c3_108] : memref<4x8xf32, #tpu.memory_space<smem>>
    %482 = vector.extract_strided_slice %195 {offsets = [3, 0, 0], sizes = [1, 16, 16], strides = [1, 1, 1]} : vector<4x16x16xf32> to vector<1x16x16xf32>
    %483 = vector.shape_cast %482 : vector<1x16x16xf32> to vector<16x16xf32>
    %484 = vector.extract_strided_slice %201 {offsets = [3, 0, 0], sizes = [1, 16, 16], strides = [1, 1, 1]} : vector<4x16x16xf32> to vector<1x16x16xf32>
    %485 = vector.shape_cast %484 : vector<1x16x16xf32> to vector<16x16xf32>
    %486 = vector.broadcast %480 : f32 to vector<16x16xf32>
    %487 = arith.mulf %483, %486 : vector<16x16xf32>
    %488 = arith.addf %473, %487 : vector<16x16xf32>
    %489 = vector.broadcast %481 : f32 to vector<16x16xf32>
    %490 = arith.mulf %485, %489 : vector<16x16xf32>
    %491 = arith.subf %488, %490 : vector<16x16xf32>
    %492 = vector.broadcast %481 : f32 to vector<16x16xf32>
    %493 = arith.mulf %483, %492 : vector<16x16xf32>
    %494 = arith.addf %479, %493 : vector<16x16xf32>
    %495 = vector.broadcast %480 : f32 to vector<16x16xf32>
    %496 = arith.mulf %485, %495 : vector<16x16xf32>
    %497 = arith.addf %494, %496 : vector<16x16xf32>
    %cst_109 = arith.constant 0.000000e+00 : f32
    %498 = vector.broadcast %cst_109 : f32 to vector<16x16xf32>
    %cst_110 = arith.constant 0.000000e+00 : f32
    %499 = vector.broadcast %cst_110 : f32 to vector<16x16xf32>
    %c0_111 = arith.constant 0 : index
    %c4 = arith.constant 4 : index
    %500 = memref.load %arg6[%c0_111, %c4] : memref<4x8xf32, #tpu.memory_space<smem>>
    %c0_112 = arith.constant 0 : index
    %c4_113 = arith.constant 4 : index
    %501 = memref.load %arg7[%c0_112, %c4_113] : memref<4x8xf32, #tpu.memory_space<smem>>
    %502 = vector.extract_strided_slice %195 {offsets = [0, 0, 0], sizes = [1, 16, 16], strides = [1, 1, 1]} : vector<4x16x16xf32> to vector<1x16x16xf32>
    %503 = vector.shape_cast %502 : vector<1x16x16xf32> to vector<16x16xf32>
    %504 = vector.extract_strided_slice %201 {offsets = [0, 0, 0], sizes = [1, 16, 16], strides = [1, 1, 1]} : vector<4x16x16xf32> to vector<1x16x16xf32>
    %505 = vector.shape_cast %504 : vector<1x16x16xf32> to vector<16x16xf32>
    %506 = vector.broadcast %500 : f32 to vector<16x16xf32>
    %507 = arith.mulf %503, %506 : vector<16x16xf32>
    %508 = arith.addf %498, %507 : vector<16x16xf32>
    %509 = vector.broadcast %501 : f32 to vector<16x16xf32>
    %510 = arith.mulf %505, %509 : vector<16x16xf32>
    %511 = arith.subf %508, %510 : vector<16x16xf32>
    %512 = vector.broadcast %501 : f32 to vector<16x16xf32>
    %513 = arith.mulf %503, %512 : vector<16x16xf32>
    %514 = arith.addf %499, %513 : vector<16x16xf32>
    %515 = vector.broadcast %500 : f32 to vector<16x16xf32>
    %516 = arith.mulf %505, %515 : vector<16x16xf32>
    %517 = arith.addf %514, %516 : vector<16x16xf32>
    %c1_114 = arith.constant 1 : index
    %c4_115 = arith.constant 4 : index
    %518 = memref.load %arg6[%c1_114, %c4_115] : memref<4x8xf32, #tpu.memory_space<smem>>
    %c1_116 = arith.constant 1 : index
    %c4_117 = arith.constant 4 : index
    %519 = memref.load %arg7[%c1_116, %c4_117] : memref<4x8xf32, #tpu.memory_space<smem>>
    %520 = vector.extract_strided_slice %195 {offsets = [1, 0, 0], sizes = [1, 16, 16], strides = [1, 1, 1]} : vector<4x16x16xf32> to vector<1x16x16xf32>
    %521 = vector.shape_cast %520 : vector<1x16x16xf32> to vector<16x16xf32>
    %522 = vector.extract_strided_slice %201 {offsets = [1, 0, 0], sizes = [1, 16, 16], strides = [1, 1, 1]} : vector<4x16x16xf32> to vector<1x16x16xf32>
    %523 = vector.shape_cast %522 : vector<1x16x16xf32> to vector<16x16xf32>
    %524 = vector.broadcast %518 : f32 to vector<16x16xf32>
    %525 = arith.mulf %521, %524 : vector<16x16xf32>
    %526 = arith.addf %511, %525 : vector<16x16xf32>
    %527 = vector.broadcast %519 : f32 to vector<16x16xf32>
    %528 = arith.mulf %523, %527 : vector<16x16xf32>
    %529 = arith.subf %526, %528 : vector<16x16xf32>
    %530 = vector.broadcast %519 : f32 to vector<16x16xf32>
    %531 = arith.mulf %521, %530 : vector<16x16xf32>
    %532 = arith.addf %517, %531 : vector<16x16xf32>
    %533 = vector.broadcast %518 : f32 to vector<16x16xf32>
    %534 = arith.mulf %523, %533 : vector<16x16xf32>
    %535 = arith.addf %532, %534 : vector<16x16xf32>
    %c2_118 = arith.constant 2 : index
    %c4_119 = arith.constant 4 : index
    %536 = memref.load %arg6[%c2_118, %c4_119] : memref<4x8xf32, #tpu.memory_space<smem>>
    %c2_120 = arith.constant 2 : index
    %c4_121 = arith.constant 4 : index
    %537 = memref.load %arg7[%c2_120, %c4_121] : memref<4x8xf32, #tpu.memory_space<smem>>
    %538 = vector.extract_strided_slice %195 {offsets = [2, 0, 0], sizes = [1, 16, 16], strides = [1, 1, 1]} : vector<4x16x16xf32> to vector<1x16x16xf32>
    %539 = vector.shape_cast %538 : vector<1x16x16xf32> to vector<16x16xf32>
    %540 = vector.extract_strided_slice %201 {offsets = [2, 0, 0], sizes = [1, 16, 16], strides = [1, 1, 1]} : vector<4x16x16xf32> to vector<1x16x16xf32>
    %541 = vector.shape_cast %540 : vector<1x16x16xf32> to vector<16x16xf32>
    %542 = vector.broadcast %536 : f32 to vector<16x16xf32>
    %543 = arith.mulf %539, %542 : vector<16x16xf32>
    %544 = arith.addf %529, %543 : vector<16x16xf32>
    %545 = vector.broadcast %537 : f32 to vector<16x16xf32>
    %546 = arith.mulf %541, %545 : vector<16x16xf32>
    %547 = arith.subf %544, %546 : vector<16x16xf32>
    %548 = vector.broadcast %537 : f32 to vector<16x16xf32>
    %549 = arith.mulf %539, %548 : vector<16x16xf32>
    %550 = arith.addf %535, %549 : vector<16x16xf32>
    %551 = vector.broadcast %536 : f32 to vector<16x16xf32>
    %552 = arith.mulf %541, %551 : vector<16x16xf32>
    %553 = arith.addf %550, %552 : vector<16x16xf32>
    %c3_122 = arith.constant 3 : index
    %c4_123 = arith.constant 4 : index
    %554 = memref.load %arg6[%c3_122, %c4_123] : memref<4x8xf32, #tpu.memory_space<smem>>
    %c3_124 = arith.constant 3 : index
    %c4_125 = arith.constant 4 : index
    %555 = memref.load %arg7[%c3_124, %c4_125] : memref<4x8xf32, #tpu.memory_space<smem>>
    %556 = vector.extract_strided_slice %195 {offsets = [3, 0, 0], sizes = [1, 16, 16], strides = [1, 1, 1]} : vector<4x16x16xf32> to vector<1x16x16xf32>
    %557 = vector.shape_cast %556 : vector<1x16x16xf32> to vector<16x16xf32>
    %558 = vector.extract_strided_slice %201 {offsets = [3, 0, 0], sizes = [1, 16, 16], strides = [1, 1, 1]} : vector<4x16x16xf32> to vector<1x16x16xf32>
    %559 = vector.shape_cast %558 : vector<1x16x16xf32> to vector<16x16xf32>
    %560 = vector.broadcast %554 : f32 to vector<16x16xf32>
    %561 = arith.mulf %557, %560 : vector<16x16xf32>
    %562 = arith.addf %547, %561 : vector<16x16xf32>
    %563 = vector.broadcast %555 : f32 to vector<16x16xf32>
    %564 = arith.mulf %559, %563 : vector<16x16xf32>
    %565 = arith.subf %562, %564 : vector<16x16xf32>
    %566 = vector.broadcast %555 : f32 to vector<16x16xf32>
    %567 = arith.mulf %557, %566 : vector<16x16xf32>
    %568 = arith.addf %553, %567 : vector<16x16xf32>
    %569 = vector.broadcast %554 : f32 to vector<16x16xf32>
    %570 = arith.mulf %559, %569 : vector<16x16xf32>
    %571 = arith.addf %568, %570 : vector<16x16xf32>
    %cst_126 = arith.constant 0.000000e+00 : f32
    %572 = vector.broadcast %cst_126 : f32 to vector<16x16xf32>
    %cst_127 = arith.constant 0.000000e+00 : f32
    %573 = vector.broadcast %cst_127 : f32 to vector<16x16xf32>
    %c0_128 = arith.constant 0 : index
    %c5 = arith.constant 5 : index
    %574 = memref.load %arg6[%c0_128, %c5] : memref<4x8xf32, #tpu.memory_space<smem>>
    %c0_129 = arith.constant 0 : index
    %c5_130 = arith.constant 5 : index
    %575 = memref.load %arg7[%c0_129, %c5_130] : memref<4x8xf32, #tpu.memory_space<smem>>
    %576 = vector.extract_strided_slice %195 {offsets = [0, 0, 0], sizes = [1, 16, 16], strides = [1, 1, 1]} : vector<4x16x16xf32> to vector<1x16x16xf32>
    %577 = vector.shape_cast %576 : vector<1x16x16xf32> to vector<16x16xf32>
    %578 = vector.extract_strided_slice %201 {offsets = [0, 0, 0], sizes = [1, 16, 16], strides = [1, 1, 1]} : vector<4x16x16xf32> to vector<1x16x16xf32>
    %579 = vector.shape_cast %578 : vector<1x16x16xf32> to vector<16x16xf32>
    %580 = vector.broadcast %574 : f32 to vector<16x16xf32>
    %581 = arith.mulf %577, %580 : vector<16x16xf32>
    %582 = arith.addf %572, %581 : vector<16x16xf32>
    %583 = vector.broadcast %575 : f32 to vector<16x16xf32>
    %584 = arith.mulf %579, %583 : vector<16x16xf32>
    %585 = arith.subf %582, %584 : vector<16x16xf32>
    %586 = vector.broadcast %575 : f32 to vector<16x16xf32>
    %587 = arith.mulf %577, %586 : vector<16x16xf32>
    %588 = arith.addf %573, %587 : vector<16x16xf32>
    %589 = vector.broadcast %574 : f32 to vector<16x16xf32>
    %590 = arith.mulf %579, %589 : vector<16x16xf32>
    %591 = arith.addf %588, %590 : vector<16x16xf32>
    %c1_131 = arith.constant 1 : index
    %c5_132 = arith.constant 5 : index
    %592 = memref.load %arg6[%c1_131, %c5_132] : memref<4x8xf32, #tpu.memory_space<smem>>
    %c1_133 = arith.constant 1 : index
    %c5_134 = arith.constant 5 : index
    %593 = memref.load %arg7[%c1_133, %c5_134] : memref<4x8xf32, #tpu.memory_space<smem>>
    %594 = vector.extract_strided_slice %195 {offsets = [1, 0, 0], sizes = [1, 16, 16], strides = [1, 1, 1]} : vector<4x16x16xf32> to vector<1x16x16xf32>
    %595 = vector.shape_cast %594 : vector<1x16x16xf32> to vector<16x16xf32>
    %596 = vector.extract_strided_slice %201 {offsets = [1, 0, 0], sizes = [1, 16, 16], strides = [1, 1, 1]} : vector<4x16x16xf32> to vector<1x16x16xf32>
    %597 = vector.shape_cast %596 : vector<1x16x16xf32> to vector<16x16xf32>
    %598 = vector.broadcast %592 : f32 to vector<16x16xf32>
    %599 = arith.mulf %595, %598 : vector<16x16xf32>
    %600 = arith.addf %585, %599 : vector<16x16xf32>
    %601 = vector.broadcast %593 : f32 to vector<16x16xf32>
    %602 = arith.mulf %597, %601 : vector<16x16xf32>
    %603 = arith.subf %600, %602 : vector<16x16xf32>
    %604 = vector.broadcast %593 : f32 to vector<16x16xf32>
    %605 = arith.mulf %595, %604 : vector<16x16xf32>
    %606 = arith.addf %591, %605 : vector<16x16xf32>
    %607 = vector.broadcast %592 : f32 to vector<16x16xf32>
    %608 = arith.mulf %597, %607 : vector<16x16xf32>
    %609 = arith.addf %606, %608 : vector<16x16xf32>
    %c2_135 = arith.constant 2 : index
    %c5_136 = arith.constant 5 : index
    %610 = memref.load %arg6[%c2_135, %c5_136] : memref<4x8xf32, #tpu.memory_space<smem>>
    %c2_137 = arith.constant 2 : index
    %c5_138 = arith.constant 5 : index
    %611 = memref.load %arg7[%c2_137, %c5_138] : memref<4x8xf32, #tpu.memory_space<smem>>
    %612 = vector.extract_strided_slice %195 {offsets = [2, 0, 0], sizes = [1, 16, 16], strides = [1, 1, 1]} : vector<4x16x16xf32> to vector<1x16x16xf32>
    %613 = vector.shape_cast %612 : vector<1x16x16xf32> to vector<16x16xf32>
    %614 = vector.extract_strided_slice %201 {offsets = [2, 0, 0], sizes = [1, 16, 16], strides = [1, 1, 1]} : vector<4x16x16xf32> to vector<1x16x16xf32>
    %615 = vector.shape_cast %614 : vector<1x16x16xf32> to vector<16x16xf32>
    %616 = vector.broadcast %610 : f32 to vector<16x16xf32>
    %617 = arith.mulf %613, %616 : vector<16x16xf32>
    %618 = arith.addf %603, %617 : vector<16x16xf32>
    %619 = vector.broadcast %611 : f32 to vector<16x16xf32>
    %620 = arith.mulf %615, %619 : vector<16x16xf32>
    %621 = arith.subf %618, %620 : vector<16x16xf32>
    %622 = vector.broadcast %611 : f32 to vector<16x16xf32>
    %623 = arith.mulf %613, %622 : vector<16x16xf32>
    %624 = arith.addf %609, %623 : vector<16x16xf32>
    %625 = vector.broadcast %610 : f32 to vector<16x16xf32>
    %626 = arith.mulf %615, %625 : vector<16x16xf32>
    %627 = arith.addf %624, %626 : vector<16x16xf32>
    %c3_139 = arith.constant 3 : index
    %c5_140 = arith.constant 5 : index
    %628 = memref.load %arg6[%c3_139, %c5_140] : memref<4x8xf32, #tpu.memory_space<smem>>
    %c3_141 = arith.constant 3 : index
    %c5_142 = arith.constant 5 : index
    %629 = memref.load %arg7[%c3_141, %c5_142] : memref<4x8xf32, #tpu.memory_space<smem>>
    %630 = vector.extract_strided_slice %195 {offsets = [3, 0, 0], sizes = [1, 16, 16], strides = [1, 1, 1]} : vector<4x16x16xf32> to vector<1x16x16xf32>
    %631 = vector.shape_cast %630 : vector<1x16x16xf32> to vector<16x16xf32>
    %632 = vector.extract_strided_slice %201 {offsets = [3, 0, 0], sizes = [1, 16, 16], strides = [1, 1, 1]} : vector<4x16x16xf32> to vector<1x16x16xf32>
    %633 = vector.shape_cast %632 : vector<1x16x16xf32> to vector<16x16xf32>
    %634 = vector.broadcast %628 : f32 to vector<16x16xf32>
    %635 = arith.mulf %631, %634 : vector<16x16xf32>
    %636 = arith.addf %621, %635 : vector<16x16xf32>
    %637 = vector.broadcast %629 : f32 to vector<16x16xf32>
    %638 = arith.mulf %633, %637 : vector<16x16xf32>
    %639 = arith.subf %636, %638 : vector<16x16xf32>
    %640 = vector.broadcast %629 : f32 to vector<16x16xf32>
    %641 = arith.mulf %631, %640 : vector<16x16xf32>
    %642 = arith.addf %627, %641 : vector<16x16xf32>
    %643 = vector.broadcast %628 : f32 to vector<16x16xf32>
    %644 = arith.mulf %633, %643 : vector<16x16xf32>
    %645 = arith.addf %642, %644 : vector<16x16xf32>
    %cst_143 = arith.constant 0.000000e+00 : f32
    %646 = vector.broadcast %cst_143 : f32 to vector<16x16xf32>
    %cst_144 = arith.constant 0.000000e+00 : f32
    %647 = vector.broadcast %cst_144 : f32 to vector<16x16xf32>
    %c0_145 = arith.constant 0 : index
    %c6 = arith.constant 6 : index
    %648 = memref.load %arg6[%c0_145, %c6] : memref<4x8xf32, #tpu.memory_space<smem>>
    %c0_146 = arith.constant 0 : index
    %c6_147 = arith.constant 6 : index
    %649 = memref.load %arg7[%c0_146, %c6_147] : memref<4x8xf32, #tpu.memory_space<smem>>
    %650 = vector.extract_strided_slice %195 {offsets = [0, 0, 0], sizes = [1, 16, 16], strides = [1, 1, 1]} : vector<4x16x16xf32> to vector<1x16x16xf32>
    %651 = vector.shape_cast %650 : vector<1x16x16xf32> to vector<16x16xf32>
    %652 = vector.extract_strided_slice %201 {offsets = [0, 0, 0], sizes = [1, 16, 16], strides = [1, 1, 1]} : vector<4x16x16xf32> to vector<1x16x16xf32>
    %653 = vector.shape_cast %652 : vector<1x16x16xf32> to vector<16x16xf32>
    %654 = vector.broadcast %648 : f32 to vector<16x16xf32>
    %655 = arith.mulf %651, %654 : vector<16x16xf32>
    %656 = arith.addf %646, %655 : vector<16x16xf32>
    %657 = vector.broadcast %649 : f32 to vector<16x16xf32>
    %658 = arith.mulf %653, %657 : vector<16x16xf32>
    %659 = arith.subf %656, %658 : vector<16x16xf32>
    %660 = vector.broadcast %649 : f32 to vector<16x16xf32>
    %661 = arith.mulf %651, %660 : vector<16x16xf32>
    %662 = arith.addf %647, %661 : vector<16x16xf32>
    %663 = vector.broadcast %648 : f32 to vector<16x16xf32>
    %664 = arith.mulf %653, %663 : vector<16x16xf32>
    %665 = arith.addf %662, %664 : vector<16x16xf32>
    %c1_148 = arith.constant 1 : index
    %c6_149 = arith.constant 6 : index
    %666 = memref.load %arg6[%c1_148, %c6_149] : memref<4x8xf32, #tpu.memory_space<smem>>
    %c1_150 = arith.constant 1 : index
    %c6_151 = arith.constant 6 : index
    %667 = memref.load %arg7[%c1_150, %c6_151] : memref<4x8xf32, #tpu.memory_space<smem>>
    %668 = vector.extract_strided_slice %195 {offsets = [1, 0, 0], sizes = [1, 16, 16], strides = [1, 1, 1]} : vector<4x16x16xf32> to vector<1x16x16xf32>
    %669 = vector.shape_cast %668 : vector<1x16x16xf32> to vector<16x16xf32>
    %670 = vector.extract_strided_slice %201 {offsets = [1, 0, 0], sizes = [1, 16, 16], strides = [1, 1, 1]} : vector<4x16x16xf32> to vector<1x16x16xf32>
    %671 = vector.shape_cast %670 : vector<1x16x16xf32> to vector<16x16xf32>
    %672 = vector.broadcast %666 : f32 to vector<16x16xf32>
    %673 = arith.mulf %669, %672 : vector<16x16xf32>
    %674 = arith.addf %659, %673 : vector<16x16xf32>
    %675 = vector.broadcast %667 : f32 to vector<16x16xf32>
    %676 = arith.mulf %671, %675 : vector<16x16xf32>
    %677 = arith.subf %674, %676 : vector<16x16xf32>
    %678 = vector.broadcast %667 : f32 to vector<16x16xf32>
    %679 = arith.mulf %669, %678 : vector<16x16xf32>
    %680 = arith.addf %665, %679 : vector<16x16xf32>
    %681 = vector.broadcast %666 : f32 to vector<16x16xf32>
    %682 = arith.mulf %671, %681 : vector<16x16xf32>
    %683 = arith.addf %680, %682 : vector<16x16xf32>
    %c2_152 = arith.constant 2 : index
    %c6_153 = arith.constant 6 : index
    %684 = memref.load %arg6[%c2_152, %c6_153] : memref<4x8xf32, #tpu.memory_space<smem>>
    %c2_154 = arith.constant 2 : index
    %c6_155 = arith.constant 6 : index
    %685 = memref.load %arg7[%c2_154, %c6_155] : memref<4x8xf32, #tpu.memory_space<smem>>
    %686 = vector.extract_strided_slice %195 {offsets = [2, 0, 0], sizes = [1, 16, 16], strides = [1, 1, 1]} : vector<4x16x16xf32> to vector<1x16x16xf32>
    %687 = vector.shape_cast %686 : vector<1x16x16xf32> to vector<16x16xf32>
    %688 = vector.extract_strided_slice %201 {offsets = [2, 0, 0], sizes = [1, 16, 16], strides = [1, 1, 1]} : vector<4x16x16xf32> to vector<1x16x16xf32>
    %689 = vector.shape_cast %688 : vector<1x16x16xf32> to vector<16x16xf32>
    %690 = vector.broadcast %684 : f32 to vector<16x16xf32>
    %691 = arith.mulf %687, %690 : vector<16x16xf32>
    %692 = arith.addf %677, %691 : vector<16x16xf32>
    %693 = vector.broadcast %685 : f32 to vector<16x16xf32>
    %694 = arith.mulf %689, %693 : vector<16x16xf32>
    %695 = arith.subf %692, %694 : vector<16x16xf32>
    %696 = vector.broadcast %685 : f32 to vector<16x16xf32>
    %697 = arith.mulf %687, %696 : vector<16x16xf32>
    %698 = arith.addf %683, %697 : vector<16x16xf32>
    %699 = vector.broadcast %684 : f32 to vector<16x16xf32>
    %700 = arith.mulf %689, %699 : vector<16x16xf32>
    %701 = arith.addf %698, %700 : vector<16x16xf32>
    %c3_156 = arith.constant 3 : index
    %c6_157 = arith.constant 6 : index
    %702 = memref.load %arg6[%c3_156, %c6_157] : memref<4x8xf32, #tpu.memory_space<smem>>
    %c3_158 = arith.constant 3 : index
    %c6_159 = arith.constant 6 : index
    %703 = memref.load %arg7[%c3_158, %c6_159] : memref<4x8xf32, #tpu.memory_space<smem>>
    %704 = vector.extract_strided_slice %195 {offsets = [3, 0, 0], sizes = [1, 16, 16], strides = [1, 1, 1]} : vector<4x16x16xf32> to vector<1x16x16xf32>
    %705 = vector.shape_cast %704 : vector<1x16x16xf32> to vector<16x16xf32>
    %706 = vector.extract_strided_slice %201 {offsets = [3, 0, 0], sizes = [1, 16, 16], strides = [1, 1, 1]} : vector<4x16x16xf32> to vector<1x16x16xf32>
    %707 = vector.shape_cast %706 : vector<1x16x16xf32> to vector<16x16xf32>
    %708 = vector.broadcast %702 : f32 to vector<16x16xf32>
    %709 = arith.mulf %705, %708 : vector<16x16xf32>
    %710 = arith.addf %695, %709 : vector<16x16xf32>
    %711 = vector.broadcast %703 : f32 to vector<16x16xf32>
    %712 = arith.mulf %707, %711 : vector<16x16xf32>
    %713 = arith.subf %710, %712 : vector<16x16xf32>
    %714 = vector.broadcast %703 : f32 to vector<16x16xf32>
    %715 = arith.mulf %705, %714 : vector<16x16xf32>
    %716 = arith.addf %701, %715 : vector<16x16xf32>
    %717 = vector.broadcast %702 : f32 to vector<16x16xf32>
    %718 = arith.mulf %707, %717 : vector<16x16xf32>
    %719 = arith.addf %716, %718 : vector<16x16xf32>
    %cst_160 = arith.constant 0.000000e+00 : f32
    %720 = vector.broadcast %cst_160 : f32 to vector<16x16xf32>
    %cst_161 = arith.constant 0.000000e+00 : f32
    %721 = vector.broadcast %cst_161 : f32 to vector<16x16xf32>
    %c0_162 = arith.constant 0 : index
    %c7 = arith.constant 7 : index
    %722 = memref.load %arg6[%c0_162, %c7] : memref<4x8xf32, #tpu.memory_space<smem>>
    %c0_163 = arith.constant 0 : index
    %c7_164 = arith.constant 7 : index
    %723 = memref.load %arg7[%c0_163, %c7_164] : memref<4x8xf32, #tpu.memory_space<smem>>
    %724 = vector.extract_strided_slice %195 {offsets = [0, 0, 0], sizes = [1, 16, 16], strides = [1, 1, 1]} : vector<4x16x16xf32> to vector<1x16x16xf32>
    %725 = vector.shape_cast %724 : vector<1x16x16xf32> to vector<16x16xf32>
    %726 = vector.extract_strided_slice %201 {offsets = [0, 0, 0], sizes = [1, 16, 16], strides = [1, 1, 1]} : vector<4x16x16xf32> to vector<1x16x16xf32>
    %727 = vector.shape_cast %726 : vector<1x16x16xf32> to vector<16x16xf32>
    %728 = vector.broadcast %722 : f32 to vector<16x16xf32>
    %729 = arith.mulf %725, %728 : vector<16x16xf32>
    %730 = arith.addf %720, %729 : vector<16x16xf32>
    %731 = vector.broadcast %723 : f32 to vector<16x16xf32>
    %732 = arith.mulf %727, %731 : vector<16x16xf32>
    %733 = arith.subf %730, %732 : vector<16x16xf32>
    %734 = vector.broadcast %723 : f32 to vector<16x16xf32>
    %735 = arith.mulf %725, %734 : vector<16x16xf32>
    %736 = arith.addf %721, %735 : vector<16x16xf32>
    %737 = vector.broadcast %722 : f32 to vector<16x16xf32>
    %738 = arith.mulf %727, %737 : vector<16x16xf32>
    %739 = arith.addf %736, %738 : vector<16x16xf32>
    %c1_165 = arith.constant 1 : index
    %c7_166 = arith.constant 7 : index
    %740 = memref.load %arg6[%c1_165, %c7_166] : memref<4x8xf32, #tpu.memory_space<smem>>
    %c1_167 = arith.constant 1 : index
    %c7_168 = arith.constant 7 : index
    %741 = memref.load %arg7[%c1_167, %c7_168] : memref<4x8xf32, #tpu.memory_space<smem>>
    %742 = vector.extract_strided_slice %195 {offsets = [1, 0, 0], sizes = [1, 16, 16], strides = [1, 1, 1]} : vector<4x16x16xf32> to vector<1x16x16xf32>
    %743 = vector.shape_cast %742 : vector<1x16x16xf32> to vector<16x16xf32>
    %744 = vector.extract_strided_slice %201 {offsets = [1, 0, 0], sizes = [1, 16, 16], strides = [1, 1, 1]} : vector<4x16x16xf32> to vector<1x16x16xf32>
    %745 = vector.shape_cast %744 : vector<1x16x16xf32> to vector<16x16xf32>
    %746 = vector.broadcast %740 : f32 to vector<16x16xf32>
    %747 = arith.mulf %743, %746 : vector<16x16xf32>
    %748 = arith.addf %733, %747 : vector<16x16xf32>
    %749 = vector.broadcast %741 : f32 to vector<16x16xf32>
    %750 = arith.mulf %745, %749 : vector<16x16xf32>
    %751 = arith.subf %748, %750 : vector<16x16xf32>
    %752 = vector.broadcast %741 : f32 to vector<16x16xf32>
    %753 = arith.mulf %743, %752 : vector<16x16xf32>
    %754 = arith.addf %739, %753 : vector<16x16xf32>
    %755 = vector.broadcast %740 : f32 to vector<16x16xf32>
    %756 = arith.mulf %745, %755 : vector<16x16xf32>
    %757 = arith.addf %754, %756 : vector<16x16xf32>
    %c2_169 = arith.constant 2 : index
    %c7_170 = arith.constant 7 : index
    %758 = memref.load %arg6[%c2_169, %c7_170] : memref<4x8xf32, #tpu.memory_space<smem>>
    %c2_171 = arith.constant 2 : index
    %c7_172 = arith.constant 7 : index
    %759 = memref.load %arg7[%c2_171, %c7_172] : memref<4x8xf32, #tpu.memory_space<smem>>
    %760 = vector.extract_strided_slice %195 {offsets = [2, 0, 0], sizes = [1, 16, 16], strides = [1, 1, 1]} : vector<4x16x16xf32> to vector<1x16x16xf32>
    %761 = vector.shape_cast %760 : vector<1x16x16xf32> to vector<16x16xf32>
    %762 = vector.extract_strided_slice %201 {offsets = [2, 0, 0], sizes = [1, 16, 16], strides = [1, 1, 1]} : vector<4x16x16xf32> to vector<1x16x16xf32>
    %763 = vector.shape_cast %762 : vector<1x16x16xf32> to vector<16x16xf32>
    %764 = vector.broadcast %758 : f32 to vector<16x16xf32>
    %765 = arith.mulf %761, %764 : vector<16x16xf32>
    %766 = arith.addf %751, %765 : vector<16x16xf32>
    %767 = vector.broadcast %759 : f32 to vector<16x16xf32>
    %768 = arith.mulf %763, %767 : vector<16x16xf32>
    %769 = arith.subf %766, %768 : vector<16x16xf32>
    %770 = vector.broadcast %759 : f32 to vector<16x16xf32>
    %771 = arith.mulf %761, %770 : vector<16x16xf32>
    %772 = arith.addf %757, %771 : vector<16x16xf32>
    %773 = vector.broadcast %758 : f32 to vector<16x16xf32>
    %774 = arith.mulf %763, %773 : vector<16x16xf32>
    %775 = arith.addf %772, %774 : vector<16x16xf32>
    %c3_173 = arith.constant 3 : index
    %c7_174 = arith.constant 7 : index
    %776 = memref.load %arg6[%c3_173, %c7_174] : memref<4x8xf32, #tpu.memory_space<smem>>
    %c3_175 = arith.constant 3 : index
    %c7_176 = arith.constant 7 : index
    %777 = memref.load %arg7[%c3_175, %c7_176] : memref<4x8xf32, #tpu.memory_space<smem>>
    %778 = vector.extract_strided_slice %195 {offsets = [3, 0, 0], sizes = [1, 16, 16], strides = [1, 1, 1]} : vector<4x16x16xf32> to vector<1x16x16xf32>
    %779 = vector.shape_cast %778 : vector<1x16x16xf32> to vector<16x16xf32>
    %780 = vector.extract_strided_slice %201 {offsets = [3, 0, 0], sizes = [1, 16, 16], strides = [1, 1, 1]} : vector<4x16x16xf32> to vector<1x16x16xf32>
    %781 = vector.shape_cast %780 : vector<1x16x16xf32> to vector<16x16xf32>
    %782 = vector.broadcast %776 : f32 to vector<16x16xf32>
    %783 = arith.mulf %779, %782 : vector<16x16xf32>
    %784 = arith.addf %769, %783 : vector<16x16xf32>
    %785 = vector.broadcast %777 : f32 to vector<16x16xf32>
    %786 = arith.mulf %781, %785 : vector<16x16xf32>
    %787 = arith.subf %784, %786 : vector<16x16xf32>
    %788 = vector.broadcast %777 : f32 to vector<16x16xf32>
    %789 = arith.mulf %779, %788 : vector<16x16xf32>
    %790 = arith.addf %775, %789 : vector<16x16xf32>
    %791 = vector.broadcast %776 : f32 to vector<16x16xf32>
    %792 = arith.mulf %781, %791 : vector<16x16xf32>
    %793 = arith.addf %790, %792 : vector<16x16xf32>
    %794 = vector.shape_cast %269 : vector<16x16xf32> to vector<1x16x16xf32>
    %795 = vector.shape_cast %343 : vector<16x16xf32> to vector<1x16x16xf32>
    %796 = vector.shape_cast %417 : vector<16x16xf32> to vector<1x16x16xf32>
    %797 = vector.shape_cast %491 : vector<16x16xf32> to vector<1x16x16xf32>
    %798 = vector.shape_cast %565 : vector<16x16xf32> to vector<1x16x16xf32>
    %799 = vector.shape_cast %639 : vector<16x16xf32> to vector<1x16x16xf32>
    %800 = vector.shape_cast %713 : vector<16x16xf32> to vector<1x16x16xf32>
    %801 = vector.shape_cast %787 : vector<16x16xf32> to vector<1x16x16xf32>
    %802 = tpu.concatenate %794, %795, %796, %797, %798, %799, %800, %801 in 0 : vector<1x16x16xf32>, vector<1x16x16xf32>, vector<1x16x16xf32>, vector<1x16x16xf32>, vector<1x16x16xf32>, vector<1x16x16xf32>, vector<1x16x16xf32>, vector<1x16x16xf32> -> vector<8x16x16xf32>
    %803 = vector.shape_cast %275 : vector<16x16xf32> to vector<1x16x16xf32>
    %804 = vector.shape_cast %349 : vector<16x16xf32> to vector<1x16x16xf32>
    %805 = vector.shape_cast %423 : vector<16x16xf32> to vector<1x16x16xf32>
    %806 = vector.shape_cast %497 : vector<16x16xf32> to vector<1x16x16xf32>
    %807 = vector.shape_cast %571 : vector<16x16xf32> to vector<1x16x16xf32>
    %808 = vector.shape_cast %645 : vector<16x16xf32> to vector<1x16x16xf32>
    %809 = vector.shape_cast %719 : vector<16x16xf32> to vector<1x16x16xf32>
    %810 = vector.shape_cast %793 : vector<16x16xf32> to vector<1x16x16xf32>
    %811 = tpu.concatenate %803, %804, %805, %806, %807, %808, %809, %810 in 0 : vector<1x16x16xf32>, vector<1x16x16xf32>, vector<1x16x16xf32>, vector<1x16x16xf32>, vector<1x16x16xf32>, vector<1x16x16xf32>, vector<1x16x16xf32>, vector<1x16x16xf32> -> vector<8x16x16xf32>
    %c0_177 = arith.constant 0 : index
    %c0_178 = arith.constant 0 : index
    %c0_179 = arith.constant 0 : index
    %c0_180 = arith.constant 0 : index
    %812 = vector.load %arg8[%c0_177, %c0_178, %c0_179, %c0_180] : memref<8x1x16x16xf32, #tpu.memory_space<vmem>>, vector<8x1x16x16xf32>
    %813 = vector.shape_cast %812 : vector<8x1x16x16xf32> to vector<8x16x16xf32>
    %814 = vector.shape_cast %802 : vector<8x16x16xf32> to vector<8x1x16x16xf32>
    tpu.vector_store %arg8[%c0_177, %c0_178, %c0_179, %c0_180], %814 {strides = array<i32>} : memref<8x1x16x16xf32, #tpu.memory_space<vmem>>, vector<8x1x16x16xf32>,
    %c0_181 = arith.constant 0 : index
    %c0_182 = arith.constant 0 : index
    %c0_183 = arith.constant 0 : index
    %c0_184 = arith.constant 0 : index
    %815 = vector.load %arg9[%c0_181, %c0_182, %c0_183, %c0_184] : memref<8x1x16x16xf32, #tpu.memory_space<vmem>>, vector<8x1x16x16xf32>
    %816 = vector.shape_cast %815 : vector<8x1x16x16xf32> to vector<8x16x16xf32>
    %817 = vector.shape_cast %811 : vector<8x16x16xf32> to vector<8x1x16x16xf32>
    tpu.vector_store %arg9[%c0_181, %c0_182, %c0_183, %c0_184], %817 {strides = array<i32>} : memref<8x1x16x16xf32, #tpu.memory_space<vmem>>, vector<8x1x16x16xf32>,
    %cst_185 = arith.constant dense<0.000000e+00> : vector<8x16xf32>
    %818 = vector.multi_reduction <add>, %802, %cst_185 [2] : vector<8x16x16xf32> to vector<8x16xf32>
    %cst_186 = arith.constant dense<0.000000e+00> : vector<8xf32>
    %819 = vector.multi_reduction <add>, %818, %cst_186 [1] : vector<8x16xf32> to vector<8xf32>
    %820 = vector.shape_cast %819 : vector<8xf32> to vector<8x1xf32>
    %cst_187 = arith.constant dense<0.000000e+00> : vector<8x16xf32>
    %821 = vector.multi_reduction <add>, %811, %cst_187 [2] : vector<8x16x16xf32> to vector<8x16xf32>
    %cst_188 = arith.constant dense<0.000000e+00> : vector<8xf32>
    %822 = vector.multi_reduction <add>, %821, %cst_188 [1] : vector<8x16xf32> to vector<8xf32>
    %823 = vector.shape_cast %822 : vector<8xf32> to vector<8x1xf32>
    %824 = arith.mulf %802, %802 : vector<8x16x16xf32>
    %cst_189 = arith.constant dense<0.000000e+00> : vector<8x16xf32>
    %825 = vector.multi_reduction <add>, %824, %cst_189 [2] : vector<8x16x16xf32> to vector<8x16xf32>
    %cst_190 = arith.constant dense<0.000000e+00> : vector<8xf32>
    %826 = vector.multi_reduction <add>, %825, %cst_190 [1] : vector<8x16xf32> to vector<8xf32>
    %827 = vector.shape_cast %826 : vector<8xf32> to vector<8x1xf32>
    %828 = arith.mulf %811, %811 : vector<8x16x16xf32>
    %cst_191 = arith.constant dense<0.000000e+00> : vector<8x16xf32>
    %829 = vector.multi_reduction <add>, %828, %cst_191 [2] : vector<8x16x16xf32> to vector<8x16xf32>
    %cst_192 = arith.constant dense<0.000000e+00> : vector<8xf32>
    %830 = vector.multi_reduction <add>, %829, %cst_192 [1] : vector<8x16xf32> to vector<8xf32>
    %831 = vector.shape_cast %830 : vector<8xf32> to vector<8x1xf32>
    %832 = arith.mulf %802, %811 : vector<8x16x16xf32>
    %cst_193 = arith.constant dense<0.000000e+00> : vector<8x16xf32>
    %833 = vector.multi_reduction <add>, %832, %cst_193 [2] : vector<8x16x16xf32> to vector<8x16xf32>
    %cst_194 = arith.constant dense<0.000000e+00> : vector<8xf32>
    %834 = vector.multi_reduction <add>, %833, %cst_194 [1] : vector<8x16xf32> to vector<8xf32>
    %835 = vector.shape_cast %834 : vector<8xf32> to vector<8x1xf32>
    %cst_195 = arith.constant 0.000000e+00 : f32
    %836 = vector.broadcast %cst_195 : f32 to vector<8x3xf32>
    %837 = tpu.concatenate %820, %823, %827, %831, %835, %836 in 1 : vector<8x1xf32>, vector<8x1xf32>, vector<8x1xf32>, vector<8x1xf32>, vector<8x1xf32>, vector<8x3xf32> -> vector<8x8xf32>
    %c0_196 = arith.constant 0 : index
    %c0_197 = arith.constant 0 : index
    %c0_198 = arith.constant 0 : index
    %838 = vector.load %arg10[%c0_196, %c0_197, %c0_198] : memref<1x8x8xf32, #tpu.memory_space<vmem>>, vector<1x8x8xf32>
    %839 = vector.shape_cast %838 : vector<1x8x8xf32> to vector<8x8xf32>
    %840 = vector.shape_cast %837 : vector<8x8xf32> to vector<1x8x8xf32>
    tpu.vector_store %arg10[%c0_196, %c0_197, %c0_198], %840 {strides = array<i32>} : memref<1x8x8xf32, #tpu.memory_space<vmem>>, vector<1x8x8xf32>,
    return
  }
  func.func @transform_0(%arg0: i32) -> (i32, i32, i32, i32) {
    %c0_i32 = arith.constant 0 : i32
    %c0_i32_0 = arith.constant 0 : i32
    %c0_i32_1 = arith.constant 0 : i32
    %c0_i32_2 = arith.constant 0 : i32
    return %c0_i32, %arg0, %c0_i32_0, %c0_i32_1 : i32, i32, i32, i32
  }
  func.func @transform_1(%arg0: i32) -> (i32, i32, i32, i32) {
    %c0_i32 = arith.constant 0 : i32
    %c0_i32_0 = arith.constant 0 : i32
    %c0_i32_1 = arith.constant 0 : i32
    %c0_i32_2 = arith.constant 0 : i32
    return %c0_i32, %arg0, %c0_i32_0, %c0_i32_1 : i32, i32, i32, i32
  }
  func.func @transform_2(%arg0: i32) -> (i32, i32, i32) {
    %c0_i32 = arith.constant 0 : i32
    %c0_i32_0 = arith.constant 0 : i32
    %c0_i32_1 = arith.constant 0 : i32
    %c0_i32_2 = arith.constant 0 : i32
    return %c0_i32, %c0_i32_0, %c0_i32_1 : i32, i32, i32
  }
  func.func @transform_3(%arg0: i32) -> (i32, i32, i32) {
    %c0_i32 = arith.constant 0 : i32
    %c0_i32_0 = arith.constant 0 : i32
    %c0_i32_1 = arith.constant 0 : i32
    %c0_i32_2 = arith.constant 0 : i32
    return %c0_i32, %c0_i32_0, %c0_i32_1 : i32, i32, i32
  }
  func.func @transform_4(%arg0: i32) -> (i32, i32, i32) {
    %c0_i32 = arith.constant 0 : i32
    %c0_i32_0 = arith.constant 0 : i32
    %c0_i32_1 = arith.constant 0 : i32
    %c0_i32_2 = arith.constant 0 : i32
    return %c0_i32, %c0_i32_0, %c0_i32_1 : i32, i32, i32
  }
  func.func @transform_5(%arg0: i32) -> (i32, i32) {
    %c0_i32 = arith.constant 0 : i32
    %c0_i32_0 = arith.constant 0 : i32
    %c0_i32_1 = arith.constant 0 : i32
    return %c0_i32, %c0_i32_0 : i32, i32
  }
  func.func @transform_6(%arg0: i32) -> (i32, i32) {
    %c0_i32 = arith.constant 0 : i32
    %c0_i32_0 = arith.constant 0 : i32
    %c0_i32_1 = arith.constant 0 : i32
    return %c0_i32, %c0_i32_0 : i32, i32
  }
  func.func @transform_7(%arg0: i32) -> (i32, i32, i32, i32) {
    %c0_i32 = arith.constant 0 : i32
    %c0_i32_0 = arith.constant 0 : i32
    %c0_i32_1 = arith.constant 0 : i32
    %c0_i32_2 = arith.constant 0 : i32
    return %c0_i32, %arg0, %c0_i32_0, %c0_i32_1 : i32, i32, i32, i32
  }
  func.func @transform_8(%arg0: i32) -> (i32, i32, i32, i32) {
    %c0_i32 = arith.constant 0 : i32
    %c0_i32_0 = arith.constant 0 : i32
    %c0_i32_1 = arith.constant 0 : i32
    %c0_i32_2 = arith.constant 0 : i32
    return %c0_i32, %arg0, %c0_i32_0, %c0_i32_1 : i32, i32, i32, i32
  }
  func.func @transform_9(%arg0: i32) -> (i32, i32, i32) {
    %c0_i32 = arith.constant 0 : i32
    %c0_i32_0 = arith.constant 0 : i32
    %c0_i32_1 = arith.constant 0 : i32
    return %arg0, %c0_i32, %c0_i32_0 : i32, i32, i32
  }
}

module attributes {stable_mosaic.version = 11 : i64} {
  func.func @kernel(%arg0: i32, %arg1: memref<8x256xf32, #tpu.memory_space<vmem>>, %arg2: memref<8x256xf32, #tpu.memory_space<vmem>>, %arg3: memref<8x9xf32, #tpu.memory_space<vmem>>, %arg4: memref<1x8x256xf32, #tpu.memory_space<vmem>>) attributes {dimension_semantics = [#tpu.dimension_semantics<parallel>], iteration_bounds = array<i64: 2>, scalar_prefetch = 0 : i64, scratch_operands = 0 : i64, tpu.core_type = #tpu.core_type<tc>, window_params = [{transform_indices = @transform_0, window_bounds = array<i64: 8, 256>}, {transform_indices = @transform_1, window_bounds = array<i64: 8, 256>}, {pipeline_mode = #tpu.pipeline_mode<synchronous>, transform_indices = @transform_2, window_bounds = array<i64: 8, 9>}, {transform_indices = @transform_3, window_bounds = array<i64: 1, 8, 256>}]} {
    %c0 = arith.constant 0 : index
    %c0_0 = arith.constant 0 : index
    %0 = vector.load %arg1[%c0, %c0_0] : memref<8x256xf32, #tpu.memory_space<vmem>>, vector<8x256xf32>
    %c0_1 = arith.constant 0 : index
    %c0_2 = arith.constant 0 : index
    %1 = vector.load %arg2[%c0_1, %c0_2] : memref<8x256xf32, #tpu.memory_space<vmem>>, vector<8x256xf32>
    %c0_3 = arith.constant 0 : index
    %c0_4 = arith.constant 0 : index
    %2 = vector.load %arg3[%c0_3, %c0_4] : memref<8x9xf32, #tpu.memory_space<vmem>>, vector<8x9xf32>
    %3 = vector.extract_strided_slice %2 {offsets = [0, 0], sizes = [8, 1], strides = [1, 1]} : vector<8x9xf32> to vector<8x1xf32>
    %4 = vector.broadcast %3 : vector<8x1xf32> to vector<8x256xf32>
    %5 = arith.subf %0, %4 : vector<8x256xf32>
    %6 = vector.extract_strided_slice %2 {offsets = [0, 1], sizes = [8, 1], strides = [1, 1]} : vector<8x9xf32> to vector<8x1xf32>
    %7 = vector.broadcast %6 : vector<8x1xf32> to vector<8x256xf32>
    %8 = arith.subf %1, %7 : vector<8x256xf32>
    %9 = vector.extract_strided_slice %2 {offsets = [0, 2], sizes = [8, 1], strides = [1, 1]} : vector<8x9xf32> to vector<8x1xf32>
    %10 = vector.broadcast %9 : vector<8x1xf32> to vector<8x256xf32>
    %11 = arith.mulf %5, %10 : vector<8x256xf32>
    %12 = vector.extract_strided_slice %2 {offsets = [0, 3], sizes = [8, 1], strides = [1, 1]} : vector<8x9xf32> to vector<8x1xf32>
    %13 = vector.broadcast %12 : vector<8x1xf32> to vector<8x256xf32>
    %14 = arith.mulf %8, %13 : vector<8x256xf32>
    %15 = arith.addf %11, %14 : vector<8x256xf32>
    %16 = vector.extract_strided_slice %2 {offsets = [0, 6], sizes = [8, 1], strides = [1, 1]} : vector<8x9xf32> to vector<8x1xf32>
    %17 = vector.broadcast %16 : vector<8x1xf32> to vector<8x256xf32>
    %18 = arith.addf %15, %17 : vector<8x256xf32>
    %19 = vector.extract_strided_slice %2 {offsets = [0, 4], sizes = [8, 1], strides = [1, 1]} : vector<8x9xf32> to vector<8x1xf32>
    %20 = vector.broadcast %19 : vector<8x1xf32> to vector<8x256xf32>
    %21 = arith.mulf %5, %20 : vector<8x256xf32>
    %22 = vector.extract_strided_slice %2 {offsets = [0, 5], sizes = [8, 1], strides = [1, 1]} : vector<8x9xf32> to vector<8x1xf32>
    %23 = vector.broadcast %22 : vector<8x1xf32> to vector<8x256xf32>
    %24 = arith.mulf %8, %23 : vector<8x256xf32>
    %25 = arith.addf %21, %24 : vector<8x256xf32>
    %26 = vector.extract_strided_slice %2 {offsets = [0, 7], sizes = [8, 1], strides = [1, 1]} : vector<8x9xf32> to vector<8x1xf32>
    %27 = vector.broadcast %26 : vector<8x1xf32> to vector<8x256xf32>
    %28 = arith.addf %25, %27 : vector<8x256xf32>
    %29 = arith.mulf %18, %18 : vector<8x256xf32>
    %30 = arith.mulf %28, %28 : vector<8x256xf32>
    %31 = arith.addf %29, %30 : vector<8x256xf32>
    %cst = arith.constant 1.000000e-24 : f32
    %32 = vector.broadcast %cst : f32 to vector<8x256xf32>
    %33 = arith.maximumf %31, %32 : vector<8x256xf32>
    %34 = math.rsqrt %33 : vector<8x256xf32>
    %35 = arith.mulf %31, %34 : vector<8x256xf32>
    %c0_5 = arith.constant 0 : index
    %c0_6 = arith.constant 0 : index
    %c0_7 = arith.constant 0 : index
    %36 = vector.load %arg4[%c0_5, %c0_6, %c0_7] : memref<1x8x256xf32, #tpu.memory_space<vmem>>, vector<1x8x256xf32>
    %37 = vector.shape_cast %36 : vector<1x8x256xf32> to vector<8x256xf32>
    %38 = vector.shape_cast %35 : vector<8x256xf32> to vector<1x8x256xf32>
    tpu.vector_store %arg4[%c0_5, %c0_6, %c0_7], %38 {strides = array<i32>} : memref<1x8x256xf32, #tpu.memory_space<vmem>>, vector<1x8x256xf32>,
    return
  }
  func.func @transform_0(%arg0: i32) -> (i32, i32) {
    %c0_i32 = arith.constant 0 : i32
    %c0_i32_0 = arith.constant 0 : i32
    return %c0_i32, %arg0 : i32, i32
  }
  func.func @transform_1(%arg0: i32) -> (i32, i32) {
    %c0_i32 = arith.constant 0 : i32
    %c0_i32_0 = arith.constant 0 : i32
    return %c0_i32, %arg0 : i32, i32
  }
  func.func @transform_2(%arg0: i32) -> (i32, i32) {
    %c0_i32 = arith.constant 0 : i32
    %c0_i32_0 = arith.constant 0 : i32
    %c0_i32_1 = arith.constant 0 : i32
    return %c0_i32, %c0_i32_0 : i32, i32
  }
  func.func @transform_3(%arg0: i32) -> (i32, i32, i32) {
    %c0_i32 = arith.constant 0 : i32
    %c0_i32_0 = arith.constant 0 : i32
    %c0_i32_1 = arith.constant 0 : i32
    return %arg0, %c0_i32, %c0_i32_0 : i32, i32, i32
  }
}

</mosaic_0001>

<llo_original>
// kernel: _lambda_.5
$region0: #{_lambda_.5}
  #allocation0 [shape = 'u32[]', space=smem, size = 0x4, offset = 0x4, fixed_abs, tag = 'smem constant byte address 0x4 - core index']
  #allocation1 [shape = 'u32[144,128]{1,0:T(1,128)}', space=vmem, size = 0x12000, scoped, tag = 'internal scratch']
  %s0 = inlined_call_operand.vmem [shape: f32[8,512], index: 0, kind: input, shape index: {}]
  %s1 = inlined_call_operand.vmem [shape: f32[8,512], index: 1, kind: input, shape index: {}]
  %s2 = inlined_call_operand.vmem [shape: f32[8,9], index: 2, kind: input, shape index: {}]
  %s3 = inlined_call_operand.vmem [shape: f32[2,8,256], index: 3, kind: output, shape index: {}]
  %s4 = sld [smem:[#allocation0]]
  $region45: #{_lambda_.5} parent=0
    _
  %s6 = ssub.s32 1, %s4
  %s7 = scalar_select 0, %s6, %s4
  loop: start=0, step=1, limit=4
  $region2: #{_lambda_.5} parent=0 // loop_pre_header
    _
  $region3: #{_lambda_.5} parent=0 // loop_header
    %s9 = sphi 0, %s13
    %p10 = scmp.ge.s32.totalorder %s9, 4
    %s19 = sphi 0, %s21
    %s22 = sphi 0, %s19
    %s23 = sphi 0, %s22
    %s39 = sphi 0, %s23
    %s45 = sphi 0, %s47
    %s48 = sphi 0, %s45
    %s49 = sphi 0, %s48
    %s65 = sphi 0, %s49
    %s69 = sphi 0, %s69
    %s71 = sphi 0, %s69
    %s72 = sphi 0, %s71
    %s86 = sphi 0, %s72
    %s92 = sphi 0, %s94
    %s95 = sphi 0, %s92
    %s96 = sphi 0, %s95
    %s112 = sphi 0, %s96
  $region4: #{_lambda_.5} parent=0 // loop_header_branch
    %12 = sbr.rel (%p10) target = $region8
  $region5: #{_lambda_.5} parent=0 // loop_body
    %s14 = ssub.s32 %s9, 1
    %s15 = ssub.s32 %s9, 2
    %s16 = sadd.s32 %s9, 1
    %s17 = ssub.s32 %s9, %s16
    %p18 = scmp.eq.s32.totalorder %s17, 0
    %s20 = sadd.s32 %s19, 1
    %s21 = scalar_select %p18, %s19, %s20
    %p24 = pneg %p18
    %p25 = scmp.eq.s32.totalorder %s9, 1
    %p26 = por %p24, %p25
    %p27 = scmp.ne.s32.totalorder %s19, %s22
    %p28 = scmp.eq.s32.totalorder %s9, 0
    %p29 = por %p27, %p28
    %p30 = scmp.ne.s32.totalorder %s19, %s22
    %p31 = scmp.eq.s32.totalorder %s14, 1
    %p32 = por %p30, %p31
    %p33 = scmp.ne.s32.totalorder %s22, %s23
    %p34 = scmp.eq.s32.totalorder %s14, 0
    %p35 = por %p33, %p34
    %p36 = scmp.ne.s32.totalorder %s22, %s23
    %p37 = scmp.eq.s32.totalorder %s15, 1
    %p38 = por %p36, %p37
    %p40 = scmp.ne.s32.totalorder %s23, %s39
    %p41 = scmp.eq.s32.totalorder %s15, 0
    %p42 = por %p40, %p41
    %s43 = ssub.s32 %s9, %s16
    %p44 = scmp.eq.s32.totalorder %s43, 0
    %s46 = sadd.s32 %s45, 1
    %s47 = scalar_select %p44, %s45, %s46
    %p50 = pneg %p44
    %p51 = scmp.eq.s32.totalorder %s9, 1
    %p52 = por %p50, %p51
    %p53 = scmp.ne.s32.totalorder %s45, %s48
    %p54 = scmp.eq.s32.totalorder %s9, 0
    %p55 = por %p53, %p54
    %p56 = scmp.ne.s32.totalorder %s45, %s48
    %p57 = scmp.eq.s32.totalorder %s14, 1
    %p58 = por %p56, %p57
    %p59 = scmp.ne.s32.totalorder %s48, %s49
    %p60 = scmp.eq.s32.totalorder %s14, 0
    %p61 = por %p59, %p60
    %p62 = scmp.ne.s32.totalorder %s48, %s49
    %p63 = scmp.eq.s32.totalorder %s15, 1
    %p64 = por %p62, %p63
    %p66 = scmp.ne.s32.totalorder %s49, %s65
    %p67 = scmp.eq.s32.totalorder %s15, 0
    %p68 = por %p66, %p67
    %s70 = sadd.s32 %s69, 1
    %p73 = scmp.eq.s32.totalorder %s9, 1
    %p74 = scmp.ne.s32.totalorder %s69, %s71
    %p75 = scmp.eq.s32.totalorder %s9, 0
    %p76 = por %p74, %p75
    %p77 = scmp.ne.s32.totalorder %s69, %s71
    %p78 = scmp.eq.s32.totalorder %s14, 1
    %p79 = por %p77, %p78
    %p80 = scmp.ne.s32.totalorder %s71, %s72
    %p81 = scmp.eq.s32.totalorder %s14, 0
    %p82 = por %p80, %p81
    %p83 = scmp.ne.s32.totalorder %s71, %s72
    %p84 = scmp.eq.s32.totalorder %s15, 1
    %p85 = por %p83, %p84
    %p87 = scmp.ne.s32.totalorder %s72, %s86
    %p88 = scmp.eq.s32.totalorder %s15, 0
    %p89 = por %p87, %p88
    %s90 = ssub.s32 %s9, %s16
    %p91 = scmp.eq.s32.totalorder %s90, 0
    %s93 = sadd.s32 %s92, 1
    %s94 = scalar_select %p91, %s92, %s93
    %p97 = pneg %p91
    %p98 = scmp.eq.s32.totalorder %s9, 1
    %p99 = por %p97, %p98
    %p100 = scmp.ne.s32.totalorder %s92, %s95
    %p101 = scmp.eq.s32.totalorder %s9, 0
    %p102 = por %p100, %p101
    %p103 = scmp.ne.s32.totalorder %s92, %s95
    %p104 = scmp.eq.s32.totalorder %s14, 1
    %p105 = por %p103, %p104
    %p106 = scmp.ne.s32.totalorder %s95, %s96
    %p107 = scmp.eq.s32.totalorder %s14, 0
    %p108 = por %p106, %p107
    %p109 = scmp.ne.s32.totalorder %s95, %s96
    %p110 = scmp.eq.s32.totalorder %s15, 1
    %p111 = por %p109, %p110
    %p113 = scmp.ne.s32.totalorder %s96, %s112
    %p114 = scmp.eq.s32.totalorder %s15, 0
    %p115 = por %p113, %p114
    %p116 = scmp.le.s32.totalorder 1, %s9
    %p117 = scmp.lt.s32.totalorder %s9, 3
    %p118 = pnand %p116, %p117
    %p119 = pneg %p118
    // Predicated region
    $region9: #{_lambda_.5} parent=5 // pred_check
      _
    $region10: #{_lambda_.5} parent=5 // pred_check_branch
      %121 = sbr.rel (%p118) target = $region12
    $region11: #{_lambda_.5} parent=5 // pred_region
      %s122 = ssub.s32 %s9, 1
      // Predicated region
      $region13: #{_lambda_.5} parent=11 // pred_check
        %p123 = pneg %p82
      $region14: #{_lambda_.5} parent=11 // pred_check_branch
        %125 = sbr.rel (%p123) target = $region16
      $region15: #{_lambda_.5} parent=11 // pred_region
        _
      $region16: #{_lambda_.5} parent=11 // pred_fallthru
        _
    $region12: #{_lambda_.5} parent=5 // pred_fallthru
      _
    %p126 = scmp.lt.s32.totalorder %s9, 2
    // Predicated region
    $region17: #{_lambda_.5} parent=5 // pred_check
      %p127 = pneg %p126
    $region18: #{_lambda_.5} parent=5 // pred_check_branch
      %129 = sbr.rel (%p127) target = $region20
    $region19: #{_lambda_.5} parent=5 // pred_region
      // Predicated region
      $region21: #{_lambda_.5} parent=19 // pred_check
        %p130 = pneg %p29
      $region22: #{_lambda_.5} parent=19 // pred_check_branch
        %132 = sbr.rel (%p130) target = $region24
      $region23: #{_lambda_.5} parent=19 // pred_region
        %s133 = smul.u32 2, %s9
        %p134 = scmp.lt.s32.totalorder %s133, 3
        %s135 = scalar_select %p134, %s133, 3
        %s136 = smul.addr %s135, 8
        %s137 = scalar_lea.vmem %s0, %s136
        %s138 = smul.u32 2, %s9
      $region24: #{_lambda_.5} parent=19 // pred_fallthru
        _
      // Predicated region
      $region25: #{_lambda_.5} parent=19 // pred_check
        %p139 = pneg %p55
      $region26: #{_lambda_.5} parent=19 // pred_check_branch
        %141 = sbr.rel (%p139) target = $region28
      $region27: #{_lambda_.5} parent=19 // pred_region
        %s142 = smul.u32 2, %s9
        %p143 = scmp.lt.s32.totalorder %s142, 3
        %s144 = scalar_select %p143, %s142, 3
        %s145 = smul.addr %s144, 8
        %s146 = scalar_lea.vmem %s1, %s145
        %s147 = smul.u32 2, %s9
      $region28: #{_lambda_.5} parent=19 // pred_fallthru
        _
    $region20: #{_lambda_.5} parent=5 // pred_fallthru
      _
    %p148 = scmp.le.s32.totalorder 1, %s9
    %p149 = scmp.lt.s32.totalorder %s9, 3
    %p150 = pnand %p148, %p149
    %p151 = pneg %p150
    // Predicated region
    $region29: #{_lambda_.5} parent=5 // pred_check
      _
    $region30: #{_lambda_.5} parent=5 // pred_check_branch
      %153 = sbr.rel (%p150) target = $region32
    $region31: #{_lambda_.5} parent=5 // pred_region
      %s154 = ssub.s32 %s9, 1
      %s155 = smul.u32 2, %s14
      %p156 = scmp.lt.s32.totalorder %s155, 3
      %s157 = scalar_select %p156, %s155, 3
      %s158 = smul.addr %s157, 8
      %s159 = scalar_lea.vmem %s0, %s158
      %p160 = pneg %p35
      %p161 = pneg %p32
      %s162 = smul.u32 2, %s14
      %p163 = scmp.lt.s32.totalorder %s162, 3
      %s164 = scalar_select %p163, %s162, 3
      %s165 = smul.addr %s164, 8
      %s166 = scalar_lea.vmem %s1, %s165
      %p167 = pneg %p61
      %p168 = pneg %p58
      %p169 = pneg %p82
      %p170 = pneg %p79
      %p171 = pneg %p108
      %p172 = pneg %p105
      %p173 = scmp.lt.s32.totalorder %s14, 1
      %s174 = scalar_select %p173, %s14, 1
      %s175 = smul.addr %s174, 2
      %s176 = smul.addr %s175, 8
      %s177 = scalar_lea.vmem %s3, %s176
      %s178 = smul.u32 2, %s14
      %p179 = scmp.lt.s32.totalorder %s178, 3
      %s180 = scalar_select %p179, %s178, 3
      %s181 = smul.addr %s180, 8
      %s182 = scalar_lea.vmem %s0, %s181
      %s183 = smul.u32 2, %s14
      %s184 = smul.u32 2, %s14
      %p185 = scmp.lt.s32.totalorder %s184, 3
      %s186 = scalar_select %p185, %s184, 3
      %s187 = smul.addr %s186, 8
      %s188 = scalar_lea.vmem %s1, %s187
      %s189 = smul.u32 2, %s14
      %p190 = scmp.lt.s32.totalorder %s14, 1
      %s191 = scalar_select %p190, %s14, 1
      %s192 = smul.addr %s191, 2
      %s193 = smul.addr %s192, 8
      %s194 = scalar_lea.vmem %s3, %s193
      %v195 = vld [vmem:[%s182] sm:$0xff]
      %v196 = vld [vmem:[%s182 + $0x8] sm:$0xff]
      %v197 = vld [vmem:[%s188] sm:$0xff]
      %v198 = vld [vmem:[%s188 + $0x8] sm:$0xff]
      %v199 = vld [vmem:[%s2] sm:$0xff]
      %201 = vset.pattern.permute.xlu0 0
      %202 = vperm.xlu0 %201, %v199
      %v203 = vpop.permute.xlu0 %202
      %v205 = vsub.f32 %v195, %v203
      %v206 = vsub.f32 %v196, %v203
      %207 = vset.pattern.permute.xlu0 1
      %208 = vperm.xlu0 %207, %v199
      %v209 = vpop.permute.xlu0 %208
      %v211 = vsub.f32 %v197, %v209
      %v212 = vsub.f32 %v198, %v209
      %213 = vset.pattern.permute.xlu0 2
      %214 = vperm.xlu0 %213, %v199
      %v215 = vpop.permute.xlu0 %214
      %v217 = vmul.f32 %v205, %v215
      %v218 = vmul.f32 %v206, %v215
      %219 = vset.pattern.permute.xlu0 3
      %220 = vperm.xlu0 %219, %v199
      %v221 = vpop.permute.xlu0 %220
      %v223 = vmul.f32 %v211, %v221
      %v224 = vmul.f32 %v212, %v221
      %v225 = vadd.f32 %v217, %v223
      %v226 = vadd.f32 %v218, %v224
      %227 = vset.pattern.permute.xlu0 6
      %228 = vperm.xlu0 %227, %v199
      %v229 = vpop.permute.xlu0 %228
      %v231 = vadd.f32 %v225, %v229
      %v232 = vadd.f32 %v226, %v229
      %233 = vset.pattern.permute.xlu0 4
      %234 = vperm.xlu0 %233, %v199
      %v235 = vpop.permute.xlu0 %234
      %v237 = vmul.f32 %v205, %v235
      %v238 = vmul.f32 %v206, %v235
      %239 = vset.pattern.permute.xlu0 5
      %240 = vperm.xlu0 %239, %v199
      %v241 = vpop.permute.xlu0 %240
      %v243 = vmul.f32 %v211, %v241
      %v244 = vmul.f32 %v212, %v241
      %v245 = vadd.f32 %v237, %v243
      %v246 = vadd.f32 %v238, %v244
      %247 = vset.pattern.permute.xlu0 7
      %248 = vperm.xlu0 %247, %v199
      %v249 = vpop.permute.xlu0 %248
      %v251 = vadd.f32 %v245, %v249
      %v252 = vadd.f32 %v246, %v249
      %v253 = vmul.f32 %v231, %v231
      %v254 = vmul.f32 %v232, %v232
      %v255 = vmul.f32 %v251, %v251
      %v256 = vmul.f32 %v252, %v252
      %v257 = vadd.f32 %v253, %v255
      %v258 = vadd.f32 %v254, %v256
      %v259 = vmax.f32 %v257, 1e-24
      %v260 = vmax.f32 %v258, 1e-24
      %v261 = vrsqrt.pop %v259
      %v262 = vrsqrt.pop %v260
      %v263 = vmul.f32 %v257, %v261
      %v264 = vmul.f32 %v258, %v262
      %265 = vst [vmem:[%s194] sm:$0xff] %v263
      %266 = vst [vmem:[%s194 + $0x8] sm:$0xff] %v264
      %p267 = scmp.lt.s32.totalorder %s14, 1
      %s268 = scalar_select %p267, %s14, 1
      %s269 = smul.addr %s268, 2
      %s270 = smul.addr %s269, 8
      %s271 = scalar_lea.vmem %s3, %s270
      // Predicated region
      $region33: #{_lambda_.5} parent=31 // pred_check
        %p272 = pneg %p105
      $region34: #{_lambda_.5} parent=31 // pred_check_branch
        %274 = sbr.rel (%p272) target = $region36
      $region35: #{_lambda_.5} parent=31 // pred_region
        _
      $region36: #{_lambda_.5} parent=31 // pred_fallthru
        _
    $region32: #{_lambda_.5} parent=5 // pred_fallthru
      _
    %p275 = scmp.le.s32.totalorder 2, %s9
    // Predicated region
    $region37: #{_lambda_.5} parent=5 // pred_check
      %p276 = pneg %p275
    $region38: #{_lambda_.5} parent=5 // pred_check_branch
      %278 = sbr.rel (%p276) target = $region40
    $region39: #{_lambda_.5} parent=5 // pred_region
      %s279 = ssub.s32 %s9, 2
      // Predicated region
      $region41: #{_lambda_.5} parent=39 // pred_check
        %p280 = pneg %p111
      $region42: #{_lambda_.5} parent=39 // pred_check_branch
        %282 = sbr.rel (%p280) target = $region44
      $region43: #{_lambda_.5} parent=39 // pred_region
        %p283 = scmp.lt.s32.totalorder %s15, 1
        %s284 = scalar_select %p283, %s15, 1
        %s285 = smul.addr %s284, 2
        %s286 = smul.addr %s285, 8
        %s287 = scalar_lea.vmem %s3, %s286
      $region44: #{_lambda_.5} parent=39 // pred_fallthru
        _
    $region40: #{_lambda_.5} parent=5 // pred_fallthru
      _
  $region6: #{_lambda_.5} parent=0 // loop_footer
    %s13 = sadd.s32 1, %s9
  $region7: #{_lambda_.5} parent=0 // loop_footer_branch
    %8 = sbr.rel target = $region3
  $region8: #{_lambda_.5} parent=0 // loop_exit
    _

// kernel: _lambda_.3
$region0: #{_lambda_.3}
  #allocation0 [shape = 'u32[]', space=smem, size = 0x4, offset = 0x4, fixed_abs, tag = 'smem constant byte address 0x4 - core index']
  #allocation1 [shape = 'u32[144,128]{1,0:T(1,128)}', space=vmem, size = 0x12000, scoped, tag = 'internal scratch']
  #allocation2 [shape = 'f32[4,18,18]{2,1,0:T(8,128)}', space=vmem, size = 0xc000, scoped, tag = 'scratch operand']
  %s0 = inlined_call_operand.hbm [shape: f32[2,4,16,16], index: 0, kind: input, shape index: {}]
  %s1 = inlined_call_operand.vmem [shape: f32[4,3,3], index: 1, kind: input, shape index: {}]
  %s2 = inlined_call_operand.vmem [shape: f32[4,3,3], index: 2, kind: input, shape index: {}]
  %s3 = inlined_call_operand.vmem [shape: f32[4,4], index: 3, kind: input, shape index: {}]
  %s4 = inlined_call_operand.vmem [shape: f32[4,4], index: 4, kind: input, shape index: {}]
  %s5 = inlined_call_operand.vmem [shape: f32[4,2,16,16], index: 5, kind: output, shape index: {0}]
  %s6 = inlined_call_operand.vmem [shape: f32[4,2,16,16], index: 6, kind: output, shape index: {1}]
  %s7 = inlined_call_operand.vmem [shape: f32[2,4,8], index: 7, kind: output, shape index: {2}]
  %8 = xla_tuple %s5, %s6, %s7
  %s9 = sld [smem:[#allocation0]]
  $region149: #{_lambda_.3} parent=0
    _
  %s11 = ssub.s32 1, %s9
  %s12 = scalar_select 0, %s11, %s9
  $region1: #{_lambda_.3} parent=0
    #allocation3 [shape = 'u8[65536]{0}', space=vmem, size = 0x10000, scoped, tag = 'input window, operand 0']
    #allocation4 [shape = 's32[2]{0}', space=sflag, size = 0x8, scoped, tag = 'scoped memory for _lambda_.3']
    #allocation5 [shape = 's32[2]{0}', space=sflag, size = 0x8, scoped, tag = 'scoped memory for _lambda_.3']
    #allocation6 [shape = 'u8[2048]{0}', space=smem, size = 0x800, scoped, tag = 'input window, operand 3, single buffered']
    #allocation7 [shape = 'u8[2048]{0}', space=smem, size = 0x800, scoped, tag = 'input window, operand 4, single buffered']
    #allocation8 [shape = 's32[1]{0}', space=sflag, size = 0x4, scoped, tag = 'scoped memory for _lambda_.3']
    #allocation9 [shape = 'u8[65536]{0}', space=vmem, size = 0x10000, scoped, tag = 'output window, operand 0']
    #allocation10 [shape = 'u8[65536]{0}', space=vmem, size = 0x10000, scoped, tag = 'output window, operand 1']
    %13 = vsyncpa [#allocation4], 0
    %s14 = scalar_lea.sflag [#allocation4], 1
    %15 = vsyncpa %s14, 0
    %16 = vsyncpa [#allocation5], 0
    %17 = vsyncpa [#allocation8], 0
    loop: start=0, step=1, limit=4
    $region2: #{_lambda_.3} parent=1 // loop_pre_header
      _
    $region3: #{_lambda_.3} parent=1 // loop_header
      %s19 = sphi 0, %s23
      %p20 = scmp.ge.s32.totalorder %s19, 4
      %s29 = sphi 0, %s31
      %s32 = sphi 0, %s29
      %s33 = sphi 0, %s32
      %s49 = sphi 0, %s33
      %s53 = sphi 0, %s53
      %s55 = sphi 0, %s53
      %s56 = sphi 0, %s55
      %s70 = sphi 0, %s56
      %s74 = sphi 0, %s74
      %s76 = sphi 0, %s74
      %s77 = sphi 0, %s76
      %s91 = sphi 0, %s77
      %s95 = sphi 0, %s95
      %s97 = sphi 0, %s95
      %s98 = sphi 0, %s97
      %s112 = sphi 0, %s98
      %s116 = sphi 0, %s116
      %s118 = sphi 0, %s116
      %s119 = sphi 0, %s118
      %s133 = sphi 0, %s119
      %s139 = sphi 0, %s141
      %s142 = sphi 0, %s139
      %s143 = sphi 0, %s142
      %s159 = sphi 0, %s143
      %s165 = sphi 0, %s167
      %s168 = sphi 0, %s165
      %s169 = sphi 0, %s168
      %s185 = sphi 0, %s169
      %s191 = sphi 0, %s193
      %s194 = sphi 0, %s191
      %s195 = sphi 0, %s194
      %s211 = sphi 0, %s195
    $region4: #{_lambda_.3} parent=1 // loop_header_branch
      %22 = sbr.rel (%p20) target = $region8
    $region5: #{_lambda_.3} parent=1 // loop_body
      %s24 = ssub.s32 %s19, 1
      %s25 = ssub.s32 %s19, 2
      %s26 = sadd.s32 %s19, 1
      %s27 = ssub.s32 %s19, %s26
      %p28 = scmp.eq.s32.totalorder %s27, 0
      %s30 = sadd.s32 %s29, 1
      %s31 = scalar_select %p28, %s29, %s30
      %p34 = pneg %p28
      %p35 = scmp.eq.s32.totalorder %s19, 1
      %p36 = por %p34, %p35
      %p37 = scmp.ne.s32.totalorder %s29, %s32
      %p38 = scmp.eq.s32.totalorder %s19, 0
      %p39 = por %p37, %p38
      %p40 = scmp.ne.s32.totalorder %s29, %s32
      %p41 = scmp.eq.s32.totalorder %s24, 1
      %p42 = por %p40, %p41
      %p43 = scmp.ne.s32.totalorder %s32, %s33
      %p44 = scmp.eq.s32.totalorder %s24, 0
      %p45 = por %p43, %p44
      %p46 = scmp.ne.s32.totalorder %s32, %s33
      %p47 = scmp.eq.s32.totalorder %s25, 1
      %p48 = por %p46, %p47
      %p50 = scmp.ne.s32.totalorder %s33, %s49
      %p51 = scmp.eq.s32.totalorder %s25, 0
      %p52 = por %p50, %p51
      %s54 = sadd.s32 %s53, 1
      %p57 = scmp.eq.s32.totalorder %s19, 1
      %p58 = scmp.ne.s32.totalorder %s53, %s55
      %p59 = scmp.eq.s32.totalorder %s19, 0
      %p60 = por %p58, %p59
      %p61 = scmp.ne.s32.totalorder %s53, %s55
      %p62 = scmp.eq.s32.totalorder %s24, 1
      %p63 = por %p61, %p62
      %p64 = scmp.ne.s32.totalorder %s55, %s56
      %p65 = scmp.eq.s32.totalorder %s24, 0
      %p66 = por %p64, %p65
      %p67 = scmp.ne.s32.totalorder %s55, %s56
      %p68 = scmp.eq.s32.totalorder %s25, 1
      %p69 = por %p67, %p68
      %p71 = scmp.ne.s32.totalorder %s56, %s70
      %p72 = scmp.eq.s32.totalorder %s25, 0
      %p73 = por %p71, %p72
      %s75 = sadd.s32 %s74, 1
      %p78 = scmp.eq.s32.totalorder %s19, 1
      %p79 = scmp.ne.s32.totalorder %s74, %s76
      %p80 = scmp.eq.s32.totalorder %s19, 0
      %p81 = por %p79, %p80
      %p82 = scmp.ne.s32.totalorder %s74, %s76
      %p83 = scmp.eq.s32.totalorder %s24, 1
      %p84 = por %p82, %p83
      %p85 = scmp.ne.s32.totalorder %s76, %s77
      %p86 = scmp.eq.s32.totalorder %s24, 0
      %p87 = por %p85, %p86
      %p88 = scmp.ne.s32.totalorder %s76, %s77
      %p89 = scmp.eq.s32.totalorder %s25, 1
      %p90 = por %p88, %p89
      %p92 = scmp.ne.s32.totalorder %s77, %s91
      %p93 = scmp.eq.s32.totalorder %s25, 0
      %p94 = por %p92, %p93
      %s96 = sadd.s32 %s95, 1
      %p99 = scmp.eq.s32.totalorder %s19, 1
      %p100 = scmp.ne.s32.totalorder %s95, %s97
      %p101 = scmp.eq.s32.totalorder %s19, 0
      %p102 = por %p100, %p101
      %p103 = scmp.ne.s32.totalorder %s95, %s97
      %p104 = scmp.eq.s32.totalorder %s24, 1
      %p105 = por %p103, %p104
      %p106 = scmp.ne.s32.totalorder %s97, %s98
      %p107 = scmp.eq.s32.totalorder %s24, 0
      %p108 = por %p106, %p107
      %p109 = scmp.ne.s32.totalorder %s97, %s98
      %p110 = scmp.eq.s32.totalorder %s25, 1
      %p111 = por %p109, %p110
      %p113 = scmp.ne.s32.totalorder %s98, %s112
      %p114 = scmp.eq.s32.totalorder %s25, 0
      %p115 = por %p113, %p114
      %s117 = sadd.s32 %s116, 1
      %p120 = scmp.eq.s32.totalorder %s19, 1
      %p121 = scmp.ne.s32.totalorder %s116, %s118
      %p122 = scmp.eq.s32.totalorder %s19, 0
      %p123 = por %p121, %p122
      %p124 = scmp.ne.s32.totalorder %s116, %s118
      %p125 = scmp.eq.s32.totalorder %s24, 1
      %p126 = por %p124, %p125
      %p127 = scmp.ne.s32.totalorder %s118, %s119
      %p128 = scmp.eq.s32.totalorder %s24, 0
      %p129 = por %p127, %p128
      %p130 = scmp.ne.s32.totalorder %s118, %s119
      %p131 = scmp.eq.s32.totalorder %s25, 1
      %p132 = por %p130, %p131
      %p134 = scmp.ne.s32.totalorder %s119, %s133
      %p135 = scmp.eq.s32.totalorder %s25, 0
      %p136 = por %p134, %p135
      %s137 = ssub.s32 %s19, %s26
      %p138 = scmp.eq.s32.totalorder %s137, 0
      %s140 = sadd.s32 %s139, 1
      %s141 = scalar_select %p138, %s139, %s140
      %p144 = pneg %p138
      %p145 = scmp.eq.s32.totalorder %s19, 1
      %p146 = por %p144, %p145
      %p147 = scmp.ne.s32.totalorder %s139, %s142
      %p148 = scmp.eq.s32.totalorder %s19, 0
      %p149 = por %p147, %p148
      %p150 = scmp.ne.s32.totalorder %s139, %s142
      %p151 = scmp.eq.s32.totalorder %s24, 1
      %p152 = por %p150, %p151
      %p153 = scmp.ne.s32.totalorder %s142, %s143
      %p154 = scmp.eq.s32.totalorder %s24, 0
      %p155 = por %p153, %p154
      %p156 = scmp.ne.s32.totalorder %s142, %s143
      %p157 = scmp.eq.s32.totalorder %s25, 1
      %p158 = por %p156, %p157
      %p160 = scmp.ne.s32.totalorder %s143, %s159
      %p161 = scmp.eq.s32.totalorder %s25, 0
      %p162 = por %p160, %p161
      %s163 = ssub.s32 %s19, %s26
      %p164 = scmp.eq.s32.totalorder %s163, 0
      %s166 = sadd.s32 %s165, 1
      %s167 = scalar_select %p164, %s165, %s166
      %p170 = pneg %p164
      %p171 = scmp.eq.s32.totalorder %s19, 1
      %p172 = por %p170, %p171
      %p173 = scmp.ne.s32.totalorder %s165, %s168
      %p174 = scmp.eq.s32.totalorder %s19, 0
      %p175 = por %p173, %p174
      %p176 = scmp.ne.s32.totalorder %s165, %s168
      %p177 = scmp.eq.s32.totalorder %s24, 1
      %p178 = por %p176, %p177
      %p179 = scmp.ne.s32.totalorder %s168, %s169
      %p180 = scmp.eq.s32.totalorder %s24, 0
      %p181 = por %p179, %p180
      %p182 = scmp.ne.s32.totalorder %s168, %s169
      %p183 = scmp.eq.s32.totalorder %s25, 1
      %p184 = por %p182, %p183
      %p186 = scmp.ne.s32.totalorder %s169, %s185
      %p187 = scmp.eq.s32.totalorder %s25, 0
      %p188 = por %p186, %p187
      %s189 = ssub.s32 %s19, %s26
      %p190 = scmp.eq.s32.totalorder %s189, 0
      %s192 = sadd.s32 %s191, 1
      %s193 = scalar_select %p190, %s191, %s192
      %p196 = pneg %p190
      %p197 = scmp.eq.s32.totalorder %s19, 1
      %p198 = por %p196, %p197
      %p199 = scmp.ne.s32.totalorder %s191, %s194
      %p200 = scmp.eq.s32.totalorder %s19, 0
      %p201 = por %p199, %p200
      %p202 = scmp.ne.s32.totalorder %s191, %s194
      %p203 = scmp.eq.s32.totalorder %s24, 1
      %p204 = por %p202, %p203
      %p205 = scmp.ne.s32.totalorder %s194, %s195
      %p206 = scmp.eq.s32.totalorder %s24, 0
      %p207 = por %p205, %p206
      %p208 = scmp.ne.s32.totalorder %s194, %s195
      %p209 = scmp.eq.s32.totalorder %s25, 1
      %p210 = por %p208, %p209
      %p212 = scmp.ne.s32.totalorder %s195, %s211
      %p213 = scmp.eq.s32.totalorder %s25, 0
      %p214 = por %p212, %p213
      %p215 = scmp.le.s32.totalorder 1, %s19
      %p216 = scmp.lt.s32.totalorder %s19, 3
      %p217 = pnand %p215, %p216
      %p218 = pneg %p217
      // Predicated region
      $region9: #{_lambda_.3} parent=5 // pred_check
        _
      $region10: #{_lambda_.3} parent=5 // pred_check_branch
        %220 = sbr.rel (%p217) target = $region12
      $region11: #{_lambda_.3} parent=5 // pred_region
        %s221 = ssub.s32 %s19, 1
        // Predicated region
        $region13: #{_lambda_.3} parent=11 // pred_check
          %p222 = pneg %p66
        $region14: #{_lambda_.3} parent=11 // pred_check_branch
          %224 = sbr.rel (%p222) target = $region16
        $region15: #{_lambda_.3} parent=11 // pred_region
          _
        $region16: #{_lambda_.3} parent=11 // pred_fallthru
          _
        // Predicated region
        $region17: #{_lambda_.3} parent=11 // pred_check
          %p225 = pneg %p87
        $region18: #{_lambda_.3} parent=11 // pred_check_branch
          %227 = sbr.rel (%p225) target = $region20
        $region19: #{_lambda_.3} parent=11 // pred_region
          _
        $region20: #{_lambda_.3} parent=11 // pred_fallthru
          _
        // Predicated region
        $region21: #{_lambda_.3} parent=11 // pred_check
          %p228 = pneg %p108
        $region22: #{_lambda_.3} parent=11 // pred_check_branch
          %230 = sbr.rel (%p228) target = $region24
        $region23: #{_lambda_.3} parent=11 // pred_region
          %s232 = ssub.s32 64, 64
          %233 = vsyncadd [#allocation5], %s232
          %s235 = sshll.u32 %s3, 4
          %s236 = int_to_ptr.vmem [resolvable:$true] %s235
          %238 = dma.vmem_to_smem %s236, 64, [#allocation6], [#allocation5]
        $region24: #{_lambda_.3} parent=11 // pred_fallthru
          _
        // Predicated region
        $region25: #{_lambda_.3} parent=11 // pred_check
          %p239 = pneg %p129
        $region26: #{_lambda_.3} parent=11 // pred_check_branch
          %241 = sbr.rel (%p239) target = $region28
        $region27: #{_lambda_.3} parent=11 // pred_region
          %s243 = ssub.s32 64, 64
          %244 = vsyncadd [#allocation8], %s243
          %s246 = sshll.u32 %s4, 4
          %s247 = int_to_ptr.vmem [resolvable:$true] %s246
          %249 = dma.vmem_to_smem %s247, 64, [#allocation7], [#allocation8]
        $region28: #{_lambda_.3} parent=11 // pred_fallthru
          _
      $region12: #{_lambda_.3} parent=5 // pred_fallthru
        _
      %p250 = scmp.lt.s32.totalorder %s19, 2
      // Predicated region
      $region29: #{_lambda_.3} parent=5 // pred_check
        %p251 = pneg %p250
      $region30: #{_lambda_.3} parent=5 // pred_check_branch
        %253 = sbr.rel (%p251) target = $region32
      $region31: #{_lambda_.3} parent=5 // pred_region
        // Predicated region
        $region33: #{_lambda_.3} parent=31 // pred_check
          %p254 = pneg %p39
        $region34: #{_lambda_.3} parent=31 // pred_check_branch
          %256 = sbr.rel (%p254) target = $region36
        $region35: #{_lambda_.3} parent=31 // pred_region
          %s257 = sand.u32 %s29, 1
          %s258 = scalar_lea.sflag [#allocation4], %s257
          %s259 = sand.u32 %s29, 1
          %s260 = smul.addr %s259, 64
          %s261 = scalar_lea.vmem [#allocation3], %s260
          %s263 = ssub.s32 1024, 1024
          %264 = vsyncadd %s258, %s263
          %s265 = smul.addr %s19, 8
          %s266 = smul.addr %s265, 128
          %s267 = scalar_lea.hbm %s0, %s266
          %s268 = sshll.u32 %s261, 4
          %s269 = int_to_ptr.vmem [resolvable:$true] %s268
          %274 = dma.hbm_to_vmem [thread:$0]  %s267, 1024, %s269, %s258, 128, 128, 8
        $region36: #{_lambda_.3} parent=31 // pred_fallthru
          _
      $region32: #{_lambda_.3} parent=5 // pred_fallthru
        _
      %p275 = scmp.le.s32.totalorder 1, %s19
      %p276 = scmp.lt.s32.totalorder %s19, 3
      %p277 = pnand %p275, %p276
      %p278 = pneg %p277
      // Predicated region
      $region37: #{_lambda_.3} parent=5 // pred_check
        _
      $region38: #{_lambda_.3} parent=5 // pred_check_branch
        %280 = sbr.rel (%p277) target = $region40
      $region39: #{_lambda_.3} parent=5 // pred_region
        %s281 = ssub.s32 %s19, 1
        %s282 = sand.u32 %s32, 1
        %s283 = scalar_lea.sflag [#allocation4], %s282
        %s284 = sand.u32 %s32, 1
        %s285 = smul.addr %s284, 64
        %s286 = scalar_lea.vmem [#allocation3], %s285
        // Predicated region
        $region41: #{_lambda_.3} parent=39 // pred_check
          %p287 = pneg %p45
        $region42: #{_lambda_.3} parent=39 // pred_check_branch
          %289 = sbr.rel (%p287) target = $region44
        $region43: #{_lambda_.3} parent=39 // pred_region
          %290 = dma.done %s283, 1024
        $region44: #{_lambda_.3} parent=39 // pred_fallthru
          _
        // Predicated region
        $region45: #{_lambda_.3} parent=39 // pred_check
          %p291 = pneg %p108
        $region46: #{_lambda_.3} parent=39 // pred_check_branch
          %293 = sbr.rel (%p291) target = $region48
        $region47: #{_lambda_.3} parent=39 // pred_region
          %294 = dma.done [#allocation5], 64
        $region48: #{_lambda_.3} parent=39 // pred_fallthru
          _
        // Predicated region
        $region49: #{_lambda_.3} parent=39 // pred_check
          %p295 = pneg %p129
        $region50: #{_lambda_.3} parent=39 // pred_check_branch
          %297 = sbr.rel (%p295) target = $region52
        $region51: #{_lambda_.3} parent=39 // pred_region
          %298 = dma.done [#allocation8], 64
        $region52: #{_lambda_.3} parent=39 // pred_fallthru
          _
        %299 = sfence
        %s300 = sand.u32 %s32, 1
        %s301 = scalar_lea.sflag [#allocation4], %s300
        %s302 = sand.u32 %s32, 1
        %s303 = smul.addr %s302, 64
        %s304 = scalar_lea.vmem [#allocation3], %s303
        %p305 = pneg %p45
        %p306 = pneg %p42
        %p307 = pneg %p66
        %p308 = pneg %p63
        %p309 = pneg %p87
        %p310 = pneg %p84
        %p311 = pneg %p108
        %p312 = pneg %p105
        %p313 = pneg %p129
        %p314 = pneg %p126
        %p315 = pneg %p155
        %p316 = pneg %p152
        %s317 = sand.u32 %s142, 1
        %s318 = sand.u32 %s142, 1
        %s319 = smul.addr %s318, 64
        %s320 = scalar_lea.vmem [#allocation9], %s319
        %p321 = pneg %p181
        %p322 = pneg %p178
        %s323 = sand.u32 %s168, 1
        %s324 = sand.u32 %s168, 1
        %s325 = smul.addr %s324, 64
        %s326 = scalar_lea.vmem [#allocation10], %s325
        %p327 = pneg %p207
        %p328 = pneg %p204
        %p329 = scmp.lt.s32.totalorder %s24, 1
        %s330 = scalar_select %p329, %s24, 1
        %s331 = smul.addr %s330, 4
        %s332 = scalar_lea.vmem %s7, %s331
        %p333 = scmp.lt.s32.totalorder %s24, 1
        %s334 = scalar_select %p333, %s24, 1
        %s335 = smul.addr %s334, 4
        %s336 = scalar_lea.vmem %s7, %s335
        %v337 = vld [vmem:[%s286] sm:$0xff]
        %v338 = vld [vmem:[%s286 + $0x8] sm:$0xff]
        %v339 = vld [vmem:[%s286 + $0x10] sm:$0xff]
        %v340 = vld [vmem:[%s286 + $0x18] sm:$0xff]
        %v341 = vld [vmem:[%s286 + $0x20] sm:$0xff]
        %v342 = vld [vmem:[%s286 + $0x28] sm:$0xff]
        %v343 = vld [vmem:[%s286 + $0x30] sm:$0xff]
        %v344 = vld [vmem:[%s286 + $0x38] sm:$0xff]
        %vm345 = vcmask 146432
        %346 = vst.msk [vmem:[#allocation2] sm:$0xff] %vm345, 0.0
        %347 = vst.msk [vmem:[#allocation2 + $0x8] sm:$0xff] %vm345, 0.0
        %vm348 = vcmask 140288
        %349 = vst.msk [vmem:[#allocation2 + $0x10] sm:$0x3] %vm348, 0.0
        %350 = vst.msk [vmem:[#allocation2 + $0x18] sm:$0xff] %vm345, 0.0
        %351 = vst.msk [vmem:[#allocation2 + $0x20] sm:$0xff] %vm345, 0.0
        %352 = vst.msk [vmem:[#allocation2 + $0x28] sm:$0x3] %vm348, 0.0
        %353 = vst.msk [vmem:[#allocation2 + $0x30] sm:$0xff] %vm345, 0.0
        %354 = vst.msk [vmem:[#allocation2 + $0x38] sm:$0xff] %vm345, 0.0
        %355 = vst.msk [vmem:[#allocation2 + $0x40] sm:$0x3] %vm348, 0.0
        %356 = vst.msk [vmem:[#allocation2 + $0x48] sm:$0xff] %vm345, 0.0
        %357 = vst.msk [vmem:[#allocation2 + $0x50] sm:$0xff] %vm345, 0.0
        %358 = vst.msk [vmem:[#allocation2 + $0x58] sm:$0x3] %vm348, 0.0
        %367 = vrot.lane.b32.xlu0 %v337, 1
        %v368 = vpop.permute.xlu0 %367
        %369 = vrot.lane.b32.xlu0 %v338, 1
        %v370 = vpop.permute.xlu0 %369
        %371 = vrot.lane.b32.xlu0 %v339, 1
        %v372 = vpop.permute.xlu0 %371
        %373 = vrot.lane.b32.xlu0 %v340, 1
        %v374 = vpop.permute.xlu0 %373
        %375 = vrot.lane.b32.xlu0 %v341, 1
        %v376 = vpop.permute.xlu0 %375
        %377 = vrot.lane.b32.xlu0 %v342, 1
        %v378 = vpop.permute.xlu0 %377
        %379 = vrot.lane.b32.xlu0 %v343, 1
        %v380 = vpop.permute.xlu0 %379
        %381 = vrot.lane.b32.xlu0 %v344, 1
        %v382 = vpop.permute.xlu0 %381
        %vm391 = vcmask 138248
        %392 = vst.msk [vmem:[#allocation2 + $0x1] sm:$0xff] %vm391, %v368
        %393 = vst.msk [vmem:[#allocation2 + $0x9] sm:$0xff] %vm391, %v370
        %394 = vst.msk [vmem:[#allocation2 + $0x19] sm:$0xff] %vm391, %v372
        %395 = vst.msk [vmem:[#allocation2 + $0x21] sm:$0xff] %vm391, %v374
        %396 = vst.msk [vmem:[#allocation2 + $0x31] sm:$0xff] %vm391, %v376
        %397 = vst.msk [vmem:[#allocation2 + $0x39] sm:$0xff] %vm391, %v378
        %398 = vst.msk [vmem:[#allocation2 + $0x49] sm:$0xff] %vm391, %v380
        %399 = vst.msk [vmem:[#allocation2 + $0x51] sm:$0xff] %vm391, %v382
        %v400 = vld [vmem:[#allocation2] sm:$0xff]
        %v401 = vld [vmem:[#allocation2 + $0x8] sm:$0xff]
        %v402 = vld [vmem:[#allocation2 + $0x10] sm:$0x3]
        %v403 = vld [vmem:[#allocation2 + $0x18] sm:$0xff]
        %v404 = vld [vmem:[#allocation2 + $0x20] sm:$0xff]
        %v405 = vld [vmem:[#allocation2 + $0x28] sm:$0x3]
        %v406 = vld [vmem:[#allocation2 + $0x30] sm:$0xff]
        %v407 = vld [vmem:[#allocation2 + $0x38] sm:$0xff]
        %v408 = vld [vmem:[#allocation2 + $0x40] sm:$0x3]
        %v409 = vld [vmem:[#allocation2 + $0x48] sm:$0xff]
        %v410 = vld [vmem:[#allocation2 + $0x50] sm:$0xff]
        %v411 = vld [vmem:[#allocation2 + $0x58] sm:$0x3]
        %v412 = vld [vmem:[%s1] sm:$0x7]
        %v413 = vld [vmem:[%s1 + $0x4] sm:$0x7]
        %v414 = vld [vmem:[%s1 + $0x8] sm:$0x7]
        %v415 = vld [vmem:[%s1 + $0xc] sm:$0x7]
        %v416 = vld [vmem:[%s2] sm:$0x7]
        %v417 = vld [vmem:[%s2 + $0x4] sm:$0x7]
        %v418 = vld [vmem:[%s2 + $0x8] sm:$0x7]
        %v419 = vld [vmem:[%s2 + $0xc] sm:$0x7]
        %s421 = vtos %v412
        %v422 = vstv %s421
        %s425 = vtos %v413
        %v426 = vstv %s425
        %s429 = vtos %v414
        %v430 = vstv %s429
        %s433 = vtos %v415
        %v434 = vstv %s433
        %v436 = vmul.f32 %v400, %v422
        %v437 = vmul.f32 %v401, %v422
        %v438 = vmul.f32 %v403, %v426
        %v439 = vmul.f32 %v404, %v426
        %v440 = vmul.f32 %v406, %v430
        %v441 = vmul.f32 %v407, %v430
        %v442 = vmul.f32 %v409, %v434
        %v443 = vmul.f32 %v410, %v434
        %v444 = vadd.f32 %v436, 0.0
        %v445 = vadd.f32 %v437, 0.0
        %v446 = vadd.f32 %v438, 0.0
        %v447 = vadd.f32 %v439, 0.0
        %v448 = vadd.f32 %v440, 0.0
        %v449 = vadd.f32 %v441, 0.0
        %v450 = vadd.f32 %v442, 0.0
        %v451 = vadd.f32 %v443, 0.0
        %s453 = vtos %v416
        %v454 = vstv %s453
        %s457 = vtos %v417
        %v458 = vstv %s457
        %s461 = vtos %v418
        %v462 = vstv %s461
        %s465 = vtos %v419
        %v466 = vstv %s465
        %v468 = vmul.f32 %v400, %v454
        %v469 = vmul.f32 %v401, %v454
        %v470 = vmul.f32 %v403, %v458
        %v471 = vmul.f32 %v404, %v458
        %v472 = vmul.f32 %v406, %v462
        %v473 = vmul.f32 %v407, %v462
        %v474 = vmul.f32 %v409, %v466
        %v475 = vmul.f32 %v410, %v466
        %v476 = vadd.f32 %v468, 0.0
        %v477 = vadd.f32 %v469, 0.0
        %v478 = vadd.f32 %v470, 0.0
        %v479 = vadd.f32 %v471, 0.0
        %v480 = vadd.f32 %v472, 0.0
        %v481 = vadd.f32 %v473, 0.0
        %v482 = vadd.f32 %v474, 0.0
        %v483 = vadd.f32 %v475, 0.0
        %484 = vrot.lane.b32.xlu0 %v412, 127
        %v485 = vpop.permute.xlu0 %484
        %486 = vrot.lane.b32.xlu0 %v413, 127
        %v487 = vpop.permute.xlu0 %486
        %488 = vrot.lane.b32.xlu0 %v414, 127
        %v489 = vpop.permute.xlu0 %488
        %490 = vrot.lane.b32.xlu0 %v415, 127
        %v491 = vpop.permute.xlu0 %490
        %s492 = vtos %v485
        %v493 = vstv %s492
        %s495 = vtos %v487
        %v496 = vstv %s495
        %s498 = vtos %v489
        %v499 = vstv %s498
        %s501 = vtos %v491
        %v502 = vstv %s501
        %v504 = vmul.f32 %v400, %v493
        %v505 = vmul.f32 %v401, %v493
        %v506 = vmul.f32 %v403, %v496
        %v507 = vmul.f32 %v404, %v496
        %v508 = vmul.f32 %v406, %v499
        %v509 = vmul.f32 %v407, %v499
        %v510 = vmul.f32 %v409, %v502
        %v511 = vmul.f32 %v410, %v502
        %520 = vrot.lane.b32.xlu0 %v504, 127
        %v521 = vpop.permute.xlu0 %520
        %522 = vrot.lane.b32.xlu0 %v505, 127
        %v523 = vpop.permute.xlu0 %522
        %524 = vrot.lane.b32.xlu0 %v506, 127
        %v525 = vpop.permute.xlu0 %524
        %526 = vrot.lane.b32.xlu0 %v507, 127
        %v527 = vpop.permute.xlu0 %526
        %528 = vrot.lane.b32.xlu0 %v508, 127
        %v529 = vpop.permute.xlu0 %528
        %530 = vrot.lane.b32.xlu0 %v509, 127
        %v531 = vpop.permute.xlu0 %530
        %532 = vrot.lane.b32.xlu0 %v510, 127
        %v533 = vpop.permute.xlu0 %532
        %534 = vrot.lane.b32.xlu0 %v511, 127
        %v535 = vpop.permute.xlu0 %534
        %v544 = vadd.f32 %v444, %v521
        %v545 = vadd.f32 %v445, %v523
        %v546 = vadd.f32 %v446, %v525
        %v547 = vadd.f32 %v447, %v527
        %v548 = vadd.f32 %v448, %v529
        %v549 = vadd.f32 %v449, %v531
        %v550 = vadd.f32 %v450, %v533
        %v551 = vadd.f32 %v451, %v535
        %552 = vrot.lane.b32.xlu0 %v416, 127
        %v553 = vpop.permute.xlu0 %552
        %554 = vrot.lane.b32.xlu0 %v417, 127
        %v555 = vpop.permute.xlu0 %554
        %556 = vrot.lane.b32.xlu0 %v418, 127
        %v557 = vpop.permute.xlu0 %556
        %558 = vrot.lane.b32.xlu0 %v419, 127
        %v559 = vpop.permute.xlu0 %558
        %s560 = vtos %v553
        %v561 = vstv %s560
        %s563 = vtos %v555
        %v564 = vstv %s563
        %s566 = vtos %v557
        %v567 = vstv %s566
        %s569 = vtos %v559
        %v570 = vstv %s569
        %v572 = vmul.f32 %v400, %v561
        %v573 = vmul.f32 %v401, %v561
        %v574 = vmul.f32 %v403, %v564
        %v575 = vmul.f32 %v404, %v564
        %v576 = vmul.f32 %v406, %v567
        %v577 = vmul.f32 %v407, %v567
        %v578 = vmul.f32 %v409, %v570
        %v579 = vmul.f32 %v410, %v570
        %588 = vrot.lane.b32.xlu0 %v572, 127
        %v589 = vpop.permute.xlu0 %588
        %590 = vrot.lane.b32.xlu0 %v573, 127
        %v591 = vpop.permute.xlu0 %590
        %592 = vrot.lane.b32.xlu0 %v574, 127
        %v593 = vpop.permute.xlu0 %592
        %594 = vrot.lane.b32.xlu0 %v575, 127
        %v595 = vpop.permute.xlu0 %594
        %596 = vrot.lane.b32.xlu0 %v576, 127
        %v597 = vpop.permute.xlu0 %596
        %598 = vrot.lane.b32.xlu0 %v577, 127
        %v599 = vpop.permute.xlu0 %598
        %600 = vrot.lane.b32.xlu0 %v578, 127
        %v601 = vpop.permute.xlu0 %600
        %602 = vrot.lane.b32.xlu0 %v579, 127
        %v603 = vpop.permute.xlu0 %602
        %v612 = vadd.f32 %v476, %v589
        %v613 = vadd.f32 %v477, %v591
        %v614 = vadd.f32 %v478, %v593
        %v615 = vadd.f32 %v479, %v595
        %v616 = vadd.f32 %v480, %v597
        %v617 = vadd.f32 %v481, %v599
        %v618 = vadd.f32 %v482, %v601
        %v619 = vadd.f32 %v483, %v603
        %620 = vrot.lane.b32.xlu0 %v412, 126
        %v621 = vpop.permute.xlu0 %620
        %622 = vrot.lane.b32.xlu0 %v413, 126
        %v623 = vpop.permute.xlu0 %622
        %624 = vrot.lane.b32.xlu0 %v414, 126
        %v625 = vpop.permute.xlu0 %624
        %626 = vrot.lane.b32.xlu0 %v415, 126
        %v627 = vpop.permute.xlu0 %626
        %s628 = vtos %v621
        %v629 = vstv %s628
        %s631 = vtos %v623
        %v632 = vstv %s631
        %s634 = vtos %v625
        %v635 = vstv %s634
        %s637 = vtos %v627
        %v638 = vstv %s637
        %v640 = vmul.f32 %v400, %v629
        %v641 = vmul.f32 %v401, %v629
        %v642 = vmul.f32 %v403, %v632
        %v643 = vmul.f32 %v404, %v632
        %v644 = vmul.f32 %v406, %v635
        %v645 = vmul.f32 %v407, %v635
        %v646 = vmul.f32 %v409, %v638
        %v647 = vmul.f32 %v410, %v638
        %656 = vrot.lane.b32.xlu0 %v640, 126
        %v657 = vpop.permute.xlu0 %656
        %658 = vrot.lane.b32.xlu0 %v641, 126
        %v659 = vpop.permute.xlu0 %658
        %660 = vrot.lane.b32.xlu0 %v642, 126
        %v661 = vpop.permute.xlu0 %660
        %662 = vrot.lane.b32.xlu0 %v643, 126
        %v663 = vpop.permute.xlu0 %662
        %664 = vrot.lane.b32.xlu0 %v644, 126
        %v665 = vpop.permute.xlu0 %664
        %666 = vrot.lane.b32.xlu0 %v645, 126
        %v667 = vpop.permute.xlu0 %666
        %668 = vrot.lane.b32.xlu0 %v646, 126
        %v669 = vpop.permute.xlu0 %668
        %670 = vrot.lane.b32.xlu0 %v647, 126
        %v671 = vpop.permute.xlu0 %670
        %v680 = vadd.f32 %v544, %v657
        %v681 = vadd.f32 %v545, %v659
        %v682 = vadd.f32 %v546, %v661
        %v683 = vadd.f32 %v547, %v663
        %v684 = vadd.f32 %v548, %v665
        %v685 = vadd.f32 %v549, %v667
        %v686 = vadd.f32 %v550, %v669
        %v687 = vadd.f32 %v551, %v671
        %688 = vrot.lane.b32.xlu0 %v416, 126
        %v689 = vpop.permute.xlu0 %688
        %690 = vrot.lane.b32.xlu0 %v417, 126
        %v691 = vpop.permute.xlu0 %690
        %692 = vrot.lane.b32.xlu0 %v418, 126
        %v693 = vpop.permute.xlu0 %692
        %694 = vrot.lane.b32.xlu0 %v419, 126
        %v695 = vpop.permute.xlu0 %694
        %s696 = vtos %v689
        %v697 = vstv %s696
        %s699 = vtos %v691
        %v700 = vstv %s699
        %s702 = vtos %v693
        %v703 = vstv %s702
        %s705 = vtos %v695
        %v706 = vstv %s705
        %v708 = vmul.f32 %v400, %v697
        %v709 = vmul.f32 %v401, %v697
        %v710 = vmul.f32 %v403, %v700
        %v711 = vmul.f32 %v404, %v700
        %v712 = vmul.f32 %v406, %v703
        %v713 = vmul.f32 %v407, %v703
        %v714 = vmul.f32 %v409, %v706
        %v715 = vmul.f32 %v410, %v706
        %724 = vrot.lane.b32.xlu0 %v708, 126
        %v725 = vpop.permute.xlu0 %724
        %726 = vrot.lane.b32.xlu0 %v709, 126
        %v727 = vpop.permute.xlu0 %726
        %728 = vrot.lane.b32.xlu0 %v710, 126
        %v729 = vpop.permute.xlu0 %728
        %730 = vrot.lane.b32.xlu0 %v711, 126
        %v731 = vpop.permute.xlu0 %730
        %732 = vrot.lane.b32.xlu0 %v712, 126
        %v733 = vpop.permute.xlu0 %732
        %734 = vrot.lane.b32.xlu0 %v713, 126
        %v735 = vpop.permute.xlu0 %734
        %736 = vrot.lane.b32.xlu0 %v714, 126
        %v737 = vpop.permute.xlu0 %736
        %738 = vrot.lane.b32.xlu0 %v715, 126
        %v739 = vpop.permute.xlu0 %738
        %v748 = vadd.f32 %v612, %v725
        %v749 = vadd.f32 %v613, %v727
        %v750 = vadd.f32 %v614, %v729
        %v751 = vadd.f32 %v615, %v731
        %v752 = vadd.f32 %v616, %v733
        %v753 = vadd.f32 %v617, %v735
        %v754 = vadd.f32 %v618, %v737
        %v755 = vadd.f32 %v619, %v739
        %v756 = vrot.slane %v412, 1
        %v757 = vrot.slane %v413, 1
        %v758 = vrot.slane %v414, 1
        %v759 = vrot.slane %v415, 1
        %s760 = vtos %v756
        %v761 = vstv %s760
        %s763 = vtos %v757
        %v764 = vstv %s763
        %s766 = vtos %v758
        %v767 = vstv %s766
        %s769 = vtos %v759
        %v770 = vstv %s769
        %v772 = vmul.f32 %v400, %v761
        %v773 = vmul.f32 %v401, %v761
        %v774 = vmul.f32 %v402, %v761
        %v775 = vmul.f32 %v403, %v764
        %v776 = vmul.f32 %v404, %v764
        %v777 = vmul.f32 %v405, %v764
        %v778 = vmul.f32 %v406, %v767
        %v779 = vmul.f32 %v407, %v767
        %v780 = vmul.f32 %v408, %v767
        %v781 = vmul.f32 %v409, %v770
        %v782 = vmul.f32 %v410, %v770
        %v783 = vmul.f32 %v411, %v770
        %vm796 = vcmask 1046528
        %v797 = vrot.slane %v772, 1
        %v798 = vrot.slane %v773, 1
        %v799 = vsel %vm796, %v797, %v798
        %v800 = vrot.slane %v774, 1
        %v801 = vsel %vm796, %v798, %v800
        %v802 = vrot.slane %v775, 1
        %v803 = vrot.slane %v776, 1
        %v804 = vsel %vm796, %v802, %v803
        %v805 = vrot.slane %v777, 1
        %v806 = vsel %vm796, %v803, %v805
        %v807 = vrot.slane %v778, 1
        %v808 = vrot.slane %v779, 1
        %v809 = vsel %vm796, %v807, %v808
        %v810 = vrot.slane %v780, 1
        %v811 = vsel %vm796, %v808, %v810
        %v812 = vrot.slane %v781, 1
        %v813 = vrot.slane %v782, 1
        %v814 = vsel %vm796, %v812, %v813
        %v815 = vrot.slane %v783, 1
        %v816 = vsel %vm796, %v813, %v815
        %v825 = vadd.f32 %v680, %v799
        %v826 = vadd.f32 %v681, %v801
        %v827 = vadd.f32 %v682, %v804
        %v828 = vadd.f32 %v683, %v806
        %v829 = vadd.f32 %v684, %v809
        %v830 = vadd.f32 %v685, %v811
        %v831 = vadd.f32 %v686, %v814
        %v832 = vadd.f32 %v687, %v816
        %v833 = vrot.slane %v416, 1
        %v834 = vrot.slane %v417, 1
        %v835 = vrot.slane %v418, 1
        %v836 = vrot.slane %v419, 1
        %s837 = vtos %v833
        %v838 = vstv %s837
        %s840 = vtos %v834
        %v841 = vstv %s840
        %s843 = vtos %v835
        %v844 = vstv %s843
        %s846 = vtos %v836
        %v847 = vstv %s846
        %v849 = vmul.f32 %v400, %v838
        %v850 = vmul.f32 %v401, %v838
        %v851 = vmul.f32 %v402, %v838
        %v852 = vmul.f32 %v403, %v841
        %v853 = vmul.f32 %v404, %v841
        %v854 = vmul.f32 %v405, %v841
        %v855 = vmul.f32 %v406, %v844
        %v856 = vmul.f32 %v407, %v844
        %v857 = vmul.f32 %v408, %v844
        %v858 = vmul.f32 %v409, %v847
        %v859 = vmul.f32 %v410, %v847
        %v860 = vmul.f32 %v411, %v847
        %v873 = vrot.slane %v849, 1
        %v874 = vrot.slane %v850, 1
        %v875 = vsel %vm796, %v873, %v874
        %v876 = vrot.slane %v851, 1
        %v877 = vsel %vm796, %v874, %v876
        %v878 = vrot.slane %v852, 1
        %v879 = vrot.slane %v853, 1
        %v880 = vsel %vm796, %v878, %v879
        %v881 = vrot.slane %v854, 1
        %v882 = vsel %vm796, %v879, %v881
        %v883 = vrot.slane %v855, 1
        %v884 = vrot.slane %v856, 1
        %v885 = vsel %vm796, %v883, %v884
        %v886 = vrot.slane %v857, 1
        %v887 = vsel %vm796, %v884, %v886
        %v888 = vrot.slane %v858, 1
        %v889 = vrot.slane %v859, 1
        %v890 = vsel %vm796, %v888, %v889
        %v891 = vrot.slane %v860, 1
        %v892 = vsel %vm796, %v889, %v891
        %v901 = vadd.f32 %v748, %v875
        %v902 = vadd.f32 %v749, %v877
        %v903 = vadd.f32 %v750, %v880
        %v904 = vadd.f32 %v751, %v882
        %v905 = vadd.f32 %v752, %v885
        %v906 = vadd.f32 %v753, %v887
        %v907 = vadd.f32 %v754, %v890
        %v908 = vadd.f32 %v755, %v892
        %909 = vrot.lane.b32.xlu0 %v756, 127
        %v910 = vpop.permute.xlu0 %909
        %911 = vrot.lane.b32.xlu0 %v757, 127
        %v912 = vpop.permute.xlu0 %911
        %913 = vrot.lane.b32.xlu0 %v758, 127
        %v914 = vpop.permute.xlu0 %913
        %915 = vrot.lane.b32.xlu0 %v759, 127
        %v916 = vpop.permute.xlu0 %915
        %s917 = vtos %v910
        %v918 = vstv %s917
        %s920 = vtos %v912
        %v921 = vstv %s920
        %s923 = vtos %v914
        %v924 = vstv %s923
        %s926 = vtos %v916
        %v927 = vstv %s926
        %v929 = vmul.f32 %v400, %v918
        %v930 = vmul.f32 %v401, %v918
        %v931 = vmul.f32 %v402, %v918
        %v932 = vmul.f32 %v403, %v921
        %v933 = vmul.f32 %v404, %v921
        %v934 = vmul.f32 %v405, %v921
        %v935 = vmul.f32 %v406, %v924
        %v936 = vmul.f32 %v407, %v924
        %v937 = vmul.f32 %v408, %v924
        %v938 = vmul.f32 %v409, %v927
        %v939 = vmul.f32 %v410, %v927
        %v940 = vmul.f32 %v411, %v927
        %v953 = vrot.slane %v929, 1
        %v954 = vrot.slane %v930, 1
        %v955 = vsel %vm796, %v953, %v954
        %v956 = vrot.slane %v931, 1
        %v957 = vsel %vm796, %v954, %v956
        %v958 = vrot.slane %v932, 1
        %v959 = vrot.slane %v933, 1
        %v960 = vsel %vm796, %v958, %v959
        %v961 = vrot.slane %v934, 1
        %v962 = vsel %vm796, %v959, %v961
        %v963 = vrot.slane %v935, 1
        %v964 = vrot.slane %v936, 1
        %v965 = vsel %vm796, %v963, %v964
        %v966 = vrot.slane %v937, 1
        %v967 = vsel %vm796, %v964, %v966
        %v968 = vrot.slane %v938, 1
        %v969 = vrot.slane %v939, 1
        %v970 = vsel %vm796, %v968, %v969
        %v971 = vrot.slane %v940, 1
        %v972 = vsel %vm796, %v969, %v971
        %973 = vrot.lane.b32.xlu0 %v955, 127
        %v974 = vpop.permute.xlu0 %973
        %975 = vrot.lane.b32.xlu0 %v957, 127
        %v976 = vpop.permute.xlu0 %975
        %977 = vrot.lane.b32.xlu0 %v960, 127
        %v978 = vpop.permute.xlu0 %977
        %979 = vrot.lane.b32.xlu0 %v962, 127
        %v980 = vpop.permute.xlu0 %979
        %981 = vrot.lane.b32.xlu0 %v965, 127
        %v982 = vpop.permute.xlu0 %981
        %983 = vrot.lane.b32.xlu0 %v967, 127
        %v984 = vpop.permute.xlu0 %983
        %985 = vrot.lane.b32.xlu0 %v970, 127
        %v986 = vpop.permute.xlu0 %985
        %987 = vrot.lane.b32.xlu0 %v972, 127
        %v988 = vpop.permute.xlu0 %987
        %v997 = vadd.f32 %v825, %v974
        %v998 = vadd.f32 %v826, %v976
        %v999 = vadd.f32 %v827, %v978
        %v1000 = vadd.f32 %v828, %v980
        %v1001 = vadd.f32 %v829, %v982
        %v1002 = vadd.f32 %v830, %v984
        %v1003 = vadd.f32 %v831, %v986
        %v1004 = vadd.f32 %v832, %v988
        %1005 = vrot.lane.b32.xlu0 %v833, 127
        %v1006 = vpop.permute.xlu0 %1005
        %1007 = vrot.lane.b32.xlu0 %v834, 127
        %v1008 = vpop.permute.xlu0 %1007
        %1009 = vrot.lane.b32.xlu0 %v835, 127
        %v1010 = vpop.permute.xlu0 %1009
        %1011 = vrot.lane.b32.xlu0 %v836, 127
        %v1012 = vpop.permute.xlu0 %1011
        %s1013 = vtos %v1006
        %v1014 = vstv %s1013
        %s1016 = vtos %v1008
        %v1017 = vstv %s1016
        %s1019 = vtos %v1010
        %v1020 = vstv %s1019
        %s1022 = vtos %v1012
        %v1023 = vstv %s1022
        %v1025 = vmul.f32 %v400, %v1014
        %v1026 = vmul.f32 %v401, %v1014
        %v1027 = vmul.f32 %v402, %v1014
        %v1028 = vmul.f32 %v403, %v1017
        %v1029 = vmul.f32 %v404, %v1017
        %v1030 = vmul.f32 %v405, %v1017
        %v1031 = vmul.f32 %v406, %v1020
        %v1032 = vmul.f32 %v407, %v1020
        %v1033 = vmul.f32 %v408, %v1020
        %v1034 = vmul.f32 %v409, %v1023
        %v1035 = vmul.f32 %v410, %v1023
        %v1036 = vmul.f32 %v411, %v1023
        %v1049 = vrot.slane %v1025, 1
        %v1050 = vrot.slane %v1026, 1
        %v1051 = vsel %vm796, %v1049, %v1050
        %v1052 = vrot.slane %v1027, 1
        %v1053 = vsel %vm796, %v1050, %v1052
        %v1054 = vrot.slane %v1028, 1
        %v1055 = vrot.slane %v1029, 1
        %v1056 = vsel %vm796, %v1054, %v1055
        %v1057 = vrot.slane %v1030, 1
        %v1058 = vsel %vm796, %v1055, %v1057
        %v1059 = vrot.slane %v1031, 1
        %v1060 = vrot.slane %v1032, 1
        %v1061 = vsel %vm796, %v1059, %v1060
        %v1062 = vrot.slane %v1033, 1
        %v1063 = vsel %vm796, %v1060, %v1062
        %v1064 = vrot.slane %v1034, 1
        %v1065 = vrot.slane %v1035, 1
        %v1066 = vsel %vm796, %v1064, %v1065
        %v1067 = vrot.slane %v1036, 1
        %v1068 = vsel %vm796, %v1065, %v1067
        %1069 = vrot.lane.b32.xlu0 %v1051, 127
        %v1070 = vpop.permute.xlu0 %1069
        %1071 = vrot.lane.b32.xlu0 %v1053, 127
        %v1072 = vpop.permute.xlu0 %1071
        %1073 = vrot.lane.b32.xlu0 %v1056, 127
        %v1074 = vpop.permute.xlu0 %1073
        %1075 = vrot.lane.b32.xlu0 %v1058, 127
        %v1076 = vpop.permute.xlu0 %1075
        %1077 = vrot.lane.b32.xlu0 %v1061, 127
        %v1078 = vpop.permute.xlu0 %1077
        %1079 = vrot.lane.b32.xlu0 %v1063, 127
        %v1080 = vpop.permute.xlu0 %1079
        %1081 = vrot.lane.b32.xlu0 %v1066, 127
        %v1082 = vpop.permute.xlu0 %1081
        %1083 = vrot.lane.b32.xlu0 %v1068, 127
        %v1084 = vpop.permute.xlu0 %1083
        %v1093 = vadd.f32 %v901, %v1070
        %v1094 = vadd.f32 %v902, %v1072
        %v1095 = vadd.f32 %v903, %v1074
        %v1096 = vadd.f32 %v904, %v1076
        %v1097 = vadd.f32 %v905, %v1078
        %v1098 = vadd.f32 %v906, %v1080
        %v1099 = vadd.f32 %v907, %v1082
        %v1100 = vadd.f32 %v908, %v1084
        %1101 = vrot.lane.b32.xlu0 %v756, 126
        %v1102 = vpop.permute.xlu0 %1101
        %1103 = vrot.lane.b32.xlu0 %v757, 126
        %v1104 = vpop.permute.xlu0 %1103
        %1105 = vrot.lane.b32.xlu0 %v758, 126
        %v1106 = vpop.permute.xlu0 %1105
        %1107 = vrot.lane.b32.xlu0 %v759, 126
        %v1108 = vpop.permute.xlu0 %1107
        %s1109 = vtos %v1102
        %v1110 = vstv %s1109
        %s1112 = vtos %v1104
        %v1113 = vstv %s1112
        %s1115 = vtos %v1106
        %v1116 = vstv %s1115
        %s1118 = vtos %v1108
        %v1119 = vstv %s1118
        %v1121 = vmul.f32 %v400, %v1110
        %v1122 = vmul.f32 %v401, %v1110
        %v1123 = vmul.f32 %v402, %v1110
        %v1124 = vmul.f32 %v403, %v1113
        %v1125 = vmul.f32 %v404, %v1113
        %v1126 = vmul.f32 %v405, %v1113
        %v1127 = vmul.f32 %v406, %v1116
        %v1128 = vmul.f32 %v407, %v1116
        %v1129 = vmul.f32 %v408, %v1116
        %v1130 = vmul.f32 %v409, %v1119
        %v1131 = vmul.f32 %v410, %v1119
        %v1132 = vmul.f32 %v411, %v1119
        %v1145 = vrot.slane %v1121, 1
        %v1146 = vrot.slane %v1122, 1
        %v1147 = vsel %vm796, %v1145, %v1146
        %v1148 = vrot.slane %v1123, 1
        %v1149 = vsel %vm796, %v1146, %v1148
        %v1150 = vrot.slane %v1124, 1
        %v1151 = vrot.slane %v1125, 1
        %v1152 = vsel %vm796, %v1150, %v1151
        %v1153 = vrot.slane %v1126, 1
        %v1154 = vsel %vm796, %v1151, %v1153
        %v1155 = vrot.slane %v1127, 1
        %v1156 = vrot.slane %v1128, 1
        %v1157 = vsel %vm796, %v1155, %v1156
        %v1158 = vrot.slane %v1129, 1
        %v1159 = vsel %vm796, %v1156, %v1158
        %v1160 = vrot.slane %v1130, 1
        %v1161 = vrot.slane %v1131, 1
        %v1162 = vsel %vm796, %v1160, %v1161
        %v1163 = vrot.slane %v1132, 1
        %v1164 = vsel %vm796, %v1161, %v1163
        %1165 = vrot.lane.b32.xlu0 %v1147, 126
        %v1166 = vpop.permute.xlu0 %1165
        %1167 = vrot.lane.b32.xlu0 %v1149, 126
        %v1168 = vpop.permute.xlu0 %1167
        %1169 = vrot.lane.b32.xlu0 %v1152, 126
        %v1170 = vpop.permute.xlu0 %1169
        %1171 = vrot.lane.b32.xlu0 %v1154, 126
        %v1172 = vpop.permute.xlu0 %1171
        %1173 = vrot.lane.b32.xlu0 %v1157, 126
        %v1174 = vpop.permute.xlu0 %1173
        %1175 = vrot.lane.b32.xlu0 %v1159, 126
        %v1176 = vpop.permute.xlu0 %1175
        %1177 = vrot.lane.b32.xlu0 %v1162, 126
        %v1178 = vpop.permute.xlu0 %1177
        %1179 = vrot.lane.b32.xlu0 %v1164, 126
        %v1180 = vpop.permute.xlu0 %1179
        %v1189 = vadd.f32 %v997, %v1166
        %v1190 = vadd.f32 %v998, %v1168
        %v1191 = vadd.f32 %v999, %v1170
        %v1192 = vadd.f32 %v1000, %v1172
        %v1193 = vadd.f32 %v1001, %v1174
        %v1194 = vadd.f32 %v1002, %v1176
        %v1195 = vadd.f32 %v1003, %v1178
        %v1196 = vadd.f32 %v1004, %v1180
        %1197 = vrot.lane.b32.xlu0 %v833, 126
        %v1198 = vpop.permute.xlu0 %1197
        %1199 = vrot.lane.b32.xlu0 %v834, 126
        %v1200 = vpop.permute.xlu0 %1199
        %1201 = vrot.lane.b32.xlu0 %v835, 126
        %v1202 = vpop.permute.xlu0 %1201
        %1203 = vrot.lane.b32.xlu0 %v836, 126
        %v1204 = vpop.permute.xlu0 %1203
        %s1205 = vtos %v1198
        %v1206 = vstv %s1205
        %s1208 = vtos %v1200
        %v1209 = vstv %s1208
        %s1211 = vtos %v1202
        %v1212 = vstv %s1211
        %s1214 = vtos %v1204
        %v1215 = vstv %s1214
        %v1217 = vmul.f32 %v400, %v1206
        %v1218 = vmul.f32 %v401, %v1206
        %v1219 = vmul.f32 %v402, %v1206
        %v1220 = vmul.f32 %v403, %v1209
        %v1221 = vmul.f32 %v404, %v1209
        %v1222 = vmul.f32 %v405, %v1209
        %v1223 = vmul.f32 %v406, %v1212
        %v1224 = vmul.f32 %v407, %v1212
        %v1225 = vmul.f32 %v408, %v1212
        %v1226 = vmul.f32 %v409, %v1215
        %v1227 = vmul.f32 %v410, %v1215
        %v1228 = vmul.f32 %v411, %v1215
        %v1241 = vrot.slane %v1217, 1
        %v1242 = vrot.slane %v1218, 1
        %v1243 = vsel %vm796, %v1241, %v1242
        %v1244 = vrot.slane %v1219, 1
        %v1245 = vsel %vm796, %v1242, %v1244
        %v1246 = vrot.slane %v1220, 1
        %v1247 = vrot.slane %v1221, 1
        %v1248 = vsel %vm796, %v1246, %v1247
        %v1249 = vrot.slane %v1222, 1
        %v1250 = vsel %vm796, %v1247, %v1249
        %v1251 = vrot.slane %v1223, 1
        %v1252 = vrot.slane %v1224, 1
        %v1253 = vsel %vm796, %v1251, %v1252
        %v1254 = vrot.slane %v1225, 1
        %v1255 = vsel %vm796, %v1252, %v1254
        %v1256 = vrot.slane %v1226, 1
        %v1257 = vrot.slane %v1227, 1
        %v1258 = vsel %vm796, %v1256, %v1257
        %v1259 = vrot.slane %v1228, 1
        %v1260 = vsel %vm796, %v1257, %v1259
        %1261 = vrot.lane.b32.xlu0 %v1243, 126
        %v1262 = vpop.permute.xlu0 %1261
        %1263 = vrot.lane.b32.xlu0 %v1245, 126
        %v1264 = vpop.permute.xlu0 %1263
        %1265 = vrot.lane.b32.xlu0 %v1248, 126
        %v1266 = vpop.permute.xlu0 %1265
        %1267 = vrot.lane.b32.xlu0 %v1250, 126
        %v1268 = vpop.permute.xlu0 %1267
        %1269 = vrot.lane.b32.xlu0 %v1253, 126
        %v1270 = vpop.permute.xlu0 %1269
        %1271 = vrot.lane.b32.xlu0 %v1255, 126
        %v1272 = vpop.permute.xlu0 %1271
        %1273 = vrot.lane.b32.xlu0 %v1258, 126
        %v1274 = vpop.permute.xlu0 %1273
        %1275 = vrot.lane.b32.xlu0 %v1260, 126
        %v1276 = vpop.permute.xlu0 %1275
        %v1285 = vadd.f32 %v1093, %v1262
        %v1286 = vadd.f32 %v1094, %v1264
        %v1287 = vadd.f32 %v1095, %v1266
        %v1288 = vadd.f32 %v1096, %v1268
        %v1289 = vadd.f32 %v1097, %v1270
        %v1290 = vadd.f32 %v1098, %v1272
        %v1291 = vadd.f32 %v1099, %v1274
        %v1292 = vadd.f32 %v1100, %v1276
        %v1293 = vrot.slane %v412, 2
        %v1294 = vrot.slane %v413, 2
        %v1295 = vrot.slane %v414, 2
        %v1296 = vrot.slane %v415, 2
        %s1297 = vtos %v1293
        %v1298 = vstv %s1297
        %s1300 = vtos %v1294
        %v1301 = vstv %s1300
        %s1303 = vtos %v1295
        %v1304 = vstv %s1303
        %s1306 = vtos %v1296
        %v1307 = vstv %s1306
        %v1309 = vmul.f32 %v400, %v1298
        %v1310 = vmul.f32 %v401, %v1298
        %v1311 = vmul.f32 %v402, %v1298
        %v1312 = vmul.f32 %v403, %v1301
        %v1313 = vmul.f32 %v404, %v1301
        %v1314 = vmul.f32 %v405, %v1301
        %v1315 = vmul.f32 %v406, %v1304
        %v1316 = vmul.f32 %v407, %v1304
        %v1317 = vmul.f32 %v408, %v1304
        %v1318 = vmul.f32 %v409, %v1307
        %v1319 = vmul.f32 %v410, %v1307
        %v1320 = vmul.f32 %v411, %v1307
        %vm1333 = vcmask 1045504
        %v1334 = vrot.slane %v1309, 2
        %v1335 = vrot.slane %v1310, 2
        %v1336 = vsel %vm1333, %v1334, %v1335
        %v1337 = vrot.slane %v1311, 2
        %v1338 = vsel %vm1333, %v1335, %v1337
        %v1339 = vrot.slane %v1312, 2
        %v1340 = vrot.slane %v1313, 2
        %v1341 = vsel %vm1333, %v1339, %v1340
        %v1342 = vrot.slane %v1314, 2
        %v1343 = vsel %vm1333, %v1340, %v1342
        %v1344 = vrot.slane %v1315, 2
        %v1345 = vrot.slane %v1316, 2
        %v1346 = vsel %vm1333, %v1344, %v1345
        %v1347 = vrot.slane %v1317, 2
        %v1348 = vsel %vm1333, %v1345, %v1347
        %v1349 = vrot.slane %v1318, 2
        %v1350 = vrot.slane %v1319, 2
        %v1351 = vsel %vm1333, %v1349, %v1350
        %v1352 = vrot.slane %v1320, 2
        %v1353 = vsel %vm1333, %v1350, %v1352
        %v1362 = vadd.f32 %v1189, %v1336
        %v1363 = vadd.f32 %v1190, %v1338
        %v1364 = vadd.f32 %v1191, %v1341
        %v1365 = vadd.f32 %v1192, %v1343
        %v1366 = vadd.f32 %v1193, %v1346
        %v1367 = vadd.f32 %v1194, %v1348
        %v1368 = vadd.f32 %v1195, %v1351
        %v1369 = vadd.f32 %v1196, %v1353
        %v1370 = vrot.slane %v416, 2
        %v1371 = vrot.slane %v417, 2
        %v1372 = vrot.slane %v418, 2
        %v1373 = vrot.slane %v419, 2
        %s1374 = vtos %v1370
        %v1375 = vstv %s1374
        %s1377 = vtos %v1371
        %v1378 = vstv %s1377
        %s1380 = vtos %v1372
        %v1381 = vstv %s1380
        %s1383 = vtos %v1373
        %v1384 = vstv %s1383
        %v1386 = vmul.f32 %v400, %v1375
        %v1387 = vmul.f32 %v401, %v1375
        %v1388 = vmul.f32 %v402, %v1375
        %v1389 = vmul.f32 %v403, %v1378
        %v1390 = vmul.f32 %v404, %v1378
        %v1391 = vmul.f32 %v405, %v1378
        %v1392 = vmul.f32 %v406, %v1381
        %v1393 = vmul.f32 %v407, %v1381
        %v1394 = vmul.f32 %v408, %v1381
        %v1395 = vmul.f32 %v409, %v1384
        %v1396 = vmul.f32 %v410, %v1384
        %v1397 = vmul.f32 %v411, %v1384
        %v1410 = vrot.slane %v1386, 2
        %v1411 = vrot.slane %v1387, 2
        %v1412 = vsel %vm1333, %v1410, %v1411
        %v1413 = vrot.slane %v1388, 2
        %v1414 = vsel %vm1333, %v1411, %v1413
        %v1415 = vrot.slane %v1389, 2
        %v1416 = vrot.slane %v1390, 2
        %v1417 = vsel %vm1333, %v1415, %v1416
        %v1418 = vrot.slane %v1391, 2
        %v1419 = vsel %vm1333, %v1416, %v1418
        %v1420 = vrot.slane %v1392, 2
        %v1421 = vrot.slane %v1393, 2
        %v1422 = vsel %vm1333, %v1420, %v1421
        %v1423 = vrot.slane %v1394, 2
        %v1424 = vsel %vm1333, %v1421, %v1423
        %v1425 = vrot.slane %v1395, 2
        %v1426 = vrot.slane %v1396, 2
        %v1427 = vsel %vm1333, %v1425, %v1426
        %v1428 = vrot.slane %v1397, 2
        %v1429 = vsel %vm1333, %v1426, %v1428
        %v1438 = vadd.f32 %v1285, %v1412
        %v1439 = vadd.f32 %v1286, %v1414
        %v1440 = vadd.f32 %v1287, %v1417
        %v1441 = vadd.f32 %v1288, %v1419
        %v1442 = vadd.f32 %v1289, %v1422
        %v1443 = vadd.f32 %v1290, %v1424
        %v1444 = vadd.f32 %v1291, %v1427
        %v1445 = vadd.f32 %v1292, %v1429
        %1446 = vrot.lane.b32.xlu0 %v1293, 127
        %v1447 = vpop.permute.xlu0 %1446
        %1448 = vrot.lane.b32.xlu0 %v1294, 127
        %v1449 = vpop.permute.xlu0 %1448
        %1450 = vrot.lane.b32.xlu0 %v1295, 127
        %v1451 = vpop.permute.xlu0 %1450
        %1452 = vrot.lane.b32.xlu0 %v1296, 127
        %v1453 = vpop.permute.xlu0 %1452
        %s1454 = vtos %v1447
        %v1455 = vstv %s1454
        %s1457 = vtos %v1449
        %v1458 = vstv %s1457
        %s1460 = vtos %v1451
        %v1461 = vstv %s1460
        %s1463 = vtos %v1453
        %v1464 = vstv %s1463
        %v1466 = vmul.f32 %v400, %v1455
        %v1467 = vmul.f32 %v401, %v1455
        %v1468 = vmul.f32 %v402, %v1455
        %v1469 = vmul.f32 %v403, %v1458
        %v1470 = vmul.f32 %v404, %v1458
        %v1471 = vmul.f32 %v405, %v1458
        %v1472 = vmul.f32 %v406, %v1461
        %v1473 = vmul.f32 %v407, %v1461
        %v1474 = vmul.f32 %v408, %v1461
        %v1475 = vmul.f32 %v409, %v1464
        %v1476 = vmul.f32 %v410, %v1464
        %v1477 = vmul.f32 %v411, %v1464
        %v1490 = vrot.slane %v1466, 2
        %v1491 = vrot.slane %v1467, 2
        %v1492 = vsel %vm1333, %v1490, %v1491
        %v1493 = vrot.slane %v1468, 2
        %v1494 = vsel %vm1333, %v1491, %v1493
        %v1495 = vrot.slane %v1469, 2
        %v1496 = vrot.slane %v1470, 2
        %v1497 = vsel %vm1333, %v1495, %v1496
        %v1498 = vrot.slane %v1471, 2
        %v1499 = vsel %vm1333, %v1496, %v1498
        %v1500 = vrot.slane %v1472, 2
        %v1501 = vrot.slane %v1473, 2
        %v1502 = vsel %vm1333, %v1500, %v1501
        %v1503 = vrot.slane %v1474, 2
        %v1504 = vsel %vm1333, %v1501, %v1503
        %v1505 = vrot.slane %v1475, 2
        %v1506 = vrot.slane %v1476, 2
        %v1507 = vsel %vm1333, %v1505, %v1506
        %v1508 = vrot.slane %v1477, 2
        %v1509 = vsel %vm1333, %v1506, %v1508
        %1510 = vrot.lane.b32.xlu0 %v1492, 127
        %v1511 = vpop.permute.xlu0 %1510
        %1512 = vrot.lane.b32.xlu0 %v1494, 127
        %v1513 = vpop.permute.xlu0 %1512
        %1514 = vrot.lane.b32.xlu0 %v1497, 127
        %v1515 = vpop.permute.xlu0 %1514
        %1516 = vrot.lane.b32.xlu0 %v1499, 127
        %v1517 = vpop.permute.xlu0 %1516
        %1518 = vrot.lane.b32.xlu0 %v1502, 127
        %v1519 = vpop.permute.xlu0 %1518
        %1520 = vrot.lane.b32.xlu0 %v1504, 127
        %v1521 = vpop.permute.xlu0 %1520
        %1522 = vrot.lane.b32.xlu0 %v1507, 127
        %v1523 = vpop.permute.xlu0 %1522
        %1524 = vrot.lane.b32.xlu0 %v1509, 127
        %v1525 = vpop.permute.xlu0 %1524
        %v1534 = vadd.f32 %v1362, %v1511
        %v1535 = vadd.f32 %v1363, %v1513
        %v1536 = vadd.f32 %v1364, %v1515
        %v1537 = vadd.f32 %v1365, %v1517
        %v1538 = vadd.f32 %v1366, %v1519
        %v1539 = vadd.f32 %v1367, %v1521
        %v1540 = vadd.f32 %v1368, %v1523
        %v1541 = vadd.f32 %v1369, %v1525
        %1542 = vrot.lane.b32.xlu0 %v1370, 127
        %v1543 = vpop.permute.xlu0 %1542
        %1544 = vrot.lane.b32.xlu0 %v1371, 127
        %v1545 = vpop.permute.xlu0 %1544
        %1546 = vrot.lane.b32.xlu0 %v1372, 127
        %v1547 = vpop.permute.xlu0 %1546
        %1548 = vrot.lane.b32.xlu0 %v1373, 127
        %v1549 = vpop.permute.xlu0 %1548
        %s1550 = vtos %v1543
        %v1551 = vstv %s1550
        %s1553 = vtos %v1545
        %v1554 = vstv %s1553
        %s1556 = vtos %v1547
        %v1557 = vstv %s1556
        %s1559 = vtos %v1549
        %v1560 = vstv %s1559
        %v1562 = vmul.f32 %v400, %v1551
        %v1563 = vmul.f32 %v401, %v1551
        %v1564 = vmul.f32 %v402, %v1551
        %v1565 = vmul.f32 %v403, %v1554
        %v1566 = vmul.f32 %v404, %v1554
        %v1567 = vmul.f32 %v405, %v1554
        %v1568 = vmul.f32 %v406, %v1557
        %v1569 = vmul.f32 %v407, %v1557
        %v1570 = vmul.f32 %v408, %v1557
        %v1571 = vmul.f32 %v409, %v1560
        %v1572 = vmul.f32 %v410, %v1560
        %v1573 = vmul.f32 %v411, %v1560
        %v1586 = vrot.slane %v1562, 2
        %v1587 = vrot.slane %v1563, 2
        %v1588 = vsel %vm1333, %v1586, %v1587
        %v1589 = vrot.slane %v1564, 2
        %v1590 = vsel %vm1333, %v1587, %v1589
        %v1591 = vrot.slane %v1565, 2
        %v1592 = vrot.slane %v1566, 2
        %v1593 = vsel %vm1333, %v1591, %v1592
        %v1594 = vrot.slane %v1567, 2
        %v1595 = vsel %vm1333, %v1592, %v1594
        %v1596 = vrot.slane %v1568, 2
        %v1597 = vrot.slane %v1569, 2
        %v1598 = vsel %vm1333, %v1596, %v1597
        %v1599 = vrot.slane %v1570, 2
        %v1600 = vsel %vm1333, %v1597, %v1599
        %v1601 = vrot.slane %v1571, 2
        %v1602 = vrot.slane %v1572, 2
        %v1603 = vsel %vm1333, %v1601, %v1602
        %v1604 = vrot.slane %v1573, 2
        %v1605 = vsel %vm1333, %v1602, %v1604
        %1606 = vrot.lane.b32.xlu0 %v1588, 127
        %v1607 = vpop.permute.xlu0 %1606
        %1608 = vrot.lane.b32.xlu0 %v1590, 127
        %v1609 = vpop.permute.xlu0 %1608
        %1610 = vrot.lane.b32.xlu0 %v1593, 127
        %v1611 = vpop.permute.xlu0 %1610
        %1612 = vrot.lane.b32.xlu0 %v1595, 127
        %v1613 = vpop.permute.xlu0 %1612
        %1614 = vrot.lane.b32.xlu0 %v1598, 127
        %v1615 = vpop.permute.xlu0 %1614
        %1616 = vrot.lane.b32.xlu0 %v1600, 127
        %v1617 = vpop.permute.xlu0 %1616
        %1618 = vrot.lane.b32.xlu0 %v1603, 127
        %v1619 = vpop.permute.xlu0 %1618
        %1620 = vrot.lane.b32.xlu0 %v1605, 127
        %v1621 = vpop.permute.xlu0 %1620
        %v1630 = vadd.f32 %v1438, %v1607
        %v1631 = vadd.f32 %v1439, %v1609
        %v1632 = vadd.f32 %v1440, %v1611
        %v1633 = vadd.f32 %v1441, %v1613
        %v1634 = vadd.f32 %v1442, %v1615
        %v1635 = vadd.f32 %v1443, %v1617
        %v1636 = vadd.f32 %v1444, %v1619
        %v1637 = vadd.f32 %v1445, %v1621
        %1638 = vrot.lane.b32.xlu0 %v1293, 126
        %v1639 = vpop.permute.xlu0 %1638
        %1640 = vrot.lane.b32.xlu0 %v1294, 126
        %v1641 = vpop.permute.xlu0 %1640
        %1642 = vrot.lane.b32.xlu0 %v1295, 126
        %v1643 = vpop.permute.xlu0 %1642
        %1644 = vrot.lane.b32.xlu0 %v1296, 126
        %v1645 = vpop.permute.xlu0 %1644
        %s1646 = vtos %v1639
        %v1647 = vstv %s1646
        %s1649 = vtos %v1641
        %v1650 = vstv %s1649
        %s1652 = vtos %v1643
        %v1653 = vstv %s1652
        %s1655 = vtos %v1645
        %v1656 = vstv %s1655
        %v1658 = vmul.f32 %v400, %v1647
        %v1659 = vmul.f32 %v401, %v1647
        %v1660 = vmul.f32 %v402, %v1647
        %v1661 = vmul.f32 %v403, %v1650
        %v1662 = vmul.f32 %v404, %v1650
        %v1663 = vmul.f32 %v405, %v1650
        %v1664 = vmul.f32 %v406, %v1653
        %v1665 = vmul.f32 %v407, %v1653
        %v1666 = vmul.f32 %v408, %v1653
        %v1667 = vmul.f32 %v409, %v1656
        %v1668 = vmul.f32 %v410, %v1656
        %v1669 = vmul.f32 %v411, %v1656
        %v1682 = vrot.slane %v1658, 2
        %v1683 = vrot.slane %v1659, 2
        %v1684 = vsel %vm1333, %v1682, %v1683
        %v1685 = vrot.slane %v1660, 2
        %v1686 = vsel %vm1333, %v1683, %v1685
        %v1687 = vrot.slane %v1661, 2
        %v1688 = vrot.slane %v1662, 2
        %v1689 = vsel %vm1333, %v1687, %v1688
        %v1690 = vrot.slane %v1663, 2
        %v1691 = vsel %vm1333, %v1688, %v1690
        %v1692 = vrot.slane %v1664, 2
        %v1693 = vrot.slane %v1665, 2
        %v1694 = vsel %vm1333, %v1692, %v1693
        %v1695 = vrot.slane %v1666, 2
        %v1696 = vsel %vm1333, %v1693, %v1695
        %v1697 = vrot.slane %v1667, 2
        %v1698 = vrot.slane %v1668, 2
        %v1699 = vsel %vm1333, %v1697, %v1698
        %v1700 = vrot.slane %v1669, 2
        %v1701 = vsel %vm1333, %v1698, %v1700
        %1702 = vrot.lane.b32.xlu0 %v1684, 126
        %v1703 = vpop.permute.xlu0 %1702
        %1704 = vrot.lane.b32.xlu0 %v1686, 126
        %v1705 = vpop.permute.xlu0 %1704
        %1706 = vrot.lane.b32.xlu0 %v1689, 126
        %v1707 = vpop.permute.xlu0 %1706
        %1708 = vrot.lane.b32.xlu0 %v1691, 126
        %v1709 = vpop.permute.xlu0 %1708
        %1710 = vrot.lane.b32.xlu0 %v1694, 126
        %v1711 = vpop.permute.xlu0 %1710
        %1712 = vrot.lane.b32.xlu0 %v1696, 126
        %v1713 = vpop.permute.xlu0 %1712
        %1714 = vrot.lane.b32.xlu0 %v1699, 126
        %v1715 = vpop.permute.xlu0 %1714
        %1716 = vrot.lane.b32.xlu0 %v1701, 126
        %v1717 = vpop.permute.xlu0 %1716
        %v1726 = vadd.f32 %v1534, %v1703
        %v1727 = vadd.f32 %v1535, %v1705
        %v1728 = vadd.f32 %v1536, %v1707
        %v1729 = vadd.f32 %v1537, %v1709
        %v1730 = vadd.f32 %v1538, %v1711
        %v1731 = vadd.f32 %v1539, %v1713
        %v1732 = vadd.f32 %v1540, %v1715
        %v1733 = vadd.f32 %v1541, %v1717
        %1734 = vrot.lane.b32.xlu0 %v1370, 126
        %v1735 = vpop.permute.xlu0 %1734
        %1736 = vrot.lane.b32.xlu0 %v1371, 126
        %v1737 = vpop.permute.xlu0 %1736
        %1738 = vrot.lane.b32.xlu0 %v1372, 126
        %v1739 = vpop.permute.xlu0 %1738
        %1740 = vrot.lane.b32.xlu0 %v1373, 126
        %v1741 = vpop.permute.xlu0 %1740
        %s1742 = vtos %v1735
        %v1743 = vstv %s1742
        %s1745 = vtos %v1737
        %v1746 = vstv %s1745
        %s1748 = vtos %v1739
        %v1749 = vstv %s1748
        %s1751 = vtos %v1741
        %v1752 = vstv %s1751
        %v1754 = vmul.f32 %v400, %v1743
        %v1755 = vmul.f32 %v401, %v1743
        %v1756 = vmul.f32 %v402, %v1743
        %v1757 = vmul.f32 %v403, %v1746
        %v1758 = vmul.f32 %v404, %v1746
        %v1759 = vmul.f32 %v405, %v1746
        %v1760 = vmul.f32 %v406, %v1749
        %v1761 = vmul.f32 %v407, %v1749
        %v1762 = vmul.f32 %v408, %v1749
        %v1763 = vmul.f32 %v409, %v1752
        %v1764 = vmul.f32 %v410, %v1752
        %v1765 = vmul.f32 %v411, %v1752
        %v1778 = vrot.slane %v1754, 2
        %v1779 = vrot.slane %v1755, 2
        %v1780 = vsel %vm1333, %v1778, %v1779
        %v1781 = vrot.slane %v1756, 2
        %v1782 = vsel %vm1333, %v1779, %v1781
        %v1783 = vrot.slane %v1757, 2
        %v1784 = vrot.slane %v1758, 2
        %v1785 = vsel %vm1333, %v1783, %v1784
        %v1786 = vrot.slane %v1759, 2
        %v1787 = vsel %vm1333, %v1784, %v1786
        %v1788 = vrot.slane %v1760, 2
        %v1789 = vrot.slane %v1761, 2
        %v1790 = vsel %vm1333, %v1788, %v1789
        %v1791 = vrot.slane %v1762, 2
        %v1792 = vsel %vm1333, %v1789, %v1791
        %v1793 = vrot.slane %v1763, 2
        %v1794 = vrot.slane %v1764, 2
        %v1795 = vsel %vm1333, %v1793, %v1794
        %v1796 = vrot.slane %v1765, 2
        %v1797 = vsel %vm1333, %v1794, %v1796
        %1798 = vrot.lane.b32.xlu0 %v1780, 126
        %v1799 = vpop.permute.xlu0 %1798
        %1800 = vrot.lane.b32.xlu0 %v1782, 126
        %v1801 = vpop.permute.xlu0 %1800
        %1802 = vrot.lane.b32.xlu0 %v1785, 126
        %v1803 = vpop.permute.xlu0 %1802
        %1804 = vrot.lane.b32.xlu0 %v1787, 126
        %v1805 = vpop.permute.xlu0 %1804
        %1806 = vrot.lane.b32.xlu0 %v1790, 126
        %v1807 = vpop.permute.xlu0 %1806
        %1808 = vrot.lane.b32.xlu0 %v1792, 126
        %v1809 = vpop.permute.xlu0 %1808
        %1810 = vrot.lane.b32.xlu0 %v1795, 126
        %v1811 = vpop.permute.xlu0 %1810
        %1812 = vrot.lane.b32.xlu0 %v1797, 126
        %v1813 = vpop.permute.xlu0 %1812
        %v1822 = vadd.f32 %v1630, %v1799
        %v1823 = vadd.f32 %v1631, %v1801
        %v1824 = vadd.f32 %v1632, %v1803
        %v1825 = vadd.f32 %v1633, %v1805
        %v1826 = vadd.f32 %v1634, %v1807
        %v1827 = vadd.f32 %v1635, %v1809
        %v1828 = vadd.f32 %v1636, %v1811
        %v1829 = vadd.f32 %v1637, %v1813
        %s1830 = sld [smem:[#allocation6]]
        %s1831 = sld [smem:[#allocation7]]
        %v1832 = vstv %s1830
        %v1833 = vmul.f32 %v1726, %v1832
        %v1834 = vmul.f32 %v1727, %v1832
        %v1835 = vadd.f32 %v1833, 0.0
        %v1836 = vadd.f32 %v1834, 0.0
        %v1837 = vstv %s1831
        %v1838 = vmul.f32 %v1822, %v1837
        %v1839 = vmul.f32 %v1823, %v1837
        %v1840 = vsub.f32 %v1835, %v1838
        %v1841 = vsub.f32 %v1836, %v1839
        %v1842 = vmul.f32 %v1726, %v1837
        %v1843 = vmul.f32 %v1727, %v1837
        %v1844 = vadd.f32 %v1842, 0.0
        %v1845 = vadd.f32 %v1843, 0.0
        %v1846 = vmul.f32 %v1822, %v1832
        %v1847 = vmul.f32 %v1823, %v1832
        %v1848 = vadd.f32 %v1844, %v1846
        %v1849 = vadd.f32 %v1845, %v1847
        %s1850 = sld [smem:[#allocation6 + $0x80]]
        %s1851 = sld [smem:[#allocation7 + $0x80]]
        %v1852 = vstv %s1850
        %v1853 = vmul.f32 %v1728, %v1852
        %v1854 = vmul.f32 %v1729, %v1852
        %v1855 = vadd.f32 %v1840, %v1853
        %v1856 = vadd.f32 %v1841, %v1854
        %v1857 = vstv %s1851
        %v1858 = vmul.f32 %v1824, %v1857
        %v1859 = vmul.f32 %v1825, %v1857
        %v1860 = vsub.f32 %v1855, %v1858
        %v1861 = vsub.f32 %v1856, %v1859
        %v1862 = vmul.f32 %v1728, %v1857
        %v1863 = vmul.f32 %v1729, %v1857
        %v1864 = vadd.f32 %v1848, %v1862
        %v1865 = vadd.f32 %v1849, %v1863
        %v1866 = vmul.f32 %v1824, %v1852
        %v1867 = vmul.f32 %v1825, %v1852
        %v1868 = vadd.f32 %v1864, %v1866
        %v1869 = vadd.f32 %v1865, %v1867
        %s1870 = sld [smem:[#allocation6 + $0x100]]
        %s1871 = sld [smem:[#allocation7 + $0x100]]
        %v1872 = vstv %s1870
        %v1873 = vmul.f32 %v1730, %v1872
        %v1874 = vmul.f32 %v1731, %v1872
        %v1875 = vadd.f32 %v1860, %v1873
        %v1876 = vadd.f32 %v1861, %v1874
        %v1877 = vstv %s1871
        %v1878 = vmul.f32 %v1826, %v1877
        %v1879 = vmul.f32 %v1827, %v1877
        %v1880 = vsub.f32 %v1875, %v1878
        %v1881 = vsub.f32 %v1876, %v1879
        %v1882 = vmul.f32 %v1730, %v1877
        %v1883 = vmul.f32 %v1731, %v1877
        %v1884 = vadd.f32 %v1868, %v1882
        %v1885 = vadd.f32 %v1869, %v1883
        %v1886 = vmul.f32 %v1826, %v1872
        %v1887 = vmul.f32 %v1827, %v1872
        %v1888 = vadd.f32 %v1884, %v1886
        %v1889 = vadd.f32 %v1885, %v1887
        %s1890 = sld [smem:[#allocation6 + $0x180]]
        %s1891 = sld [smem:[#allocation7 + $0x180]]
        %v1892 = vstv %s1890
        %v1893 = vmul.f32 %v1732, %v1892
        %v1894 = vmul.f32 %v1733, %v1892
        %v1895 = vadd.f32 %v1880, %v1893
        %v1896 = vadd.f32 %v1881, %v1894
        %v1897 = vstv %s1891
        %v1898 = vmul.f32 %v1828, %v1897
        %v1899 = vmul.f32 %v1829, %v1897
        %v1900 = vsub.f32 %v1895, %v1898
        %v1901 = vsub.f32 %v1896, %v1899
        %v1902 = vmul.f32 %v1732, %v1897
        %v1903 = vmul.f32 %v1733, %v1897
        %v1904 = vadd.f32 %v1888, %v1902
        %v1905 = vadd.f32 %v1889, %v1903
        %v1906 = vmul.f32 %v1828, %v1892
        %v1907 = vmul.f32 %v1829, %v1892
        %v1908 = vadd.f32 %v1904, %v1906
        %v1909 = vadd.f32 %v1905, %v1907
        %s1910 = sld [smem:[#allocation6 + $0x1]]
        %s1911 = sld [smem:[#allocation7 + $0x1]]
        %v1912 = vstv %s1910
        %v1913 = vmul.f32 %v1726, %v1912
        %v1914 = vmul.f32 %v1727, %v1912
        %v1915 = vadd.f32 %v1913, 0.0
        %v1916 = vadd.f32 %v1914, 0.0
        %v1917 = vstv %s1911
        %v1918 = vmul.f32 %v1822, %v1917
        %v1919 = vmul.f32 %v1823, %v1917
        %v1920 = vsub.f32 %v1915, %v1918
        %v1921 = vsub.f32 %v1916, %v1919
        %v1922 = vmul.f32 %v1726, %v1917
        %v1923 = vmul.f32 %v1727, %v1917
        %v1924 = vadd.f32 %v1922, 0.0
        %v1925 = vadd.f32 %v1923, 0.0
        %v1926 = vmul.f32 %v1822, %v1912
        %v1927 = vmul.f32 %v1823, %v1912
        %v1928 = vadd.f32 %v1924, %v1926
        %v1929 = vadd.f32 %v1925, %v1927
        %s1930 = sld [smem:[#allocation6 + $0x81]]
        %s1931 = sld [smem:[#allocation7 + $0x81]]
        %v1932 = vstv %s1930
        %v1933 = vmul.f32 %v1728, %v1932
        %v1934 = vmul.f32 %v1729, %v1932
        %v1935 = vadd.f32 %v1920, %v1933
        %v1936 = vadd.f32 %v1921, %v1934
        %v1937 = vstv %s1931
        %v1938 = vmul.f32 %v1824, %v1937
        %v1939 = vmul.f32 %v1825, %v1937
        %v1940 = vsub.f32 %v1935, %v1938
        %v1941 = vsub.f32 %v1936, %v1939
        %v1942 = vmul.f32 %v1728, %v1937
        %v1943 = vmul.f32 %v1729, %v1937
        %v1944 = vadd.f32 %v1928, %v1942
        %v1945 = vadd.f32 %v1929, %v1943
        %v1946 = vmul.f32 %v1824, %v1932
        %v1947 = vmul.f32 %v1825, %v1932
        %v1948 = vadd.f32 %v1944, %v1946
        %v1949 = vadd.f32 %v1945, %v1947
        %s1950 = sld [smem:[#allocation6 + $0x101]]
        %s1951 = sld [smem:[#allocation7 + $0x101]]
        %v1952 = vstv %s1950
        %v1953 = vmul.f32 %v1730, %v1952
        %v1954 = vmul.f32 %v1731, %v1952
        %v1955 = vadd.f32 %v1940, %v1953
        %v1956 = vadd.f32 %v1941, %v1954
        %v1957 = vstv %s1951
        %v1958 = vmul.f32 %v1826, %v1957
        %v1959 = vmul.f32 %v1827, %v1957
        %v1960 = vsub.f32 %v1955, %v1958
        %v1961 = vsub.f32 %v1956, %v1959
        %v1962 = vmul.f32 %v1730, %v1957
        %v1963 = vmul.f32 %v1731, %v1957
        %v1964 = vadd.f32 %v1948, %v1962
        %v1965 = vadd.f32 %v1949, %v1963
        %v1966 = vmul.f32 %v1826, %v1952
        %v1967 = vmul.f32 %v1827, %v1952
        %v1968 = vadd.f32 %v1964, %v1966
        %v1969 = vadd.f32 %v1965, %v1967
        %s1970 = sld [smem:[#allocation6 + $0x181]]
        %s1971 = sld [smem:[#allocation7 + $0x181]]
        %v1972 = vstv %s1970
        %v1973 = vmul.f32 %v1732, %v1972
        %v1974 = vmul.f32 %v1733, %v1972
        %v1975 = vadd.f32 %v1960, %v1973
        %v1976 = vadd.f32 %v1961, %v1974
        %v1977 = vstv %s1971
        %v1978 = vmul.f32 %v1828, %v1977
        %v1979 = vmul.f32 %v1829, %v1977
        %v1980 = vsub.f32 %v1975, %v1978
        %v1981 = vsub.f32 %v1976, %v1979
        %v1982 = vmul.f32 %v1732, %v1977
        %v1983 = vmul.f32 %v1733, %v1977
        %v1984 = vadd.f32 %v1968, %v1982
        %v1985 = vadd.f32 %v1969, %v1983
        %v1986 = vmul.f32 %v1828, %v1972
        %v1987 = vmul.f32 %v1829, %v1972
        %v1988 = vadd.f32 %v1984, %v1986
        %v1989 = vadd.f32 %v1985, %v1987
        %s1990 = sld [smem:[#allocation6 + $0x2]]
        %s1991 = sld [smem:[#allocation7 + $0x2]]
        %v1992 = vstv %s1990
        %v1993 = vmul.f32 %v1726, %v1992
        %v1994 = vmul.f32 %v1727, %v1992
        %v1995 = vadd.f32 %v1993, 0.0
        %v1996 = vadd.f32 %v1994, 0.0
        %v1997 = vstv %s1991
        %v1998 = vmul.f32 %v1822, %v1997
        %v1999 = vmul.f32 %v1823, %v1997
        %v2000 = vsub.f32 %v1995, %v1998
        %v2001 = vsub.f32 %v1996, %v1999
        %v2002 = vmul.f32 %v1726, %v1997
        %v2003 = vmul.f32 %v1727, %v1997
        %v2004 = vadd.f32 %v2002, 0.0
        %v2005 = vadd.f32 %v2003, 0.0
        %v2006 = vmul.f32 %v1822, %v1992
        %v2007 = vmul.f32 %v1823, %v1992
        %v2008 = vadd.f32 %v2004, %v2006
        %v2009 = vadd.f32 %v2005, %v2007
        %s2010 = sld [smem:[#allocation6 + $0x82]]
        %s2011 = sld [smem:[#allocation7 + $0x82]]
        %v2012 = vstv %s2010
        %v2013 = vmul.f32 %v1728, %v2012
        %v2014 = vmul.f32 %v1729, %v2012
        %v2015 = vadd.f32 %v2000, %v2013
        %v2016 = vadd.f32 %v2001, %v2014
        %v2017 = vstv %s2011
        %v2018 = vmul.f32 %v1824, %v2017
        %v2019 = vmul.f32 %v1825, %v2017
        %v2020 = vsub.f32 %v2015, %v2018
        %v2021 = vsub.f32 %v2016, %v2019
        %v2022 = vmul.f32 %v1728, %v2017
        %v2023 = vmul.f32 %v1729, %v2017
        %v2024 = vadd.f32 %v2008, %v2022
        %v2025 = vadd.f32 %v2009, %v2023
        %v2026 = vmul.f32 %v1824, %v2012
        %v2027 = vmul.f32 %v1825, %v2012
        %v2028 = vadd.f32 %v2024, %v2026
        %v2029 = vadd.f32 %v2025, %v2027
        %s2030 = sld [smem:[#allocation6 + $0x102]]
        %s2031 = sld [smem:[#allocation7 + $0x102]]
        %v2032 = vstv %s2030
        %v2033 = vmul.f32 %v1730, %v2032
        %v2034 = vmul.f32 %v1731, %v2032
        %v2035 = vadd.f32 %v2020, %v2033
        %v2036 = vadd.f32 %v2021, %v2034
        %v2037 = vstv %s2031
        %v2038 = vmul.f32 %v1826, %v2037
        %v2039 = vmul.f32 %v1827, %v2037
        %v2040 = vsub.f32 %v2035, %v2038
        %v2041 = vsub.f32 %v2036, %v2039
        %v2042 = vmul.f32 %v1730, %v2037
        %v2043 = vmul.f32 %v1731, %v2037
        %v2044 = vadd.f32 %v2028, %v2042
        %v2045 = vadd.f32 %v2029, %v2043
        %v2046 = vmul.f32 %v1826, %v2032
        %v2047 = vmul.f32 %v1827, %v2032
        %v2048 = vadd.f32 %v2044, %v2046
        %v2049 = vadd.f32 %v2045, %v2047
        %s2050 = sld [smem:[#allocation6 + $0x182]]
        %s2051 = sld [smem:[#allocation7 + $0x182]]
        %v2052 = vstv %s2050
        %v2053 = vmul.f32 %v1732, %v2052
        %v2054 = vmul.f32 %v1733, %v2052
        %v2055 = vadd.f32 %v2040, %v2053
        %v2056 = vadd.f32 %v2041, %v2054
        %v2057 = vstv %s2051
        %v2058 = vmul.f32 %v1828, %v2057
        %v2059 = vmul.f32 %v1829, %v2057
        %v2060 = vsub.f32 %v2055, %v2058
        %v2061 = vsub.f32 %v2056, %v2059
        %v2062 = vmul.f32 %v1732, %v2057
        %v2063 = vmul.f32 %v1733, %v2057
        %v2064 = vadd.f32 %v2048, %v2062
        %v2065 = vadd.f32 %v2049, %v2063
        %v2066 = vmul.f32 %v1828, %v2052
        %v2067 = vmul.f32 %v1829, %v2052
        %v2068 = vadd.f32 %v2064, %v2066
        %v2069 = vadd.f32 %v2065, %v2067
        %s2070 = sld [smem:[#allocation6 + $0x3]]
        %s2071 = sld [smem:[#allocation7 + $0x3]]
        %v2072 = vstv %s2070
        %v2073 = vmul.f32 %v1726, %v2072
        %v2074 = vmul.f32 %v1727, %v2072
        %v2075 = vadd.f32 %v2073, 0.0
        %v2076 = vadd.f32 %v2074, 0.0
        %v2077 = vstv %s2071
        %v2078 = vmul.f32 %v1822, %v2077
        %v2079 = vmul.f32 %v1823, %v2077
        %v2080 = vsub.f32 %v2075, %v2078
        %v2081 = vsub.f32 %v2076, %v2079
        %v2082 = vmul.f32 %v1726, %v2077
        %v2083 = vmul.f32 %v1727, %v2077
        %v2084 = vadd.f32 %v2082, 0.0
        %v2085 = vadd.f32 %v2083, 0.0
        %v2086 = vmul.f32 %v1822, %v2072
        %v2087 = vmul.f32 %v1823, %v2072
        %v2088 = vadd.f32 %v2084, %v2086
        %v2089 = vadd.f32 %v2085, %v2087
        %s2090 = sld [smem:[#allocation6 + $0x83]]
        %s2091 = sld [smem:[#allocation7 + $0x83]]
        %v2092 = vstv %s2090
        %v2093 = vmul.f32 %v1728, %v2092
        %v2094 = vmul.f32 %v1729, %v2092
        %v2095 = vadd.f32 %v2080, %v2093
        %v2096 = vadd.f32 %v2081, %v2094
        %v2097 = vstv %s2091
        %v2098 = vmul.f32 %v1824, %v2097
        %v2099 = vmul.f32 %v1825, %v2097
        %v2100 = vsub.f32 %v2095, %v2098
        %v2101 = vsub.f32 %v2096, %v2099
        %v2102 = vmul.f32 %v1728, %v2097
        %v2103 = vmul.f32 %v1729, %v2097
        %v2104 = vadd.f32 %v2088, %v2102
        %v2105 = vadd.f32 %v2089, %v2103
        %v2106 = vmul.f32 %v1824, %v2092
        %v2107 = vmul.f32 %v1825, %v2092
        %v2108 = vadd.f32 %v2104, %v2106
        %v2109 = vadd.f32 %v2105, %v2107
        %s2110 = sld [smem:[#allocation6 + $0x103]]
        %s2111 = sld [smem:[#allocation7 + $0x103]]
        %v2112 = vstv %s2110
        %v2113 = vmul.f32 %v1730, %v2112
        %v2114 = vmul.f32 %v1731, %v2112
        %v2115 = vadd.f32 %v2100, %v2113
        %v2116 = vadd.f32 %v2101, %v2114
        %v2117 = vstv %s2111
        %v2118 = vmul.f32 %v1826, %v2117
        %v2119 = vmul.f32 %v1827, %v2117
        %v2120 = vsub.f32 %v2115, %v2118
        %v2121 = vsub.f32 %v2116, %v2119
        %v2122 = vmul.f32 %v1730, %v2117
        %v2123 = vmul.f32 %v1731, %v2117
        %v2124 = vadd.f32 %v2108, %v2122
        %v2125 = vadd.f32 %v2109, %v2123
        %v2126 = vmul.f32 %v1826, %v2112
        %v2127 = vmul.f32 %v1827, %v2112
        %v2128 = vadd.f32 %v2124, %v2126
        %v2129 = vadd.f32 %v2125, %v2127
        %s2130 = sld [smem:[#allocation6 + $0x183]]
        %s2131 = sld [smem:[#allocation7 + $0x183]]
        %v2132 = vstv %s2130
        %v2133 = vmul.f32 %v1732, %v2132
        %v2134 = vmul.f32 %v1733, %v2132
        %v2135 = vadd.f32 %v2120, %v2133
        %v2136 = vadd.f32 %v2121, %v2134
        %v2137 = vstv %s2131
        %v2138 = vmul.f32 %v1828, %v2137
        %v2139 = vmul.f32 %v1829, %v2137
        %v2140 = vsub.f32 %v2135, %v2138
        %v2141 = vsub.f32 %v2136, %v2139
        %v2142 = vmul.f32 %v1732, %v2137
        %v2143 = vmul.f32 %v1733, %v2137
        %v2144 = vadd.f32 %v2128, %v2142
        %v2145 = vadd.f32 %v2129, %v2143
        %v2146 = vmul.f32 %v1828, %v2132
        %v2147 = vmul.f32 %v1829, %v2132
        %v2148 = vadd.f32 %v2144, %v2146
        %v2149 = vadd.f32 %v2145, %v2147
        %vm2150 = vcmask 130048
        %2151 = vst.msk [vmem:[%s320] sm:$0xff] %vm2150, %v1900
        %2152 = vst.msk [vmem:[%s320 + $0x8] sm:$0xff] %vm2150, %v1901
        %2153 = vst.msk [vmem:[%s320 + $0x10] sm:$0xff] %vm2150, %v1980
        %2154 = vst.msk [vmem:[%s320 + $0x18] sm:$0xff] %vm2150, %v1981
        %2155 = vst.msk [vmem:[%s320 + $0x20] sm:$0xff] %vm2150, %v2060
        %2156 = vst.msk [vmem:[%s320 + $0x28] sm:$0xff] %vm2150, %v2061
        %2157 = vst.msk [vmem:[%s320 + $0x30] sm:$0xff] %vm2150, %v2140
        %2158 = vst.msk [vmem:[%s320 + $0x38] sm:$0xff] %vm2150, %v2141
        %2159 = vst.msk [vmem:[%s326] sm:$0xff] %vm2150, %v1908
        %2160 = vst.msk [vmem:[%s326 + $0x8] sm:$0xff] %vm2150, %v1909
        %2161 = vst.msk [vmem:[%s326 + $0x10] sm:$0xff] %vm2150, %v1988
        %2162 = vst.msk [vmem:[%s326 + $0x18] sm:$0xff] %vm2150, %v1989
        %2163 = vst.msk [vmem:[%s326 + $0x20] sm:$0xff] %vm2150, %v2068
        %2164 = vst.msk [vmem:[%s326 + $0x28] sm:$0xff] %vm2150, %v2069
        %2165 = vst.msk [vmem:[%s326 + $0x30] sm:$0xff] %vm2150, %v2148
        %2166 = vst.msk [vmem:[%s326 + $0x38] sm:$0xff] %vm2150, %v2149
        %v2167 = vsel %vm2150, %v1900, 0.0
        %2168 = vadd.xlane.f32.xlu0 %v2167
        %v2169 = vpop.xlane.xlu0 %2168
        %v2170 = vsel %vm2150, %v1901, 0.0
        %2171 = vadd.xlane.f32.xlu0 %v2170
        %v2172 = vpop.xlane.xlu0 %2171
        %v2173 = vsel %vm2150, %v1980, 0.0
        %2174 = vadd.xlane.f32.xlu0 %v2173
        %v2175 = vpop.xlane.xlu0 %2174
        %v2176 = vsel %vm2150, %v1981, 0.0
        %2177 = vadd.xlane.f32.xlu0 %v2176
        %v2178 = vpop.xlane.xlu0 %2177
        %v2179 = vsel %vm2150, %v2060, 0.0
        %2180 = vadd.xlane.f32.xlu0 %v2179
        %v2181 = vpop.xlane.xlu0 %2180
        %v2182 = vsel %vm2150, %v2061, 0.0
        %2183 = vadd.xlane.f32.xlu0 %v2182
        %v2184 = vpop.xlane.xlu0 %2183
        %v2185 = vsel %vm2150, %v2140, 0.0
        %2186 = vadd.xlane.f32.xlu0 %v2185
        %v2187 = vpop.xlane.xlu0 %2186
        %v2188 = vsel %vm2150, %v2141, 0.0
        %2189 = vadd.xlane.f32.xlu0 %v2188
        %v2190 = vpop.xlane.xlu0 %2189
        %v2199 = vlaneseq
        %v2200 = vand.u32 %v2199, 127
        %v2201 = vlaneseq
        %v2202 = vshrl.u32 %v2201, 7
        %v2203 = vsub.s32 %v2200, %v2202
        %v2204 = vrot.slane %v2169, %v2203
        %v2205 = vadd.s32 %v2200, 4294967288
        %v2206 = vlaneseq
        %v2207 = vshrl.u32 %v2206, 7
        %v2208 = vsub.s32 %v2205, %v2207
        %v2209 = vrot.slane %v2172, %v2208
        %vm2210 = vcmask 130112
        %v2211 = vsel %vm2210, %v2209, %v2204
        %v2212 = vlaneseq
        %v2213 = vshrl.u32 %v2212, 7
        %v2214 = vsub.s32 %v2200, %v2213
        %v2215 = vrot.slane %v2175, %v2214
        %v2216 = vlaneseq
        %v2217 = vshrl.u32 %v2216, 7
        %v2218 = vsub.s32 %v2205, %v2217
        %v2219 = vrot.slane %v2178, %v2218
        %v2220 = vsel %vm2210, %v2219, %v2215
        %v2221 = vlaneseq
        %v2222 = vshrl.u32 %v2221, 7
        %v2223 = vsub.s32 %v2200, %v2222
        %v2224 = vrot.slane %v2181, %v2223
        %v2225 = vlaneseq
        %v2226 = vshrl.u32 %v2225, 7
        %v2227 = vsub.s32 %v2205, %v2226
        %v2228 = vrot.slane %v2184, %v2227
        %v2229 = vsel %vm2210, %v2228, %v2224
        %v2230 = vlaneseq
        %v2231 = vshrl.u32 %v2230, 7
        %v2232 = vsub.s32 %v2200, %v2231
        %v2233 = vrot.slane %v2187, %v2232
        %v2234 = vlaneseq
        %v2235 = vshrl.u32 %v2234, 7
        %v2236 = vsub.s32 %v2205, %v2235
        %v2237 = vrot.slane %v2190, %v2236
        %v2238 = vsel %vm2210, %v2237, %v2233
        %vm2239 = vcmask 1041409
        %v2240 = vsel %vm2239, %v2220, %v2211
        %vm2241 = vcmask 1042434
        %v2242 = vsel %vm2241, %v2229, %v2240
        %vm2243 = vcmask 1043459
        %v2244 = vsel %vm2243, %v2238, %v2242
        %vm2246 = vcmask 125952
        %v2247 = vsel %vm2246, %v2244, 0.0
        %2248 = vadd.xlane.f32.xlu0 %v2247
        %v2249 = vpop.xlane.xlu0 %2248
        %v2250 = vsel %vm2150, %v1908, 0.0
        %2251 = vadd.xlane.f32.xlu0 %v2250
        %v2252 = vpop.xlane.xlu0 %2251
        %v2253 = vsel %vm2150, %v1909, 0.0
        %2254 = vadd.xlane.f32.xlu0 %v2253
        %v2255 = vpop.xlane.xlu0 %2254
        %v2256 = vsel %vm2150, %v1988, 0.0
        %2257 = vadd.xlane.f32.xlu0 %v2256
        %v2258 = vpop.xlane.xlu0 %2257
        %v2259 = vsel %vm2150, %v1989, 0.0
        %2260 = vadd.xlane.f32.xlu0 %v2259
        %v2261 = vpop.xlane.xlu0 %2260
        %v2262 = vsel %vm2150, %v2068, 0.0
        %2263 = vadd.xlane.f32.xlu0 %v2262
        %v2264 = vpop.xlane.xlu0 %2263
        %v2265 = vsel %vm2150, %v2069, 0.0
        %2266 = vadd.xlane.f32.xlu0 %v2265
        %v2267 = vpop.xlane.xlu0 %2266
        %v2268 = vsel %vm2150, %v2148, 0.0
        %2269 = vadd.xlane.f32.xlu0 %v2268
        %v2270 = vpop.xlane.xlu0 %2269
        %v2271 = vsel %vm2150, %v2149, 0.0
        %2272 = vadd.xlane.f32.xlu0 %v2271
        %v2273 = vpop.xlane.xlu0 %2272
        %v2282 = vlaneseq
        %v2283 = vshrl.u32 %v2282, 7
        %v2284 = vsub.s32 %v2200, %v2283
        %v2285 = vrot.slane %v2252, %v2284
        %v2286 = vlaneseq
        %v2287 = vshrl.u32 %v2286, 7
        %v2288 = vsub.s32 %v2205, %v2287
        %v2289 = vrot.slane %v2255, %v2288
        %v2290 = vsel %vm2210, %v2289, %v2285
        %v2291 = vlaneseq
        %v2292 = vshrl.u32 %v2291, 7
        %v2293 = vsub.s32 %v2200, %v2292
        %v2294 = vrot.slane %v2258, %v2293
        %v2295 = vlaneseq
        %v2296 = vshrl.u32 %v2295, 7
        %v2297 = vsub.s32 %v2205, %v2296
        %v2298 = vrot.slane %v2261, %v2297
        %v2299 = vsel %vm2210, %v2298, %v2294
        %v2300 = vlaneseq
        %v2301 = vshrl.u32 %v2300, 7
        %v2302 = vsub.s32 %v2200, %v2301
        %v2303 = vrot.slane %v2264, %v2302
        %v2304 = vlaneseq
        %v2305 = vshrl.u32 %v2304, 7
        %v2306 = vsub.s32 %v2205, %v2305
        %v2307 = vrot.slane %v2267, %v2306
        %v2308 = vsel %vm2210, %v2307, %v2303
        %v2309 = vlaneseq
        %v2310 = vshrl.u32 %v2309, 7
        %v2311 = vsub.s32 %v2200, %v2310
        %v2312 = vrot.slane %v2270, %v2311
        %v2313 = vlaneseq
        %v2314 = vshrl.u32 %v2313, 7
        %v2315 = vsub.s32 %v2205, %v2314
        %v2316 = vrot.slane %v2273, %v2315
        %v2317 = vsel %vm2210, %v2316, %v2312
        %v2318 = vsel %vm2239, %v2299, %v2290
        %v2319 = vsel %vm2241, %v2308, %v2318
        %v2320 = vsel %vm2243, %v2317, %v2319
        %v2322 = vsel %vm2246, %v2320, 0.0
        %2323 = vadd.xlane.f32.xlu0 %v2322
        %v2324 = vpop.xlane.xlu0 %2323
        %v2325 = vmul.f32 %v1900, %v1900
        %v2326 = vmul.f32 %v1901, %v1901
        %v2327 = vmul.f32 %v1980, %v1980
        %v2328 = vmul.f32 %v1981, %v1981
        %v2329 = vmul.f32 %v2060, %v2060
        %v2330 = vmul.f32 %v2061, %v2061
        %v2331 = vmul.f32 %v2140, %v2140
        %v2332 = vmul.f32 %v2141, %v2141
        %v2333 = vsel %vm2150, %v2325, 0.0
        %2334 = vadd.xlane.f32.xlu0 %v2333
        %v2335 = vpop.xlane.xlu0 %2334
        %v2336 = vsel %vm2150, %v2326, 0.0
        %2337 = vadd.xlane.f32.xlu0 %v2336
        %v2338 = vpop.xlane.xlu0 %2337
        %v2339 = vsel %vm2150, %v2327, 0.0
        %2340 = vadd.xlane.f32.xlu0 %v2339
        %v2341 = vpop.xlane.xlu0 %2340
        %v2342 = vsel %vm2150, %v2328, 0.0
        %2343 = vadd.xlane.f32.xlu0 %v2342
        %v2344 = vpop.xlane.xlu0 %2343
        %v2345 = vsel %vm2150, %v2329, 0.0
        %2346 = vadd.xlane.f32.xlu0 %v2345
        %v2347 = vpop.xlane.xlu0 %2346
        %v2348 = vsel %vm2150, %v2330, 0.0
        %2349 = vadd.xlane.f32.xlu0 %v2348
        %v2350 = vpop.xlane.xlu0 %2349
        %v2351 = vsel %vm2150, %v2331, 0.0
        %2352 = vadd.xlane.f32.xlu0 %v2351
        %v2353 = vpop.xlane.xlu0 %2352
        %v2354 = vsel %vm2150, %v2332, 0.0
        %2355 = vadd.xlane.f32.xlu0 %v2354
        %v2356 = vpop.xlane.xlu0 %2355
        %v2365 = vlaneseq
        %v2366 = vshrl.u32 %v2365, 7
        %v2367 = vsub.s32 %v2200, %v2366
        %v2368 = vrot.slane %v2335, %v2367
        %v2369 = vlaneseq
        %v2370 = vshrl.u32 %v2369, 7
        %v2371 = vsub.s32 %v2205, %v2370
        %v2372 = vrot.slane %v2338, %v2371
        %v2373 = vsel %vm2210, %v2372, %v2368
        %v2374 = vlaneseq
        %v2375 = vshrl.u32 %v2374, 7
        %v2376 = vsub.s32 %v2200, %v2375
        %v2377 = vrot.slane %v2341, %v2376
        %v2378 = vlaneseq
        %v2379 = vshrl.u32 %v2378, 7
        %v2380 = vsub.s32 %v2205, %v2379
        %v2381 = vrot.slane %v2344, %v2380
        %v2382 = vsel %vm2210, %v2381, %v2377
        %v2383 = vlaneseq
        %v2384 = vshrl.u32 %v2383, 7
        %v2385 = vsub.s32 %v2200, %v2384
        %v2386 = vrot.slane %v2347, %v2385
        %v2387 = vlaneseq
        %v2388 = vshrl.u32 %v2387, 7
        %v2389 = vsub.s32 %v2205, %v2388
        %v2390 = vrot.slane %v2350, %v2389
        %v2391 = vsel %vm2210, %v2390, %v2386
        %v2392 = vlaneseq
        %v2393 = vshrl.u32 %v2392, 7
        %v2394 = vsub.s32 %v2200, %v2393
        %v2395 = vrot.slane %v2353, %v2394
        %v2396 = vlaneseq
        %v2397 = vshrl.u32 %v2396, 7
        %v2398 = vsub.s32 %v2205, %v2397
        %v2399 = vrot.slane %v2356, %v2398
        %v2400 = vsel %vm2210, %v2399, %v2395
        %v2401 = vsel %vm2239, %v2382, %v2373
        %v2402 = vsel %vm2241, %v2391, %v2401
        %v2403 = vsel %vm2243, %v2400, %v2402
        %v2405 = vsel %vm2246, %v2403, 0.0
        %2406 = vadd.xlane.f32.xlu0 %v2405
        %v2407 = vpop.xlane.xlu0 %2406
        %v2408 = vmul.f32 %v1908, %v1908
        %v2409 = vmul.f32 %v1909, %v1909
        %v2410 = vmul.f32 %v1988, %v1988
        %v2411 = vmul.f32 %v1989, %v1989
        %v2412 = vmul.f32 %v2068, %v2068
        %v2413 = vmul.f32 %v2069, %v2069
        %v2414 = vmul.f32 %v2148, %v2148
        %v2415 = vmul.f32 %v2149, %v2149
        %v2416 = vsel %vm2150, %v2408, 0.0
        %2417 = vadd.xlane.f32.xlu0 %v2416
        %v2418 = vpop.xlane.xlu0 %2417
        %v2419 = vsel %vm2150, %v2409, 0.0
        %2420 = vadd.xlane.f32.xlu0 %v2419
        %v2421 = vpop.xlane.xlu0 %2420
        %v2422 = vsel %vm2150, %v2410, 0.0
        %2423 = vadd.xlane.f32.xlu0 %v2422
        %v2424 = vpop.xlane.xlu0 %2423
        %v2425 = vsel %vm2150, %v2411, 0.0
        %2426 = vadd.xlane.f32.xlu0 %v2425
        %v2427 = vpop.xlane.xlu0 %2426
        %v2428 = vsel %vm2150, %v2412, 0.0
        %2429 = vadd.xlane.f32.xlu0 %v2428
        %v2430 = vpop.xlane.xlu0 %2429
        %v2431 = vsel %vm2150, %v2413, 0.0
        %2432 = vadd.xlane.f32.xlu0 %v2431
        %v2433 = vpop.xlane.xlu0 %2432
        %v2434 = vsel %vm2150, %v2414, 0.0
        %2435 = vadd.xlane.f32.xlu0 %v2434
        %v2436 = vpop.xlane.xlu0 %2435
        %v2437 = vsel %vm2150, %v2415, 0.0
        %2438 = vadd.xlane.f32.xlu0 %v2437
        %v2439 = vpop.xlane.xlu0 %2438
        %v2448 = vlaneseq
        %v2449 = vshrl.u32 %v2448, 7
        %v2450 = vsub.s32 %v2200, %v2449
        %v2451 = vrot.slane %v2418, %v2450
        %v2452 = vlaneseq
        %v2453 = vshrl.u32 %v2452, 7
        %v2454 = vsub.s32 %v2205, %v2453
        %v2455 = vrot.slane %v2421, %v2454
        %v2456 = vsel %vm2210, %v2455, %v2451
        %v2457 = vlaneseq
        %v2458 = vshrl.u32 %v2457, 7
        %v2459 = vsub.s32 %v2200, %v2458
        %v2460 = vrot.slane %v2424, %v2459
        %v2461 = vlaneseq
        %v2462 = vshrl.u32 %v2461, 7
        %v2463 = vsub.s32 %v2205, %v2462
        %v2464 = vrot.slane %v2427, %v2463
        %v2465 = vsel %vm2210, %v2464, %v2460
        %v2466 = vlaneseq
        %v2467 = vshrl.u32 %v2466, 7
        %v2468 = vsub.s32 %v2200, %v2467
        %v2469 = vrot.slane %v2430, %v2468
        %v2470 = vlaneseq
        %v2471 = vshrl.u32 %v2470, 7
        %v2472 = vsub.s32 %v2205, %v2471
        %v2473 = vrot.slane %v2433, %v2472
        %v2474 = vsel %vm2210, %v2473, %v2469
        %v2475 = vlaneseq
        %v2476 = vshrl.u32 %v2475, 7
        %v2477 = vsub.s32 %v2200, %v2476
        %v2478 = vrot.slane %v2436, %v2477
        %v2479 = vlaneseq
        %v2480 = vshrl.u32 %v2479, 7
        %v2481 = vsub.s32 %v2205, %v2480
        %v2482 = vrot.slane %v2439, %v2481
        %v2483 = vsel %vm2210, %v2482, %v2478
        %v2484 = vsel %vm2239, %v2465, %v2456
        %v2485 = vsel %vm2241, %v2474, %v2484
        %v2486 = vsel %vm2243, %v2483, %v2485
        %v2488 = vsel %vm2246, %v2486, 0.0
        %2489 = vadd.xlane.f32.xlu0 %v2488
        %v2490 = vpop.xlane.xlu0 %2489
        %v2491 = vmul.f32 %v1900, %v1908
        %v2492 = vmul.f32 %v1901, %v1909
        %v2493 = vmul.f32 %v1980, %v1988
        %v2494 = vmul.f32 %v1981, %v1989
        %v2495 = vmul.f32 %v2060, %v2068
        %v2496 = vmul.f32 %v2061, %v2069
        %v2497 = vmul.f32 %v2140, %v2148
        %v2498 = vmul.f32 %v2141, %v2149
        %v2499 = vsel %vm2150, %v2491, 0.0
        %2500 = vadd.xlane.f32.xlu0 %v2499
        %v2501 = vpop.xlane.xlu0 %2500
        %v2502 = vsel %vm2150, %v2492, 0.0
        %2503 = vadd.xlane.f32.xlu0 %v2502
        %v2504 = vpop.xlane.xlu0 %2503
        %v2505 = vsel %vm2150, %v2493, 0.0
        %2506 = vadd.xlane.f32.xlu0 %v2505
        %v2507 = vpop.xlane.xlu0 %2506
        %v2508 = vsel %vm2150, %v2494, 0.0
        %2509 = vadd.xlane.f32.xlu0 %v2508
        %v2510 = vpop.xlane.xlu0 %2509
        %v2511 = vsel %vm2150, %v2495, 0.0
        %2512 = vadd.xlane.f32.xlu0 %v2511
        %v2513 = vpop.xlane.xlu0 %2512
        %v2514 = vsel %vm2150, %v2496, 0.0
        %2515 = vadd.xlane.f32.xlu0 %v2514
        %v2516 = vpop.xlane.xlu0 %2515
        %v2517 = vsel %vm2150, %v2497, 0.0
        %2518 = vadd.xlane.f32.xlu0 %v2517
        %v2519 = vpop.xlane.xlu0 %2518
        %v2520 = vsel %vm2150, %v2498, 0.0
        %2521 = vadd.xlane.f32.xlu0 %v2520
        %v2522 = vpop.xlane.xlu0 %2521
        %v2531 = vlaneseq
        %v2532 = vshrl.u32 %v2531, 7
        %v2533 = vsub.s32 %v2200, %v2532
        %v2534 = vrot.slane %v2501, %v2533
        %v2535 = vlaneseq
        %v2536 = vshrl.u32 %v2535, 7
        %v2537 = vsub.s32 %v2205, %v2536
        %v2538 = vrot.slane %v2504, %v2537
        %v2539 = vsel %vm2210, %v2538, %v2534
        %v2540 = vlaneseq
        %v2541 = vshrl.u32 %v2540, 7
        %v2542 = vsub.s32 %v2200, %v2541
        %v2543 = vrot.slane %v2507, %v2542
        %v2544 = vlaneseq
        %v2545 = vshrl.u32 %v2544, 7
        %v2546 = vsub.s32 %v2205, %v2545
        %v2547 = vrot.slane %v2510, %v2546
        %v2548 = vsel %vm2210, %v2547, %v2543
        %v2549 = vlaneseq
        %v2550 = vshrl.u32 %v2549, 7
        %v2551 = vsub.s32 %v2200, %v2550
        %v2552 = vrot.slane %v2513, %v2551
        %v2553 = vlaneseq
        %v2554 = vshrl.u32 %v2553, 7
        %v2555 = vsub.s32 %v2205, %v2554
        %v2556 = vrot.slane %v2516, %v2555
        %v2557 = vsel %vm2210, %v2556, %v2552
        %v2558 = vlaneseq
        %v2559 = vshrl.u32 %v2558, 7
        %v2560 = vsub.s32 %v2200, %v2559
        %v2561 = vrot.slane %v2519, %v2560
        %v2562 = vlaneseq
        %v2563 = vshrl.u32 %v2562, 7
        %v2564 = vsub.s32 %v2205, %v2563
        %v2565 = vrot.slane %v2522, %v2564
        %v2566 = vsel %vm2210, %v2565, %v2561
        %v2567 = vsel %vm2239, %v2548, %v2539
        %v2568 = vsel %vm2241, %v2557, %v2567
        %v2569 = vsel %vm2243, %v2566, %v2568
        %v2571 = vsel %vm2246, %v2569, 0.0
        %2572 = vadd.xlane.f32.xlu0 %v2571
        %v2573 = vpop.xlane.xlu0 %2572
        %vm2574 = vcmask 7168
        %v2575 = vsel %vm2574, %v2249, %v2324
        %vm2576 = vcmask 15360
        %v2577 = vsel %vm2576, %v2575, %v2407
        %vm2578 = vcmask 23552
        %v2579 = vsel %vm2578, %v2577, %v2490
        %vm2580 = vcmask 31744
        %v2581 = vsel %vm2580, %v2579, %v2573
        %vm2582 = vcmask 39936
        %v2583 = vsel %vm2582, %v2581, 0.0
        %vm2584 = vcmask 60416
        %2585 = vst.msk [vmem:[%s336] sm:$0xf] %vm2584, %v2583
        %s2586 = sand.u32 %s142, 1
        %s2587 = sand.u32 %s142, 1
        %s2588 = smul.addr %s2587, 64
        %s2589 = scalar_lea.vmem [#allocation9], %s2588
        %s2590 = sand.u32 %s168, 1
        %s2591 = sand.u32 %s168, 1
        %s2592 = smul.addr %s2591, 64
        %s2593 = scalar_lea.vmem [#allocation10], %s2592
        %p2594 = scmp.lt.s32.totalorder %s24, 1
        %s2595 = scalar_select %p2594, %s24, 1
        %s2596 = smul.addr %s2595, 4
        %s2597 = scalar_lea.vmem %s7, %s2596
        // Predicated region
        $region53: #{_lambda_.3} parent=39 // pred_check
          %p2598 = pneg %p152
        $region54: #{_lambda_.3} parent=39 // pred_check_branch
          %2600 = sbr.rel (%p2598) target = $region56
        $region55: #{_lambda_.3} parent=39 // pred_region
          %s2601 = smul.addr %s24, 2
          %s2602 = smul.addr %s2601, 8
          %s2603 = scalar_lea.vmem %s5, %s2602
          // Predicated region
          $region57: #{_lambda_.3} parent=55 // pred_check
            _
          $region58: #{_lambda_.3} parent=55 // pred_check_branch
            %2605 = sbr.rel (0) target = $region60
          $region59: #{_lambda_.3} parent=55 // pred_region
            // Predicated region
            $region61: #{_lambda_.3} parent=59 // pred_check
              _
            $region62: #{_lambda_.3} parent=59 // pred_check_branch
              %2607 = sbr.rel (0) target = $region64
            $region63: #{_lambda_.3} parent=59 // pred_region
              // Predicated region
              $region76: #{_lambda_.3} parent=63 // pred_check
                _
              $region77: #{_lambda_.3} parent=63 // pred_check_branch
                %2637 = sbr.rel (0) target = $region79
              $region78: #{_lambda_.3} parent=63 // pred_region
                loop: start=0, step=1, limit=1
                $region80: #{_lambda_.3} parent=78 // loop_pre_header
                  _
                $region81: #{_lambda_.3} parent=78 // loop_header
                  %s2639 = sphi 0, %s2643
                  %p2640 = scmp.ge.s32.totalorder %s2639, 1
                  %s2644 = sphi %s2589, %s2589
                  %s2645 = sphi %s2603, %s2603
                $region82: #{_lambda_.3} parent=78 // loop_header_branch
                  %2642 = sbr.rel (%p2640) target = $region86
                $region83: #{_lambda_.3} parent=78 // loop_body
                  %v2646 = vld [vmem:[%s2644] sm:$0xff]
                  %2647 = vst [vmem:[%s2645] sm:$0xff] %v2646
                  %v2648 = vld [vmem:[%s2644 + $0x8] sm:$0xff]
                  %2649 = vst [vmem:[%s2645 + $0x8] sm:$0xff] %v2648
                  %v2650 = vld [vmem:[%s2644 + $0x10] sm:$0xff]
                  %2651 = vst [vmem:[%s2645 + $0x20] sm:$0xff] %v2650
                  %v2652 = vld [vmem:[%s2644 + $0x18] sm:$0xff]
                  %2653 = vst [vmem:[%s2645 + $0x28] sm:$0xff] %v2652
                  %v2654 = vld [vmem:[%s2644 + $0x20] sm:$0xff]
                  %2655 = vst [vmem:[%s2645 + $0x40] sm:$0xff] %v2654
                  %v2656 = vld [vmem:[%s2644 + $0x28] sm:$0xff]
                  %2657 = vst [vmem:[%s2645 + $0x48] sm:$0xff] %v2656
                  %v2658 = vld [vmem:[%s2644 + $0x30] sm:$0xff]
                  %2659 = vst [vmem:[%s2645 + $0x60] sm:$0xff] %v2658
                  %v2660 = vld [vmem:[%s2644 + $0x38] sm:$0xff]
                  %2661 = vst [vmem:[%s2645 + $0x68] sm:$0xff] %v2660
                $region84: #{_lambda_.3} parent=78 // loop_footer
                  %s2643 = sadd.s32 1, %s2639
                $region85: #{_lambda_.3} parent=78 // loop_footer_branch
                  %2638 = sbr.rel target = $region81
                $region86: #{_lambda_.3} parent=78 // loop_exit
                  _
              $region79: #{_lambda_.3} parent=63 // pred_fallthru
                _
              // Predicated region
              $region87: #{_lambda_.3} parent=63 // pred_check
                _
              $region88: #{_lambda_.3} parent=63 // pred_check_branch
                %2663 = sbr.rel target = $region90
              $region89: #{_lambda_.3} parent=63 // pred_region
                _
              $region90: #{_lambda_.3} parent=63 // pred_fallthru
                _
            $region64: #{_lambda_.3} parent=59 // pred_fallthru
              _
            // Predicated region
            $region65: #{_lambda_.3} parent=59 // pred_check
              _
            $region66: #{_lambda_.3} parent=59 // pred_check_branch
              %2609 = sbr.rel target = $region68
            $region67: #{_lambda_.3} parent=59 // pred_region
              %s2611 = ssub.s32 256, 1
              loop: start=0, step=1, limit=1
              $region69: #{_lambda_.3} parent=67 // loop_pre_header
                _
              $region70: #{_lambda_.3} parent=67 // loop_header
                %s2613 = sphi 0, %s2617
                %p2614 = scmp.ge.s32.totalorder %s2613, 1
                %s2618 = sphi %s2589, %s2589
                %s2619 = sphi %s2603, %s2603
              $region71: #{_lambda_.3} parent=67 // loop_header_branch
                %2616 = sbr.rel (%p2614) target = $region75
              $region72: #{_lambda_.3} parent=67 // loop_body
                %v2620 = vld [vmem:[%s2618] sm:%s2611]
                %2621 = vst [vmem:[%s2619] sm:%s2611] %v2620
                %v2622 = vld [vmem:[%s2618 + $0x8] sm:%s2611]
                %2623 = vst [vmem:[%s2619 + $0x8] sm:%s2611] %v2622
                %v2624 = vld [vmem:[%s2618 + $0x10] sm:%s2611]
                %2625 = vst [vmem:[%s2619 + $0x20] sm:%s2611] %v2624
                %v2626 = vld [vmem:[%s2618 + $0x18] sm:%s2611]
                %2627 = vst [vmem:[%s2619 + $0x28] sm:%s2611] %v2626
                %v2628 = vld [vmem:[%s2618 + $0x20] sm:%s2611]
                %2629 = vst [vmem:[%s2619 + $0x40] sm:%s2611] %v2628
                %v2630 = vld [vmem:[%s2618 + $0x28] sm:%s2611]
                %2631 = vst [vmem:[%s2619 + $0x48] sm:%s2611] %v2630
                %v2632 = vld [vmem:[%s2618 + $0x30] sm:%s2611]
                %2633 = vst [vmem:[%s2619 + $0x60] sm:%s2611] %v2632
                %v2634 = vld [vmem:[%s2618 + $0x38] sm:%s2611]
                %2635 = vst [vmem:[%s2619 + $0x68] sm:%s2611] %v2634
              $region73: #{_lambda_.3} parent=67 // loop_footer
                %s2617 = sadd.s32 1, %s2613
              $region74: #{_lambda_.3} parent=67 // loop_footer_branch
                %2612 = sbr.rel target = $region70
              $region75: #{_lambda_.3} parent=67 // loop_exit
                _
            $region68: #{_lambda_.3} parent=59 // pred_fallthru
              _
          $region60: #{_lambda_.3} parent=55 // pred_fallthru
            _
          %2664 = vnop
        $region56: #{_lambda_.3} parent=39 // pred_fallthru
          _
        // Predicated region
        $region91: #{_lambda_.3} parent=39 // pred_check
          %p2665 = pneg %p178
        $region92: #{_lambda_.3} parent=39 // pred_check_branch
          %2667 = sbr.rel (%p2665) target = $region94
        $region93: #{_lambda_.3} parent=39 // pred_region
          %s2668 = smul.addr %s24, 2
          %s2669 = smul.addr %s2668, 8
          %s2670 = scalar_lea.vmem %s6, %s2669
          // Predicated region
          $region95: #{_lambda_.3} parent=93 // pred_check
            _
          $region96: #{_lambda_.3} parent=93 // pred_check_branch
            %2672 = sbr.rel (0) target = $region98
          $region97: #{_lambda_.3} parent=93 // pred_region
            // Predicated region
            $region99: #{_lambda_.3} parent=97 // pred_check
              _
            $region100: #{_lambda_.3} parent=97 // pred_check_branch
              %2674 = sbr.rel (0) target = $region102
            $region101: #{_lambda_.3} parent=97 // pred_region
              // Predicated region
              $region114: #{_lambda_.3} parent=101 // pred_check
                _
              $region115: #{_lambda_.3} parent=101 // pred_check_branch
                %2704 = sbr.rel (0) target = $region117
              $region116: #{_lambda_.3} parent=101 // pred_region
                loop: start=0, step=1, limit=1
                $region118: #{_lambda_.3} parent=116 // loop_pre_header
                  _
                $region119: #{_lambda_.3} parent=116 // loop_header
                  %s2706 = sphi 0, %s2710
                  %p2707 = scmp.ge.s32.totalorder %s2706, 1
                  %s2711 = sphi %s2593, %s2593
                  %s2712 = sphi %s2670, %s2670
                $region120: #{_lambda_.3} parent=116 // loop_header_branch
                  %2709 = sbr.rel (%p2707) target = $region124
                $region121: #{_lambda_.3} parent=116 // loop_body
                  %v2713 = vld [vmem:[%s2711] sm:$0xff]
                  %2714 = vst [vmem:[%s2712] sm:$0xff] %v2713
                  %v2715 = vld [vmem:[%s2711 + $0x8] sm:$0xff]
                  %2716 = vst [vmem:[%s2712 + $0x8] sm:$0xff] %v2715
                  %v2717 = vld [vmem:[%s2711 + $0x10] sm:$0xff]
                  %2718 = vst [vmem:[%s2712 + $0x20] sm:$0xff] %v2717
                  %v2719 = vld [vmem:[%s2711 + $0x18] sm:$0xff]
                  %2720 = vst [vmem:[%s2712 + $0x28] sm:$0xff] %v2719
                  %v2721 = vld [vmem:[%s2711 + $0x20] sm:$0xff]
                  %2722 = vst [vmem:[%s2712 + $0x40] sm:$0xff] %v2721
                  %v2723 = vld [vmem:[%s2711 + $0x28] sm:$0xff]
                  %2724 = vst [vmem:[%s2712 + $0x48] sm:$0xff] %v2723
                  %v2725 = vld [vmem:[%s2711 + $0x30] sm:$0xff]
                  %2726 = vst [vmem:[%s2712 + $0x60] sm:$0xff] %v2725
                  %v2727 = vld [vmem:[%s2711 + $0x38] sm:$0xff]
                  %2728 = vst [vmem:[%s2712 + $0x68] sm:$0xff] %v2727
                $region122: #{_lambda_.3} parent=116 // loop_footer
                  %s2710 = sadd.s32 1, %s2706
                $region123: #{_lambda_.3} parent=116 // loop_footer_branch
                  %2705 = sbr.rel target = $region119
                $region124: #{_lambda_.3} parent=116 // loop_exit
                  _
              $region117: #{_lambda_.3} parent=101 // pred_fallthru
                _
              // Predicated region
              $region125: #{_lambda_.3} parent=101 // pred_check
                _
              $region126: #{_lambda_.3} parent=101 // pred_check_branch
                %2730 = sbr.rel target = $region128
              $region127: #{_lambda_.3} parent=101 // pred_region
                _
              $region128: #{_lambda_.3} parent=101 // pred_fallthru
                _
            $region102: #{_lambda_.3} parent=97 // pred_fallthru
              _
            // Predicated region
            $region103: #{_lambda_.3} parent=97 // pred_check
              _
            $region104: #{_lambda_.3} parent=97 // pred_check_branch
              %2676 = sbr.rel target = $region106
            $region105: #{_lambda_.3} parent=97 // pred_region
              %s2678 = ssub.s32 256, 1
              loop: start=0, step=1, limit=1
              $region107: #{_lambda_.3} parent=105 // loop_pre_header
                _
              $region108: #{_lambda_.3} parent=105 // loop_header
                %s2680 = sphi 0, %s2684
                %p2681 = scmp.ge.s32.totalorder %s2680, 1
                %s2685 = sphi %s2593, %s2593
                %s2686 = sphi %s2670, %s2670
              $region109: #{_lambda_.3} parent=105 // loop_header_branch
                %2683 = sbr.rel (%p2681) target = $region113
              $region110: #{_lambda_.3} parent=105 // loop_body
                %v2687 = vld [vmem:[%s2685] sm:%s2678]
                %2688 = vst [vmem:[%s2686] sm:%s2678] %v2687
                %v2689 = vld [vmem:[%s2685 + $0x8] sm:%s2678]
                %2690 = vst [vmem:[%s2686 + $0x8] sm:%s2678] %v2689
                %v2691 = vld [vmem:[%s2685 + $0x10] sm:%s2678]
                %2692 = vst [vmem:[%s2686 + $0x20] sm:%s2678] %v2691
                %v2693 = vld [vmem:[%s2685 + $0x18] sm:%s2678]
                %2694 = vst [vmem:[%s2686 + $0x28] sm:%s2678] %v2693
                %v2695 = vld [vmem:[%s2685 + $0x20] sm:%s2678]
                %2696 = vst [vmem:[%s2686 + $0x40] sm:%s2678] %v2695
                %v2697 = vld [vmem:[%s2685 + $0x28] sm:%s2678]
                %2698 = vst [vmem:[%s2686 + $0x48] sm:%s2678] %v2697
                %v2699 = vld [vmem:[%s2685 + $0x30] sm:%s2678]
                %2700 = vst [vmem:[%s2686 + $0x60] sm:%s2678] %v2699
                %v2701 = vld [vmem:[%s2685 + $0x38] sm:%s2678]
                %2702 = vst [vmem:[%s2686 + $0x68] sm:%s2678] %v2701
              $region111: #{_lambda_.3} parent=105 // loop_footer
                %s2684 = sadd.s32 1, %s2680
              $region112: #{_lambda_.3} parent=105 // loop_footer_branch
                %2679 = sbr.rel target = $region108
              $region113: #{_lambda_.3} parent=105 // loop_exit
                _
            $region106: #{_lambda_.3} parent=97 // pred_fallthru
              _
          $region98: #{_lambda_.3} parent=93 // pred_fallthru
            _
          %2731 = vnop
        $region94: #{_lambda_.3} parent=39 // pred_fallthru
          _
        // Predicated region
        $region129: #{_lambda_.3} parent=39 // pred_check
          %p2732 = pneg %p204
        $region130: #{_lambda_.3} parent=39 // pred_check_branch
          %2734 = sbr.rel (%p2732) target = $region132
        $region131: #{_lambda_.3} parent=39 // pred_region
          _
        $region132: #{_lambda_.3} parent=39 // pred_fallthru
          _
      $region40: #{_lambda_.3} parent=5 // pred_fallthru
        _
      %p2735 = scmp.le.s32.totalorder 2, %s19
      // Predicated region
      $region133: #{_lambda_.3} parent=5 // pred_check
        %p2736 = pneg %p2735
      $region134: #{_lambda_.3} parent=5 // pred_check_branch
        %2738 = sbr.rel (%p2736) target = $region136
      $region135: #{_lambda_.3} parent=5 // pred_region
        %s2739 = ssub.s32 %s19, 2
        // Predicated region
        $region137: #{_lambda_.3} parent=135 // pred_check
          %p2740 = pneg %p158
        $region138: #{_lambda_.3} parent=135 // pred_check_branch
          %2742 = sbr.rel (%p2740) target = $region140
        $region139: #{_lambda_.3} parent=135 // pred_region
          %s2743 = sand.u32 %s143, 1
          %s2744 = sand.u32 %s143, 1
          %s2745 = smul.addr %s2744, 64
          %s2746 = scalar_lea.vmem [#allocation9], %s2745
        $region140: #{_lambda_.3} parent=135 // pred_fallthru
          _
        // Predicated region
        $region141: #{_lambda_.3} parent=135 // pred_check
          %p2747 = pneg %p184
        $region142: #{_lambda_.3} parent=135 // pred_check_branch
          %2749 = sbr.rel (%p2747) target = $region144
        $region143: #{_lambda_.3} parent=135 // pred_region
          %s2750 = sand.u32 %s169, 1
          %s2751 = sand.u32 %s169, 1
          %s2752 = smul.addr %s2751, 64
          %s2753 = scalar_lea.vmem [#allocation10], %s2752
        $region144: #{_lambda_.3} parent=135 // pred_fallthru
          _
        // Predicated region
        $region145: #{_lambda_.3} parent=135 // pred_check
          %p2754 = pneg %p210
        $region146: #{_lambda_.3} parent=135 // pred_check_branch
          %2756 = sbr.rel (%p2754) target = $region148
        $region147: #{_lambda_.3} parent=135 // pred_region
          %p2757 = scmp.lt.s32.totalorder %s25, 1
          %s2758 = scalar_select %p2757, %s25, 1
          %s2759 = smul.addr %s2758, 4
          %s2760 = scalar_lea.vmem %s7, %s2759
        $region148: #{_lambda_.3} parent=135 // pred_fallthru
          _
      $region136: #{_lambda_.3} parent=5 // pred_fallthru
        _
    $region6: #{_lambda_.3} parent=1 // loop_footer
      %s23 = sadd.s32 1, %s19
    $region7: #{_lambda_.3} parent=1 // loop_footer_branch
      %18 = sbr.rel target = $region3
    $region8: #{_lambda_.3} parent=1 // loop_exit
      _
    %2761 = vsyncpa [#allocation4], 1
    %s2762 = scalar_lea.sflag [#allocation4], 1
    %2763 = vsyncpa %s2762, 1
    %2764 = vsyncpa [#allocation5], 1
    %s2765 = scalar_lea.sflag [#allocation5], 1
    %2766 = vsyncpa %s2765, 1
    %2767 = vsyncpa [#allocation8], 1

// kernel: _lambda_.4
$region0: #{_lambda_.4}
  #allocation0 [shape = 'u32[]', space=smem, size = 0x4, offset = 0x4, fixed_abs, tag = 'smem constant byte address 0x4 - core index']
  #allocation1 [shape = 'u32[144,128]{1,0:T(1,128)}', space=vmem, size = 0x12000, scoped, tag = 'internal scratch']
  #allocation2 [shape = 'f32[4,18,18]{2,1,0:T(8,128)}', space=vmem, size = 0xc000, scoped, tag = 'scratch operand']
  #allocation3 [shape = 'f32[4,18,18]{2,1,0:T(8,128)}', space=vmem, size = 0xc000, scoped, tag = 'scratch operand']
  %s0 = inlined_call_operand.vmem [shape: f32[4,2,16,16], index: 0, kind: input, shape index: {}]
  %s1 = inlined_call_operand.vmem [shape: f32[4,2,16,16], index: 1, kind: input, shape index: {}]
  %s2 = inlined_call_operand.vmem [shape: f32[4,9,1], index: 2, kind: input, shape index: {}]
  %s3 = inlined_call_operand.vmem [shape: f32[4,3,3], index: 3, kind: input, shape index: {}]
  %s4 = inlined_call_operand.vmem [shape: f32[4,3,3], index: 4, kind: input, shape index: {}]
  %s5 = inlined_call_operand.vmem [shape: f32[4,8], index: 5, kind: input, shape index: {}]
  %s6 = inlined_call_operand.vmem [shape: f32[4,8], index: 6, kind: input, shape index: {}]
  %s7 = inlined_call_operand.vmem [shape: f32[8,2,16,16], index: 7, kind: output, shape index: {0}]
  %s8 = inlined_call_operand.vmem [shape: f32[8,2,16,16], index: 8, kind: output, shape index: {1}]
  %s9 = inlined_call_operand.vmem [shape: f32[2,8,8], index: 9, kind: output, shape index: {2}]
  %10 = xla_tuple %s7, %s8, %s9
  %s11 = sld [smem:[#allocation0]]
  $region229: #{_lambda_.4} parent=0
    _
  %s13 = ssub.s32 1, %s11
  %s14 = scalar_select 0, %s13, %s11
  $region1: #{_lambda_.4} parent=0
    #allocation4 [shape = 'u8[65536]{0}', space=vmem, size = 0x10000, scoped, tag = 'input window, operand 0']
    #allocation5 [shape = 'u8[65536]{0}', space=vmem, size = 0x10000, scoped, tag = 'input window, operand 1']
    #allocation6 [shape = 'u8[2048]{0}', space=smem, size = 0x800, scoped, tag = 'input window, operand 5, single buffered']
    #allocation7 [shape = 's32[2]{0}', space=sflag, size = 0x8, scoped, tag = 'scoped memory for _lambda_.4']
    #allocation8 [shape = 'u8[2048]{0}', space=smem, size = 0x800, scoped, tag = 'input window, operand 6, single buffered']
    #allocation9 [shape = 's32[1]{0}', space=sflag, size = 0x4, scoped, tag = 'scoped memory for _lambda_.4']
    #allocation10 [shape = 'u8[131072]{0}', space=vmem, size = 0x20000, scoped, tag = 'output window, operand 0']
    #allocation11 [shape = 'u8[131072]{0}', space=vmem, size = 0x20000, scoped, tag = 'output window, operand 1']
    %15 = vsyncpa [#allocation7], 0
    %16 = vsyncpa [#allocation9], 0
    loop: start=0, step=1, limit=4
    $region2: #{_lambda_.4} parent=1 // loop_pre_header
      _
    $region3: #{_lambda_.4} parent=1 // loop_header
      %s18 = sphi 0, %s22
      %p19 = scmp.ge.s32.totalorder %s18, 4
      %s28 = sphi 0, %s30
      %s31 = sphi 0, %s28
      %s32 = sphi 0, %s31
      %s48 = sphi 0, %s32
      %s54 = sphi 0, %s56
      %s57 = sphi 0, %s54
      %s58 = sphi 0, %s57
      %s74 = sphi 0, %s58
      %s78 = sphi 0, %s78
      %s80 = sphi 0, %s78
      %s81 = sphi 0, %s80
      %s95 = sphi 0, %s81
      %s99 = sphi 0, %s99
      %s101 = sphi 0, %s99
      %s102 = sphi 0, %s101
      %s116 = sphi 0, %s102
      %s120 = sphi 0, %s120
      %s122 = sphi 0, %s120
      %s123 = sphi 0, %s122
      %s137 = sphi 0, %s123
      %s141 = sphi 0, %s141
      %s143 = sphi 0, %s141
      %s144 = sphi 0, %s143
      %s158 = sphi 0, %s144
      %s162 = sphi 0, %s162
      %s164 = sphi 0, %s162
      %s165 = sphi 0, %s164
      %s179 = sphi 0, %s165
      %s185 = sphi 0, %s187
      %s188 = sphi 0, %s185
      %s189 = sphi 0, %s188
      %s205 = sphi 0, %s189
      %s211 = sphi 0, %s213
      %s214 = sphi 0, %s211
      %s215 = sphi 0, %s214
      %s231 = sphi 0, %s215
      %s237 = sphi 0, %s239
      %s240 = sphi 0, %s237
      %s241 = sphi 0, %s240
      %s257 = sphi 0, %s241
    $region4: #{_lambda_.4} parent=1 // loop_header_branch
      %21 = sbr.rel (%p19) target = $region8
    $region5: #{_lambda_.4} parent=1 // loop_body
      %s23 = ssub.s32 %s18, 1
      %s24 = ssub.s32 %s18, 2
      %s25 = sadd.s32 %s18, 1
      %s26 = ssub.s32 %s18, %s25
      %p27 = scmp.eq.s32.totalorder %s26, 0
      %s29 = sadd.s32 %s28, 1
      %s30 = scalar_select %p27, %s28, %s29
      %p33 = pneg %p27
      %p34 = scmp.eq.s32.totalorder %s18, 1
      %p35 = por %p33, %p34
      %p36 = scmp.ne.s32.totalorder %s28, %s31
      %p37 = scmp.eq.s32.totalorder %s18, 0
      %p38 = por %p36, %p37
      %p39 = scmp.ne.s32.totalorder %s28, %s31
      %p40 = scmp.eq.s32.totalorder %s23, 1
      %p41 = por %p39, %p40
      %p42 = scmp.ne.s32.totalorder %s31, %s32
      %p43 = scmp.eq.s32.totalorder %s23, 0
      %p44 = por %p42, %p43
      %p45 = scmp.ne.s32.totalorder %s31, %s32
      %p46 = scmp.eq.s32.totalorder %s24, 1
      %p47 = por %p45, %p46
      %p49 = scmp.ne.s32.totalorder %s32, %s48
      %p50 = scmp.eq.s32.totalorder %s24, 0
      %p51 = por %p49, %p50
      %s52 = ssub.s32 %s18, %s25
      %p53 = scmp.eq.s32.totalorder %s52, 0
      %s55 = sadd.s32 %s54, 1
      %s56 = scalar_select %p53, %s54, %s55
      %p59 = pneg %p53
      %p60 = scmp.eq.s32.totalorder %s18, 1
      %p61 = por %p59, %p60
      %p62 = scmp.ne.s32.totalorder %s54, %s57
      %p63 = scmp.eq.s32.totalorder %s18, 0
      %p64 = por %p62, %p63
      %p65 = scmp.ne.s32.totalorder %s54, %s57
      %p66 = scmp.eq.s32.totalorder %s23, 1
      %p67 = por %p65, %p66
      %p68 = scmp.ne.s32.totalorder %s57, %s58
      %p69 = scmp.eq.s32.totalorder %s23, 0
      %p70 = por %p68, %p69
      %p71 = scmp.ne.s32.totalorder %s57, %s58
      %p72 = scmp.eq.s32.totalorder %s24, 1
      %p73 = por %p71, %p72
      %p75 = scmp.ne.s32.totalorder %s58, %s74
      %p76 = scmp.eq.s32.totalorder %s24, 0
      %p77 = por %p75, %p76
      %s79 = sadd.s32 %s78, 1
      %p82 = scmp.eq.s32.totalorder %s18, 1
      %p83 = scmp.ne.s32.totalorder %s78, %s80
      %p84 = scmp.eq.s32.totalorder %s18, 0
      %p85 = por %p83, %p84
      %p86 = scmp.ne.s32.totalorder %s78, %s80
      %p87 = scmp.eq.s32.totalorder %s23, 1
      %p88 = por %p86, %p87
      %p89 = scmp.ne.s32.totalorder %s80, %s81
      %p90 = scmp.eq.s32.totalorder %s23, 0
      %p91 = por %p89, %p90
      %p92 = scmp.ne.s32.totalorder %s80, %s81
      %p93 = scmp.eq.s32.totalorder %s24, 1
      %p94 = por %p92, %p93
      %p96 = scmp.ne.s32.totalorder %s81, %s95
      %p97 = scmp.eq.s32.totalorder %s24, 0
      %p98 = por %p96, %p97
      %s100 = sadd.s32 %s99, 1
      %p103 = scmp.eq.s32.totalorder %s18, 1
      %p104 = scmp.ne.s32.totalorder %s99, %s101
      %p105 = scmp.eq.s32.totalorder %s18, 0
      %p106 = por %p104, %p105
      %p107 = scmp.ne.s32.totalorder %s99, %s101
      %p108 = scmp.eq.s32.totalorder %s23, 1
      %p109 = por %p107, %p108
      %p110 = scmp.ne.s32.totalorder %s101, %s102
      %p111 = scmp.eq.s32.totalorder %s23, 0
      %p112 = por %p110, %p111
      %p113 = scmp.ne.s32.totalorder %s101, %s102
      %p114 = scmp.eq.s32.totalorder %s24, 1
      %p115 = por %p113, %p114
      %p117 = scmp.ne.s32.totalorder %s102, %s116
      %p118 = scmp.eq.s32.totalorder %s24, 0
      %p119 = por %p117, %p118
      %s121 = sadd.s32 %s120, 1
      %p124 = scmp.eq.s32.totalorder %s18, 1
      %p125 = scmp.ne.s32.totalorder %s120, %s122
      %p126 = scmp.eq.s32.totalorder %s18, 0
      %p127 = por %p125, %p126
      %p128 = scmp.ne.s32.totalorder %s120, %s122
      %p129 = scmp.eq.s32.totalorder %s23, 1
      %p130 = por %p128, %p129
      %p131 = scmp.ne.s32.totalorder %s122, %s123
      %p132 = scmp.eq.s32.totalorder %s23, 0
      %p133 = por %p131, %p132
      %p134 = scmp.ne.s32.totalorder %s122, %s123
      %p135 = scmp.eq.s32.totalorder %s24, 1
      %p136 = por %p134, %p135
      %p138 = scmp.ne.s32.totalorder %s123, %s137
      %p139 = scmp.eq.s32.totalorder %s24, 0
      %p140 = por %p138, %p139
      %s142 = sadd.s32 %s141, 1
      %p145 = scmp.eq.s32.totalorder %s18, 1
      %p146 = scmp.ne.s32.totalorder %s141, %s143
      %p147 = scmp.eq.s32.totalorder %s18, 0
      %p148 = por %p146, %p147
      %p149 = scmp.ne.s32.totalorder %s141, %s143
      %p150 = scmp.eq.s32.totalorder %s23, 1
      %p151 = por %p149, %p150
      %p152 = scmp.ne.s32.totalorder %s143, %s144
      %p153 = scmp.eq.s32.totalorder %s23, 0
      %p154 = por %p152, %p153
      %p155 = scmp.ne.s32.totalorder %s143, %s144
      %p156 = scmp.eq.s32.totalorder %s24, 1
      %p157 = por %p155, %p156
      %p159 = scmp.ne.s32.totalorder %s144, %s158
      %p160 = scmp.eq.s32.totalorder %s24, 0
      %p161 = por %p159, %p160
      %s163 = sadd.s32 %s162, 1
      %p166 = scmp.eq.s32.totalorder %s18, 1
      %p167 = scmp.ne.s32.totalorder %s162, %s164
      %p168 = scmp.eq.s32.totalorder %s18, 0
      %p169 = por %p167, %p168
      %p170 = scmp.ne.s32.totalorder %s162, %s164
      %p171 = scmp.eq.s32.totalorder %s23, 1
      %p172 = por %p170, %p171
      %p173 = scmp.ne.s32.totalorder %s164, %s165
      %p174 = scmp.eq.s32.totalorder %s23, 0
      %p175 = por %p173, %p174
      %p176 = scmp.ne.s32.totalorder %s164, %s165
      %p177 = scmp.eq.s32.totalorder %s24, 1
      %p178 = por %p176, %p177
      %p180 = scmp.ne.s32.totalorder %s165, %s179
      %p181 = scmp.eq.s32.totalorder %s24, 0
      %p182 = por %p180, %p181
      %s183 = ssub.s32 %s18, %s25
      %p184 = scmp.eq.s32.totalorder %s183, 0
      %s186 = sadd.s32 %s185, 1
      %s187 = scalar_select %p184, %s185, %s186
      %p190 = pneg %p184
      %p191 = scmp.eq.s32.totalorder %s18, 1
      %p192 = por %p190, %p191
      %p193 = scmp.ne.s32.totalorder %s185, %s188
      %p194 = scmp.eq.s32.totalorder %s18, 0
      %p195 = por %p193, %p194
      %p196 = scmp.ne.s32.totalorder %s185, %s188
      %p197 = scmp.eq.s32.totalorder %s23, 1
      %p198 = por %p196, %p197
      %p199 = scmp.ne.s32.totalorder %s188, %s189
      %p200 = scmp.eq.s32.totalorder %s23, 0
      %p201 = por %p199, %p200
      %p202 = scmp.ne.s32.totalorder %s188, %s189
      %p203 = scmp.eq.s32.totalorder %s24, 1
      %p204 = por %p202, %p203
      %p206 = scmp.ne.s32.totalorder %s189, %s205
      %p207 = scmp.eq.s32.totalorder %s24, 0
      %p208 = por %p206, %p207
      %s209 = ssub.s32 %s18, %s25
      %p210 = scmp.eq.s32.totalorder %s209, 0
      %s212 = sadd.s32 %s211, 1
      %s213 = scalar_select %p210, %s211, %s212
      %p216 = pneg %p210
      %p217 = scmp.eq.s32.totalorder %s18, 1
      %p218 = por %p216, %p217
      %p219 = scmp.ne.s32.totalorder %s211, %s214
      %p220 = scmp.eq.s32.totalorder %s18, 0
      %p221 = por %p219, %p220
      %p222 = scmp.ne.s32.totalorder %s211, %s214
      %p223 = scmp.eq.s32.totalorder %s23, 1
      %p224 = por %p222, %p223
      %p225 = scmp.ne.s32.totalorder %s214, %s215
      %p226 = scmp.eq.s32.totalorder %s23, 0
      %p227 = por %p225, %p226
      %p228 = scmp.ne.s32.totalorder %s214, %s215
      %p229 = scmp.eq.s32.totalorder %s24, 1
      %p230 = por %p228, %p229
      %p232 = scmp.ne.s32.totalorder %s215, %s231
      %p233 = scmp.eq.s32.totalorder %s24, 0
      %p234 = por %p232, %p233
      %s235 = ssub.s32 %s18, %s25
      %p236 = scmp.eq.s32.totalorder %s235, 0
      %s238 = sadd.s32 %s237, 1
      %s239 = scalar_select %p236, %s237, %s238
      %p242 = pneg %p236
      %p243 = scmp.eq.s32.totalorder %s18, 1
      %p244 = por %p242, %p243
      %p245 = scmp.ne.s32.totalorder %s237, %s240
      %p246 = scmp.eq.s32.totalorder %s18, 0
      %p247 = por %p245, %p246
      %p248 = scmp.ne.s32.totalorder %s237, %s240
      %p249 = scmp.eq.s32.totalorder %s23, 1
      %p250 = por %p248, %p249
      %p251 = scmp.ne.s32.totalorder %s240, %s241
      %p252 = scmp.eq.s32.totalorder %s23, 0
      %p253 = por %p251, %p252
      %p254 = scmp.ne.s32.totalorder %s240, %s241
      %p255 = scmp.eq.s32.totalorder %s24, 1
      %p256 = por %p254, %p255
      %p258 = scmp.ne.s32.totalorder %s241, %s257
      %p259 = scmp.eq.s32.totalorder %s24, 0
      %p260 = por %p258, %p259
      %p261 = scmp.le.s32.totalorder 1, %s18
      %p262 = scmp.lt.s32.totalorder %s18, 3
      %p263 = pnand %p261, %p262
      %p264 = pneg %p263
      // Predicated region
      $region9: #{_lambda_.4} parent=5 // pred_check
        _
      $region10: #{_lambda_.4} parent=5 // pred_check_branch
        %266 = sbr.rel (%p263) target = $region12
      $region11: #{_lambda_.4} parent=5 // pred_region
        %s267 = ssub.s32 %s18, 1
        // Predicated region
        $region13: #{_lambda_.4} parent=11 // pred_check
          %p268 = pneg %p91
        $region14: #{_lambda_.4} parent=11 // pred_check_branch
          %270 = sbr.rel (%p268) target = $region16
        $region15: #{_lambda_.4} parent=11 // pred_region
          _
        $region16: #{_lambda_.4} parent=11 // pred_fallthru
          _
        // Predicated region
        $region17: #{_lambda_.4} parent=11 // pred_check
          %p271 = pneg %p112
        $region18: #{_lambda_.4} parent=11 // pred_check_branch
          %273 = sbr.rel (%p271) target = $region20
        $region19: #{_lambda_.4} parent=11 // pred_region
          _
        $region20: #{_lambda_.4} parent=11 // pred_fallthru
          _
        // Predicated region
        $region21: #{_lambda_.4} parent=11 // pred_check
          %p274 = pneg %p133
        $region22: #{_lambda_.4} parent=11 // pred_check_branch
          %276 = sbr.rel (%p274) target = $region24
        $region23: #{_lambda_.4} parent=11 // pred_region
          _
        $region24: #{_lambda_.4} parent=11 // pred_fallthru
          _
        // Predicated region
        $region25: #{_lambda_.4} parent=11 // pred_check
          %p277 = pneg %p154
        $region26: #{_lambda_.4} parent=11 // pred_check_branch
          %279 = sbr.rel (%p277) target = $region28
        $region27: #{_lambda_.4} parent=11 // pred_region
          %s281 = ssub.s32 64, 64
          %282 = vsyncadd [#allocation7], %s281
          %s284 = sshll.u32 %s5, 4
          %s285 = int_to_ptr.vmem [resolvable:$true] %s284
          %287 = dma.vmem_to_smem %s285, 64, [#allocation6], [#allocation7]
        $region28: #{_lambda_.4} parent=11 // pred_fallthru
          _
        // Predicated region
        $region29: #{_lambda_.4} parent=11 // pred_check
          %p288 = pneg %p175
        $region30: #{_lambda_.4} parent=11 // pred_check_branch
          %290 = sbr.rel (%p288) target = $region32
        $region31: #{_lambda_.4} parent=11 // pred_region
          %s292 = ssub.s32 64, 64
          %293 = vsyncadd [#allocation9], %s292
          %s295 = sshll.u32 %s6, 4
          %s296 = int_to_ptr.vmem [resolvable:$true] %s295
          %298 = dma.vmem_to_smem %s296, 64, [#allocation8], [#allocation9]
        $region32: #{_lambda_.4} parent=11 // pred_fallthru
          _
      $region12: #{_lambda_.4} parent=5 // pred_fallthru
        _
      %p299 = scmp.lt.s32.totalorder %s18, 2
      // Predicated region
      $region33: #{_lambda_.4} parent=5 // pred_check
        %p300 = pneg %p299
      $region34: #{_lambda_.4} parent=5 // pred_check_branch
        %302 = sbr.rel (%p300) target = $region36
      $region35: #{_lambda_.4} parent=5 // pred_region
        // Predicated region
        $region37: #{_lambda_.4} parent=35 // pred_check
          %p303 = pneg %p38
        $region38: #{_lambda_.4} parent=35 // pred_check_branch
          %305 = sbr.rel (%p303) target = $region40
        $region39: #{_lambda_.4} parent=35 // pred_region
          %s306 = sand.u32 %s28, 1
          %s307 = sand.u32 %s28, 1
          %s308 = smul.addr %s307, 64
          %s309 = scalar_lea.vmem [#allocation4], %s308
          %s310 = smul.addr %s18, 2
          %s311 = smul.addr %s310, 8
          %s312 = scalar_lea.vmem %s0, %s311
          // Predicated region
          $region41: #{_lambda_.4} parent=39 // pred_check
            _
          $region42: #{_lambda_.4} parent=39 // pred_check_branch
            %314 = sbr.rel (0) target = $region44
          $region43: #{_lambda_.4} parent=39 // pred_region
            // Predicated region
            $region45: #{_lambda_.4} parent=43 // pred_check
              _
            $region46: #{_lambda_.4} parent=43 // pred_check_branch
              %316 = sbr.rel (0) target = $region48
            $region47: #{_lambda_.4} parent=43 // pred_region
              // Predicated region
              $region60: #{_lambda_.4} parent=47 // pred_check
                _
              $region61: #{_lambda_.4} parent=47 // pred_check_branch
                %346 = sbr.rel (0) target = $region63
              $region62: #{_lambda_.4} parent=47 // pred_region
                loop: start=0, step=1, limit=1
                $region64: #{_lambda_.4} parent=62 // loop_pre_header
                  _
                $region65: #{_lambda_.4} parent=62 // loop_header
                  %s348 = sphi 0, %s352
                  %p349 = scmp.ge.s32.totalorder %s348, 1
                  %s353 = sphi %s312, %s312
                  %s354 = sphi %s309, %s309
                $region66: #{_lambda_.4} parent=62 // loop_header_branch
                  %351 = sbr.rel (%p349) target = $region70
                $region67: #{_lambda_.4} parent=62 // loop_body
                  %v355 = vld [vmem:[%s353] sm:$0xff]
                  %356 = vst [vmem:[%s354] sm:$0xff] %v355
                  %v357 = vld [vmem:[%s353 + $0x8] sm:$0xff]
                  %358 = vst [vmem:[%s354 + $0x8] sm:$0xff] %v357
                  %v359 = vld [vmem:[%s353 + $0x20] sm:$0xff]
                  %360 = vst [vmem:[%s354 + $0x10] sm:$0xff] %v359
                  %v361 = vld [vmem:[%s353 + $0x28] sm:$0xff]
                  %362 = vst [vmem:[%s354 + $0x18] sm:$0xff] %v361
                  %v363 = vld [vmem:[%s353 + $0x40] sm:$0xff]
                  %364 = vst [vmem:[%s354 + $0x20] sm:$0xff] %v363
                  %v365 = vld [vmem:[%s353 + $0x48] sm:$0xff]
                  %366 = vst [vmem:[%s354 + $0x28] sm:$0xff] %v365
                  %v367 = vld [vmem:[%s353 + $0x60] sm:$0xff]
                  %368 = vst [vmem:[%s354 + $0x30] sm:$0xff] %v367
                  %v369 = vld [vmem:[%s353 + $0x68] sm:$0xff]
                  %370 = vst [vmem:[%s354 + $0x38] sm:$0xff] %v369
                $region68: #{_lambda_.4} parent=62 // loop_footer
                  %s352 = sadd.s32 1, %s348
                $region69: #{_lambda_.4} parent=62 // loop_footer_branch
                  %347 = sbr.rel target = $region65
                $region70: #{_lambda_.4} parent=62 // loop_exit
                  _
              $region63: #{_lambda_.4} parent=47 // pred_fallthru
                _
              // Predicated region
              $region71: #{_lambda_.4} parent=47 // pred_check
                _
              $region72: #{_lambda_.4} parent=47 // pred_check_branch
                %372 = sbr.rel target = $region74
              $region73: #{_lambda_.4} parent=47 // pred_region
                _
              $region74: #{_lambda_.4} parent=47 // pred_fallthru
                _
            $region48: #{_lambda_.4} parent=43 // pred_fallthru
              _
            // Predicated region
            $region49: #{_lambda_.4} parent=43 // pred_check
              _
            $region50: #{_lambda_.4} parent=43 // pred_check_branch
              %318 = sbr.rel target = $region52
            $region51: #{_lambda_.4} parent=43 // pred_region
              %s320 = ssub.s32 256, 1
              loop: start=0, step=1, limit=1
              $region53: #{_lambda_.4} parent=51 // loop_pre_header
                _
              $region54: #{_lambda_.4} parent=51 // loop_header
                %s322 = sphi 0, %s326
                %p323 = scmp.ge.s32.totalorder %s322, 1
                %s327 = sphi %s312, %s312
                %s328 = sphi %s309, %s309
              $region55: #{_lambda_.4} parent=51 // loop_header_branch
                %325 = sbr.rel (%p323) target = $region59
              $region56: #{_lambda_.4} parent=51 // loop_body
                %v329 = vld [vmem:[%s327] sm:%s320]
                %330 = vst [vmem:[%s328] sm:%s320] %v329
                %v331 = vld [vmem:[%s327 + $0x8] sm:%s320]
                %332 = vst [vmem:[%s328 + $0x8] sm:%s320] %v331
                %v333 = vld [vmem:[%s327 + $0x20] sm:%s320]
                %334 = vst [vmem:[%s328 + $0x10] sm:%s320] %v333
                %v335 = vld [vmem:[%s327 + $0x28] sm:%s320]
                %336 = vst [vmem:[%s328 + $0x18] sm:%s320] %v335
                %v337 = vld [vmem:[%s327 + $0x40] sm:%s320]
                %338 = vst [vmem:[%s328 + $0x20] sm:%s320] %v337
                %v339 = vld [vmem:[%s327 + $0x48] sm:%s320]
                %340 = vst [vmem:[%s328 + $0x28] sm:%s320] %v339
                %v341 = vld [vmem:[%s327 + $0x60] sm:%s320]
                %342 = vst [vmem:[%s328 + $0x30] sm:%s320] %v341
                %v343 = vld [vmem:[%s327 + $0x68] sm:%s320]
                %344 = vst [vmem:[%s328 + $0x38] sm:%s320] %v343
              $region57: #{_lambda_.4} parent=51 // loop_footer
                %s326 = sadd.s32 1, %s322
              $region58: #{_lambda_.4} parent=51 // loop_footer_branch
                %321 = sbr.rel target = $region54
              $region59: #{_lambda_.4} parent=51 // loop_exit
                _
            $region52: #{_lambda_.4} parent=43 // pred_fallthru
              _
          $region44: #{_lambda_.4} parent=39 // pred_fallthru
            _
          %373 = vnop
        $region40: #{_lambda_.4} parent=35 // pred_fallthru
          _
        // Predicated region
        $region75: #{_lambda_.4} parent=35 // pred_check
          %p374 = pneg %p64
        $region76: #{_lambda_.4} parent=35 // pred_check_branch
          %376 = sbr.rel (%p374) target = $region78
        $region77: #{_lambda_.4} parent=35 // pred_region
          %s377 = sand.u32 %s54, 1
          %s378 = sand.u32 %s54, 1
          %s379 = smul.addr %s378, 64
          %s380 = scalar_lea.vmem [#allocation5], %s379
          %s381 = smul.addr %s18, 2
          %s382 = smul.addr %s381, 8
          %s383 = scalar_lea.vmem %s1, %s382
          // Predicated region
          $region79: #{_lambda_.4} parent=77 // pred_check
            _
          $region80: #{_lambda_.4} parent=77 // pred_check_branch
            %385 = sbr.rel (0) target = $region82
          $region81: #{_lambda_.4} parent=77 // pred_region
            // Predicated region
            $region83: #{_lambda_.4} parent=81 // pred_check
              _
            $region84: #{_lambda_.4} parent=81 // pred_check_branch
              %387 = sbr.rel (0) target = $region86
            $region85: #{_lambda_.4} parent=81 // pred_region
              // Predicated region
              $region98: #{_lambda_.4} parent=85 // pred_check
                _
              $region99: #{_lambda_.4} parent=85 // pred_check_branch
                %417 = sbr.rel (0) target = $region101
              $region100: #{_lambda_.4} parent=85 // pred_region
                loop: start=0, step=1, limit=1
                $region102: #{_lambda_.4} parent=100 // loop_pre_header
                  _
                $region103: #{_lambda_.4} parent=100 // loop_header
                  %s419 = sphi 0, %s423
                  %p420 = scmp.ge.s32.totalorder %s419, 1
                  %s424 = sphi %s383, %s383
                  %s425 = sphi %s380, %s380
                $region104: #{_lambda_.4} parent=100 // loop_header_branch
                  %422 = sbr.rel (%p420) target = $region108
                $region105: #{_lambda_.4} parent=100 // loop_body
                  %v426 = vld [vmem:[%s424] sm:$0xff]
                  %427 = vst [vmem:[%s425] sm:$0xff] %v426
                  %v428 = vld [vmem:[%s424 + $0x8] sm:$0xff]
                  %429 = vst [vmem:[%s425 + $0x8] sm:$0xff] %v428
                  %v430 = vld [vmem:[%s424 + $0x20] sm:$0xff]
                  %431 = vst [vmem:[%s425 + $0x10] sm:$0xff] %v430
                  %v432 = vld [vmem:[%s424 + $0x28] sm:$0xff]
                  %433 = vst [vmem:[%s425 + $0x18] sm:$0xff] %v432
                  %v434 = vld [vmem:[%s424 + $0x40] sm:$0xff]
                  %435 = vst [vmem:[%s425 + $0x20] sm:$0xff] %v434
                  %v436 = vld [vmem:[%s424 + $0x48] sm:$0xff]
                  %437 = vst [vmem:[%s425 + $0x28] sm:$0xff] %v436
                  %v438 = vld [vmem:[%s424 + $0x60] sm:$0xff]
                  %439 = vst [vmem:[%s425 + $0x30] sm:$0xff] %v438
                  %v440 = vld [vmem:[%s424 + $0x68] sm:$0xff]
                  %441 = vst [vmem:[%s425 + $0x38] sm:$0xff] %v440
                $region106: #{_lambda_.4} parent=100 // loop_footer
                  %s423 = sadd.s32 1, %s419
                $region107: #{_lambda_.4} parent=100 // loop_footer_branch
                  %418 = sbr.rel target = $region103
                $region108: #{_lambda_.4} parent=100 // loop_exit
                  _
              $region101: #{_lambda_.4} parent=85 // pred_fallthru
                _
              // Predicated region
              $region109: #{_lambda_.4} parent=85 // pred_check
                _
              $region110: #{_lambda_.4} parent=85 // pred_check_branch
                %443 = sbr.rel target = $region112
              $region111: #{_lambda_.4} parent=85 // pred_region
                _
              $region112: #{_lambda_.4} parent=85 // pred_fallthru
                _
            $region86: #{_lambda_.4} parent=81 // pred_fallthru
              _
            // Predicated region
            $region87: #{_lambda_.4} parent=81 // pred_check
              _
            $region88: #{_lambda_.4} parent=81 // pred_check_branch
              %389 = sbr.rel target = $region90
            $region89: #{_lambda_.4} parent=81 // pred_region
              %s391 = ssub.s32 256, 1
              loop: start=0, step=1, limit=1
              $region91: #{_lambda_.4} parent=89 // loop_pre_header
                _
              $region92: #{_lambda_.4} parent=89 // loop_header
                %s393 = sphi 0, %s397
                %p394 = scmp.ge.s32.totalorder %s393, 1
                %s398 = sphi %s383, %s383
                %s399 = sphi %s380, %s380
              $region93: #{_lambda_.4} parent=89 // loop_header_branch
                %396 = sbr.rel (%p394) target = $region97
              $region94: #{_lambda_.4} parent=89 // loop_body
                %v400 = vld [vmem:[%s398] sm:%s391]
                %401 = vst [vmem:[%s399] sm:%s391] %v400
                %v402 = vld [vmem:[%s398 + $0x8] sm:%s391]
                %403 = vst [vmem:[%s399 + $0x8] sm:%s391] %v402
                %v404 = vld [vmem:[%s398 + $0x20] sm:%s391]
                %405 = vst [vmem:[%s399 + $0x10] sm:%s391] %v404
                %v406 = vld [vmem:[%s398 + $0x28] sm:%s391]
                %407 = vst [vmem:[%s399 + $0x18] sm:%s391] %v406
                %v408 = vld [vmem:[%s398 + $0x40] sm:%s391]
                %409 = vst [vmem:[%s399 + $0x20] sm:%s391] %v408
                %v410 = vld [vmem:[%s398 + $0x48] sm:%s391]
                %411 = vst [vmem:[%s399 + $0x28] sm:%s391] %v410
                %v412 = vld [vmem:[%s398 + $0x60] sm:%s391]
                %413 = vst [vmem:[%s399 + $0x30] sm:%s391] %v412
                %v414 = vld [vmem:[%s398 + $0x68] sm:%s391]
                %415 = vst [vmem:[%s399 + $0x38] sm:%s391] %v414
              $region95: #{_lambda_.4} parent=89 // loop_footer
                %s397 = sadd.s32 1, %s393
              $region96: #{_lambda_.4} parent=89 // loop_footer_branch
                %392 = sbr.rel target = $region92
              $region97: #{_lambda_.4} parent=89 // loop_exit
                _
            $region90: #{_lambda_.4} parent=81 // pred_fallthru
              _
          $region82: #{_lambda_.4} parent=77 // pred_fallthru
            _
          %444 = vnop
        $region78: #{_lambda_.4} parent=35 // pred_fallthru
          _
      $region36: #{_lambda_.4} parent=5 // pred_fallthru
        _
      %p445 = scmp.le.s32.totalorder 1, %s18
      %p446 = scmp.lt.s32.totalorder %s18, 3
      %p447 = pnand %p445, %p446
      %p448 = pneg %p447
      // Predicated region
      $region113: #{_lambda_.4} parent=5 // pred_check
        _
      $region114: #{_lambda_.4} parent=5 // pred_check_branch
        %450 = sbr.rel (%p447) target = $region116
      $region115: #{_lambda_.4} parent=5 // pred_region
        %s451 = ssub.s32 %s18, 1
        %s452 = sand.u32 %s31, 1
        %s453 = sand.u32 %s31, 1
        %s454 = smul.addr %s453, 64
        %s455 = scalar_lea.vmem [#allocation4], %s454
        // Predicated region
        $region117: #{_lambda_.4} parent=115 // pred_check
          %p456 = pneg %p44
        $region118: #{_lambda_.4} parent=115 // pred_check_branch
          %458 = sbr.rel (%p456) target = $region120
        $region119: #{_lambda_.4} parent=115 // pred_region
          _
        $region120: #{_lambda_.4} parent=115 // pred_fallthru
          _
        %s459 = sand.u32 %s57, 1
        %s460 = sand.u32 %s57, 1
        %s461 = smul.addr %s460, 64
        %s462 = scalar_lea.vmem [#allocation5], %s461
        // Predicated region
        $region121: #{_lambda_.4} parent=115 // pred_check
          %p463 = pneg %p70
        $region122: #{_lambda_.4} parent=115 // pred_check_branch
          %465 = sbr.rel (%p463) target = $region124
        $region123: #{_lambda_.4} parent=115 // pred_region
          _
        $region124: #{_lambda_.4} parent=115 // pred_fallthru
          _
        // Predicated region
        $region125: #{_lambda_.4} parent=115 // pred_check
          %p466 = pneg %p154
        $region126: #{_lambda_.4} parent=115 // pred_check_branch
          %468 = sbr.rel (%p466) target = $region128
        $region127: #{_lambda_.4} parent=115 // pred_region
          %469 = dma.done [#allocation7], 64
        $region128: #{_lambda_.4} parent=115 // pred_fallthru
          _
        // Predicated region
        $region129: #{_lambda_.4} parent=115 // pred_check
          %p470 = pneg %p175
        $region130: #{_lambda_.4} parent=115 // pred_check_branch
          %472 = sbr.rel (%p470) target = $region132
        $region131: #{_lambda_.4} parent=115 // pred_region
          %473 = dma.done [#allocation9], 64
        $region132: #{_lambda_.4} parent=115 // pred_fallthru
          _
        %474 = sfence
        %s475 = sand.u32 %s31, 1
        %s476 = sand.u32 %s31, 1
        %s477 = smul.addr %s476, 64
        %s478 = scalar_lea.vmem [#allocation4], %s477
        %p479 = pneg %p44
        %p480 = pneg %p41
        %s481 = sand.u32 %s57, 1
        %s482 = sand.u32 %s57, 1
        %s483 = smul.addr %s482, 64
        %s484 = scalar_lea.vmem [#allocation5], %s483
        %p485 = pneg %p70
        %p486 = pneg %p67
        %p487 = pneg %p91
        %p488 = pneg %p88
        %p489 = pneg %p112
        %p490 = pneg %p109
        %p491 = pneg %p133
        %p492 = pneg %p130
        %p493 = pneg %p154
        %p494 = pneg %p151
        %p495 = pneg %p175
        %p496 = pneg %p172
        %p497 = pneg %p201
        %p498 = pneg %p198
        %s499 = sand.u32 %s188, 1
        %s500 = sand.u32 %s188, 1
        %s501 = smul.addr %s500, 128
        %s502 = scalar_lea.vmem [#allocation10], %s501
        %p503 = pneg %p227
        %p504 = pneg %p224
        %s505 = sand.u32 %s214, 1
        %s506 = sand.u32 %s214, 1
        %s507 = smul.addr %s506, 128
        %s508 = scalar_lea.vmem [#allocation11], %s507
        %p509 = pneg %p253
        %p510 = pneg %p250
        %p511 = scmp.lt.s32.totalorder %s23, 1
        %s512 = scalar_select %p511, %s23, 1
        %s513 = smul.addr %s512, 8
        %s514 = scalar_lea.vmem %s9, %s513
        %p515 = scmp.lt.s32.totalorder %s23, 1
        %s516 = scalar_select %p515, %s23, 1
        %s517 = smul.addr %s516, 8
        %s518 = scalar_lea.vmem %s9, %s517
        %v519 = vld [vmem:[%s455] sm:$0xff]
        %v520 = vld [vmem:[%s455 + $0x8] sm:$0xff]
        %v521 = vld [vmem:[%s455 + $0x10] sm:$0xff]
        %v522 = vld [vmem:[%s455 + $0x18] sm:$0xff]
        %v523 = vld [vmem:[%s455 + $0x20] sm:$0xff]
        %v524 = vld [vmem:[%s455 + $0x28] sm:$0xff]
        %v525 = vld [vmem:[%s455 + $0x30] sm:$0xff]
        %v526 = vld [vmem:[%s455 + $0x38] sm:$0xff]
        %v527 = vld [vmem:[%s462] sm:$0xff]
        %v528 = vld [vmem:[%s462 + $0x8] sm:$0xff]
        %v529 = vld [vmem:[%s462 + $0x10] sm:$0xff]
        %v530 = vld [vmem:[%s462 + $0x18] sm:$0xff]
        %v531 = vld [vmem:[%s462 + $0x20] sm:$0xff]
        %v532 = vld [vmem:[%s462 + $0x28] sm:$0xff]
        %v533 = vld [vmem:[%s462 + $0x30] sm:$0xff]
        %v534 = vld [vmem:[%s462 + $0x38] sm:$0xff]
        %v535 = vld [vmem:[%s2] sm:$0xff]
        %v536 = vld [vmem:[%s2 + $0x8] sm:$0x1]
        %v537 = vld [vmem:[%s2 + $0x10] sm:$0xff]
        %v538 = vld [vmem:[%s2 + $0x18] sm:$0x1]
        %v539 = vld [vmem:[%s2 + $0x20] sm:$0xff]
        %v540 = vld [vmem:[%s2 + $0x28] sm:$0x1]
        %v541 = vld [vmem:[%s2 + $0x30] sm:$0xff]
        %v542 = vld [vmem:[%s2 + $0x38] sm:$0x1]
        %s544 = vtos %v535
        %v545 = vstv %s544
        %s548 = vtos %v537
        %v549 = vstv %s548
        %s552 = vtos %v539
        %v553 = vstv %s552
        %s556 = vtos %v541
        %v557 = vstv %s556
        %v559 = vsub.f32 %v519, %v545
        %v560 = vsub.f32 %v520, %v545
        %v561 = vsub.f32 %v521, %v549
        %v562 = vsub.f32 %v522, %v549
        %v563 = vsub.f32 %v523, %v553
        %v564 = vsub.f32 %v524, %v553
        %v565 = vsub.f32 %v525, %v557
        %v566 = vsub.f32 %v526, %v557
        %v567 = vrot.slane %v535, 1
        %v568 = vrot.slane %v537, 1
        %v569 = vrot.slane %v539, 1
        %v570 = vrot.slane %v541, 1
        %s571 = vtos %v567
        %v572 = vstv %s571
        %s574 = vtos %v568
        %v575 = vstv %s574
        %s577 = vtos %v569
        %v578 = vstv %s577
        %s580 = vtos %v570
        %v581 = vstv %s580
        %v583 = vsub.f32 %v527, %v572
        %v584 = vsub.f32 %v528, %v572
        %v585 = vsub.f32 %v529, %v575
        %v586 = vsub.f32 %v530, %v575
        %v587 = vsub.f32 %v531, %v578
        %v588 = vsub.f32 %v532, %v578
        %v589 = vsub.f32 %v533, %v581
        %v590 = vsub.f32 %v534, %v581
        %v591 = vrot.slane %v535, 2
        %v592 = vrot.slane %v537, 2
        %v593 = vrot.slane %v539, 2
        %v594 = vrot.slane %v541, 2
        %s595 = vtos %v591
        %v596 = vstv %s595
        %s598 = vtos %v592
        %v599 = vstv %s598
        %s601 = vtos %v593
        %v602 = vstv %s601
        %s604 = vtos %v594
        %v605 = vstv %s604
        %v607 = vmul.f32 %v559, %v596
        %v608 = vmul.f32 %v560, %v596
        %v609 = vmul.f32 %v561, %v599
        %v610 = vmul.f32 %v562, %v599
        %v611 = vmul.f32 %v563, %v602
        %v612 = vmul.f32 %v564, %v602
        %v613 = vmul.f32 %v565, %v605
        %v614 = vmul.f32 %v566, %v605
        %v615 = vrot.slane %v535, 3
        %v616 = vrot.slane %v537, 3
        %v617 = vrot.slane %v539, 3
        %v618 = vrot.slane %v541, 3
        %s619 = vtos %v615
        %v620 = vstv %s619
        %s622 = vtos %v616
        %v623 = vstv %s622
        %s625 = vtos %v617
        %v626 = vstv %s625
        %s628 = vtos %v618
        %v629 = vstv %s628
        %v631 = vmul.f32 %v583, %v620
        %v632 = vmul.f32 %v584, %v620
        %v633 = vmul.f32 %v585, %v623
        %v634 = vmul.f32 %v586, %v623
        %v635 = vmul.f32 %v587, %v626
        %v636 = vmul.f32 %v588, %v626
        %v637 = vmul.f32 %v589, %v629
        %v638 = vmul.f32 %v590, %v629
        %v639 = vadd.f32 %v607, %v631
        %v640 = vadd.f32 %v608, %v632
        %v641 = vadd.f32 %v609, %v633
        %v642 = vadd.f32 %v610, %v634
        %v643 = vadd.f32 %v611, %v635
        %v644 = vadd.f32 %v612, %v636
        %v645 = vadd.f32 %v613, %v637
        %v646 = vadd.f32 %v614, %v638
        %v647 = vrot.slane %v535, 6
        %v648 = vrot.slane %v537, 6
        %v649 = vrot.slane %v539, 6
        %v650 = vrot.slane %v541, 6
        %s651 = vtos %v647
        %v652 = vstv %s651
        %s654 = vtos %v648
        %v655 = vstv %s654
        %s657 = vtos %v649
        %v658 = vstv %s657
        %s660 = vtos %v650
        %v661 = vstv %s660
        %v663 = vadd.f32 %v639, %v652
        %v664 = vadd.f32 %v640, %v652
        %v665 = vadd.f32 %v641, %v655
        %v666 = vadd.f32 %v642, %v655
        %v667 = vadd.f32 %v643, %v658
        %v668 = vadd.f32 %v644, %v658
        %v669 = vadd.f32 %v645, %v661
        %v670 = vadd.f32 %v646, %v661
        %v671 = vrot.slane %v535, 4
        %v672 = vrot.slane %v537, 4
        %v673 = vrot.slane %v539, 4
        %v674 = vrot.slane %v541, 4
        %s675 = vtos %v671
        %v676 = vstv %s675
        %s678 = vtos %v672
        %v679 = vstv %s678
        %s681 = vtos %v673
        %v682 = vstv %s681
        %s684 = vtos %v674
        %v685 = vstv %s684
        %v687 = vmul.f32 %v559, %v676
        %v688 = vmul.f32 %v560, %v676
        %v689 = vmul.f32 %v561, %v679
        %v690 = vmul.f32 %v562, %v679
        %v691 = vmul.f32 %v563, %v682
        %v692 = vmul.f32 %v564, %v682
        %v693 = vmul.f32 %v565, %v685
        %v694 = vmul.f32 %v566, %v685
        %v695 = vrot.slane %v535, 5
        %v696 = vrot.slane %v537, 5
        %v697 = vrot.slane %v539, 5
        %v698 = vrot.slane %v541, 5
        %s699 = vtos %v695
        %v700 = vstv %s699
        %s702 = vtos %v696
        %v703 = vstv %s702
        %s705 = vtos %v697
        %v706 = vstv %s705
        %s708 = vtos %v698
        %v709 = vstv %s708
        %v711 = vmul.f32 %v583, %v700
        %v712 = vmul.f32 %v584, %v700
        %v713 = vmul.f32 %v585, %v703
        %v714 = vmul.f32 %v586, %v703
        %v715 = vmul.f32 %v587, %v706
        %v716 = vmul.f32 %v588, %v706
        %v717 = vmul.f32 %v589, %v709
        %v718 = vmul.f32 %v590, %v709
        %v719 = vadd.f32 %v687, %v711
        %v720 = vadd.f32 %v688, %v712
        %v721 = vadd.f32 %v689, %v713
        %v722 = vadd.f32 %v690, %v714
        %v723 = vadd.f32 %v691, %v715
        %v724 = vadd.f32 %v692, %v716
        %v725 = vadd.f32 %v693, %v717
        %v726 = vadd.f32 %v694, %v718
        %v727 = vrot.slane %v535, 7
        %v728 = vrot.slane %v537, 7
        %v729 = vrot.slane %v539, 7
        %v730 = vrot.slane %v541, 7
        %s731 = vtos %v727
        %v732 = vstv %s731
        %s734 = vtos %v728
        %v735 = vstv %s734
        %s737 = vtos %v729
        %v738 = vstv %s737
        %s740 = vtos %v730
        %v741 = vstv %s740
        %v743 = vadd.f32 %v719, %v732
        %v744 = vadd.f32 %v720, %v732
        %v745 = vadd.f32 %v721, %v735
        %v746 = vadd.f32 %v722, %v735
        %v747 = vadd.f32 %v723, %v738
        %v748 = vadd.f32 %v724, %v738
        %v749 = vadd.f32 %v725, %v741
        %v750 = vadd.f32 %v726, %v741
        %v751 = vmul.f32 %v663, %v663
        %v752 = vmul.f32 %v664, %v664
        %v753 = vmul.f32 %v665, %v665
        %v754 = vmul.f32 %v666, %v666
        %v755 = vmul.f32 %v667, %v667
        %v756 = vmul.f32 %v668, %v668
        %v757 = vmul.f32 %v669, %v669
        %v758 = vmul.f32 %v670, %v670
        %v759 = vmul.f32 %v743, %v743
        %v760 = vmul.f32 %v744, %v744
        %v761 = vmul.f32 %v745, %v745
        %v762 = vmul.f32 %v746, %v746
        %v763 = vmul.f32 %v747, %v747
        %v764 = vmul.f32 %v748, %v748
        %v765 = vmul.f32 %v749, %v749
        %v766 = vmul.f32 %v750, %v750
        %v767 = vadd.f32 %v751, %v759
        %v768 = vadd.f32 %v752, %v760
        %v769 = vadd.f32 %v753, %v761
        %v770 = vadd.f32 %v754, %v762
        %v771 = vadd.f32 %v755, %v763
        %v772 = vadd.f32 %v756, %v764
        %v773 = vadd.f32 %v757, %v765
        %v774 = vadd.f32 %v758, %v766
        %v775 = vmax.f32 %v767, 1e-10
        %v776 = vmax.f32 %v768, 1e-10
        %v777 = vmax.f32 %v769, 1e-10
        %v778 = vmax.f32 %v770, 1e-10
        %v779 = vmax.f32 %v771, 1e-10
        %v780 = vmax.f32 %v772, 1e-10
        %v781 = vmax.f32 %v773, 1e-10
        %v782 = vmax.f32 %v774, 1e-10
        %v783 = vrsqrt.pop %v775
        %v784 = vrsqrt.pop %v776
        %v785 = vrsqrt.pop %v777
        %v786 = vrsqrt.pop %v778
        %v787 = vrsqrt.pop %v779
        %v788 = vrsqrt.pop %v780
        %v789 = vrsqrt.pop %v781
        %v790 = vrsqrt.pop %v782
        %s792 = vtos %v536
        %v793 = vstv %s792
        %s796 = vtos %v538
        %v797 = vstv %s796
        %s800 = vtos %v540
        %v801 = vstv %s800
        %s804 = vtos %v542
        %v805 = vstv %s804
        %v807 = vmul.f32 %v793, %v783
        %v808 = vmul.f32 %v793, %v784
        %v809 = vmul.f32 %v797, %v785
        %v810 = vmul.f32 %v797, %v786
        %v811 = vmul.f32 %v801, %v787
        %v812 = vmul.f32 %v801, %v788
        %v813 = vmul.f32 %v805, %v789
        %v814 = vmul.f32 %v805, %v790
        %v815 = vadd.f32 %v807, 1.0
        %v816 = vadd.f32 %v808, 1.0
        %v817 = vadd.f32 %v809, 1.0
        %v818 = vadd.f32 %v810, 1.0
        %v819 = vadd.f32 %v811, 1.0
        %v820 = vadd.f32 %v812, 1.0
        %v821 = vadd.f32 %v813, 1.0
        %v822 = vadd.f32 %v814, 1.0
        %v823 = vmax.f32 %v815, 0.0
        %v824 = vmax.f32 %v816, 0.0
        %v825 = vmax.f32 %v817, 0.0
        %v826 = vmax.f32 %v818, 0.0
        %v827 = vmax.f32 %v819, 0.0
        %v828 = vmax.f32 %v820, 0.0
        %v829 = vmax.f32 %v821, 0.0
        %v830 = vmax.f32 %v822, 0.0
        %v831 = vmul.f32 %v663, %v823
        %v832 = vmul.f32 %v664, %v824
        %v833 = vmul.f32 %v665, %v825
        %v834 = vmul.f32 %v666, %v826
        %v835 = vmul.f32 %v667, %v827
        %v836 = vmul.f32 %v668, %v828
        %v837 = vmul.f32 %v669, %v829
        %v838 = vmul.f32 %v670, %v830
        %v839 = vmul.f32 %v743, %v823
        %v840 = vmul.f32 %v744, %v824
        %v841 = vmul.f32 %v745, %v825
        %v842 = vmul.f32 %v746, %v826
        %v843 = vmul.f32 %v747, %v827
        %v844 = vmul.f32 %v748, %v828
        %v845 = vmul.f32 %v749, %v829
        %v846 = vmul.f32 %v750, %v830
        %vm847 = vcmask 146432
        %848 = vst.msk [vmem:[#allocation2] sm:$0xff] %vm847, 0.0
        %849 = vst.msk [vmem:[#allocation2 + $0x8] sm:$0xff] %vm847, 0.0
        %vm850 = vcmask 140288
        %851 = vst.msk [vmem:[#allocation2 + $0x10] sm:$0x3] %vm850, 0.0
        %852 = vst.msk [vmem:[#allocation2 + $0x18] sm:$0xff] %vm847, 0.0
        %853 = vst.msk [vmem:[#allocation2 + $0x20] sm:$0xff] %vm847, 0.0
        %854 = vst.msk [vmem:[#allocation2 + $0x28] sm:$0x3] %vm850, 0.0
        %855 = vst.msk [vmem:[#allocation2 + $0x30] sm:$0xff] %vm847, 0.0
        %856 = vst.msk [vmem:[#allocation2 + $0x38] sm:$0xff] %vm847, 0.0
        %857 = vst.msk [vmem:[#allocation2 + $0x40] sm:$0x3] %vm850, 0.0
        %858 = vst.msk [vmem:[#allocation2 + $0x48] sm:$0xff] %vm847, 0.0
        %859 = vst.msk [vmem:[#allocation2 + $0x50] sm:$0xff] %vm847, 0.0
        %860 = vst.msk [vmem:[#allocation2 + $0x58] sm:$0x3] %vm850, 0.0
        %861 = vst.msk [vmem:[#allocation3] sm:$0xff] %vm847, 0.0
        %862 = vst.msk [vmem:[#allocation3 + $0x8] sm:$0xff] %vm847, 0.0
        %863 = vst.msk [vmem:[#allocation3 + $0x10] sm:$0x3] %vm850, 0.0
        %864 = vst.msk [vmem:[#allocation3 + $0x18] sm:$0xff] %vm847, 0.0
        %865 = vst.msk [vmem:[#allocation3 + $0x20] sm:$0xff] %vm847, 0.0
        %866 = vst.msk [vmem:[#allocation3 + $0x28] sm:$0x3] %vm850, 0.0
        %867 = vst.msk [vmem:[#allocation3 + $0x30] sm:$0xff] %vm847, 0.0
        %868 = vst.msk [vmem:[#allocation3 + $0x38] sm:$0xff] %vm847, 0.0
        %869 = vst.msk [vmem:[#allocation3 + $0x40] sm:$0x3] %vm850, 0.0
        %870 = vst.msk [vmem:[#allocation3 + $0x48] sm:$0xff] %vm847, 0.0
        %871 = vst.msk [vmem:[#allocation3 + $0x50] sm:$0xff] %vm847, 0.0
        %872 = vst.msk [vmem:[#allocation3 + $0x58] sm:$0x3] %vm850, 0.0
        %881 = vrot.lane.b32.xlu0 %v831, 1
        %v882 = vpop.permute.xlu0 %881
        %883 = vrot.lane.b32.xlu0 %v832, 1
        %v884 = vpop.permute.xlu0 %883
        %885 = vrot.lane.b32.xlu0 %v833, 1
        %v886 = vpop.permute.xlu0 %885
        %887 = vrot.lane.b32.xlu0 %v834, 1
        %v888 = vpop.permute.xlu0 %887
        %889 = vrot.lane.b32.xlu0 %v835, 1
        %v890 = vpop.permute.xlu0 %889
        %891 = vrot.lane.b32.xlu0 %v836, 1
        %v892 = vpop.permute.xlu0 %891
        %893 = vrot.lane.b32.xlu0 %v837, 1
        %v894 = vpop.permute.xlu0 %893
        %895 = vrot.lane.b32.xlu0 %v838, 1
        %v896 = vpop.permute.xlu0 %895
        %vm905 = vcmask 138248
        %906 = vst.msk [vmem:[#allocation2 + $0x1] sm:$0xff] %vm905, %v882
        %907 = vst.msk [vmem:[#allocation2 + $0x9] sm:$0xff] %vm905, %v884
        %908 = vst.msk [vmem:[#allocation2 + $0x19] sm:$0xff] %vm905, %v886
        %909 = vst.msk [vmem:[#allocation2 + $0x21] sm:$0xff] %vm905, %v888
        %910 = vst.msk [vmem:[#allocation2 + $0x31] sm:$0xff] %vm905, %v890
        %911 = vst.msk [vmem:[#allocation2 + $0x39] sm:$0xff] %vm905, %v892
        %912 = vst.msk [vmem:[#allocation2 + $0x49] sm:$0xff] %vm905, %v894
        %913 = vst.msk [vmem:[#allocation2 + $0x51] sm:$0xff] %vm905, %v896
        %922 = vrot.lane.b32.xlu0 %v839, 1
        %v923 = vpop.permute.xlu0 %922
        %924 = vrot.lane.b32.xlu0 %v840, 1
        %v925 = vpop.permute.xlu0 %924
        %926 = vrot.lane.b32.xlu0 %v841, 1
        %v927 = vpop.permute.xlu0 %926
        %928 = vrot.lane.b32.xlu0 %v842, 1
        %v929 = vpop.permute.xlu0 %928
        %930 = vrot.lane.b32.xlu0 %v843, 1
        %v931 = vpop.permute.xlu0 %930
        %932 = vrot.lane.b32.xlu0 %v844, 1
        %v933 = vpop.permute.xlu0 %932
        %934 = vrot.lane.b32.xlu0 %v845, 1
        %v935 = vpop.permute.xlu0 %934
        %936 = vrot.lane.b32.xlu0 %v846, 1
        %v937 = vpop.permute.xlu0 %936
        %946 = vst.msk [vmem:[#allocation3 + $0x1] sm:$0xff] %vm905, %v923
        %947 = vst.msk [vmem:[#allocation3 + $0x9] sm:$0xff] %vm905, %v925
        %948 = vst.msk [vmem:[#allocation3 + $0x19] sm:$0xff] %vm905, %v927
        %949 = vst.msk [vmem:[#allocation3 + $0x21] sm:$0xff] %vm905, %v929
        %950 = vst.msk [vmem:[#allocation3 + $0x31] sm:$0xff] %vm905, %v931
        %951 = vst.msk [vmem:[#allocation3 + $0x39] sm:$0xff] %vm905, %v933
        %952 = vst.msk [vmem:[#allocation3 + $0x49] sm:$0xff] %vm905, %v935
        %953 = vst.msk [vmem:[#allocation3 + $0x51] sm:$0xff] %vm905, %v937
        %v954 = vld [vmem:[#allocation2] sm:$0xff]
        %v955 = vld [vmem:[#allocation2 + $0x8] sm:$0xff]
        %v956 = vld [vmem:[#allocation2 + $0x10] sm:$0x3]
        %v957 = vld [vmem:[#allocation2 + $0x18] sm:$0xff]
        %v958 = vld [vmem:[#allocation2 + $0x20] sm:$0xff]
        %v959 = vld [vmem:[#allocation2 + $0x28] sm:$0x3]
        %v960 = vld [vmem:[#allocation2 + $0x30] sm:$0xff]
        %v961 = vld [vmem:[#allocation2 + $0x38] sm:$0xff]
        %v962 = vld [vmem:[#allocation2 + $0x40] sm:$0x3]
        %v963 = vld [vmem:[#allocation2 + $0x48] sm:$0xff]
        %v964 = vld [vmem:[#allocation2 + $0x50] sm:$0xff]
        %v965 = vld [vmem:[#allocation2 + $0x58] sm:$0x3]
        %v966 = vld [vmem:[#allocation3] sm:$0xff]
        %v967 = vld [vmem:[#allocation3 + $0x8] sm:$0xff]
        %v968 = vld [vmem:[#allocation3 + $0x10] sm:$0x3]
        %v969 = vld [vmem:[#allocation3 + $0x18] sm:$0xff]
        %v970 = vld [vmem:[#allocation3 + $0x20] sm:$0xff]
        %v971 = vld [vmem:[#allocation3 + $0x28] sm:$0x3]
        %v972 = vld [vmem:[#allocation3 + $0x30] sm:$0xff]
        %v973 = vld [vmem:[#allocation3 + $0x38] sm:$0xff]
        %v974 = vld [vmem:[#allocation3 + $0x40] sm:$0x3]
        %v975 = vld [vmem:[#allocation3 + $0x48] sm:$0xff]
        %v976 = vld [vmem:[#allocation3 + $0x50] sm:$0xff]
        %v977 = vld [vmem:[#allocation3 + $0x58] sm:$0x3]
        %v978 = vld [vmem:[%s3] sm:$0x7]
        %v979 = vld [vmem:[%s3 + $0x4] sm:$0x7]
        %v980 = vld [vmem:[%s3 + $0x8] sm:$0x7]
        %v981 = vld [vmem:[%s3 + $0xc] sm:$0x7]
        %v982 = vld [vmem:[%s4] sm:$0x7]
        %v983 = vld [vmem:[%s4 + $0x4] sm:$0x7]
        %v984 = vld [vmem:[%s4 + $0x8] sm:$0x7]
        %v985 = vld [vmem:[%s4 + $0xc] sm:$0x7]
        %s987 = vtos %v978
        %v988 = vstv %s987
        %s991 = vtos %v979
        %v992 = vstv %s991
        %s995 = vtos %v980
        %v996 = vstv %s995
        %s999 = vtos %v981
        %v1000 = vstv %s999
        %v1002 = vmul.f32 %v954, %v988
        %v1003 = vmul.f32 %v955, %v988
        %v1004 = vmul.f32 %v957, %v992
        %v1005 = vmul.f32 %v958, %v992
        %v1006 = vmul.f32 %v960, %v996
        %v1007 = vmul.f32 %v961, %v996
        %v1008 = vmul.f32 %v963, %v1000
        %v1009 = vmul.f32 %v964, %v1000
        %v1010 = vadd.f32 %v1002, 0.0
        %v1011 = vadd.f32 %v1003, 0.0
        %v1012 = vadd.f32 %v1004, 0.0
        %v1013 = vadd.f32 %v1005, 0.0
        %v1014 = vadd.f32 %v1006, 0.0
        %v1015 = vadd.f32 %v1007, 0.0
        %v1016 = vadd.f32 %v1008, 0.0
        %v1017 = vadd.f32 %v1009, 0.0
        %s1019 = vtos %v982
        %v1020 = vstv %s1019
        %s1023 = vtos %v983
        %v1024 = vstv %s1023
        %s1027 = vtos %v984
        %v1028 = vstv %s1027
        %s1031 = vtos %v985
        %v1032 = vstv %s1031
        %v1034 = vmul.f32 %v966, %v1020
        %v1035 = vmul.f32 %v967, %v1020
        %v1036 = vmul.f32 %v969, %v1024
        %v1037 = vmul.f32 %v970, %v1024
        %v1038 = vmul.f32 %v972, %v1028
        %v1039 = vmul.f32 %v973, %v1028
        %v1040 = vmul.f32 %v975, %v1032
        %v1041 = vmul.f32 %v976, %v1032
        %v1042 = vsub.f32 %v1010, %v1034
        %v1043 = vsub.f32 %v1011, %v1035
        %v1044 = vsub.f32 %v1012, %v1036
        %v1045 = vsub.f32 %v1013, %v1037
        %v1046 = vsub.f32 %v1014, %v1038
        %v1047 = vsub.f32 %v1015, %v1039
        %v1048 = vsub.f32 %v1016, %v1040
        %v1049 = vsub.f32 %v1017, %v1041
        %v1050 = vmul.f32 %v954, %v1020
        %v1051 = vmul.f32 %v955, %v1020
        %v1052 = vmul.f32 %v957, %v1024
        %v1053 = vmul.f32 %v958, %v1024
        %v1054 = vmul.f32 %v960, %v1028
        %v1055 = vmul.f32 %v961, %v1028
        %v1056 = vmul.f32 %v963, %v1032
        %v1057 = vmul.f32 %v964, %v1032
        %v1058 = vadd.f32 %v1050, 0.0
        %v1059 = vadd.f32 %v1051, 0.0
        %v1060 = vadd.f32 %v1052, 0.0
        %v1061 = vadd.f32 %v1053, 0.0
        %v1062 = vadd.f32 %v1054, 0.0
        %v1063 = vadd.f32 %v1055, 0.0
        %v1064 = vadd.f32 %v1056, 0.0
        %v1065 = vadd.f32 %v1057, 0.0
        %v1066 = vmul.f32 %v966, %v988
        %v1067 = vmul.f32 %v967, %v988
        %v1068 = vmul.f32 %v969, %v992
        %v1069 = vmul.f32 %v970, %v992
        %v1070 = vmul.f32 %v972, %v996
        %v1071 = vmul.f32 %v973, %v996
        %v1072 = vmul.f32 %v975, %v1000
        %v1073 = vmul.f32 %v976, %v1000
        %v1074 = vadd.f32 %v1058, %v1066
        %v1075 = vadd.f32 %v1059, %v1067
        %v1076 = vadd.f32 %v1060, %v1068
        %v1077 = vadd.f32 %v1061, %v1069
        %v1078 = vadd.f32 %v1062, %v1070
        %v1079 = vadd.f32 %v1063, %v1071
        %v1080 = vadd.f32 %v1064, %v1072
        %v1081 = vadd.f32 %v1065, %v1073
        %1082 = vrot.lane.b32.xlu0 %v978, 127
        %v1083 = vpop.permute.xlu0 %1082
        %1084 = vrot.lane.b32.xlu0 %v979, 127
        %v1085 = vpop.permute.xlu0 %1084
        %1086 = vrot.lane.b32.xlu0 %v980, 127
        %v1087 = vpop.permute.xlu0 %1086
        %1088 = vrot.lane.b32.xlu0 %v981, 127
        %v1089 = vpop.permute.xlu0 %1088
        %s1090 = vtos %v1083
        %v1091 = vstv %s1090
        %s1093 = vtos %v1085
        %v1094 = vstv %s1093
        %s1096 = vtos %v1087
        %v1097 = vstv %s1096
        %s1099 = vtos %v1089
        %v1100 = vstv %s1099
        %v1102 = vmul.f32 %v954, %v1091
        %v1103 = vmul.f32 %v955, %v1091
        %v1104 = vmul.f32 %v957, %v1094
        %v1105 = vmul.f32 %v958, %v1094
        %v1106 = vmul.f32 %v960, %v1097
        %v1107 = vmul.f32 %v961, %v1097
        %v1108 = vmul.f32 %v963, %v1100
        %v1109 = vmul.f32 %v964, %v1100
        %1118 = vrot.lane.b32.xlu0 %v1102, 127
        %v1119 = vpop.permute.xlu0 %1118
        %1120 = vrot.lane.b32.xlu0 %v1103, 127
        %v1121 = vpop.permute.xlu0 %1120
        %1122 = vrot.lane.b32.xlu0 %v1104, 127
        %v1123 = vpop.permute.xlu0 %1122
        %1124 = vrot.lane.b32.xlu0 %v1105, 127
        %v1125 = vpop.permute.xlu0 %1124
        %1126 = vrot.lane.b32.xlu0 %v1106, 127
        %v1127 = vpop.permute.xlu0 %1126
        %1128 = vrot.lane.b32.xlu0 %v1107, 127
        %v1129 = vpop.permute.xlu0 %1128
        %1130 = vrot.lane.b32.xlu0 %v1108, 127
        %v1131 = vpop.permute.xlu0 %1130
        %1132 = vrot.lane.b32.xlu0 %v1109, 127
        %v1133 = vpop.permute.xlu0 %1132
        %v1142 = vadd.f32 %v1042, %v1119
        %v1143 = vadd.f32 %v1043, %v1121
        %v1144 = vadd.f32 %v1044, %v1123
        %v1145 = vadd.f32 %v1045, %v1125
        %v1146 = vadd.f32 %v1046, %v1127
        %v1147 = vadd.f32 %v1047, %v1129
        %v1148 = vadd.f32 %v1048, %v1131
        %v1149 = vadd.f32 %v1049, %v1133
        %1150 = vrot.lane.b32.xlu0 %v982, 127
        %v1151 = vpop.permute.xlu0 %1150
        %1152 = vrot.lane.b32.xlu0 %v983, 127
        %v1153 = vpop.permute.xlu0 %1152
        %1154 = vrot.lane.b32.xlu0 %v984, 127
        %v1155 = vpop.permute.xlu0 %1154
        %1156 = vrot.lane.b32.xlu0 %v985, 127
        %v1157 = vpop.permute.xlu0 %1156
        %s1158 = vtos %v1151
        %v1159 = vstv %s1158
        %s1161 = vtos %v1153
        %v1162 = vstv %s1161
        %s1164 = vtos %v1155
        %v1165 = vstv %s1164
        %s1167 = vtos %v1157
        %v1168 = vstv %s1167
        %v1170 = vmul.f32 %v966, %v1159
        %v1171 = vmul.f32 %v967, %v1159
        %v1172 = vmul.f32 %v969, %v1162
        %v1173 = vmul.f32 %v970, %v1162
        %v1174 = vmul.f32 %v972, %v1165
        %v1175 = vmul.f32 %v973, %v1165
        %v1176 = vmul.f32 %v975, %v1168
        %v1177 = vmul.f32 %v976, %v1168
        %1186 = vrot.lane.b32.xlu0 %v1170, 127
        %v1187 = vpop.permute.xlu0 %1186
        %1188 = vrot.lane.b32.xlu0 %v1171, 127
        %v1189 = vpop.permute.xlu0 %1188
        %1190 = vrot.lane.b32.xlu0 %v1172, 127
        %v1191 = vpop.permute.xlu0 %1190
        %1192 = vrot.lane.b32.xlu0 %v1173, 127
        %v1193 = vpop.permute.xlu0 %1192
        %1194 = vrot.lane.b32.xlu0 %v1174, 127
        %v1195 = vpop.permute.xlu0 %1194
        %1196 = vrot.lane.b32.xlu0 %v1175, 127
        %v1197 = vpop.permute.xlu0 %1196
        %1198 = vrot.lane.b32.xlu0 %v1176, 127
        %v1199 = vpop.permute.xlu0 %1198
        %1200 = vrot.lane.b32.xlu0 %v1177, 127
        %v1201 = vpop.permute.xlu0 %1200
        %v1210 = vsub.f32 %v1142, %v1187
        %v1211 = vsub.f32 %v1143, %v1189
        %v1212 = vsub.f32 %v1144, %v1191
        %v1213 = vsub.f32 %v1145, %v1193
        %v1214 = vsub.f32 %v1146, %v1195
        %v1215 = vsub.f32 %v1147, %v1197
        %v1216 = vsub.f32 %v1148, %v1199
        %v1217 = vsub.f32 %v1149, %v1201
        %v1218 = vmul.f32 %v954, %v1159
        %v1219 = vmul.f32 %v955, %v1159
        %v1220 = vmul.f32 %v957, %v1162
        %v1221 = vmul.f32 %v958, %v1162
        %v1222 = vmul.f32 %v960, %v1165
        %v1223 = vmul.f32 %v961, %v1165
        %v1224 = vmul.f32 %v963, %v1168
        %v1225 = vmul.f32 %v964, %v1168
        %1234 = vrot.lane.b32.xlu0 %v1218, 127
        %v1235 = vpop.permute.xlu0 %1234
        %1236 = vrot.lane.b32.xlu0 %v1219, 127
        %v1237 = vpop.permute.xlu0 %1236
        %1238 = vrot.lane.b32.xlu0 %v1220, 127
        %v1239 = vpop.permute.xlu0 %1238
        %1240 = vrot.lane.b32.xlu0 %v1221, 127
        %v1241 = vpop.permute.xlu0 %1240
        %1242 = vrot.lane.b32.xlu0 %v1222, 127
        %v1243 = vpop.permute.xlu0 %1242
        %1244 = vrot.lane.b32.xlu0 %v1223, 127
        %v1245 = vpop.permute.xlu0 %1244
        %1246 = vrot.lane.b32.xlu0 %v1224, 127
        %v1247 = vpop.permute.xlu0 %1246
        %1248 = vrot.lane.b32.xlu0 %v1225, 127
        %v1249 = vpop.permute.xlu0 %1248
        %v1258 = vadd.f32 %v1074, %v1235
        %v1259 = vadd.f32 %v1075, %v1237
        %v1260 = vadd.f32 %v1076, %v1239
        %v1261 = vadd.f32 %v1077, %v1241
        %v1262 = vadd.f32 %v1078, %v1243
        %v1263 = vadd.f32 %v1079, %v1245
        %v1264 = vadd.f32 %v1080, %v1247
        %v1265 = vadd.f32 %v1081, %v1249
        %v1266 = vmul.f32 %v966, %v1091
        %v1267 = vmul.f32 %v967, %v1091
        %v1268 = vmul.f32 %v969, %v1094
        %v1269 = vmul.f32 %v970, %v1094
        %v1270 = vmul.f32 %v972, %v1097
        %v1271 = vmul.f32 %v973, %v1097
        %v1272 = vmul.f32 %v975, %v1100
        %v1273 = vmul.f32 %v976, %v1100
        %1282 = vrot.lane.b32.xlu0 %v1266, 127
        %v1283 = vpop.permute.xlu0 %1282
        %1284 = vrot.lane.b32.xlu0 %v1267, 127
        %v1285 = vpop.permute.xlu0 %1284
        %1286 = vrot.lane.b32.xlu0 %v1268, 127
        %v1287 = vpop.permute.xlu0 %1286
        %1288 = vrot.lane.b32.xlu0 %v1269, 127
        %v1289 = vpop.permute.xlu0 %1288
        %1290 = vrot.lane.b32.xlu0 %v1270, 127
        %v1291 = vpop.permute.xlu0 %1290
        %1292 = vrot.lane.b32.xlu0 %v1271, 127
        %v1293 = vpop.permute.xlu0 %1292
        %1294 = vrot.lane.b32.xlu0 %v1272, 127
        %v1295 = vpop.permute.xlu0 %1294
        %1296 = vrot.lane.b32.xlu0 %v1273, 127
        %v1297 = vpop.permute.xlu0 %1296
        %v1306 = vadd.f32 %v1258, %v1283
        %v1307 = vadd.f32 %v1259, %v1285
        %v1308 = vadd.f32 %v1260, %v1287
        %v1309 = vadd.f32 %v1261, %v1289
        %v1310 = vadd.f32 %v1262, %v1291
        %v1311 = vadd.f32 %v1263, %v1293
        %v1312 = vadd.f32 %v1264, %v1295
        %v1313 = vadd.f32 %v1265, %v1297
        %1314 = vrot.lane.b32.xlu0 %v978, 126
        %v1315 = vpop.permute.xlu0 %1314
        %1316 = vrot.lane.b32.xlu0 %v979, 126
        %v1317 = vpop.permute.xlu0 %1316
        %1318 = vrot.lane.b32.xlu0 %v980, 126
        %v1319 = vpop.permute.xlu0 %1318
        %1320 = vrot.lane.b32.xlu0 %v981, 126
        %v1321 = vpop.permute.xlu0 %1320
        %s1322 = vtos %v1315
        %v1323 = vstv %s1322
        %s1325 = vtos %v1317
        %v1326 = vstv %s1325
        %s1328 = vtos %v1319
        %v1329 = vstv %s1328
        %s1331 = vtos %v1321
        %v1332 = vstv %s1331
        %v1334 = vmul.f32 %v954, %v1323
        %v1335 = vmul.f32 %v955, %v1323
        %v1336 = vmul.f32 %v957, %v1326
        %v1337 = vmul.f32 %v958, %v1326
        %v1338 = vmul.f32 %v960, %v1329
        %v1339 = vmul.f32 %v961, %v1329
        %v1340 = vmul.f32 %v963, %v1332
        %v1341 = vmul.f32 %v964, %v1332
        %1350 = vrot.lane.b32.xlu0 %v1334, 126
        %v1351 = vpop.permute.xlu0 %1350
        %1352 = vrot.lane.b32.xlu0 %v1335, 126
        %v1353 = vpop.permute.xlu0 %1352
        %1354 = vrot.lane.b32.xlu0 %v1336, 126
        %v1355 = vpop.permute.xlu0 %1354
        %1356 = vrot.lane.b32.xlu0 %v1337, 126
        %v1357 = vpop.permute.xlu0 %1356
        %1358 = vrot.lane.b32.xlu0 %v1338, 126
        %v1359 = vpop.permute.xlu0 %1358
        %1360 = vrot.lane.b32.xlu0 %v1339, 126
        %v1361 = vpop.permute.xlu0 %1360
        %1362 = vrot.lane.b32.xlu0 %v1340, 126
        %v1363 = vpop.permute.xlu0 %1362
        %1364 = vrot.lane.b32.xlu0 %v1341, 126
        %v1365 = vpop.permute.xlu0 %1364
        %v1374 = vadd.f32 %v1210, %v1351
        %v1375 = vadd.f32 %v1211, %v1353
        %v1376 = vadd.f32 %v1212, %v1355
        %v1377 = vadd.f32 %v1213, %v1357
        %v1378 = vadd.f32 %v1214, %v1359
        %v1379 = vadd.f32 %v1215, %v1361
        %v1380 = vadd.f32 %v1216, %v1363
        %v1381 = vadd.f32 %v1217, %v1365
        %1382 = vrot.lane.b32.xlu0 %v982, 126
        %v1383 = vpop.permute.xlu0 %1382
        %1384 = vrot.lane.b32.xlu0 %v983, 126
        %v1385 = vpop.permute.xlu0 %1384
        %1386 = vrot.lane.b32.xlu0 %v984, 126
        %v1387 = vpop.permute.xlu0 %1386
        %1388 = vrot.lane.b32.xlu0 %v985, 126
        %v1389 = vpop.permute.xlu0 %1388
        %s1390 = vtos %v1383
        %v1391 = vstv %s1390
        %s1393 = vtos %v1385
        %v1394 = vstv %s1393
        %s1396 = vtos %v1387
        %v1397 = vstv %s1396
        %s1399 = vtos %v1389
        %v1400 = vstv %s1399
        %v1402 = vmul.f32 %v966, %v1391
        %v1403 = vmul.f32 %v967, %v1391
        %v1404 = vmul.f32 %v969, %v1394
        %v1405 = vmul.f32 %v970, %v1394
        %v1406 = vmul.f32 %v972, %v1397
        %v1407 = vmul.f32 %v973, %v1397
        %v1408 = vmul.f32 %v975, %v1400
        %v1409 = vmul.f32 %v976, %v1400
        %1418 = vrot.lane.b32.xlu0 %v1402, 126
        %v1419 = vpop.permute.xlu0 %1418
        %1420 = vrot.lane.b32.xlu0 %v1403, 126
        %v1421 = vpop.permute.xlu0 %1420
        %1422 = vrot.lane.b32.xlu0 %v1404, 126
        %v1423 = vpop.permute.xlu0 %1422
        %1424 = vrot.lane.b32.xlu0 %v1405, 126
        %v1425 = vpop.permute.xlu0 %1424
        %1426 = vrot.lane.b32.xlu0 %v1406, 126
        %v1427 = vpop.permute.xlu0 %1426
        %1428 = vrot.lane.b32.xlu0 %v1407, 126
        %v1429 = vpop.permute.xlu0 %1428
        %1430 = vrot.lane.b32.xlu0 %v1408, 126
        %v1431 = vpop.permute.xlu0 %1430
        %1432 = vrot.lane.b32.xlu0 %v1409, 126
        %v1433 = vpop.permute.xlu0 %1432
        %v1442 = vsub.f32 %v1374, %v1419
        %v1443 = vsub.f32 %v1375, %v1421
        %v1444 = vsub.f32 %v1376, %v1423
        %v1445 = vsub.f32 %v1377, %v1425
        %v1446 = vsub.f32 %v1378, %v1427
        %v1447 = vsub.f32 %v1379, %v1429
        %v1448 = vsub.f32 %v1380, %v1431
        %v1449 = vsub.f32 %v1381, %v1433
        %v1450 = vmul.f32 %v954, %v1391
        %v1451 = vmul.f32 %v955, %v1391
        %v1452 = vmul.f32 %v957, %v1394
        %v1453 = vmul.f32 %v958, %v1394
        %v1454 = vmul.f32 %v960, %v1397
        %v1455 = vmul.f32 %v961, %v1397
        %v1456 = vmul.f32 %v963, %v1400
        %v1457 = vmul.f32 %v964, %v1400
        %1466 = vrot.lane.b32.xlu0 %v1450, 126
        %v1467 = vpop.permute.xlu0 %1466
        %1468 = vrot.lane.b32.xlu0 %v1451, 126
        %v1469 = vpop.permute.xlu0 %1468
        %1470 = vrot.lane.b32.xlu0 %v1452, 126
        %v1471 = vpop.permute.xlu0 %1470
        %1472 = vrot.lane.b32.xlu0 %v1453, 126
        %v1473 = vpop.permute.xlu0 %1472
        %1474 = vrot.lane.b32.xlu0 %v1454, 126
        %v1475 = vpop.permute.xlu0 %1474
        %1476 = vrot.lane.b32.xlu0 %v1455, 126
        %v1477 = vpop.permute.xlu0 %1476
        %1478 = vrot.lane.b32.xlu0 %v1456, 126
        %v1479 = vpop.permute.xlu0 %1478
        %1480 = vrot.lane.b32.xlu0 %v1457, 126
        %v1481 = vpop.permute.xlu0 %1480
        %v1490 = vadd.f32 %v1306, %v1467
        %v1491 = vadd.f32 %v1307, %v1469
        %v1492 = vadd.f32 %v1308, %v1471
        %v1493 = vadd.f32 %v1309, %v1473
        %v1494 = vadd.f32 %v1310, %v1475
        %v1495 = vadd.f32 %v1311, %v1477
        %v1496 = vadd.f32 %v1312, %v1479
        %v1497 = vadd.f32 %v1313, %v1481
        %v1498 = vmul.f32 %v966, %v1323
        %v1499 = vmul.f32 %v967, %v1323
        %v1500 = vmul.f32 %v969, %v1326
        %v1501 = vmul.f32 %v970, %v1326
        %v1502 = vmul.f32 %v972, %v1329
        %v1503 = vmul.f32 %v973, %v1329
        %v1504 = vmul.f32 %v975, %v1332
        %v1505 = vmul.f32 %v976, %v1332
        %1514 = vrot.lane.b32.xlu0 %v1498, 126
        %v1515 = vpop.permute.xlu0 %1514
        %1516 = vrot.lane.b32.xlu0 %v1499, 126
        %v1517 = vpop.permute.xlu0 %1516
        %1518 = vrot.lane.b32.xlu0 %v1500, 126
        %v1519 = vpop.permute.xlu0 %1518
        %1520 = vrot.lane.b32.xlu0 %v1501, 126
        %v1521 = vpop.permute.xlu0 %1520
        %1522 = vrot.lane.b32.xlu0 %v1502, 126
        %v1523 = vpop.permute.xlu0 %1522
        %1524 = vrot.lane.b32.xlu0 %v1503, 126
        %v1525 = vpop.permute.xlu0 %1524
        %1526 = vrot.lane.b32.xlu0 %v1504, 126
        %v1527 = vpop.permute.xlu0 %1526
        %1528 = vrot.lane.b32.xlu0 %v1505, 126
        %v1529 = vpop.permute.xlu0 %1528
        %v1538 = vadd.f32 %v1490, %v1515
        %v1539 = vadd.f32 %v1491, %v1517
        %v1540 = vadd.f32 %v1492, %v1519
        %v1541 = vadd.f32 %v1493, %v1521
        %v1542 = vadd.f32 %v1494, %v1523
        %v1543 = vadd.f32 %v1495, %v1525
        %v1544 = vadd.f32 %v1496, %v1527
        %v1545 = vadd.f32 %v1497, %v1529
        %v1546 = vrot.slane %v978, 1
        %v1547 = vrot.slane %v979, 1
        %v1548 = vrot.slane %v980, 1
        %v1549 = vrot.slane %v981, 1
        %s1550 = vtos %v1546
        %v1551 = vstv %s1550
        %s1553 = vtos %v1547
        %v1554 = vstv %s1553
        %s1556 = vtos %v1548
        %v1557 = vstv %s1556
        %s1559 = vtos %v1549
        %v1560 = vstv %s1559
        %v1562 = vmul.f32 %v954, %v1551
        %v1563 = vmul.f32 %v955, %v1551
        %v1564 = vmul.f32 %v956, %v1551
        %v1565 = vmul.f32 %v957, %v1554
        %v1566 = vmul.f32 %v958, %v1554
        %v1567 = vmul.f32 %v959, %v1554
        %v1568 = vmul.f32 %v960, %v1557
        %v1569 = vmul.f32 %v961, %v1557
        %v1570 = vmul.f32 %v962, %v1557
        %v1571 = vmul.f32 %v963, %v1560
        %v1572 = vmul.f32 %v964, %v1560
        %v1573 = vmul.f32 %v965, %v1560
        %vm1586 = vcmask 1046528
        %v1587 = vrot.slane %v1562, 1
        %v1588 = vrot.slane %v1563, 1
        %v1589 = vsel %vm1586, %v1587, %v1588
        %v1590 = vrot.slane %v1564, 1
        %v1591 = vsel %vm1586, %v1588, %v1590
        %v1592 = vrot.slane %v1565, 1
        %v1593 = vrot.slane %v1566, 1
        %v1594 = vsel %vm1586, %v1592, %v1593
        %v1595 = vrot.slane %v1567, 1
        %v1596 = vsel %vm1586, %v1593, %v1595
        %v1597 = vrot.slane %v1568, 1
        %v1598 = vrot.slane %v1569, 1
        %v1599 = vsel %vm1586, %v1597, %v1598
        %v1600 = vrot.slane %v1570, 1
        %v1601 = vsel %vm1586, %v1598, %v1600
        %v1602 = vrot.slane %v1571, 1
        %v1603 = vrot.slane %v1572, 1
        %v1604 = vsel %vm1586, %v1602, %v1603
        %v1605 = vrot.slane %v1573, 1
        %v1606 = vsel %vm1586, %v1603, %v1605
        %v1615 = vadd.f32 %v1442, %v1589
        %v1616 = vadd.f32 %v1443, %v1591
        %v1617 = vadd.f32 %v1444, %v1594
        %v1618 = vadd.f32 %v1445, %v1596
        %v1619 = vadd.f32 %v1446, %v1599
        %v1620 = vadd.f32 %v1447, %v1601
        %v1621 = vadd.f32 %v1448, %v1604
        %v1622 = vadd.f32 %v1449, %v1606
        %v1623 = vrot.slane %v982, 1
        %v1624 = vrot.slane %v983, 1
        %v1625 = vrot.slane %v984, 1
        %v1626 = vrot.slane %v985, 1
        %s1627 = vtos %v1623
        %v1628 = vstv %s1627
        %s1630 = vtos %v1624
        %v1631 = vstv %s1630
        %s1633 = vtos %v1625
        %v1634 = vstv %s1633
        %s1636 = vtos %v1626
        %v1637 = vstv %s1636
        %v1639 = vmul.f32 %v966, %v1628
        %v1640 = vmul.f32 %v967, %v1628
        %v1641 = vmul.f32 %v968, %v1628
        %v1642 = vmul.f32 %v969, %v1631
        %v1643 = vmul.f32 %v970, %v1631
        %v1644 = vmul.f32 %v971, %v1631
        %v1645 = vmul.f32 %v972, %v1634
        %v1646 = vmul.f32 %v973, %v1634
        %v1647 = vmul.f32 %v974, %v1634
        %v1648 = vmul.f32 %v975, %v1637
        %v1649 = vmul.f32 %v976, %v1637
        %v1650 = vmul.f32 %v977, %v1637
        %v1663 = vrot.slane %v1639, 1
        %v1664 = vrot.slane %v1640, 1
        %v1665 = vsel %vm1586, %v1663, %v1664
        %v1666 = vrot.slane %v1641, 1
        %v1667 = vsel %vm1586, %v1664, %v1666
        %v1668 = vrot.slane %v1642, 1
        %v1669 = vrot.slane %v1643, 1
        %v1670 = vsel %vm1586, %v1668, %v1669
        %v1671 = vrot.slane %v1644, 1
        %v1672 = vsel %vm1586, %v1669, %v1671
        %v1673 = vrot.slane %v1645, 1
        %v1674 = vrot.slane %v1646, 1
        %v1675 = vsel %vm1586, %v1673, %v1674
        %v1676 = vrot.slane %v1647, 1
        %v1677 = vsel %vm1586, %v1674, %v1676
        %v1678 = vrot.slane %v1648, 1
        %v1679 = vrot.slane %v1649, 1
        %v1680 = vsel %vm1586, %v1678, %v1679
        %v1681 = vrot.slane %v1650, 1
        %v1682 = vsel %vm1586, %v1679, %v1681
        %v1691 = vsub.f32 %v1615, %v1665
        %v1692 = vsub.f32 %v1616, %v1667
        %v1693 = vsub.f32 %v1617, %v1670
        %v1694 = vsub.f32 %v1618, %v1672
        %v1695 = vsub.f32 %v1619, %v1675
        %v1696 = vsub.f32 %v1620, %v1677
        %v1697 = vsub.f32 %v1621, %v1680
        %v1698 = vsub.f32 %v1622, %v1682
        %v1699 = vmul.f32 %v954, %v1628
        %v1700 = vmul.f32 %v955, %v1628
        %v1701 = vmul.f32 %v956, %v1628
        %v1702 = vmul.f32 %v957, %v1631
        %v1703 = vmul.f32 %v958, %v1631
        %v1704 = vmul.f32 %v959, %v1631
        %v1705 = vmul.f32 %v960, %v1634
        %v1706 = vmul.f32 %v961, %v1634
        %v1707 = vmul.f32 %v962, %v1634
        %v1708 = vmul.f32 %v963, %v1637
        %v1709 = vmul.f32 %v964, %v1637
        %v1710 = vmul.f32 %v965, %v1637
        %v1723 = vrot.slane %v1699, 1
        %v1724 = vrot.slane %v1700, 1
        %v1725 = vsel %vm1586, %v1723, %v1724
        %v1726 = vrot.slane %v1701, 1
        %v1727 = vsel %vm1586, %v1724, %v1726
        %v1728 = vrot.slane %v1702, 1
        %v1729 = vrot.slane %v1703, 1
        %v1730 = vsel %vm1586, %v1728, %v1729
        %v1731 = vrot.slane %v1704, 1
        %v1732 = vsel %vm1586, %v1729, %v1731
        %v1733 = vrot.slane %v1705, 1
        %v1734 = vrot.slane %v1706, 1
        %v1735 = vsel %vm1586, %v1733, %v1734
        %v1736 = vrot.slane %v1707, 1
        %v1737 = vsel %vm1586, %v1734, %v1736
        %v1738 = vrot.slane %v1708, 1
        %v1739 = vrot.slane %v1709, 1
        %v1740 = vsel %vm1586, %v1738, %v1739
        %v1741 = vrot.slane %v1710, 1
        %v1742 = vsel %vm1586, %v1739, %v1741
        %v1751 = vadd.f32 %v1538, %v1725
        %v1752 = vadd.f32 %v1539, %v1727
        %v1753 = vadd.f32 %v1540, %v1730
        %v1754 = vadd.f32 %v1541, %v1732
        %v1755 = vadd.f32 %v1542, %v1735
        %v1756 = vadd.f32 %v1543, %v1737
        %v1757 = vadd.f32 %v1544, %v1740
        %v1758 = vadd.f32 %v1545, %v1742
        %v1759 = vmul.f32 %v966, %v1551
        %v1760 = vmul.f32 %v967, %v1551
        %v1761 = vmul.f32 %v968, %v1551
        %v1762 = vmul.f32 %v969, %v1554
        %v1763 = vmul.f32 %v970, %v1554
        %v1764 = vmul.f32 %v971, %v1554
        %v1765 = vmul.f32 %v972, %v1557
        %v1766 = vmul.f32 %v973, %v1557
        %v1767 = vmul.f32 %v974, %v1557
        %v1768 = vmul.f32 %v975, %v1560
        %v1769 = vmul.f32 %v976, %v1560
        %v1770 = vmul.f32 %v977, %v1560
        %v1783 = vrot.slane %v1759, 1
        %v1784 = vrot.slane %v1760, 1
        %v1785 = vsel %vm1586, %v1783, %v1784
        %v1786 = vrot.slane %v1761, 1
        %v1787 = vsel %vm1586, %v1784, %v1786
        %v1788 = vrot.slane %v1762, 1
        %v1789 = vrot.slane %v1763, 1
        %v1790 = vsel %vm1586, %v1788, %v1789
        %v1791 = vrot.slane %v1764, 1
        %v1792 = vsel %vm1586, %v1789, %v1791
        %v1793 = vrot.slane %v1765, 1
        %v1794 = vrot.slane %v1766, 1
        %v1795 = vsel %vm1586, %v1793, %v1794
        %v1796 = vrot.slane %v1767, 1
        %v1797 = vsel %vm1586, %v1794, %v1796
        %v1798 = vrot.slane %v1768, 1
        %v1799 = vrot.slane %v1769, 1
        %v1800 = vsel %vm1586, %v1798, %v1799
        %v1801 = vrot.slane %v1770, 1
        %v1802 = vsel %vm1586, %v1799, %v1801
        %v1811 = vadd.f32 %v1751, %v1785
        %v1812 = vadd.f32 %v1752, %v1787
        %v1813 = vadd.f32 %v1753, %v1790
        %v1814 = vadd.f32 %v1754, %v1792
        %v1815 = vadd.f32 %v1755, %v1795
        %v1816 = vadd.f32 %v1756, %v1797
        %v1817 = vadd.f32 %v1757, %v1800
        %v1818 = vadd.f32 %v1758, %v1802
        %1819 = vrot.lane.b32.xlu0 %v1546, 127
        %v1820 = vpop.permute.xlu0 %1819
        %1821 = vrot.lane.b32.xlu0 %v1547, 127
        %v1822 = vpop.permute.xlu0 %1821
        %1823 = vrot.lane.b32.xlu0 %v1548, 127
        %v1824 = vpop.permute.xlu0 %1823
        %1825 = vrot.lane.b32.xlu0 %v1549, 127
        %v1826 = vpop.permute.xlu0 %1825
        %s1827 = vtos %v1820
        %v1828 = vstv %s1827
        %s1830 = vtos %v1822
        %v1831 = vstv %s1830
        %s1833 = vtos %v1824
        %v1834 = vstv %s1833
        %s1836 = vtos %v1826
        %v1837 = vstv %s1836
        %v1839 = vmul.f32 %v954, %v1828
        %v1840 = vmul.f32 %v955, %v1828
        %v1841 = vmul.f32 %v956, %v1828
        %v1842 = vmul.f32 %v957, %v1831
        %v1843 = vmul.f32 %v958, %v1831
        %v1844 = vmul.f32 %v959, %v1831
        %v1845 = vmul.f32 %v960, %v1834
        %v1846 = vmul.f32 %v961, %v1834
        %v1847 = vmul.f32 %v962, %v1834
        %v1848 = vmul.f32 %v963, %v1837
        %v1849 = vmul.f32 %v964, %v1837
        %v1850 = vmul.f32 %v965, %v1837
        %v1863 = vrot.slane %v1839, 1
        %v1864 = vrot.slane %v1840, 1
        %v1865 = vsel %vm1586, %v1863, %v1864
        %v1866 = vrot.slane %v1841, 1
        %v1867 = vsel %vm1586, %v1864, %v1866
        %v1868 = vrot.slane %v1842, 1
        %v1869 = vrot.slane %v1843, 1
        %v1870 = vsel %vm1586, %v1868, %v1869
        %v1871 = vrot.slane %v1844, 1
        %v1872 = vsel %vm1586, %v1869, %v1871
        %v1873 = vrot.slane %v1845, 1
        %v1874 = vrot.slane %v1846, 1
        %v1875 = vsel %vm1586, %v1873, %v1874
        %v1876 = vrot.slane %v1847, 1
        %v1877 = vsel %vm1586, %v1874, %v1876
        %v1878 = vrot.slane %v1848, 1
        %v1879 = vrot.slane %v1849, 1
        %v1880 = vsel %vm1586, %v1878, %v1879
        %v1881 = vrot.slane %v1850, 1
        %v1882 = vsel %vm1586, %v1879, %v1881
        %1883 = vrot.lane.b32.xlu0 %v1865, 127
        %v1884 = vpop.permute.xlu0 %1883
        %1885 = vrot.lane.b32.xlu0 %v1867, 127
        %v1886 = vpop.permute.xlu0 %1885
        %1887 = vrot.lane.b32.xlu0 %v1870, 127
        %v1888 = vpop.permute.xlu0 %1887
        %1889 = vrot.lane.b32.xlu0 %v1872, 127
        %v1890 = vpop.permute.xlu0 %1889
        %1891 = vrot.lane.b32.xlu0 %v1875, 127
        %v1892 = vpop.permute.xlu0 %1891
        %1893 = vrot.lane.b32.xlu0 %v1877, 127
        %v1894 = vpop.permute.xlu0 %1893
        %1895 = vrot.lane.b32.xlu0 %v1880, 127
        %v1896 = vpop.permute.xlu0 %1895
        %1897 = vrot.lane.b32.xlu0 %v1882, 127
        %v1898 = vpop.permute.xlu0 %1897
        %v1907 = vadd.f32 %v1691, %v1884
        %v1908 = vadd.f32 %v1692, %v1886
        %v1909 = vadd.f32 %v1693, %v1888
        %v1910 = vadd.f32 %v1694, %v1890
        %v1911 = vadd.f32 %v1695, %v1892
        %v1912 = vadd.f32 %v1696, %v1894
        %v1913 = vadd.f32 %v1697, %v1896
        %v1914 = vadd.f32 %v1698, %v1898
        %1915 = vrot.lane.b32.xlu0 %v1623, 127
        %v1916 = vpop.permute.xlu0 %1915
        %1917 = vrot.lane.b32.xlu0 %v1624, 127
        %v1918 = vpop.permute.xlu0 %1917
        %1919 = vrot.lane.b32.xlu0 %v1625, 127
        %v1920 = vpop.permute.xlu0 %1919
        %1921 = vrot.lane.b32.xlu0 %v1626, 127
        %v1922 = vpop.permute.xlu0 %1921
        %s1923 = vtos %v1916
        %v1924 = vstv %s1923
        %s1926 = vtos %v1918
        %v1927 = vstv %s1926
        %s1929 = vtos %v1920
        %v1930 = vstv %s1929
        %s1932 = vtos %v1922
        %v1933 = vstv %s1932
        %v1935 = vmul.f32 %v966, %v1924
        %v1936 = vmul.f32 %v967, %v1924
        %v1937 = vmul.f32 %v968, %v1924
        %v1938 = vmul.f32 %v969, %v1927
        %v1939 = vmul.f32 %v970, %v1927
        %v1940 = vmul.f32 %v971, %v1927
        %v1941 = vmul.f32 %v972, %v1930
        %v1942 = vmul.f32 %v973, %v1930
        %v1943 = vmul.f32 %v974, %v1930
        %v1944 = vmul.f32 %v975, %v1933
        %v1945 = vmul.f32 %v976, %v1933
        %v1946 = vmul.f32 %v977, %v1933
        %v1959 = vrot.slane %v1935, 1
        %v1960 = vrot.slane %v1936, 1
        %v1961 = vsel %vm1586, %v1959, %v1960
        %v1962 = vrot.slane %v1937, 1
        %v1963 = vsel %vm1586, %v1960, %v1962
        %v1964 = vrot.slane %v1938, 1
        %v1965 = vrot.slane %v1939, 1
        %v1966 = vsel %vm1586, %v1964, %v1965
        %v1967 = vrot.slane %v1940, 1
        %v1968 = vsel %vm1586, %v1965, %v1967
        %v1969 = vrot.slane %v1941, 1
        %v1970 = vrot.slane %v1942, 1
        %v1971 = vsel %vm1586, %v1969, %v1970
        %v1972 = vrot.slane %v1943, 1
        %v1973 = vsel %vm1586, %v1970, %v1972
        %v1974 = vrot.slane %v1944, 1
        %v1975 = vrot.slane %v1945, 1
        %v1976 = vsel %vm1586, %v1974, %v1975
        %v1977 = vrot.slane %v1946, 1
        %v1978 = vsel %vm1586, %v1975, %v1977
        %1979 = vrot.lane.b32.xlu0 %v1961, 127
        %v1980 = vpop.permute.xlu0 %1979
        %1981 = vrot.lane.b32.xlu0 %v1963, 127
        %v1982 = vpop.permute.xlu0 %1981
        %1983 = vrot.lane.b32.xlu0 %v1966, 127
        %v1984 = vpop.permute.xlu0 %1983
        %1985 = vrot.lane.b32.xlu0 %v1968, 127
        %v1986 = vpop.permute.xlu0 %1985
        %1987 = vrot.lane.b32.xlu0 %v1971, 127
        %v1988 = vpop.permute.xlu0 %1987
        %1989 = vrot.lane.b32.xlu0 %v1973, 127
        %v1990 = vpop.permute.xlu0 %1989
        %1991 = vrot.lane.b32.xlu0 %v1976, 127
        %v1992 = vpop.permute.xlu0 %1991
        %1993 = vrot.lane.b32.xlu0 %v1978, 127
        %v1994 = vpop.permute.xlu0 %1993
        %v2003 = vsub.f32 %v1907, %v1980
        %v2004 = vsub.f32 %v1908, %v1982
        %v2005 = vsub.f32 %v1909, %v1984
        %v2006 = vsub.f32 %v1910, %v1986
        %v2007 = vsub.f32 %v1911, %v1988
        %v2008 = vsub.f32 %v1912, %v1990
        %v2009 = vsub.f32 %v1913, %v1992
        %v2010 = vsub.f32 %v1914, %v1994
        %v2011 = vmul.f32 %v954, %v1924
        %v2012 = vmul.f32 %v955, %v1924
        %v2013 = vmul.f32 %v956, %v1924
        %v2014 = vmul.f32 %v957, %v1927
        %v2015 = vmul.f32 %v958, %v1927
        %v2016 = vmul.f32 %v959, %v1927
        %v2017 = vmul.f32 %v960, %v1930
        %v2018 = vmul.f32 %v961, %v1930
        %v2019 = vmul.f32 %v962, %v1930
        %v2020 = vmul.f32 %v963, %v1933
        %v2021 = vmul.f32 %v964, %v1933
        %v2022 = vmul.f32 %v965, %v1933
        %v2035 = vrot.slane %v2011, 1
        %v2036 = vrot.slane %v2012, 1
        %v2037 = vsel %vm1586, %v2035, %v2036
        %v2038 = vrot.slane %v2013, 1
        %v2039 = vsel %vm1586, %v2036, %v2038
        %v2040 = vrot.slane %v2014, 1
        %v2041 = vrot.slane %v2015, 1
        %v2042 = vsel %vm1586, %v2040, %v2041
        %v2043 = vrot.slane %v2016, 1
        %v2044 = vsel %vm1586, %v2041, %v2043
        %v2045 = vrot.slane %v2017, 1
        %v2046 = vrot.slane %v2018, 1
        %v2047 = vsel %vm1586, %v2045, %v2046
        %v2048 = vrot.slane %v2019, 1
        %v2049 = vsel %vm1586, %v2046, %v2048
        %v2050 = vrot.slane %v2020, 1
        %v2051 = vrot.slane %v2021, 1
        %v2052 = vsel %vm1586, %v2050, %v2051
        %v2053 = vrot.slane %v2022, 1
        %v2054 = vsel %vm1586, %v2051, %v2053
        %2055 = vrot.lane.b32.xlu0 %v2037, 127
        %v2056 = vpop.permute.xlu0 %2055
        %2057 = vrot.lane.b32.xlu0 %v2039, 127
        %v2058 = vpop.permute.xlu0 %2057
        %2059 = vrot.lane.b32.xlu0 %v2042, 127
        %v2060 = vpop.permute.xlu0 %2059
        %2061 = vrot.lane.b32.xlu0 %v2044, 127
        %v2062 = vpop.permute.xlu0 %2061
        %2063 = vrot.lane.b32.xlu0 %v2047, 127
        %v2064 = vpop.permute.xlu0 %2063
        %2065 = vrot.lane.b32.xlu0 %v2049, 127
        %v2066 = vpop.permute.xlu0 %2065
        %2067 = vrot.lane.b32.xlu0 %v2052, 127
        %v2068 = vpop.permute.xlu0 %2067
        %2069 = vrot.lane.b32.xlu0 %v2054, 127
        %v2070 = vpop.permute.xlu0 %2069
        %v2079 = vadd.f32 %v1811, %v2056
        %v2080 = vadd.f32 %v1812, %v2058
        %v2081 = vadd.f32 %v1813, %v2060
        %v2082 = vadd.f32 %v1814, %v2062
        %v2083 = vadd.f32 %v1815, %v2064
        %v2084 = vadd.f32 %v1816, %v2066
        %v2085 = vadd.f32 %v1817, %v2068
        %v2086 = vadd.f32 %v1818, %v2070
        %v2087 = vmul.f32 %v966, %v1828
        %v2088 = vmul.f32 %v967, %v1828
        %v2089 = vmul.f32 %v968, %v1828
        %v2090 = vmul.f32 %v969, %v1831
        %v2091 = vmul.f32 %v970, %v1831
        %v2092 = vmul.f32 %v971, %v1831
        %v2093 = vmul.f32 %v972, %v1834
        %v2094 = vmul.f32 %v973, %v1834
        %v2095 = vmul.f32 %v974, %v1834
        %v2096 = vmul.f32 %v975, %v1837
        %v2097 = vmul.f32 %v976, %v1837
        %v2098 = vmul.f32 %v977, %v1837
        %v2111 = vrot.slane %v2087, 1
        %v2112 = vrot.slane %v2088, 1
        %v2113 = vsel %vm1586, %v2111, %v2112
        %v2114 = vrot.slane %v2089, 1
        %v2115 = vsel %vm1586, %v2112, %v2114
        %v2116 = vrot.slane %v2090, 1
        %v2117 = vrot.slane %v2091, 1
        %v2118 = vsel %vm1586, %v2116, %v2117
        %v2119 = vrot.slane %v2092, 1
        %v2120 = vsel %vm1586, %v2117, %v2119
        %v2121 = vrot.slane %v2093, 1
        %v2122 = vrot.slane %v2094, 1
        %v2123 = vsel %vm1586, %v2121, %v2122
        %v2124 = vrot.slane %v2095, 1
        %v2125 = vsel %vm1586, %v2122, %v2124
        %v2126 = vrot.slane %v2096, 1
        %v2127 = vrot.slane %v2097, 1
        %v2128 = vsel %vm1586, %v2126, %v2127
        %v2129 = vrot.slane %v2098, 1
        %v2130 = vsel %vm1586, %v2127, %v2129
        %2131 = vrot.lane.b32.xlu0 %v2113, 127
        %v2132 = vpop.permute.xlu0 %2131
        %2133 = vrot.lane.b32.xlu0 %v2115, 127
        %v2134 = vpop.permute.xlu0 %2133
        %2135 = vrot.lane.b32.xlu0 %v2118, 127
        %v2136 = vpop.permute.xlu0 %2135
        %2137 = vrot.lane.b32.xlu0 %v2120, 127
        %v2138 = vpop.permute.xlu0 %2137
        %2139 = vrot.lane.b32.xlu0 %v2123, 127
        %v2140 = vpop.permute.xlu0 %2139
        %2141 = vrot.lane.b32.xlu0 %v2125, 127
        %v2142 = vpop.permute.xlu0 %2141
        %2143 = vrot.lane.b32.xlu0 %v2128, 127
        %v2144 = vpop.permute.xlu0 %2143
        %2145 = vrot.lane.b32.xlu0 %v2130, 127
        %v2146 = vpop.permute.xlu0 %2145
        %v2155 = vadd.f32 %v2079, %v2132
        %v2156 = vadd.f32 %v2080, %v2134
        %v2157 = vadd.f32 %v2081, %v2136
        %v2158 = vadd.f32 %v2082, %v2138
        %v2159 = vadd.f32 %v2083, %v2140
        %v2160 = vadd.f32 %v2084, %v2142
        %v2161 = vadd.f32 %v2085, %v2144
        %v2162 = vadd.f32 %v2086, %v2146
        %2163 = vrot.lane.b32.xlu0 %v1546, 126
        %v2164 = vpop.permute.xlu0 %2163
        %2165 = vrot.lane.b32.xlu0 %v1547, 126
        %v2166 = vpop.permute.xlu0 %2165
        %2167 = vrot.lane.b32.xlu0 %v1548, 126
        %v2168 = vpop.permute.xlu0 %2167
        %2169 = vrot.lane.b32.xlu0 %v1549, 126
        %v2170 = vpop.permute.xlu0 %2169
        %s2171 = vtos %v2164
        %v2172 = vstv %s2171
        %s2174 = vtos %v2166
        %v2175 = vstv %s2174
        %s2177 = vtos %v2168
        %v2178 = vstv %s2177
        %s2180 = vtos %v2170
        %v2181 = vstv %s2180
        %v2183 = vmul.f32 %v954, %v2172
        %v2184 = vmul.f32 %v955, %v2172
        %v2185 = vmul.f32 %v956, %v2172
        %v2186 = vmul.f32 %v957, %v2175
        %v2187 = vmul.f32 %v958, %v2175
        %v2188 = vmul.f32 %v959, %v2175
        %v2189 = vmul.f32 %v960, %v2178
        %v2190 = vmul.f32 %v961, %v2178
        %v2191 = vmul.f32 %v962, %v2178
        %v2192 = vmul.f32 %v963, %v2181
        %v2193 = vmul.f32 %v964, %v2181
        %v2194 = vmul.f32 %v965, %v2181
        %v2207 = vrot.slane %v2183, 1
        %v2208 = vrot.slane %v2184, 1
        %v2209 = vsel %vm1586, %v2207, %v2208
        %v2210 = vrot.slane %v2185, 1
        %v2211 = vsel %vm1586, %v2208, %v2210
        %v2212 = vrot.slane %v2186, 1
        %v2213 = vrot.slane %v2187, 1
        %v2214 = vsel %vm1586, %v2212, %v2213
        %v2215 = vrot.slane %v2188, 1
        %v2216 = vsel %vm1586, %v2213, %v2215
        %v2217 = vrot.slane %v2189, 1
        %v2218 = vrot.slane %v2190, 1
        %v2219 = vsel %vm1586, %v2217, %v2218
        %v2220 = vrot.slane %v2191, 1
        %v2221 = vsel %vm1586, %v2218, %v2220
        %v2222 = vrot.slane %v2192, 1
        %v2223 = vrot.slane %v2193, 1
        %v2224 = vsel %vm1586, %v2222, %v2223
        %v2225 = vrot.slane %v2194, 1
        %v2226 = vsel %vm1586, %v2223, %v2225
        %2227 = vrot.lane.b32.xlu0 %v2209, 126
        %v2228 = vpop.permute.xlu0 %2227
        %2229 = vrot.lane.b32.xlu0 %v2211, 126
        %v2230 = vpop.permute.xlu0 %2229
        %2231 = vrot.lane.b32.xlu0 %v2214, 126
        %v2232 = vpop.permute.xlu0 %2231
        %2233 = vrot.lane.b32.xlu0 %v2216, 126
        %v2234 = vpop.permute.xlu0 %2233
        %2235 = vrot.lane.b32.xlu0 %v2219, 126
        %v2236 = vpop.permute.xlu0 %2235
        %2237 = vrot.lane.b32.xlu0 %v2221, 126
        %v2238 = vpop.permute.xlu0 %2237
        %2239 = vrot.lane.b32.xlu0 %v2224, 126
        %v2240 = vpop.permute.xlu0 %2239
        %2241 = vrot.lane.b32.xlu0 %v2226, 126
        %v2242 = vpop.permute.xlu0 %2241
        %v2251 = vadd.f32 %v2003, %v2228
        %v2252 = vadd.f32 %v2004, %v2230
        %v2253 = vadd.f32 %v2005, %v2232
        %v2254 = vadd.f32 %v2006, %v2234
        %v2255 = vadd.f32 %v2007, %v2236
        %v2256 = vadd.f32 %v2008, %v2238
        %v2257 = vadd.f32 %v2009, %v2240
        %v2258 = vadd.f32 %v2010, %v2242
        %2259 = vrot.lane.b32.xlu0 %v1623, 126
        %v2260 = vpop.permute.xlu0 %2259
        %2261 = vrot.lane.b32.xlu0 %v1624, 126
        %v2262 = vpop.permute.xlu0 %2261
        %2263 = vrot.lane.b32.xlu0 %v1625, 126
        %v2264 = vpop.permute.xlu0 %2263
        %2265 = vrot.lane.b32.xlu0 %v1626, 126
        %v2266 = vpop.permute.xlu0 %2265
        %s2267 = vtos %v2260
        %v2268 = vstv %s2267
        %s2270 = vtos %v2262
        %v2271 = vstv %s2270
        %s2273 = vtos %v2264
        %v2274 = vstv %s2273
        %s2276 = vtos %v2266
        %v2277 = vstv %s2276
        %v2279 = vmul.f32 %v966, %v2268
        %v2280 = vmul.f32 %v967, %v2268
        %v2281 = vmul.f32 %v968, %v2268
        %v2282 = vmul.f32 %v969, %v2271
        %v2283 = vmul.f32 %v970, %v2271
        %v2284 = vmul.f32 %v971, %v2271
        %v2285 = vmul.f32 %v972, %v2274
        %v2286 = vmul.f32 %v973, %v2274
        %v2287 = vmul.f32 %v974, %v2274
        %v2288 = vmul.f32 %v975, %v2277
        %v2289 = vmul.f32 %v976, %v2277
        %v2290 = vmul.f32 %v977, %v2277
        %v2303 = vrot.slane %v2279, 1
        %v2304 = vrot.slane %v2280, 1
        %v2305 = vsel %vm1586, %v2303, %v2304
        %v2306 = vrot.slane %v2281, 1
        %v2307 = vsel %vm1586, %v2304, %v2306
        %v2308 = vrot.slane %v2282, 1
        %v2309 = vrot.slane %v2283, 1
        %v2310 = vsel %vm1586, %v2308, %v2309
        %v2311 = vrot.slane %v2284, 1
        %v2312 = vsel %vm1586, %v2309, %v2311
        %v2313 = vrot.slane %v2285, 1
        %v2314 = vrot.slane %v2286, 1
        %v2315 = vsel %vm1586, %v2313, %v2314
        %v2316 = vrot.slane %v2287, 1
        %v2317 = vsel %vm1586, %v2314, %v2316
        %v2318 = vrot.slane %v2288, 1
        %v2319 = vrot.slane %v2289, 1
        %v2320 = vsel %vm1586, %v2318, %v2319
        %v2321 = vrot.slane %v2290, 1
        %v2322 = vsel %vm1586, %v2319, %v2321
        %2323 = vrot.lane.b32.xlu0 %v2305, 126
        %v2324 = vpop.permute.xlu0 %2323
        %2325 = vrot.lane.b32.xlu0 %v2307, 126
        %v2326 = vpop.permute.xlu0 %2325
        %2327 = vrot.lane.b32.xlu0 %v2310, 126
        %v2328 = vpop.permute.xlu0 %2327
        %2329 = vrot.lane.b32.xlu0 %v2312, 126
        %v2330 = vpop.permute.xlu0 %2329
        %2331 = vrot.lane.b32.xlu0 %v2315, 126
        %v2332 = vpop.permute.xlu0 %2331
        %2333 = vrot.lane.b32.xlu0 %v2317, 126
        %v2334 = vpop.permute.xlu0 %2333
        %2335 = vrot.lane.b32.xlu0 %v2320, 126
        %v2336 = vpop.permute.xlu0 %2335
        %2337 = vrot.lane.b32.xlu0 %v2322, 126
        %v2338 = vpop.permute.xlu0 %2337
        %v2347 = vsub.f32 %v2251, %v2324
        %v2348 = vsub.f32 %v2252, %v2326
        %v2349 = vsub.f32 %v2253, %v2328
        %v2350 = vsub.f32 %v2254, %v2330
        %v2351 = vsub.f32 %v2255, %v2332
        %v2352 = vsub.f32 %v2256, %v2334
        %v2353 = vsub.f32 %v2257, %v2336
        %v2354 = vsub.f32 %v2258, %v2338
        %v2355 = vmul.f32 %v954, %v2268
        %v2356 = vmul.f32 %v955, %v2268
        %v2357 = vmul.f32 %v956, %v2268
        %v2358 = vmul.f32 %v957, %v2271
        %v2359 = vmul.f32 %v958, %v2271
        %v2360 = vmul.f32 %v959, %v2271
        %v2361 = vmul.f32 %v960, %v2274
        %v2362 = vmul.f32 %v961, %v2274
        %v2363 = vmul.f32 %v962, %v2274
        %v2364 = vmul.f32 %v963, %v2277
        %v2365 = vmul.f32 %v964, %v2277
        %v2366 = vmul.f32 %v965, %v2277
        %v2379 = vrot.slane %v2355, 1
        %v2380 = vrot.slane %v2356, 1
        %v2381 = vsel %vm1586, %v2379, %v2380
        %v2382 = vrot.slane %v2357, 1
        %v2383 = vsel %vm1586, %v2380, %v2382
        %v2384 = vrot.slane %v2358, 1
        %v2385 = vrot.slane %v2359, 1
        %v2386 = vsel %vm1586, %v2384, %v2385
        %v2387 = vrot.slane %v2360, 1
        %v2388 = vsel %vm1586, %v2385, %v2387
        %v2389 = vrot.slane %v2361, 1
        %v2390 = vrot.slane %v2362, 1
        %v2391 = vsel %vm1586, %v2389, %v2390
        %v2392 = vrot.slane %v2363, 1
        %v2393 = vsel %vm1586, %v2390, %v2392
        %v2394 = vrot.slane %v2364, 1
        %v2395 = vrot.slane %v2365, 1
        %v2396 = vsel %vm1586, %v2394, %v2395
        %v2397 = vrot.slane %v2366, 1
        %v2398 = vsel %vm1586, %v2395, %v2397
        %2399 = vrot.lane.b32.xlu0 %v2381, 126
        %v2400 = vpop.permute.xlu0 %2399
        %2401 = vrot.lane.b32.xlu0 %v2383, 126
        %v2402 = vpop.permute.xlu0 %2401
        %2403 = vrot.lane.b32.xlu0 %v2386, 126
        %v2404 = vpop.permute.xlu0 %2403
        %2405 = vrot.lane.b32.xlu0 %v2388, 126
        %v2406 = vpop.permute.xlu0 %2405
        %2407 = vrot.lane.b32.xlu0 %v2391, 126
        %v2408 = vpop.permute.xlu0 %2407
        %2409 = vrot.lane.b32.xlu0 %v2393, 126
        %v2410 = vpop.permute.xlu0 %2409
        %2411 = vrot.lane.b32.xlu0 %v2396, 126
        %v2412 = vpop.permute.xlu0 %2411
        %2413 = vrot.lane.b32.xlu0 %v2398, 126
        %v2414 = vpop.permute.xlu0 %2413
        %v2423 = vadd.f32 %v2155, %v2400
        %v2424 = vadd.f32 %v2156, %v2402
        %v2425 = vadd.f32 %v2157, %v2404
        %v2426 = vadd.f32 %v2158, %v2406
        %v2427 = vadd.f32 %v2159, %v2408
        %v2428 = vadd.f32 %v2160, %v2410
        %v2429 = vadd.f32 %v2161, %v2412
        %v2430 = vadd.f32 %v2162, %v2414
        %v2431 = vmul.f32 %v966, %v2172
        %v2432 = vmul.f32 %v967, %v2172
        %v2433 = vmul.f32 %v968, %v2172
        %v2434 = vmul.f32 %v969, %v2175
        %v2435 = vmul.f32 %v970, %v2175
        %v2436 = vmul.f32 %v971, %v2175
        %v2437 = vmul.f32 %v972, %v2178
        %v2438 = vmul.f32 %v973, %v2178
        %v2439 = vmul.f32 %v974, %v2178
        %v2440 = vmul.f32 %v975, %v2181
        %v2441 = vmul.f32 %v976, %v2181
        %v2442 = vmul.f32 %v977, %v2181
        %v2455 = vrot.slane %v2431, 1
        %v2456 = vrot.slane %v2432, 1
        %v2457 = vsel %vm1586, %v2455, %v2456
        %v2458 = vrot.slane %v2433, 1
        %v2459 = vsel %vm1586, %v2456, %v2458
        %v2460 = vrot.slane %v2434, 1
        %v2461 = vrot.slane %v2435, 1
        %v2462 = vsel %vm1586, %v2460, %v2461
        %v2463 = vrot.slane %v2436, 1
        %v2464 = vsel %vm1586, %v2461, %v2463
        %v2465 = vrot.slane %v2437, 1
        %v2466 = vrot.slane %v2438, 1
        %v2467 = vsel %vm1586, %v2465, %v2466
        %v2468 = vrot.slane %v2439, 1
        %v2469 = vsel %vm1586, %v2466, %v2468
        %v2470 = vrot.slane %v2440, 1
        %v2471 = vrot.slane %v2441, 1
        %v2472 = vsel %vm1586, %v2470, %v2471
        %v2473 = vrot.slane %v2442, 1
        %v2474 = vsel %vm1586, %v2471, %v2473
        %2475 = vrot.lane.b32.xlu0 %v2457, 126
        %v2476 = vpop.permute.xlu0 %2475
        %2477 = vrot.lane.b32.xlu0 %v2459, 126
        %v2478 = vpop.permute.xlu0 %2477
        %2479 = vrot.lane.b32.xlu0 %v2462, 126
        %v2480 = vpop.permute.xlu0 %2479
        %2481 = vrot.lane.b32.xlu0 %v2464, 126
        %v2482 = vpop.permute.xlu0 %2481
        %2483 = vrot.lane.b32.xlu0 %v2467, 126
        %v2484 = vpop.permute.xlu0 %2483
        %2485 = vrot.lane.b32.xlu0 %v2469, 126
        %v2486 = vpop.permute.xlu0 %2485
        %2487 = vrot.lane.b32.xlu0 %v2472, 126
        %v2488 = vpop.permute.xlu0 %2487
        %2489 = vrot.lane.b32.xlu0 %v2474, 126
        %v2490 = vpop.permute.xlu0 %2489
        %v2499 = vadd.f32 %v2423, %v2476
        %v2500 = vadd.f32 %v2424, %v2478
        %v2501 = vadd.f32 %v2425, %v2480
        %v2502 = vadd.f32 %v2426, %v2482
        %v2503 = vadd.f32 %v2427, %v2484
        %v2504 = vadd.f32 %v2428, %v2486
        %v2505 = vadd.f32 %v2429, %v2488
        %v2506 = vadd.f32 %v2430, %v2490
        %v2507 = vrot.slane %v978, 2
        %v2508 = vrot.slane %v979, 2
        %v2509 = vrot.slane %v980, 2
        %v2510 = vrot.slane %v981, 2
        %s2511 = vtos %v2507
        %v2512 = vstv %s2511
        %s2514 = vtos %v2508
        %v2515 = vstv %s2514
        %s2517 = vtos %v2509
        %v2518 = vstv %s2517
        %s2520 = vtos %v2510
        %v2521 = vstv %s2520
        %v2523 = vmul.f32 %v954, %v2512
        %v2524 = vmul.f32 %v955, %v2512
        %v2525 = vmul.f32 %v956, %v2512
        %v2526 = vmul.f32 %v957, %v2515
        %v2527 = vmul.f32 %v958, %v2515
        %v2528 = vmul.f32 %v959, %v2515
        %v2529 = vmul.f32 %v960, %v2518
        %v2530 = vmul.f32 %v961, %v2518
        %v2531 = vmul.f32 %v962, %v2518
        %v2532 = vmul.f32 %v963, %v2521
        %v2533 = vmul.f32 %v964, %v2521
        %v2534 = vmul.f32 %v965, %v2521
        %vm2547 = vcmask 1045504
        %v2548 = vrot.slane %v2523, 2
        %v2549 = vrot.slane %v2524, 2
        %v2550 = vsel %vm2547, %v2548, %v2549
        %v2551 = vrot.slane %v2525, 2
        %v2552 = vsel %vm2547, %v2549, %v2551
        %v2553 = vrot.slane %v2526, 2
        %v2554 = vrot.slane %v2527, 2
        %v2555 = vsel %vm2547, %v2553, %v2554
        %v2556 = vrot.slane %v2528, 2
        %v2557 = vsel %vm2547, %v2554, %v2556
        %v2558 = vrot.slane %v2529, 2
        %v2559 = vrot.slane %v2530, 2
        %v2560 = vsel %vm2547, %v2558, %v2559
        %v2561 = vrot.slane %v2531, 2
        %v2562 = vsel %vm2547, %v2559, %v2561
        %v2563 = vrot.slane %v2532, 2
        %v2564 = vrot.slane %v2533, 2
        %v2565 = vsel %vm2547, %v2563, %v2564
        %v2566 = vrot.slane %v2534, 2
        %v2567 = vsel %vm2547, %v2564, %v2566
        %v2576 = vadd.f32 %v2347, %v2550
        %v2577 = vadd.f32 %v2348, %v2552
        %v2578 = vadd.f32 %v2349, %v2555
        %v2579 = vadd.f32 %v2350, %v2557
        %v2580 = vadd.f32 %v2351, %v2560
        %v2581 = vadd.f32 %v2352, %v2562
        %v2582 = vadd.f32 %v2353, %v2565
        %v2583 = vadd.f32 %v2354, %v2567
        %v2584 = vrot.slane %v982, 2
        %v2585 = vrot.slane %v983, 2
        %v2586 = vrot.slane %v984, 2
        %v2587 = vrot.slane %v985, 2
        %s2588 = vtos %v2584
        %v2589 = vstv %s2588
        %s2591 = vtos %v2585
        %v2592 = vstv %s2591
        %s2594 = vtos %v2586
        %v2595 = vstv %s2594
        %s2597 = vtos %v2587
        %v2598 = vstv %s2597
        %v2600 = vmul.f32 %v966, %v2589
        %v2601 = vmul.f32 %v967, %v2589
        %v2602 = vmul.f32 %v968, %v2589
        %v2603 = vmul.f32 %v969, %v2592
        %v2604 = vmul.f32 %v970, %v2592
        %v2605 = vmul.f32 %v971, %v2592
        %v2606 = vmul.f32 %v972, %v2595
        %v2607 = vmul.f32 %v973, %v2595
        %v2608 = vmul.f32 %v974, %v2595
        %v2609 = vmul.f32 %v975, %v2598
        %v2610 = vmul.f32 %v976, %v2598
        %v2611 = vmul.f32 %v977, %v2598
        %v2624 = vrot.slane %v2600, 2
        %v2625 = vrot.slane %v2601, 2
        %v2626 = vsel %vm2547, %v2624, %v2625
        %v2627 = vrot.slane %v2602, 2
        %v2628 = vsel %vm2547, %v2625, %v2627
        %v2629 = vrot.slane %v2603, 2
        %v2630 = vrot.slane %v2604, 2
        %v2631 = vsel %vm2547, %v2629, %v2630
        %v2632 = vrot.slane %v2605, 2
        %v2633 = vsel %vm2547, %v2630, %v2632
        %v2634 = vrot.slane %v2606, 2
        %v2635 = vrot.slane %v2607, 2
        %v2636 = vsel %vm2547, %v2634, %v2635
        %v2637 = vrot.slane %v2608, 2
        %v2638 = vsel %vm2547, %v2635, %v2637
        %v2639 = vrot.slane %v2609, 2
        %v2640 = vrot.slane %v2610, 2
        %v2641 = vsel %vm2547, %v2639, %v2640
        %v2642 = vrot.slane %v2611, 2
        %v2643 = vsel %vm2547, %v2640, %v2642
        %v2652 = vsub.f32 %v2576, %v2626
        %v2653 = vsub.f32 %v2577, %v2628
        %v2654 = vsub.f32 %v2578, %v2631
        %v2655 = vsub.f32 %v2579, %v2633
        %v2656 = vsub.f32 %v2580, %v2636
        %v2657 = vsub.f32 %v2581, %v2638
        %v2658 = vsub.f32 %v2582, %v2641
        %v2659 = vsub.f32 %v2583, %v2643
        %v2660 = vmul.f32 %v954, %v2589
        %v2661 = vmul.f32 %v955, %v2589
        %v2662 = vmul.f32 %v956, %v2589
        %v2663 = vmul.f32 %v957, %v2592
        %v2664 = vmul.f32 %v958, %v2592
        %v2665 = vmul.f32 %v959, %v2592
        %v2666 = vmul.f32 %v960, %v2595
        %v2667 = vmul.f32 %v961, %v2595
        %v2668 = vmul.f32 %v962, %v2595
        %v2669 = vmul.f32 %v963, %v2598
        %v2670 = vmul.f32 %v964, %v2598
        %v2671 = vmul.f32 %v965, %v2598
        %v2684 = vrot.slane %v2660, 2
        %v2685 = vrot.slane %v2661, 2
        %v2686 = vsel %vm2547, %v2684, %v2685
        %v2687 = vrot.slane %v2662, 2
        %v2688 = vsel %vm2547, %v2685, %v2687
        %v2689 = vrot.slane %v2663, 2
        %v2690 = vrot.slane %v2664, 2
        %v2691 = vsel %vm2547, %v2689, %v2690
        %v2692 = vrot.slane %v2665, 2
        %v2693 = vsel %vm2547, %v2690, %v2692
        %v2694 = vrot.slane %v2666, 2
        %v2695 = vrot.slane %v2667, 2
        %v2696 = vsel %vm2547, %v2694, %v2695
        %v2697 = vrot.slane %v2668, 2
        %v2698 = vsel %vm2547, %v2695, %v2697
        %v2699 = vrot.slane %v2669, 2
        %v2700 = vrot.slane %v2670, 2
        %v2701 = vsel %vm2547, %v2699, %v2700
        %v2702 = vrot.slane %v2671, 2
        %v2703 = vsel %vm2547, %v2700, %v2702
        %v2712 = vadd.f32 %v2499, %v2686
        %v2713 = vadd.f32 %v2500, %v2688
        %v2714 = vadd.f32 %v2501, %v2691
        %v2715 = vadd.f32 %v2502, %v2693
        %v2716 = vadd.f32 %v2503, %v2696
        %v2717 = vadd.f32 %v2504, %v2698
        %v2718 = vadd.f32 %v2505, %v2701
        %v2719 = vadd.f32 %v2506, %v2703
        %v2720 = vmul.f32 %v966, %v2512
        %v2721 = vmul.f32 %v967, %v2512
        %v2722 = vmul.f32 %v968, %v2512
        %v2723 = vmul.f32 %v969, %v2515
        %v2724 = vmul.f32 %v970, %v2515
        %v2725 = vmul.f32 %v971, %v2515
        %v2726 = vmul.f32 %v972, %v2518
        %v2727 = vmul.f32 %v973, %v2518
        %v2728 = vmul.f32 %v974, %v2518
        %v2729 = vmul.f32 %v975, %v2521
        %v2730 = vmul.f32 %v976, %v2521
        %v2731 = vmul.f32 %v977, %v2521
        %v2744 = vrot.slane %v2720, 2
        %v2745 = vrot.slane %v2721, 2
        %v2746 = vsel %vm2547, %v2744, %v2745
        %v2747 = vrot.slane %v2722, 2
        %v2748 = vsel %vm2547, %v2745, %v2747
        %v2749 = vrot.slane %v2723, 2
        %v2750 = vrot.slane %v2724, 2
        %v2751 = vsel %vm2547, %v2749, %v2750
        %v2752 = vrot.slane %v2725, 2
        %v2753 = vsel %vm2547, %v2750, %v2752
        %v2754 = vrot.slane %v2726, 2
        %v2755 = vrot.slane %v2727, 2
        %v2756 = vsel %vm2547, %v2754, %v2755
        %v2757 = vrot.slane %v2728, 2
        %v2758 = vsel %vm2547, %v2755, %v2757
        %v2759 = vrot.slane %v2729, 2
        %v2760 = vrot.slane %v2730, 2
        %v2761 = vsel %vm2547, %v2759, %v2760
        %v2762 = vrot.slane %v2731, 2
        %v2763 = vsel %vm2547, %v2760, %v2762
        %v2772 = vadd.f32 %v2712, %v2746
        %v2773 = vadd.f32 %v2713, %v2748
        %v2774 = vadd.f32 %v2714, %v2751
        %v2775 = vadd.f32 %v2715, %v2753
        %v2776 = vadd.f32 %v2716, %v2756
        %v2777 = vadd.f32 %v2717, %v2758
        %v2778 = vadd.f32 %v2718, %v2761
        %v2779 = vadd.f32 %v2719, %v2763
        %2780 = vrot.lane.b32.xlu0 %v2507, 127
        %v2781 = vpop.permute.xlu0 %2780
        %2782 = vrot.lane.b32.xlu0 %v2508, 127
        %v2783 = vpop.permute.xlu0 %2782
        %2784 = vrot.lane.b32.xlu0 %v2509, 127
        %v2785 = vpop.permute.xlu0 %2784
        %2786 = vrot.lane.b32.xlu0 %v2510, 127
        %v2787 = vpop.permute.xlu0 %2786
        %s2788 = vtos %v2781
        %v2789 = vstv %s2788
        %s2791 = vtos %v2783
        %v2792 = vstv %s2791
        %s2794 = vtos %v2785
        %v2795 = vstv %s2794
        %s2797 = vtos %v2787
        %v2798 = vstv %s2797
        %v2800 = vmul.f32 %v954, %v2789
        %v2801 = vmul.f32 %v955, %v2789
        %v2802 = vmul.f32 %v956, %v2789
        %v2803 = vmul.f32 %v957, %v2792
        %v2804 = vmul.f32 %v958, %v2792
        %v2805 = vmul.f32 %v959, %v2792
        %v2806 = vmul.f32 %v960, %v2795
        %v2807 = vmul.f32 %v961, %v2795
        %v2808 = vmul.f32 %v962, %v2795
        %v2809 = vmul.f32 %v963, %v2798
        %v2810 = vmul.f32 %v964, %v2798
        %v2811 = vmul.f32 %v965, %v2798
        %v2824 = vrot.slane %v2800, 2
        %v2825 = vrot.slane %v2801, 2
        %v2826 = vsel %vm2547, %v2824, %v2825
        %v2827 = vrot.slane %v2802, 2
        %v2828 = vsel %vm2547, %v2825, %v2827
        %v2829 = vrot.slane %v2803, 2
        %v2830 = vrot.slane %v2804, 2
        %v2831 = vsel %vm2547, %v2829, %v2830
        %v2832 = vrot.slane %v2805, 2
        %v2833 = vsel %vm2547, %v2830, %v2832
        %v2834 = vrot.slane %v2806, 2
        %v2835 = vrot.slane %v2807, 2
        %v2836 = vsel %vm2547, %v2834, %v2835
        %v2837 = vrot.slane %v2808, 2
        %v2838 = vsel %vm2547, %v2835, %v2837
        %v2839 = vrot.slane %v2809, 2
        %v2840 = vrot.slane %v2810, 2
        %v2841 = vsel %vm2547, %v2839, %v2840
        %v2842 = vrot.slane %v2811, 2
        %v2843 = vsel %vm2547, %v2840, %v2842
        %2844 = vrot.lane.b32.xlu0 %v2826, 127
        %v2845 = vpop.permute.xlu0 %2844
        %2846 = vrot.lane.b32.xlu0 %v2828, 127
        %v2847 = vpop.permute.xlu0 %2846
        %2848 = vrot.lane.b32.xlu0 %v2831, 127
        %v2849 = vpop.permute.xlu0 %2848
        %2850 = vrot.lane.b32.xlu0 %v2833, 127
        %v2851 = vpop.permute.xlu0 %2850
        %2852 = vrot.lane.b32.xlu0 %v2836, 127
        %v2853 = vpop.permute.xlu0 %2852
        %2854 = vrot.lane.b32.xlu0 %v2838, 127
        %v2855 = vpop.permute.xlu0 %2854
        %2856 = vrot.lane.b32.xlu0 %v2841, 127
        %v2857 = vpop.permute.xlu0 %2856
        %2858 = vrot.lane.b32.xlu0 %v2843, 127
        %v2859 = vpop.permute.xlu0 %2858
        %v2868 = vadd.f32 %v2652, %v2845
        %v2869 = vadd.f32 %v2653, %v2847
        %v2870 = vadd.f32 %v2654, %v2849
        %v2871 = vadd.f32 %v2655, %v2851
        %v2872 = vadd.f32 %v2656, %v2853
        %v2873 = vadd.f32 %v2657, %v2855
        %v2874 = vadd.f32 %v2658, %v2857
        %v2875 = vadd.f32 %v2659, %v2859
        %2876 = vrot.lane.b32.xlu0 %v2584, 127
        %v2877 = vpop.permute.xlu0 %2876
        %2878 = vrot.lane.b32.xlu0 %v2585, 127
        %v2879 = vpop.permute.xlu0 %2878
        %2880 = vrot.lane.b32.xlu0 %v2586, 127
        %v2881 = vpop.permute.xlu0 %2880
        %2882 = vrot.lane.b32.xlu0 %v2587, 127
        %v2883 = vpop.permute.xlu0 %2882
        %s2884 = vtos %v2877
        %v2885 = vstv %s2884
        %s2887 = vtos %v2879
        %v2888 = vstv %s2887
        %s2890 = vtos %v2881
        %v2891 = vstv %s2890
        %s2893 = vtos %v2883
        %v2894 = vstv %s2893
        %v2896 = vmul.f32 %v966, %v2885
        %v2897 = vmul.f32 %v967, %v2885
        %v2898 = vmul.f32 %v968, %v2885
        %v2899 = vmul.f32 %v969, %v2888
        %v2900 = vmul.f32 %v970, %v2888
        %v2901 = vmul.f32 %v971, %v2888
        %v2902 = vmul.f32 %v972, %v2891
        %v2903 = vmul.f32 %v973, %v2891
        %v2904 = vmul.f32 %v974, %v2891
        %v2905 = vmul.f32 %v975, %v2894
        %v2906 = vmul.f32 %v976, %v2894
        %v2907 = vmul.f32 %v977, %v2894
        %v2920 = vrot.slane %v2896, 2
        %v2921 = vrot.slane %v2897, 2
        %v2922 = vsel %vm2547, %v2920, %v2921
        %v2923 = vrot.slane %v2898, 2
        %v2924 = vsel %vm2547, %v2921, %v2923
        %v2925 = vrot.slane %v2899, 2
        %v2926 = vrot.slane %v2900, 2
        %v2927 = vsel %vm2547, %v2925, %v2926
        %v2928 = vrot.slane %v2901, 2
        %v2929 = vsel %vm2547, %v2926, %v2928
        %v2930 = vrot.slane %v2902, 2
        %v2931 = vrot.slane %v2903, 2
        %v2932 = vsel %vm2547, %v2930, %v2931
        %v2933 = vrot.slane %v2904, 2
        %v2934 = vsel %vm2547, %v2931, %v2933
        %v2935 = vrot.slane %v2905, 2
        %v2936 = vrot.slane %v2906, 2
        %v2937 = vsel %vm2547, %v2935, %v2936
        %v2938 = vrot.slane %v2907, 2
        %v2939 = vsel %vm2547, %v2936, %v2938
        %2940 = vrot.lane.b32.xlu0 %v2922, 127
        %v2941 = vpop.permute.xlu0 %2940
        %2942 = vrot.lane.b32.xlu0 %v2924, 127
        %v2943 = vpop.permute.xlu0 %2942
        %2944 = vrot.lane.b32.xlu0 %v2927, 127
        %v2945 = vpop.permute.xlu0 %2944
        %2946 = vrot.lane.b32.xlu0 %v2929, 127
        %v2947 = vpop.permute.xlu0 %2946
        %2948 = vrot.lane.b32.xlu0 %v2932, 127
        %v2949 = vpop.permute.xlu0 %2948
        %2950 = vrot.lane.b32.xlu0 %v2934, 127
        %v2951 = vpop.permute.xlu0 %2950
        %2952 = vrot.lane.b32.xlu0 %v2937, 127
        %v2953 = vpop.permute.xlu0 %2952
        %2954 = vrot.lane.b32.xlu0 %v2939, 127
        %v2955 = vpop.permute.xlu0 %2954
        %v2964 = vsub.f32 %v2868, %v2941
        %v2965 = vsub.f32 %v2869, %v2943
        %v2966 = vsub.f32 %v2870, %v2945
        %v2967 = vsub.f32 %v2871, %v2947
        %v2968 = vsub.f32 %v2872, %v2949
        %v2969 = vsub.f32 %v2873, %v2951
        %v2970 = vsub.f32 %v2874, %v2953
        %v2971 = vsub.f32 %v2875, %v2955
        %v2972 = vmul.f32 %v954, %v2885
        %v2973 = vmul.f32 %v955, %v2885
        %v2974 = vmul.f32 %v956, %v2885
        %v2975 = vmul.f32 %v957, %v2888
        %v2976 = vmul.f32 %v958, %v2888
        %v2977 = vmul.f32 %v959, %v2888
        %v2978 = vmul.f32 %v960, %v2891
        %v2979 = vmul.f32 %v961, %v2891
        %v2980 = vmul.f32 %v962, %v2891
        %v2981 = vmul.f32 %v963, %v2894
        %v2982 = vmul.f32 %v964, %v2894
        %v2983 = vmul.f32 %v965, %v2894
        %v2996 = vrot.slane %v2972, 2
        %v2997 = vrot.slane %v2973, 2
        %v2998 = vsel %vm2547, %v2996, %v2997
        %v2999 = vrot.slane %v2974, 2
        %v3000 = vsel %vm2547, %v2997, %v2999
        %v3001 = vrot.slane %v2975, 2
        %v3002 = vrot.slane %v2976, 2
        %v3003 = vsel %vm2547, %v3001, %v3002
        %v3004 = vrot.slane %v2977, 2
        %v3005 = vsel %vm2547, %v3002, %v3004
        %v3006 = vrot.slane %v2978, 2
        %v3007 = vrot.slane %v2979, 2
        %v3008 = vsel %vm2547, %v3006, %v3007
        %v3009 = vrot.slane %v2980, 2
        %v3010 = vsel %vm2547, %v3007, %v3009
        %v3011 = vrot.slane %v2981, 2
        %v3012 = vrot.slane %v2982, 2
        %v3013 = vsel %vm2547, %v3011, %v3012
        %v3014 = vrot.slane %v2983, 2
        %v3015 = vsel %vm2547, %v3012, %v3014
        %3016 = vrot.lane.b32.xlu0 %v2998, 127
        %v3017 = vpop.permute.xlu0 %3016
        %3018 = vrot.lane.b32.xlu0 %v3000, 127
        %v3019 = vpop.permute.xlu0 %3018
        %3020 = vrot.lane.b32.xlu0 %v3003, 127
        %v3021 = vpop.permute.xlu0 %3020
        %3022 = vrot.lane.b32.xlu0 %v3005, 127
        %v3023 = vpop.permute.xlu0 %3022
        %3024 = vrot.lane.b32.xlu0 %v3008, 127
        %v3025 = vpop.permute.xlu0 %3024
        %3026 = vrot.lane.b32.xlu0 %v3010, 127
        %v3027 = vpop.permute.xlu0 %3026
        %3028 = vrot.lane.b32.xlu0 %v3013, 127
        %v3029 = vpop.permute.xlu0 %3028
        %3030 = vrot.lane.b32.xlu0 %v3015, 127
        %v3031 = vpop.permute.xlu0 %3030
        %v3040 = vadd.f32 %v2772, %v3017
        %v3041 = vadd.f32 %v2773, %v3019
        %v3042 = vadd.f32 %v2774, %v3021
        %v3043 = vadd.f32 %v2775, %v3023
        %v3044 = vadd.f32 %v2776, %v3025
        %v3045 = vadd.f32 %v2777, %v3027
        %v3046 = vadd.f32 %v2778, %v3029
        %v3047 = vadd.f32 %v2779, %v3031
        %v3048 = vmul.f32 %v966, %v2789
        %v3049 = vmul.f32 %v967, %v2789
        %v3050 = vmul.f32 %v968, %v2789
        %v3051 = vmul.f32 %v969, %v2792
        %v3052 = vmul.f32 %v970, %v2792
        %v3053 = vmul.f32 %v971, %v2792
        %v3054 = vmul.f32 %v972, %v2795
        %v3055 = vmul.f32 %v973, %v2795
        %v3056 = vmul.f32 %v974, %v2795
        %v3057 = vmul.f32 %v975, %v2798
        %v3058 = vmul.f32 %v976, %v2798
        %v3059 = vmul.f32 %v977, %v2798
        %v3072 = vrot.slane %v3048, 2
        %v3073 = vrot.slane %v3049, 2
        %v3074 = vsel %vm2547, %v3072, %v3073
        %v3075 = vrot.slane %v3050, 2
        %v3076 = vsel %vm2547, %v3073, %v3075
        %v3077 = vrot.slane %v3051, 2
        %v3078 = vrot.slane %v3052, 2
        %v3079 = vsel %vm2547, %v3077, %v3078
        %v3080 = vrot.slane %v3053, 2
        %v3081 = vsel %vm2547, %v3078, %v3080
        %v3082 = vrot.slane %v3054, 2
        %v3083 = vrot.slane %v3055, 2
        %v3084 = vsel %vm2547, %v3082, %v3083
        %v3085 = vrot.slane %v3056, 2
        %v3086 = vsel %vm2547, %v3083, %v3085
        %v3087 = vrot.slane %v3057, 2
        %v3088 = vrot.slane %v3058, 2
        %v3089 = vsel %vm2547, %v3087, %v3088
        %v3090 = vrot.slane %v3059, 2
        %v3091 = vsel %vm2547, %v3088, %v3090
        %3092 = vrot.lane.b32.xlu0 %v3074, 127
        %v3093 = vpop.permute.xlu0 %3092
        %3094 = vrot.lane.b32.xlu0 %v3076, 127
        %v3095 = vpop.permute.xlu0 %3094
        %3096 = vrot.lane.b32.xlu0 %v3079, 127
        %v3097 = vpop.permute.xlu0 %3096
        %3098 = vrot.lane.b32.xlu0 %v3081, 127
        %v3099 = vpop.permute.xlu0 %3098
        %3100 = vrot.lane.b32.xlu0 %v3084, 127
        %v3101 = vpop.permute.xlu0 %3100
        %3102 = vrot.lane.b32.xlu0 %v3086, 127
        %v3103 = vpop.permute.xlu0 %3102
        %3104 = vrot.lane.b32.xlu0 %v3089, 127
        %v3105 = vpop.permute.xlu0 %3104
        %3106 = vrot.lane.b32.xlu0 %v3091, 127
        %v3107 = vpop.permute.xlu0 %3106
        %v3116 = vadd.f32 %v3040, %v3093
        %v3117 = vadd.f32 %v3041, %v3095
        %v3118 = vadd.f32 %v3042, %v3097
        %v3119 = vadd.f32 %v3043, %v3099
        %v3120 = vadd.f32 %v3044, %v3101
        %v3121 = vadd.f32 %v3045, %v3103
        %v3122 = vadd.f32 %v3046, %v3105
        %v3123 = vadd.f32 %v3047, %v3107
        %3124 = vrot.lane.b32.xlu0 %v2507, 126
        %v3125 = vpop.permute.xlu0 %3124
        %3126 = vrot.lane.b32.xlu0 %v2508, 126
        %v3127 = vpop.permute.xlu0 %3126
        %3128 = vrot.lane.b32.xlu0 %v2509, 126
        %v3129 = vpop.permute.xlu0 %3128
        %3130 = vrot.lane.b32.xlu0 %v2510, 126
        %v3131 = vpop.permute.xlu0 %3130
        %s3132 = vtos %v3125
        %v3133 = vstv %s3132
        %s3135 = vtos %v3127
        %v3136 = vstv %s3135
        %s3138 = vtos %v3129
        %v3139 = vstv %s3138
        %s3141 = vtos %v3131
        %v3142 = vstv %s3141
        %v3144 = vmul.f32 %v954, %v3133
        %v3145 = vmul.f32 %v955, %v3133
        %v3146 = vmul.f32 %v956, %v3133
        %v3147 = vmul.f32 %v957, %v3136
        %v3148 = vmul.f32 %v958, %v3136
        %v3149 = vmul.f32 %v959, %v3136
        %v3150 = vmul.f32 %v960, %v3139
        %v3151 = vmul.f32 %v961, %v3139
        %v3152 = vmul.f32 %v962, %v3139
        %v3153 = vmul.f32 %v963, %v3142
        %v3154 = vmul.f32 %v964, %v3142
        %v3155 = vmul.f32 %v965, %v3142
        %v3168 = vrot.slane %v3144, 2
        %v3169 = vrot.slane %v3145, 2
        %v3170 = vsel %vm2547, %v3168, %v3169
        %v3171 = vrot.slane %v3146, 2
        %v3172 = vsel %vm2547, %v3169, %v3171
        %v3173 = vrot.slane %v3147, 2
        %v3174 = vrot.slane %v3148, 2
        %v3175 = vsel %vm2547, %v3173, %v3174
        %v3176 = vrot.slane %v3149, 2
        %v3177 = vsel %vm2547, %v3174, %v3176
        %v3178 = vrot.slane %v3150, 2
        %v3179 = vrot.slane %v3151, 2
        %v3180 = vsel %vm2547, %v3178, %v3179
        %v3181 = vrot.slane %v3152, 2
        %v3182 = vsel %vm2547, %v3179, %v3181
        %v3183 = vrot.slane %v3153, 2
        %v3184 = vrot.slane %v3154, 2
        %v3185 = vsel %vm2547, %v3183, %v3184
        %v3186 = vrot.slane %v3155, 2
        %v3187 = vsel %vm2547, %v3184, %v3186
        %3188 = vrot.lane.b32.xlu0 %v3170, 126
        %v3189 = vpop.permute.xlu0 %3188
        %3190 = vrot.lane.b32.xlu0 %v3172, 126
        %v3191 = vpop.permute.xlu0 %3190
        %3192 = vrot.lane.b32.xlu0 %v3175, 126
        %v3193 = vpop.permute.xlu0 %3192
        %3194 = vrot.lane.b32.xlu0 %v3177, 126
        %v3195 = vpop.permute.xlu0 %3194
        %3196 = vrot.lane.b32.xlu0 %v3180, 126
        %v3197 = vpop.permute.xlu0 %3196
        %3198 = vrot.lane.b32.xlu0 %v3182, 126
        %v3199 = vpop.permute.xlu0 %3198
        %3200 = vrot.lane.b32.xlu0 %v3185, 126
        %v3201 = vpop.permute.xlu0 %3200
        %3202 = vrot.lane.b32.xlu0 %v3187, 126
        %v3203 = vpop.permute.xlu0 %3202
        %v3212 = vadd.f32 %v2964, %v3189
        %v3213 = vadd.f32 %v2965, %v3191
        %v3214 = vadd.f32 %v2966, %v3193
        %v3215 = vadd.f32 %v2967, %v3195
        %v3216 = vadd.f32 %v2968, %v3197
        %v3217 = vadd.f32 %v2969, %v3199
        %v3218 = vadd.f32 %v2970, %v3201
        %v3219 = vadd.f32 %v2971, %v3203
        %3220 = vrot.lane.b32.xlu0 %v2584, 126
        %v3221 = vpop.permute.xlu0 %3220
        %3222 = vrot.lane.b32.xlu0 %v2585, 126
        %v3223 = vpop.permute.xlu0 %3222
        %3224 = vrot.lane.b32.xlu0 %v2586, 126
        %v3225 = vpop.permute.xlu0 %3224
        %3226 = vrot.lane.b32.xlu0 %v2587, 126
        %v3227 = vpop.permute.xlu0 %3226
        %s3228 = vtos %v3221
        %v3229 = vstv %s3228
        %s3231 = vtos %v3223
        %v3232 = vstv %s3231
        %s3234 = vtos %v3225
        %v3235 = vstv %s3234
        %s3237 = vtos %v3227
        %v3238 = vstv %s3237
        %v3240 = vmul.f32 %v966, %v3229
        %v3241 = vmul.f32 %v967, %v3229
        %v3242 = vmul.f32 %v968, %v3229
        %v3243 = vmul.f32 %v969, %v3232
        %v3244 = vmul.f32 %v970, %v3232
        %v3245 = vmul.f32 %v971, %v3232
        %v3246 = vmul.f32 %v972, %v3235
        %v3247 = vmul.f32 %v973, %v3235
        %v3248 = vmul.f32 %v974, %v3235
        %v3249 = vmul.f32 %v975, %v3238
        %v3250 = vmul.f32 %v976, %v3238
        %v3251 = vmul.f32 %v977, %v3238
        %v3264 = vrot.slane %v3240, 2
        %v3265 = vrot.slane %v3241, 2
        %v3266 = vsel %vm2547, %v3264, %v3265
        %v3267 = vrot.slane %v3242, 2
        %v3268 = vsel %vm2547, %v3265, %v3267
        %v3269 = vrot.slane %v3243, 2
        %v3270 = vrot.slane %v3244, 2
        %v3271 = vsel %vm2547, %v3269, %v3270
        %v3272 = vrot.slane %v3245, 2
        %v3273 = vsel %vm2547, %v3270, %v3272
        %v3274 = vrot.slane %v3246, 2
        %v3275 = vrot.slane %v3247, 2
        %v3276 = vsel %vm2547, %v3274, %v3275
        %v3277 = vrot.slane %v3248, 2
        %v3278 = vsel %vm2547, %v3275, %v3277
        %v3279 = vrot.slane %v3249, 2
        %v3280 = vrot.slane %v3250, 2
        %v3281 = vsel %vm2547, %v3279, %v3280
        %v3282 = vrot.slane %v3251, 2
        %v3283 = vsel %vm2547, %v3280, %v3282
        %3284 = vrot.lane.b32.xlu0 %v3266, 126
        %v3285 = vpop.permute.xlu0 %3284
        %3286 = vrot.lane.b32.xlu0 %v3268, 126
        %v3287 = vpop.permute.xlu0 %3286
        %3288 = vrot.lane.b32.xlu0 %v3271, 126
        %v3289 = vpop.permute.xlu0 %3288
        %3290 = vrot.lane.b32.xlu0 %v3273, 126
        %v3291 = vpop.permute.xlu0 %3290
        %3292 = vrot.lane.b32.xlu0 %v3276, 126
        %v3293 = vpop.permute.xlu0 %3292
        %3294 = vrot.lane.b32.xlu0 %v3278, 126
        %v3295 = vpop.permute.xlu0 %3294
        %3296 = vrot.lane.b32.xlu0 %v3281, 126
        %v3297 = vpop.permute.xlu0 %3296
        %3298 = vrot.lane.b32.xlu0 %v3283, 126
        %v3299 = vpop.permute.xlu0 %3298
        %v3308 = vsub.f32 %v3212, %v3285
        %v3309 = vsub.f32 %v3213, %v3287
        %v3310 = vsub.f32 %v3214, %v3289
        %v3311 = vsub.f32 %v3215, %v3291
        %v3312 = vsub.f32 %v3216, %v3293
        %v3313 = vsub.f32 %v3217, %v3295
        %v3314 = vsub.f32 %v3218, %v3297
        %v3315 = vsub.f32 %v3219, %v3299
        %v3316 = vmul.f32 %v954, %v3229
        %v3317 = vmul.f32 %v955, %v3229
        %v3318 = vmul.f32 %v956, %v3229
        %v3319 = vmul.f32 %v957, %v3232
        %v3320 = vmul.f32 %v958, %v3232
        %v3321 = vmul.f32 %v959, %v3232
        %v3322 = vmul.f32 %v960, %v3235
        %v3323 = vmul.f32 %v961, %v3235
        %v3324 = vmul.f32 %v962, %v3235
        %v3325 = vmul.f32 %v963, %v3238
        %v3326 = vmul.f32 %v964, %v3238
        %v3327 = vmul.f32 %v965, %v3238
        %v3340 = vrot.slane %v3316, 2
        %v3341 = vrot.slane %v3317, 2
        %v3342 = vsel %vm2547, %v3340, %v3341
        %v3343 = vrot.slane %v3318, 2
        %v3344 = vsel %vm2547, %v3341, %v3343
        %v3345 = vrot.slane %v3319, 2
        %v3346 = vrot.slane %v3320, 2
        %v3347 = vsel %vm2547, %v3345, %v3346
        %v3348 = vrot.slane %v3321, 2
        %v3349 = vsel %vm2547, %v3346, %v3348
        %v3350 = vrot.slane %v3322, 2
        %v3351 = vrot.slane %v3323, 2
        %v3352 = vsel %vm2547, %v3350, %v3351
        %v3353 = vrot.slane %v3324, 2
        %v3354 = vsel %vm2547, %v3351, %v3353
        %v3355 = vrot.slane %v3325, 2
        %v3356 = vrot.slane %v3326, 2
        %v3357 = vsel %vm2547, %v3355, %v3356
        %v3358 = vrot.slane %v3327, 2
        %v3359 = vsel %vm2547, %v3356, %v3358
        %3360 = vrot.lane.b32.xlu0 %v3342, 126
        %v3361 = vpop.permute.xlu0 %3360
        %3362 = vrot.lane.b32.xlu0 %v3344, 126
        %v3363 = vpop.permute.xlu0 %3362
        %3364 = vrot.lane.b32.xlu0 %v3347, 126
        %v3365 = vpop.permute.xlu0 %3364
        %3366 = vrot.lane.b32.xlu0 %v3349, 126
        %v3367 = vpop.permute.xlu0 %3366
        %3368 = vrot.lane.b32.xlu0 %v3352, 126
        %v3369 = vpop.permute.xlu0 %3368
        %3370 = vrot.lane.b32.xlu0 %v3354, 126
        %v3371 = vpop.permute.xlu0 %3370
        %3372 = vrot.lane.b32.xlu0 %v3357, 126
        %v3373 = vpop.permute.xlu0 %3372
        %3374 = vrot.lane.b32.xlu0 %v3359, 126
        %v3375 = vpop.permute.xlu0 %3374
        %v3384 = vadd.f32 %v3116, %v3361
        %v3385 = vadd.f32 %v3117, %v3363
        %v3386 = vadd.f32 %v3118, %v3365
        %v3387 = vadd.f32 %v3119, %v3367
        %v3388 = vadd.f32 %v3120, %v3369
        %v3389 = vadd.f32 %v3121, %v3371
        %v3390 = vadd.f32 %v3122, %v3373
        %v3391 = vadd.f32 %v3123, %v3375
        %v3392 = vmul.f32 %v966, %v3133
        %v3393 = vmul.f32 %v967, %v3133
        %v3394 = vmul.f32 %v968, %v3133
        %v3395 = vmul.f32 %v969, %v3136
        %v3396 = vmul.f32 %v970, %v3136
        %v3397 = vmul.f32 %v971, %v3136
        %v3398 = vmul.f32 %v972, %v3139
        %v3399 = vmul.f32 %v973, %v3139
        %v3400 = vmul.f32 %v974, %v3139
        %v3401 = vmul.f32 %v975, %v3142
        %v3402 = vmul.f32 %v976, %v3142
        %v3403 = vmul.f32 %v977, %v3142
        %v3416 = vrot.slane %v3392, 2
        %v3417 = vrot.slane %v3393, 2
        %v3418 = vsel %vm2547, %v3416, %v3417
        %v3419 = vrot.slane %v3394, 2
        %v3420 = vsel %vm2547, %v3417, %v3419
        %v3421 = vrot.slane %v3395, 2
        %v3422 = vrot.slane %v3396, 2
        %v3423 = vsel %vm2547, %v3421, %v3422
        %v3424 = vrot.slane %v3397, 2
        %v3425 = vsel %vm2547, %v3422, %v3424
        %v3426 = vrot.slane %v3398, 2
        %v3427 = vrot.slane %v3399, 2
        %v3428 = vsel %vm2547, %v3426, %v3427
        %v3429 = vrot.slane %v3400, 2
        %v3430 = vsel %vm2547, %v3427, %v3429
        %v3431 = vrot.slane %v3401, 2
        %v3432 = vrot.slane %v3402, 2
        %v3433 = vsel %vm2547, %v3431, %v3432
        %v3434 = vrot.slane %v3403, 2
        %v3435 = vsel %vm2547, %v3432, %v3434
        %3436 = vrot.lane.b32.xlu0 %v3418, 126
        %v3437 = vpop.permute.xlu0 %3436
        %3438 = vrot.lane.b32.xlu0 %v3420, 126
        %v3439 = vpop.permute.xlu0 %3438
        %3440 = vrot.lane.b32.xlu0 %v3423, 126
        %v3441 = vpop.permute.xlu0 %3440
        %3442 = vrot.lane.b32.xlu0 %v3425, 126
        %v3443 = vpop.permute.xlu0 %3442
        %3444 = vrot.lane.b32.xlu0 %v3428, 126
        %v3445 = vpop.permute.xlu0 %3444
        %3446 = vrot.lane.b32.xlu0 %v3430, 126
        %v3447 = vpop.permute.xlu0 %3446
        %3448 = vrot.lane.b32.xlu0 %v3433, 126
        %v3449 = vpop.permute.xlu0 %3448
        %3450 = vrot.lane.b32.xlu0 %v3435, 126
        %v3451 = vpop.permute.xlu0 %3450
        %v3460 = vadd.f32 %v3384, %v3437
        %v3461 = vadd.f32 %v3385, %v3439
        %v3462 = vadd.f32 %v3386, %v3441
        %v3463 = vadd.f32 %v3387, %v3443
        %v3464 = vadd.f32 %v3388, %v3445
        %v3465 = vadd.f32 %v3389, %v3447
        %v3466 = vadd.f32 %v3390, %v3449
        %v3467 = vadd.f32 %v3391, %v3451
        %s3468 = sld [smem:[#allocation6]]
        %s3469 = sld [smem:[#allocation8]]
        %v3470 = vstv %s3468
        %v3471 = vmul.f32 %v3308, %v3470
        %v3472 = vmul.f32 %v3309, %v3470
        %v3473 = vadd.f32 %v3471, 0.0
        %v3474 = vadd.f32 %v3472, 0.0
        %v3475 = vstv %s3469
        %v3476 = vmul.f32 %v3460, %v3475
        %v3477 = vmul.f32 %v3461, %v3475
        %v3478 = vsub.f32 %v3473, %v3476
        %v3479 = vsub.f32 %v3474, %v3477
        %v3480 = vmul.f32 %v3308, %v3475
        %v3481 = vmul.f32 %v3309, %v3475
        %v3482 = vadd.f32 %v3480, 0.0
        %v3483 = vadd.f32 %v3481, 0.0
        %v3484 = vmul.f32 %v3460, %v3470
        %v3485 = vmul.f32 %v3461, %v3470
        %v3486 = vadd.f32 %v3482, %v3484
        %v3487 = vadd.f32 %v3483, %v3485
        %s3488 = sld [smem:[#allocation6 + $0x80]]
        %s3489 = sld [smem:[#allocation8 + $0x80]]
        %v3490 = vstv %s3488
        %v3491 = vmul.f32 %v3310, %v3490
        %v3492 = vmul.f32 %v3311, %v3490
        %v3493 = vadd.f32 %v3478, %v3491
        %v3494 = vadd.f32 %v3479, %v3492
        %v3495 = vstv %s3489
        %v3496 = vmul.f32 %v3462, %v3495
        %v3497 = vmul.f32 %v3463, %v3495
        %v3498 = vsub.f32 %v3493, %v3496
        %v3499 = vsub.f32 %v3494, %v3497
        %v3500 = vmul.f32 %v3310, %v3495
        %v3501 = vmul.f32 %v3311, %v3495
        %v3502 = vadd.f32 %v3486, %v3500
        %v3503 = vadd.f32 %v3487, %v3501
        %v3504 = vmul.f32 %v3462, %v3490
        %v3505 = vmul.f32 %v3463, %v3490
        %v3506 = vadd.f32 %v3502, %v3504
        %v3507 = vadd.f32 %v3503, %v3505
        %s3508 = sld [smem:[#allocation6 + $0x100]]
        %s3509 = sld [smem:[#allocation8 + $0x100]]
        %v3510 = vstv %s3508
        %v3511 = vmul.f32 %v3312, %v3510
        %v3512 = vmul.f32 %v3313, %v3510
        %v3513 = vadd.f32 %v3498, %v3511
        %v3514 = vadd.f32 %v3499, %v3512
        %v3515 = vstv %s3509
        %v3516 = vmul.f32 %v3464, %v3515
        %v3517 = vmul.f32 %v3465, %v3515
        %v3518 = vsub.f32 %v3513, %v3516
        %v3519 = vsub.f32 %v3514, %v3517
        %v3520 = vmul.f32 %v3312, %v3515
        %v3521 = vmul.f32 %v3313, %v3515
        %v3522 = vadd.f32 %v3506, %v3520
        %v3523 = vadd.f32 %v3507, %v3521
        %v3524 = vmul.f32 %v3464, %v3510
        %v3525 = vmul.f32 %v3465, %v3510
        %v3526 = vadd.f32 %v3522, %v3524
        %v3527 = vadd.f32 %v3523, %v3525
        %s3528 = sld [smem:[#allocation6 + $0x180]]
        %s3529 = sld [smem:[#allocation8 + $0x180]]
        %v3530 = vstv %s3528
        %v3531 = vmul.f32 %v3314, %v3530
        %v3532 = vmul.f32 %v3315, %v3530
        %v3533 = vadd.f32 %v3518, %v3531
        %v3534 = vadd.f32 %v3519, %v3532
        %v3535 = vstv %s3529
        %v3536 = vmul.f32 %v3466, %v3535
        %v3537 = vmul.f32 %v3467, %v3535
        %v3538 = vsub.f32 %v3533, %v3536
        %v3539 = vsub.f32 %v3534, %v3537
        %v3540 = vmul.f32 %v3314, %v3535
        %v3541 = vmul.f32 %v3315, %v3535
        %v3542 = vadd.f32 %v3526, %v3540
        %v3543 = vadd.f32 %v3527, %v3541
        %v3544 = vmul.f32 %v3466, %v3530
        %v3545 = vmul.f32 %v3467, %v3530
        %v3546 = vadd.f32 %v3542, %v3544
        %v3547 = vadd.f32 %v3543, %v3545
        %s3548 = sld [smem:[#allocation6 + $0x1]]
        %s3549 = sld [smem:[#allocation8 + $0x1]]
        %v3550 = vstv %s3548
        %v3551 = vmul.f32 %v3308, %v3550
        %v3552 = vmul.f32 %v3309, %v3550
        %v3553 = vadd.f32 %v3551, 0.0
        %v3554 = vadd.f32 %v3552, 0.0
        %v3555 = vstv %s3549
        %v3556 = vmul.f32 %v3460, %v3555
        %v3557 = vmul.f32 %v3461, %v3555
        %v3558 = vsub.f32 %v3553, %v3556
        %v3559 = vsub.f32 %v3554, %v3557
        %v3560 = vmul.f32 %v3308, %v3555
        %v3561 = vmul.f32 %v3309, %v3555
        %v3562 = vadd.f32 %v3560, 0.0
        %v3563 = vadd.f32 %v3561, 0.0
        %v3564 = vmul.f32 %v3460, %v3550
        %v3565 = vmul.f32 %v3461, %v3550
        %v3566 = vadd.f32 %v3562, %v3564
        %v3567 = vadd.f32 %v3563, %v3565
        %s3568 = sld [smem:[#allocation6 + $0x81]]
        %s3569 = sld [smem:[#allocation8 + $0x81]]
        %v3570 = vstv %s3568
        %v3571 = vmul.f32 %v3310, %v3570
        %v3572 = vmul.f32 %v3311, %v3570
        %v3573 = vadd.f32 %v3558, %v3571
        %v3574 = vadd.f32 %v3559, %v3572
        %v3575 = vstv %s3569
        %v3576 = vmul.f32 %v3462, %v3575
        %v3577 = vmul.f32 %v3463, %v3575
        %v3578 = vsub.f32 %v3573, %v3576
        %v3579 = vsub.f32 %v3574, %v3577
        %v3580 = vmul.f32 %v3310, %v3575
        %v3581 = vmul.f32 %v3311, %v3575
        %v3582 = vadd.f32 %v3566, %v3580
        %v3583 = vadd.f32 %v3567, %v3581
        %v3584 = vmul.f32 %v3462, %v3570
        %v3585 = vmul.f32 %v3463, %v3570
        %v3586 = vadd.f32 %v3582, %v3584
        %v3587 = vadd.f32 %v3583, %v3585
        %s3588 = sld [smem:[#allocation6 + $0x101]]
        %s3589 = sld [smem:[#allocation8 + $0x101]]
        %v3590 = vstv %s3588
        %v3591 = vmul.f32 %v3312, %v3590
        %v3592 = vmul.f32 %v3313, %v3590
        %v3593 = vadd.f32 %v3578, %v3591
        %v3594 = vadd.f32 %v3579, %v3592
        %v3595 = vstv %s3589
        %v3596 = vmul.f32 %v3464, %v3595
        %v3597 = vmul.f32 %v3465, %v3595
        %v3598 = vsub.f32 %v3593, %v3596
        %v3599 = vsub.f32 %v3594, %v3597
        %v3600 = vmul.f32 %v3312, %v3595
        %v3601 = vmul.f32 %v3313, %v3595
        %v3602 = vadd.f32 %v3586, %v3600
        %v3603 = vadd.f32 %v3587, %v3601
        %v3604 = vmul.f32 %v3464, %v3590
        %v3605 = vmul.f32 %v3465, %v3590
        %v3606 = vadd.f32 %v3602, %v3604
        %v3607 = vadd.f32 %v3603, %v3605
        %s3608 = sld [smem:[#allocation6 + $0x181]]
        %s3609 = sld [smem:[#allocation8 + $0x181]]
        %v3610 = vstv %s3608
        %v3611 = vmul.f32 %v3314, %v3610
        %v3612 = vmul.f32 %v3315, %v3610
        %v3613 = vadd.f32 %v3598, %v3611
        %v3614 = vadd.f32 %v3599, %v3612
        %v3615 = vstv %s3609
        %v3616 = vmul.f32 %v3466, %v3615
        %v3617 = vmul.f32 %v3467, %v3615
        %v3618 = vsub.f32 %v3613, %v3616
        %v3619 = vsub.f32 %v3614, %v3617
        %v3620 = vmul.f32 %v3314, %v3615
        %v3621 = vmul.f32 %v3315, %v3615
        %v3622 = vadd.f32 %v3606, %v3620
        %v3623 = vadd.f32 %v3607, %v3621
        %v3624 = vmul.f32 %v3466, %v3610
        %v3625 = vmul.f32 %v3467, %v3610
        %v3626 = vadd.f32 %v3622, %v3624
        %v3627 = vadd.f32 %v3623, %v3625
        %s3628 = sld [smem:[#allocation6 + $0x2]]
        %s3629 = sld [smem:[#allocation8 + $0x2]]
        %v3630 = vstv %s3628
        %v3631 = vmul.f32 %v3308, %v3630
        %v3632 = vmul.f32 %v3309, %v3630
        %v3633 = vadd.f32 %v3631, 0.0
        %v3634 = vadd.f32 %v3632, 0.0
        %v3635 = vstv %s3629
        %v3636 = vmul.f32 %v3460, %v3635
        %v3637 = vmul.f32 %v3461, %v3635
        %v3638 = vsub.f32 %v3633, %v3636
        %v3639 = vsub.f32 %v3634, %v3637
        %v3640 = vmul.f32 %v3308, %v3635
        %v3641 = vmul.f32 %v3309, %v3635
        %v3642 = vadd.f32 %v3640, 0.0
        %v3643 = vadd.f32 %v3641, 0.0
        %v3644 = vmul.f32 %v3460, %v3630
        %v3645 = vmul.f32 %v3461, %v3630
        %v3646 = vadd.f32 %v3642, %v3644
        %v3647 = vadd.f32 %v3643, %v3645
        %s3648 = sld [smem:[#allocation6 + $0x82]]
        %s3649 = sld [smem:[#allocation8 + $0x82]]
        %v3650 = vstv %s3648
        %v3651 = vmul.f32 %v3310, %v3650
        %v3652 = vmul.f32 %v3311, %v3650
        %v3653 = vadd.f32 %v3638, %v3651
        %v3654 = vadd.f32 %v3639, %v3652
        %v3655 = vstv %s3649
        %v3656 = vmul.f32 %v3462, %v3655
        %v3657 = vmul.f32 %v3463, %v3655
        %v3658 = vsub.f32 %v3653, %v3656
        %v3659 = vsub.f32 %v3654, %v3657
        %v3660 = vmul.f32 %v3310, %v3655
        %v3661 = vmul.f32 %v3311, %v3655
        %v3662 = vadd.f32 %v3646, %v3660
        %v3663 = vadd.f32 %v3647, %v3661
        %v3664 = vmul.f32 %v3462, %v3650
        %v3665 = vmul.f32 %v3463, %v3650
        %v3666 = vadd.f32 %v3662, %v3664
        %v3667 = vadd.f32 %v3663, %v3665
        %s3668 = sld [smem:[#allocation6 + $0x102]]
        %s3669 = sld [smem:[#allocation8 + $0x102]]
        %v3670 = vstv %s3668
        %v3671 = vmul.f32 %v3312, %v3670
        %v3672 = vmul.f32 %v3313, %v3670
        %v3673 = vadd.f32 %v3658, %v3671
        %v3674 = vadd.f32 %v3659, %v3672
        %v3675 = vstv %s3669
        %v3676 = vmul.f32 %v3464, %v3675
        %v3677 = vmul.f32 %v3465, %v3675
        %v3678 = vsub.f32 %v3673, %v3676
        %v3679 = vsub.f32 %v3674, %v3677
        %v3680 = vmul.f32 %v3312, %v3675
        %v3681 = vmul.f32 %v3313, %v3675
        %v3682 = vadd.f32 %v3666, %v3680
        %v3683 = vadd.f32 %v3667, %v3681
        %v3684 = vmul.f32 %v3464, %v3670
        %v3685 = vmul.f32 %v3465, %v3670
        %v3686 = vadd.f32 %v3682, %v3684
        %v3687 = vadd.f32 %v3683, %v3685
        %s3688 = sld [smem:[#allocation6 + $0x182]]
        %s3689 = sld [smem:[#allocation8 + $0x182]]
        %v3690 = vstv %s3688
        %v3691 = vmul.f32 %v3314, %v3690
        %v3692 = vmul.f32 %v3315, %v3690
        %v3693 = vadd.f32 %v3678, %v3691
        %v3694 = vadd.f32 %v3679, %v3692
        %v3695 = vstv %s3689
        %v3696 = vmul.f32 %v3466, %v3695
        %v3697 = vmul.f32 %v3467, %v3695
        %v3698 = vsub.f32 %v3693, %v3696
        %v3699 = vsub.f32 %v3694, %v3697
        %v3700 = vmul.f32 %v3314, %v3695
        %v3701 = vmul.f32 %v3315, %v3695
        %v3702 = vadd.f32 %v3686, %v3700
        %v3703 = vadd.f32 %v3687, %v3701
        %v3704 = vmul.f32 %v3466, %v3690
        %v3705 = vmul.f32 %v3467, %v3690
        %v3706 = vadd.f32 %v3702, %v3704
        %v3707 = vadd.f32 %v3703, %v3705
        %s3708 = sld [smem:[#allocation6 + $0x3]]
        %s3709 = sld [smem:[#allocation8 + $0x3]]
        %v3710 = vstv %s3708
        %v3711 = vmul.f32 %v3308, %v3710
        %v3712 = vmul.f32 %v3309, %v3710
        %v3713 = vadd.f32 %v3711, 0.0
        %v3714 = vadd.f32 %v3712, 0.0
        %v3715 = vstv %s3709
        %v3716 = vmul.f32 %v3460, %v3715
        %v3717 = vmul.f32 %v3461, %v3715
        %v3718 = vsub.f32 %v3713, %v3716
        %v3719 = vsub.f32 %v3714, %v3717
        %v3720 = vmul.f32 %v3308, %v3715
        %v3721 = vmul.f32 %v3309, %v3715
        %v3722 = vadd.f32 %v3720, 0.0
        %v3723 = vadd.f32 %v3721, 0.0
        %v3724 = vmul.f32 %v3460, %v3710
        %v3725 = vmul.f32 %v3461, %v3710
        %v3726 = vadd.f32 %v3722, %v3724
        %v3727 = vadd.f32 %v3723, %v3725
        %s3728 = sld [smem:[#allocation6 + $0x83]]
        %s3729 = sld [smem:[#allocation8 + $0x83]]
        %v3730 = vstv %s3728
        %v3731 = vmul.f32 %v3310, %v3730
        %v3732 = vmul.f32 %v3311, %v3730
        %v3733 = vadd.f32 %v3718, %v3731
        %v3734 = vadd.f32 %v3719, %v3732
        %v3735 = vstv %s3729
        %v3736 = vmul.f32 %v3462, %v3735
        %v3737 = vmul.f32 %v3463, %v3735
        %v3738 = vsub.f32 %v3733, %v3736
        %v3739 = vsub.f32 %v3734, %v3737
        %v3740 = vmul.f32 %v3310, %v3735
        %v3741 = vmul.f32 %v3311, %v3735
        %v3742 = vadd.f32 %v3726, %v3740
        %v3743 = vadd.f32 %v3727, %v3741
        %v3744 = vmul.f32 %v3462, %v3730
        %v3745 = vmul.f32 %v3463, %v3730
        %v3746 = vadd.f32 %v3742, %v3744
        %v3747 = vadd.f32 %v3743, %v3745
        %s3748 = sld [smem:[#allocation6 + $0x103]]
        %s3749 = sld [smem:[#allocation8 + $0x103]]
        %v3750 = vstv %s3748
        %v3751 = vmul.f32 %v3312, %v3750
        %v3752 = vmul.f32 %v3313, %v3750
        %v3753 = vadd.f32 %v3738, %v3751
        %v3754 = vadd.f32 %v3739, %v3752
        %v3755 = vstv %s3749
        %v3756 = vmul.f32 %v3464, %v3755
        %v3757 = vmul.f32 %v3465, %v3755
        %v3758 = vsub.f32 %v3753, %v3756
        %v3759 = vsub.f32 %v3754, %v3757
        %v3760 = vmul.f32 %v3312, %v3755
        %v3761 = vmul.f32 %v3313, %v3755
        %v3762 = vadd.f32 %v3746, %v3760
        %v3763 = vadd.f32 %v3747, %v3761
        %v3764 = vmul.f32 %v3464, %v3750
        %v3765 = vmul.f32 %v3465, %v3750
        %v3766 = vadd.f32 %v3762, %v3764
        %v3767 = vadd.f32 %v3763, %v3765
        %s3768 = sld [smem:[#allocation6 + $0x183]]
        %s3769 = sld [smem:[#allocation8 + $0x183]]
        %v3770 = vstv %s3768
        %v3771 = vmul.f32 %v3314, %v3770
        %v3772 = vmul.f32 %v3315, %v3770
        %v3773 = vadd.f32 %v3758, %v3771
        %v3774 = vadd.f32 %v3759, %v3772
        %v3775 = vstv %s3769
        %v3776 = vmul.f32 %v3466, %v3775
        %v3777 = vmul.f32 %v3467, %v3775
        %v3778 = vsub.f32 %v3773, %v3776
        %v3779 = vsub.f32 %v3774, %v3777
        %v3780 = vmul.f32 %v3314, %v3775
        %v3781 = vmul.f32 %v3315, %v3775
        %v3782 = vadd.f32 %v3766, %v3780
        %v3783 = vadd.f32 %v3767, %v3781
        %v3784 = vmul.f32 %v3466, %v3770
        %v3785 = vmul.f32 %v3467, %v3770
        %v3786 = vadd.f32 %v3782, %v3784
        %v3787 = vadd.f32 %v3783, %v3785
        %s3788 = sld [smem:[#allocation6 + $0x4]]
        %s3789 = sld [smem:[#allocation8 + $0x4]]
        %v3790 = vstv %s3788
        %v3791 = vmul.f32 %v3308, %v3790
        %v3792 = vmul.f32 %v3309, %v3790
        %v3793 = vadd.f32 %v3791, 0.0
        %v3794 = vadd.f32 %v3792, 0.0
        %v3795 = vstv %s3789
        %v3796 = vmul.f32 %v3460, %v3795
        %v3797 = vmul.f32 %v3461, %v3795
        %v3798 = vsub.f32 %v3793, %v3796
        %v3799 = vsub.f32 %v3794, %v3797
        %v3800 = vmul.f32 %v3308, %v3795
        %v3801 = vmul.f32 %v3309, %v3795
        %v3802 = vadd.f32 %v3800, 0.0
        %v3803 = vadd.f32 %v3801, 0.0
        %v3804 = vmul.f32 %v3460, %v3790
        %v3805 = vmul.f32 %v3461, %v3790
        %v3806 = vadd.f32 %v3802, %v3804
        %v3807 = vadd.f32 %v3803, %v3805
        %s3808 = sld [smem:[#allocation6 + $0x84]]
        %s3809 = sld [smem:[#allocation8 + $0x84]]
        %v3810 = vstv %s3808
        %v3811 = vmul.f32 %v3310, %v3810
        %v3812 = vmul.f32 %v3311, %v3810
        %v3813 = vadd.f32 %v3798, %v3811
        %v3814 = vadd.f32 %v3799, %v3812
        %v3815 = vstv %s3809
        %v3816 = vmul.f32 %v3462, %v3815
        %v3817 = vmul.f32 %v3463, %v3815
        %v3818 = vsub.f32 %v3813, %v3816
        %v3819 = vsub.f32 %v3814, %v3817
        %v3820 = vmul.f32 %v3310, %v3815
        %v3821 = vmul.f32 %v3311, %v3815
        %v3822 = vadd.f32 %v3806, %v3820
        %v3823 = vadd.f32 %v3807, %v3821
        %v3824 = vmul.f32 %v3462, %v3810
        %v3825 = vmul.f32 %v3463, %v3810
        %v3826 = vadd.f32 %v3822, %v3824
        %v3827 = vadd.f32 %v3823, %v3825
        %s3828 = sld [smem:[#allocation6 + $0x104]]
        %s3829 = sld [smem:[#allocation8 + $0x104]]
        %v3830 = vstv %s3828
        %v3831 = vmul.f32 %v3312, %v3830
        %v3832 = vmul.f32 %v3313, %v3830
        %v3833 = vadd.f32 %v3818, %v3831
        %v3834 = vadd.f32 %v3819, %v3832
        %v3835 = vstv %s3829
        %v3836 = vmul.f32 %v3464, %v3835
        %v3837 = vmul.f32 %v3465, %v3835
        %v3838 = vsub.f32 %v3833, %v3836
        %v3839 = vsub.f32 %v3834, %v3837
        %v3840 = vmul.f32 %v3312, %v3835
        %v3841 = vmul.f32 %v3313, %v3835
        %v3842 = vadd.f32 %v3826, %v3840
        %v3843 = vadd.f32 %v3827, %v3841
        %v3844 = vmul.f32 %v3464, %v3830
        %v3845 = vmul.f32 %v3465, %v3830
        %v3846 = vadd.f32 %v3842, %v3844
        %v3847 = vadd.f32 %v3843, %v3845
        %s3848 = sld [smem:[#allocation6 + $0x184]]
        %s3849 = sld [smem:[#allocation8 + $0x184]]
        %v3850 = vstv %s3848
        %v3851 = vmul.f32 %v3314, %v3850
        %v3852 = vmul.f32 %v3315, %v3850
        %v3853 = vadd.f32 %v3838, %v3851
        %v3854 = vadd.f32 %v3839, %v3852
        %v3855 = vstv %s3849
        %v3856 = vmul.f32 %v3466, %v3855
        %v3857 = vmul.f32 %v3467, %v3855
        %v3858 = vsub.f32 %v3853, %v3856
        %v3859 = vsub.f32 %v3854, %v3857
        %v3860 = vmul.f32 %v3314, %v3855
        %v3861 = vmul.f32 %v3315, %v3855
        %v3862 = vadd.f32 %v3846, %v3860
        %v3863 = vadd.f32 %v3847, %v3861
        %v3864 = vmul.f32 %v3466, %v3850
        %v3865 = vmul.f32 %v3467, %v3850
        %v3866 = vadd.f32 %v3862, %v3864
        %v3867 = vadd.f32 %v3863, %v3865
        %s3868 = sld [smem:[#allocation6 + $0x5]]
        %s3869 = sld [smem:[#allocation8 + $0x5]]
        %v3870 = vstv %s3868
        %v3871 = vmul.f32 %v3308, %v3870
        %v3872 = vmul.f32 %v3309, %v3870
        %v3873 = vadd.f32 %v3871, 0.0
        %v3874 = vadd.f32 %v3872, 0.0
        %v3875 = vstv %s3869
        %v3876 = vmul.f32 %v3460, %v3875
        %v3877 = vmul.f32 %v3461, %v3875
        %v3878 = vsub.f32 %v3873, %v3876
        %v3879 = vsub.f32 %v3874, %v3877
        %v3880 = vmul.f32 %v3308, %v3875
        %v3881 = vmul.f32 %v3309, %v3875
        %v3882 = vadd.f32 %v3880, 0.0
        %v3883 = vadd.f32 %v3881, 0.0
        %v3884 = vmul.f32 %v3460, %v3870
        %v3885 = vmul.f32 %v3461, %v3870
        %v3886 = vadd.f32 %v3882, %v3884
        %v3887 = vadd.f32 %v3883, %v3885
        %s3888 = sld [smem:[#allocation6 + $0x85]]
        %s3889 = sld [smem:[#allocation8 + $0x85]]
        %v3890 = vstv %s3888
        %v3891 = vmul.f32 %v3310, %v3890
        %v3892 = vmul.f32 %v3311, %v3890
        %v3893 = vadd.f32 %v3878, %v3891
        %v3894 = vadd.f32 %v3879, %v3892
        %v3895 = vstv %s3889
        %v3896 = vmul.f32 %v3462, %v3895
        %v3897 = vmul.f32 %v3463, %v3895
        %v3898 = vsub.f32 %v3893, %v3896
        %v3899 = vsub.f32 %v3894, %v3897
        %v3900 = vmul.f32 %v3310, %v3895
        %v3901 = vmul.f32 %v3311, %v3895
        %v3902 = vadd.f32 %v3886, %v3900
        %v3903 = vadd.f32 %v3887, %v3901
        %v3904 = vmul.f32 %v3462, %v3890
        %v3905 = vmul.f32 %v3463, %v3890
        %v3906 = vadd.f32 %v3902, %v3904
        %v3907 = vadd.f32 %v3903, %v3905
        %s3908 = sld [smem:[#allocation6 + $0x105]]
        %s3909 = sld [smem:[#allocation8 + $0x105]]
        %v3910 = vstv %s3908
        %v3911 = vmul.f32 %v3312, %v3910
        %v3912 = vmul.f32 %v3313, %v3910
        %v3913 = vadd.f32 %v3898, %v3911
        %v3914 = vadd.f32 %v3899, %v3912
        %v3915 = vstv %s3909
        %v3916 = vmul.f32 %v3464, %v3915
        %v3917 = vmul.f32 %v3465, %v3915
        %v3918 = vsub.f32 %v3913, %v3916
        %v3919 = vsub.f32 %v3914, %v3917
        %v3920 = vmul.f32 %v3312, %v3915
        %v3921 = vmul.f32 %v3313, %v3915
        %v3922 = vadd.f32 %v3906, %v3920
        %v3923 = vadd.f32 %v3907, %v3921
        %v3924 = vmul.f32 %v3464, %v3910
        %v3925 = vmul.f32 %v3465, %v3910
        %v3926 = vadd.f32 %v3922, %v3924
        %v3927 = vadd.f32 %v3923, %v3925
        %s3928 = sld [smem:[#allocation6 + $0x185]]
        %s3929 = sld [smem:[#allocation8 + $0x185]]
        %v3930 = vstv %s3928
        %v3931 = vmul.f32 %v3314, %v3930
        %v3932 = vmul.f32 %v3315, %v3930
        %v3933 = vadd.f32 %v3918, %v3931
        %v3934 = vadd.f32 %v3919, %v3932
        %v3935 = vstv %s3929
        %v3936 = vmul.f32 %v3466, %v3935
        %v3937 = vmul.f32 %v3467, %v3935
        %v3938 = vsub.f32 %v3933, %v3936
        %v3939 = vsub.f32 %v3934, %v3937
        %v3940 = vmul.f32 %v3314, %v3935
        %v3941 = vmul.f32 %v3315, %v3935
        %v3942 = vadd.f32 %v3926, %v3940
        %v3943 = vadd.f32 %v3927, %v3941
        %v3944 = vmul.f32 %v3466, %v3930
        %v3945 = vmul.f32 %v3467, %v3930
        %v3946 = vadd.f32 %v3942, %v3944
        %v3947 = vadd.f32 %v3943, %v3945
        %s3948 = sld [smem:[#allocation6 + $0x6]]
        %s3949 = sld [smem:[#allocation8 + $0x6]]
        %v3950 = vstv %s3948
        %v3951 = vmul.f32 %v3308, %v3950
        %v3952 = vmul.f32 %v3309, %v3950
        %v3953 = vadd.f32 %v3951, 0.0
        %v3954 = vadd.f32 %v3952, 0.0
        %v3955 = vstv %s3949
        %v3956 = vmul.f32 %v3460, %v3955
        %v3957 = vmul.f32 %v3461, %v3955
        %v3958 = vsub.f32 %v3953, %v3956
        %v3959 = vsub.f32 %v3954, %v3957
        %v3960 = vmul.f32 %v3308, %v3955
        %v3961 = vmul.f32 %v3309, %v3955
        %v3962 = vadd.f32 %v3960, 0.0
        %v3963 = vadd.f32 %v3961, 0.0
        %v3964 = vmul.f32 %v3460, %v3950
        %v3965 = vmul.f32 %v3461, %v3950
        %v3966 = vadd.f32 %v3962, %v3964
        %v3967 = vadd.f32 %v3963, %v3965
        %s3968 = sld [smem:[#allocation6 + $0x86]]
        %s3969 = sld [smem:[#allocation8 + $0x86]]
        %v3970 = vstv %s3968
        %v3971 = vmul.f32 %v3310, %v3970
        %v3972 = vmul.f32 %v3311, %v3970
        %v3973 = vadd.f32 %v3958, %v3971
        %v3974 = vadd.f32 %v3959, %v3972
        %v3975 = vstv %s3969
        %v3976 = vmul.f32 %v3462, %v3975
        %v3977 = vmul.f32 %v3463, %v3975
        %v3978 = vsub.f32 %v3973, %v3976
        %v3979 = vsub.f32 %v3974, %v3977
        %v3980 = vmul.f32 %v3310, %v3975
        %v3981 = vmul.f32 %v3311, %v3975
        %v3982 = vadd.f32 %v3966, %v3980
        %v3983 = vadd.f32 %v3967, %v3981
        %v3984 = vmul.f32 %v3462, %v3970
        %v3985 = vmul.f32 %v3463, %v3970
        %v3986 = vadd.f32 %v3982, %v3984
        %v3987 = vadd.f32 %v3983, %v3985
        %s3988 = sld [smem:[#allocation6 + $0x106]]
        %s3989 = sld [smem:[#allocation8 + $0x106]]
        %v3990 = vstv %s3988
        %v3991 = vmul.f32 %v3312, %v3990
        %v3992 = vmul.f32 %v3313, %v3990
        %v3993 = vadd.f32 %v3978, %v3991
        %v3994 = vadd.f32 %v3979, %v3992
        %v3995 = vstv %s3989
        %v3996 = vmul.f32 %v3464, %v3995
        %v3997 = vmul.f32 %v3465, %v3995
        %v3998 = vsub.f32 %v3993, %v3996
        %v3999 = vsub.f32 %v3994, %v3997
        %v4000 = vmul.f32 %v3312, %v3995
        %v4001 = vmul.f32 %v3313, %v3995
        %v4002 = vadd.f32 %v3986, %v4000
        %v4003 = vadd.f32 %v3987, %v4001
        %v4004 = vmul.f32 %v3464, %v3990
        %v4005 = vmul.f32 %v3465, %v3990
        %v4006 = vadd.f32 %v4002, %v4004
        %v4007 = vadd.f32 %v4003, %v4005
        %s4008 = sld [smem:[#allocation6 + $0x186]]
        %s4009 = sld [smem:[#allocation8 + $0x186]]
        %v4010 = vstv %s4008
        %v4011 = vmul.f32 %v3314, %v4010
        %v4012 = vmul.f32 %v3315, %v4010
        %v4013 = vadd.f32 %v3998, %v4011
        %v4014 = vadd.f32 %v3999, %v4012
        %v4015 = vstv %s4009
        %v4016 = vmul.f32 %v3466, %v4015
        %v4017 = vmul.f32 %v3467, %v4015
        %v4018 = vsub.f32 %v4013, %v4016
        %v4019 = vsub.f32 %v4014, %v4017
        %v4020 = vmul.f32 %v3314, %v4015
        %v4021 = vmul.f32 %v3315, %v4015
        %v4022 = vadd.f32 %v4006, %v4020
        %v4023 = vadd.f32 %v4007, %v4021
        %v4024 = vmul.f32 %v3466, %v4010
        %v4025 = vmul.f32 %v3467, %v4010
        %v4026 = vadd.f32 %v4022, %v4024
        %v4027 = vadd.f32 %v4023, %v4025
        %s4028 = sld [smem:[#allocation6 + $0x7]]
        %s4029 = sld [smem:[#allocation8 + $0x7]]
        %v4030 = vstv %s4028
        %v4031 = vmul.f32 %v3308, %v4030
        %v4032 = vmul.f32 %v3309, %v4030
        %v4033 = vadd.f32 %v4031, 0.0
        %v4034 = vadd.f32 %v4032, 0.0
        %v4035 = vstv %s4029
        %v4036 = vmul.f32 %v3460, %v4035
        %v4037 = vmul.f32 %v3461, %v4035
        %v4038 = vsub.f32 %v4033, %v4036
        %v4039 = vsub.f32 %v4034, %v4037
        %v4040 = vmul.f32 %v3308, %v4035
        %v4041 = vmul.f32 %v3309, %v4035
        %v4042 = vadd.f32 %v4040, 0.0
        %v4043 = vadd.f32 %v4041, 0.0
        %v4044 = vmul.f32 %v3460, %v4030
        %v4045 = vmul.f32 %v3461, %v4030
        %v4046 = vadd.f32 %v4042, %v4044
        %v4047 = vadd.f32 %v4043, %v4045
        %s4048 = sld [smem:[#allocation6 + $0x87]]
        %s4049 = sld [smem:[#allocation8 + $0x87]]
        %v4050 = vstv %s4048
        %v4051 = vmul.f32 %v3310, %v4050
        %v4052 = vmul.f32 %v3311, %v4050
        %v4053 = vadd.f32 %v4038, %v4051
        %v4054 = vadd.f32 %v4039, %v4052
        %v4055 = vstv %s4049
        %v4056 = vmul.f32 %v3462, %v4055
        %v4057 = vmul.f32 %v3463, %v4055
        %v4058 = vsub.f32 %v4053, %v4056
        %v4059 = vsub.f32 %v4054, %v4057
        %v4060 = vmul.f32 %v3310, %v4055
        %v4061 = vmul.f32 %v3311, %v4055
        %v4062 = vadd.f32 %v4046, %v4060
        %v4063 = vadd.f32 %v4047, %v4061
        %v4064 = vmul.f32 %v3462, %v4050
        %v4065 = vmul.f32 %v3463, %v4050
        %v4066 = vadd.f32 %v4062, %v4064
        %v4067 = vadd.f32 %v4063, %v4065
        %s4068 = sld [smem:[#allocation6 + $0x107]]
        %s4069 = sld [smem:[#allocation8 + $0x107]]
        %v4070 = vstv %s4068
        %v4071 = vmul.f32 %v3312, %v4070
        %v4072 = vmul.f32 %v3313, %v4070
        %v4073 = vadd.f32 %v4058, %v4071
        %v4074 = vadd.f32 %v4059, %v4072
        %v4075 = vstv %s4069
        %v4076 = vmul.f32 %v3464, %v4075
        %v4077 = vmul.f32 %v3465, %v4075
        %v4078 = vsub.f32 %v4073, %v4076
        %v4079 = vsub.f32 %v4074, %v4077
        %v4080 = vmul.f32 %v3312, %v4075
        %v4081 = vmul.f32 %v3313, %v4075
        %v4082 = vadd.f32 %v4066, %v4080
        %v4083 = vadd.f32 %v4067, %v4081
        %v4084 = vmul.f32 %v3464, %v4070
        %v4085 = vmul.f32 %v3465, %v4070
        %v4086 = vadd.f32 %v4082, %v4084
        %v4087 = vadd.f32 %v4083, %v4085
        %s4088 = sld [smem:[#allocation6 + $0x187]]
        %s4089 = sld [smem:[#allocation8 + $0x187]]
        %v4090 = vstv %s4088
        %v4091 = vmul.f32 %v3314, %v4090
        %v4092 = vmul.f32 %v3315, %v4090
        %v4093 = vadd.f32 %v4078, %v4091
        %v4094 = vadd.f32 %v4079, %v4092
        %v4095 = vstv %s4089
        %v4096 = vmul.f32 %v3466, %v4095
        %v4097 = vmul.f32 %v3467, %v4095
        %v4098 = vsub.f32 %v4093, %v4096
        %v4099 = vsub.f32 %v4094, %v4097
        %v4100 = vmul.f32 %v3314, %v4095
        %v4101 = vmul.f32 %v3315, %v4095
        %v4102 = vadd.f32 %v4086, %v4100
        %v4103 = vadd.f32 %v4087, %v4101
        %v4104 = vmul.f32 %v3466, %v4090
        %v4105 = vmul.f32 %v3467, %v4090
        %v4106 = vadd.f32 %v4102, %v4104
        %v4107 = vadd.f32 %v4103, %v4105
        %vm4108 = vcmask 130048
        %4109 = vst.msk [vmem:[%s502] sm:$0xff] %vm4108, %v3538
        %4110 = vst.msk [vmem:[%s502 + $0x8] sm:$0xff] %vm4108, %v3539
        %4111 = vst.msk [vmem:[%s502 + $0x10] sm:$0xff] %vm4108, %v3618
        %4112 = vst.msk [vmem:[%s502 + $0x18] sm:$0xff] %vm4108, %v3619
        %4113 = vst.msk [vmem:[%s502 + $0x20] sm:$0xff] %vm4108, %v3698
        %4114 = vst.msk [vmem:[%s502 + $0x28] sm:$0xff] %vm4108, %v3699
        %4115 = vst.msk [vmem:[%s502 + $0x30] sm:$0xff] %vm4108, %v3778
        %4116 = vst.msk [vmem:[%s502 + $0x38] sm:$0xff] %vm4108, %v3779
        %4117 = vst.msk [vmem:[%s502 + $0x40] sm:$0xff] %vm4108, %v3858
        %4118 = vst.msk [vmem:[%s502 + $0x48] sm:$0xff] %vm4108, %v3859
        %4119 = vst.msk [vmem:[%s502 + $0x50] sm:$0xff] %vm4108, %v3938
        %4120 = vst.msk [vmem:[%s502 + $0x58] sm:$0xff] %vm4108, %v3939
        %4121 = vst.msk [vmem:[%s502 + $0x60] sm:$0xff] %vm4108, %v4018
        %4122 = vst.msk [vmem:[%s502 + $0x68] sm:$0xff] %vm4108, %v4019
        %4123 = vst.msk [vmem:[%s502 + $0x70] sm:$0xff] %vm4108, %v4098
        %4124 = vst.msk [vmem:[%s502 + $0x78] sm:$0xff] %vm4108, %v4099
        %4125 = vst.msk [vmem:[%s508] sm:$0xff] %vm4108, %v3546
        %4126 = vst.msk [vmem:[%s508 + $0x8] sm:$0xff] %vm4108, %v3547
        %4127 = vst.msk [vmem:[%s508 + $0x10] sm:$0xff] %vm4108, %v3626
        %4128 = vst.msk [vmem:[%s508 + $0x18] sm:$0xff] %vm4108, %v3627
        %4129 = vst.msk [vmem:[%s508 + $0x20] sm:$0xff] %vm4108, %v3706
        %4130 = vst.msk [vmem:[%s508 + $0x28] sm:$0xff] %vm4108, %v3707
        %4131 = vst.msk [vmem:[%s508 + $0x30] sm:$0xff] %vm4108, %v3786
        %4132 = vst.msk [vmem:[%s508 + $0x38] sm:$0xff] %vm4108, %v3787
        %4133 = vst.msk [vmem:[%s508 + $0x40] sm:$0xff] %vm4108, %v3866
        %4134 = vst.msk [vmem:[%s508 + $0x48] sm:$0xff] %vm4108, %v3867
        %4135 = vst.msk [vmem:[%s508 + $0x50] sm:$0xff] %vm4108, %v3946
        %4136 = vst.msk [vmem:[%s508 + $0x58] sm:$0xff] %vm4108, %v3947
        %4137 = vst.msk [vmem:[%s508 + $0x60] sm:$0xff] %vm4108, %v4026
        %4138 = vst.msk [vmem:[%s508 + $0x68] sm:$0xff] %vm4108, %v4027
        %4139 = vst.msk [vmem:[%s508 + $0x70] sm:$0xff] %vm4108, %v4106
        %4140 = vst.msk [vmem:[%s508 + $0x78] sm:$0xff] %vm4108, %v4107
        %v4141 = vsel %vm4108, %v3538, 0.0
        %4142 = vadd.xlane.f32.xlu0 %v4141
        %v4143 = vpop.xlane.xlu0 %4142
        %v4144 = vsel %vm4108, %v3539, 0.0
        %4145 = vadd.xlane.f32.xlu0 %v4144
        %v4146 = vpop.xlane.xlu0 %4145
        %v4147 = vsel %vm4108, %v3618, 0.0
        %4148 = vadd.xlane.f32.xlu0 %v4147
        %v4149 = vpop.xlane.xlu0 %4148
        %v4150 = vsel %vm4108, %v3619, 0.0
        %4151 = vadd.xlane.f32.xlu0 %v4150
        %v4152 = vpop.xlane.xlu0 %4151
        %v4153 = vsel %vm4108, %v3698, 0.0
        %4154 = vadd.xlane.f32.xlu0 %v4153
        %v4155 = vpop.xlane.xlu0 %4154
        %v4156 = vsel %vm4108, %v3699, 0.0
        %4157 = vadd.xlane.f32.xlu0 %v4156
        %v4158 = vpop.xlane.xlu0 %4157
        %v4159 = vsel %vm4108, %v3778, 0.0
        %4160 = vadd.xlane.f32.xlu0 %v4159
        %v4161 = vpop.xlane.xlu0 %4160
        %v4162 = vsel %vm4108, %v3779, 0.0
        %4163 = vadd.xlane.f32.xlu0 %v4162
        %v4164 = vpop.xlane.xlu0 %4163
        %v4165 = vsel %vm4108, %v3858, 0.0
        %4166 = vadd.xlane.f32.xlu0 %v4165
        %v4167 = vpop.xlane.xlu0 %4166
        %v4168 = vsel %vm4108, %v3859, 0.0
        %4169 = vadd.xlane.f32.xlu0 %v4168
        %v4170 = vpop.xlane.xlu0 %4169
        %v4171 = vsel %vm4108, %v3938, 0.0
        %4172 = vadd.xlane.f32.xlu0 %v4171
        %v4173 = vpop.xlane.xlu0 %4172
        %v4174 = vsel %vm4108, %v3939, 0.0
        %4175 = vadd.xlane.f32.xlu0 %v4174
        %v4176 = vpop.xlane.xlu0 %4175
        %v4177 = vsel %vm4108, %v4018, 0.0
        %4178 = vadd.xlane.f32.xlu0 %v4177
        %v4179 = vpop.xlane.xlu0 %4178
        %v4180 = vsel %vm4108, %v4019, 0.0
        %4181 = vadd.xlane.f32.xlu0 %v4180
        %v4182 = vpop.xlane.xlu0 %4181
        %v4183 = vsel %vm4108, %v4098, 0.0
        %4184 = vadd.xlane.f32.xlu0 %v4183
        %v4185 = vpop.xlane.xlu0 %4184
        %v4186 = vsel %vm4108, %v4099, 0.0
        %4187 = vadd.xlane.f32.xlu0 %v4186
        %v4188 = vpop.xlane.xlu0 %4187
        %v4205 = vlaneseq
        %v4206 = vand.u32 %v4205, 127
        %v4207 = vlaneseq
        %v4208 = vshrl.u32 %v4207, 7
        %v4209 = vsub.s32 %v4206, %v4208
        %v4210 = vrot.slane %v4143, %v4209
        %v4211 = vadd.s32 %v4206, 4294967288
        %v4212 = vlaneseq
        %v4213 = vshrl.u32 %v4212, 7
        %v4214 = vsub.s32 %v4211, %v4213
        %v4215 = vrot.slane %v4146, %v4214
        %vm4216 = vcmask 130112
        %v4217 = vsel %vm4216, %v4215, %v4210
        %v4218 = vlaneseq
        %v4219 = vshrl.u32 %v4218, 7
        %v4220 = vsub.s32 %v4206, %v4219
        %v4221 = vrot.slane %v4149, %v4220
        %v4222 = vlaneseq
        %v4223 = vshrl.u32 %v4222, 7
        %v4224 = vsub.s32 %v4211, %v4223
        %v4225 = vrot.slane %v4152, %v4224
        %v4226 = vsel %vm4216, %v4225, %v4221
        %v4227 = vlaneseq
        %v4228 = vshrl.u32 %v4227, 7
        %v4229 = vsub.s32 %v4206, %v4228
        %v4230 = vrot.slane %v4155, %v4229
        %v4231 = vlaneseq
        %v4232 = vshrl.u32 %v4231, 7
        %v4233 = vsub.s32 %v4211, %v4232
        %v4234 = vrot.slane %v4158, %v4233
        %v4235 = vsel %vm4216, %v4234, %v4230
        %v4236 = vlaneseq
        %v4237 = vshrl.u32 %v4236, 7
        %v4238 = vsub.s32 %v4206, %v4237
        %v4239 = vrot.slane %v4161, %v4238
        %v4240 = vlaneseq
        %v4241 = vshrl.u32 %v4240, 7
        %v4242 = vsub.s32 %v4211, %v4241
        %v4243 = vrot.slane %v4164, %v4242
        %v4244 = vsel %vm4216, %v4243, %v4239
        %v4245 = vlaneseq
        %v4246 = vshrl.u32 %v4245, 7
        %v4247 = vsub.s32 %v4206, %v4246
        %v4248 = vrot.slane %v4167, %v4247
        %v4249 = vlaneseq
        %v4250 = vshrl.u32 %v4249, 7
        %v4251 = vsub.s32 %v4211, %v4250
        %v4252 = vrot.slane %v4170, %v4251
        %v4253 = vsel %vm4216, %v4252, %v4248
        %v4254 = vlaneseq
        %v4255 = vshrl.u32 %v4254, 7
        %v4256 = vsub.s32 %v4206, %v4255
        %v4257 = vrot.slane %v4173, %v4256
        %v4258 = vlaneseq
        %v4259 = vshrl.u32 %v4258, 7
        %v4260 = vsub.s32 %v4211, %v4259
        %v4261 = vrot.slane %v4176, %v4260
        %v4262 = vsel %vm4216, %v4261, %v4257
        %v4263 = vlaneseq
        %v4264 = vshrl.u32 %v4263, 7
        %v4265 = vsub.s32 %v4206, %v4264
        %v4266 = vrot.slane %v4179, %v4265
        %v4267 = vlaneseq
        %v4268 = vshrl.u32 %v4267, 7
        %v4269 = vsub.s32 %v4211, %v4268
        %v4270 = vrot.slane %v4182, %v4269
        %v4271 = vsel %vm4216, %v4270, %v4266
        %v4272 = vlaneseq
        %v4273 = vshrl.u32 %v4272, 7
        %v4274 = vsub.s32 %v4206, %v4273
        %v4275 = vrot.slane %v4185, %v4274
        %v4276 = vlaneseq
        %v4277 = vshrl.u32 %v4276, 7
        %v4278 = vsub.s32 %v4211, %v4277
        %v4279 = vrot.slane %v4188, %v4278
        %v4280 = vsel %vm4216, %v4279, %v4275
        %vm4281 = vcmask 1041409
        %v4282 = vsel %vm4281, %v4226, %v4217
        %vm4283 = vcmask 1042434
        %v4284 = vsel %vm4283, %v4235, %v4282
        %vm4285 = vcmask 1043459
        %v4286 = vsel %vm4285, %v4244, %v4284
        %vm4287 = vcmask 1044484
        %v4288 = vsel %vm4287, %v4253, %v4286
        %vm4289 = vcmask 1045509
        %v4290 = vsel %vm4289, %v4262, %v4288
        %vm4291 = vcmask 1046534
        %v4292 = vsel %vm4291, %v4271, %v4290
        %vm4293 = vcmask 1047559
        %v4294 = vsel %vm4293, %v4280, %v4292
        %v4296 = vsel %vm4108, %v4294, 0.0
        %4297 = vadd.xlane.f32.xlu0 %v4296
        %v4298 = vpop.xlane.xlu0 %4297
        %v4299 = vsel %vm4108, %v3546, 0.0
        %4300 = vadd.xlane.f32.xlu0 %v4299
        %v4301 = vpop.xlane.xlu0 %4300
        %v4302 = vsel %vm4108, %v3547, 0.0
        %4303 = vadd.xlane.f32.xlu0 %v4302
        %v4304 = vpop.xlane.xlu0 %4303
        %v4305 = vsel %vm4108, %v3626, 0.0
        %4306 = vadd.xlane.f32.xlu0 %v4305
        %v4307 = vpop.xlane.xlu0 %4306
        %v4308 = vsel %vm4108, %v3627, 0.0
        %4309 = vadd.xlane.f32.xlu0 %v4308
        %v4310 = vpop.xlane.xlu0 %4309
        %v4311 = vsel %vm4108, %v3706, 0.0
        %4312 = vadd.xlane.f32.xlu0 %v4311
        %v4313 = vpop.xlane.xlu0 %4312
        %v4314 = vsel %vm4108, %v3707, 0.0
        %4315 = vadd.xlane.f32.xlu0 %v4314
        %v4316 = vpop.xlane.xlu0 %4315
        %v4317 = vsel %vm4108, %v3786, 0.0
        %4318 = vadd.xlane.f32.xlu0 %v4317
        %v4319 = vpop.xlane.xlu0 %4318
        %v4320 = vsel %vm4108, %v3787, 0.0
        %4321 = vadd.xlane.f32.xlu0 %v4320
        %v4322 = vpop.xlane.xlu0 %4321
        %v4323 = vsel %vm4108, %v3866, 0.0
        %4324 = vadd.xlane.f32.xlu0 %v4323
        %v4325 = vpop.xlane.xlu0 %4324
        %v4326 = vsel %vm4108, %v3867, 0.0
        %4327 = vadd.xlane.f32.xlu0 %v4326
        %v4328 = vpop.xlane.xlu0 %4327
        %v4329 = vsel %vm4108, %v3946, 0.0
        %4330 = vadd.xlane.f32.xlu0 %v4329
        %v4331 = vpop.xlane.xlu0 %4330
        %v4332 = vsel %vm4108, %v3947, 0.0
        %4333 = vadd.xlane.f32.xlu0 %v4332
        %v4334 = vpop.xlane.xlu0 %4333
        %v4335 = vsel %vm4108, %v4026, 0.0
        %4336 = vadd.xlane.f32.xlu0 %v4335
        %v4337 = vpop.xlane.xlu0 %4336
        %v4338 = vsel %vm4108, %v4027, 0.0
        %4339 = vadd.xlane.f32.xlu0 %v4338
        %v4340 = vpop.xlane.xlu0 %4339
        %v4341 = vsel %vm4108, %v4106, 0.0
        %4342 = vadd.xlane.f32.xlu0 %v4341
        %v4343 = vpop.xlane.xlu0 %4342
        %v4344 = vsel %vm4108, %v4107, 0.0
        %4345 = vadd.xlane.f32.xlu0 %v4344
        %v4346 = vpop.xlane.xlu0 %4345
        %v4363 = vlaneseq
        %v4364 = vshrl.u32 %v4363, 7
        %v4365 = vsub.s32 %v4206, %v4364
        %v4366 = vrot.slane %v4301, %v4365
        %v4367 = vlaneseq
        %v4368 = vshrl.u32 %v4367, 7
        %v4369 = vsub.s32 %v4211, %v4368
        %v4370 = vrot.slane %v4304, %v4369
        %v4371 = vsel %vm4216, %v4370, %v4366
        %v4372 = vlaneseq
        %v4373 = vshrl.u32 %v4372, 7
        %v4374 = vsub.s32 %v4206, %v4373
        %v4375 = vrot.slane %v4307, %v4374
        %v4376 = vlaneseq
        %v4377 = vshrl.u32 %v4376, 7
        %v4378 = vsub.s32 %v4211, %v4377
        %v4379 = vrot.slane %v4310, %v4378
        %v4380 = vsel %vm4216, %v4379, %v4375
        %v4381 = vlaneseq
        %v4382 = vshrl.u32 %v4381, 7
        %v4383 = vsub.s32 %v4206, %v4382
        %v4384 = vrot.slane %v4313, %v4383
        %v4385 = vlaneseq
        %v4386 = vshrl.u32 %v4385, 7
        %v4387 = vsub.s32 %v4211, %v4386
        %v4388 = vrot.slane %v4316, %v4387
        %v4389 = vsel %vm4216, %v4388, %v4384
        %v4390 = vlaneseq
        %v4391 = vshrl.u32 %v4390, 7
        %v4392 = vsub.s32 %v4206, %v4391
        %v4393 = vrot.slane %v4319, %v4392
        %v4394 = vlaneseq
        %v4395 = vshrl.u32 %v4394, 7
        %v4396 = vsub.s32 %v4211, %v4395
        %v4397 = vrot.slane %v4322, %v4396
        %v4398 = vsel %vm4216, %v4397, %v4393
        %v4399 = vlaneseq
        %v4400 = vshrl.u32 %v4399, 7
        %v4401 = vsub.s32 %v4206, %v4400
        %v4402 = vrot.slane %v4325, %v4401
        %v4403 = vlaneseq
        %v4404 = vshrl.u32 %v4403, 7
        %v4405 = vsub.s32 %v4211, %v4404
        %v4406 = vrot.slane %v4328, %v4405
        %v4407 = vsel %vm4216, %v4406, %v4402
        %v4408 = vlaneseq
        %v4409 = vshrl.u32 %v4408, 7
        %v4410 = vsub.s32 %v4206, %v4409
        %v4411 = vrot.slane %v4331, %v4410
        %v4412 = vlaneseq
        %v4413 = vshrl.u32 %v4412, 7
        %v4414 = vsub.s32 %v4211, %v4413
        %v4415 = vrot.slane %v4334, %v4414
        %v4416 = vsel %vm4216, %v4415, %v4411
        %v4417 = vlaneseq
        %v4418 = vshrl.u32 %v4417, 7
        %v4419 = vsub.s32 %v4206, %v4418
        %v4420 = vrot.slane %v4337, %v4419
        %v4421 = vlaneseq
        %v4422 = vshrl.u32 %v4421, 7
        %v4423 = vsub.s32 %v4211, %v4422
        %v4424 = vrot.slane %v4340, %v4423
        %v4425 = vsel %vm4216, %v4424, %v4420
        %v4426 = vlaneseq
        %v4427 = vshrl.u32 %v4426, 7
        %v4428 = vsub.s32 %v4206, %v4427
        %v4429 = vrot.slane %v4343, %v4428
        %v4430 = vlaneseq
        %v4431 = vshrl.u32 %v4430, 7
        %v4432 = vsub.s32 %v4211, %v4431
        %v4433 = vrot.slane %v4346, %v4432
        %v4434 = vsel %vm4216, %v4433, %v4429
        %v4435 = vsel %vm4281, %v4380, %v4371
        %v4436 = vsel %vm4283, %v4389, %v4435
        %v4437 = vsel %vm4285, %v4398, %v4436
        %v4438 = vsel %vm4287, %v4407, %v4437
        %v4439 = vsel %vm4289, %v4416, %v4438
        %v4440 = vsel %vm4291, %v4425, %v4439
        %v4441 = vsel %vm4293, %v4434, %v4440
        %v4443 = vsel %vm4108, %v4441, 0.0
        %4444 = vadd.xlane.f32.xlu0 %v4443
        %v4445 = vpop.xlane.xlu0 %4444
        %v4446 = vmul.f32 %v3538, %v3538
        %v4447 = vmul.f32 %v3539, %v3539
        %v4448 = vmul.f32 %v3618, %v3618
        %v4449 = vmul.f32 %v3619, %v3619
        %v4450 = vmul.f32 %v3698, %v3698
        %v4451 = vmul.f32 %v3699, %v3699
        %v4452 = vmul.f32 %v3778, %v3778
        %v4453 = vmul.f32 %v3779, %v3779
        %v4454 = vmul.f32 %v3858, %v3858
        %v4455 = vmul.f32 %v3859, %v3859
        %v4456 = vmul.f32 %v3938, %v3938
        %v4457 = vmul.f32 %v3939, %v3939
        %v4458 = vmul.f32 %v4018, %v4018
        %v4459 = vmul.f32 %v4019, %v4019
        %v4460 = vmul.f32 %v4098, %v4098
        %v4461 = vmul.f32 %v4099, %v4099
        %v4462 = vsel %vm4108, %v4446, 0.0
        %4463 = vadd.xlane.f32.xlu0 %v4462
        %v4464 = vpop.xlane.xlu0 %4463
        %v4465 = vsel %vm4108, %v4447, 0.0
        %4466 = vadd.xlane.f32.xlu0 %v4465
        %v4467 = vpop.xlane.xlu0 %4466
        %v4468 = vsel %vm4108, %v4448, 0.0
        %4469 = vadd.xlane.f32.xlu0 %v4468
        %v4470 = vpop.xlane.xlu0 %4469
        %v4471 = vsel %vm4108, %v4449, 0.0
        %4472 = vadd.xlane.f32.xlu0 %v4471
        %v4473 = vpop.xlane.xlu0 %4472
        %v4474 = vsel %vm4108, %v4450, 0.0
        %4475 = vadd.xlane.f32.xlu0 %v4474
        %v4476 = vpop.xlane.xlu0 %4475
        %v4477 = vsel %vm4108, %v4451, 0.0
        %4478 = vadd.xlane.f32.xlu0 %v4477
        %v4479 = vpop.xlane.xlu0 %4478
        %v4480 = vsel %vm4108, %v4452, 0.0
        %4481 = vadd.xlane.f32.xlu0 %v4480
        %v4482 = vpop.xlane.xlu0 %4481
        %v4483 = vsel %vm4108, %v4453, 0.0
        %4484 = vadd.xlane.f32.xlu0 %v4483
        %v4485 = vpop.xlane.xlu0 %4484
        %v4486 = vsel %vm4108, %v4454, 0.0
        %4487 = vadd.xlane.f32.xlu0 %v4486
        %v4488 = vpop.xlane.xlu0 %4487
        %v4489 = vsel %vm4108, %v4455, 0.0
        %4490 = vadd.xlane.f32.xlu0 %v4489
        %v4491 = vpop.xlane.xlu0 %4490
        %v4492 = vsel %vm4108, %v4456, 0.0
        %4493 = vadd.xlane.f32.xlu0 %v4492
        %v4494 = vpop.xlane.xlu0 %4493
        %v4495 = vsel %vm4108, %v4457, 0.0
        %4496 = vadd.xlane.f32.xlu0 %v4495
        %v4497 = vpop.xlane.xlu0 %4496
        %v4498 = vsel %vm4108, %v4458, 0.0
        %4499 = vadd.xlane.f32.xlu0 %v4498
        %v4500 = vpop.xlane.xlu0 %4499
        %v4501 = vsel %vm4108, %v4459, 0.0
        %4502 = vadd.xlane.f32.xlu0 %v4501
        %v4503 = vpop.xlane.xlu0 %4502
        %v4504 = vsel %vm4108, %v4460, 0.0
        %4505 = vadd.xlane.f32.xlu0 %v4504
        %v4506 = vpop.xlane.xlu0 %4505
        %v4507 = vsel %vm4108, %v4461, 0.0
        %4508 = vadd.xlane.f32.xlu0 %v4507
        %v4509 = vpop.xlane.xlu0 %4508
        %v4526 = vlaneseq
        %v4527 = vshrl.u32 %v4526, 7
        %v4528 = vsub.s32 %v4206, %v4527
        %v4529 = vrot.slane %v4464, %v4528
        %v4530 = vlaneseq
        %v4531 = vshrl.u32 %v4530, 7
        %v4532 = vsub.s32 %v4211, %v4531
        %v4533 = vrot.slane %v4467, %v4532
        %v4534 = vsel %vm4216, %v4533, %v4529
        %v4535 = vlaneseq
        %v4536 = vshrl.u32 %v4535, 7
        %v4537 = vsub.s32 %v4206, %v4536
        %v4538 = vrot.slane %v4470, %v4537
        %v4539 = vlaneseq
        %v4540 = vshrl.u32 %v4539, 7
        %v4541 = vsub.s32 %v4211, %v4540
        %v4542 = vrot.slane %v4473, %v4541
        %v4543 = vsel %vm4216, %v4542, %v4538
        %v4544 = vlaneseq
        %v4545 = vshrl.u32 %v4544, 7
        %v4546 = vsub.s32 %v4206, %v4545
        %v4547 = vrot.slane %v4476, %v4546
        %v4548 = vlaneseq
        %v4549 = vshrl.u32 %v4548, 7
        %v4550 = vsub.s32 %v4211, %v4549
        %v4551 = vrot.slane %v4479, %v4550
        %v4552 = vsel %vm4216, %v4551, %v4547
        %v4553 = vlaneseq
        %v4554 = vshrl.u32 %v4553, 7
        %v4555 = vsub.s32 %v4206, %v4554
        %v4556 = vrot.slane %v4482, %v4555
        %v4557 = vlaneseq
        %v4558 = vshrl.u32 %v4557, 7
        %v4559 = vsub.s32 %v4211, %v4558
        %v4560 = vrot.slane %v4485, %v4559
        %v4561 = vsel %vm4216, %v4560, %v4556
        %v4562 = vlaneseq
        %v4563 = vshrl.u32 %v4562, 7
        %v4564 = vsub.s32 %v4206, %v4563
        %v4565 = vrot.slane %v4488, %v4564
        %v4566 = vlaneseq
        %v4567 = vshrl.u32 %v4566, 7
        %v4568 = vsub.s32 %v4211, %v4567
        %v4569 = vrot.slane %v4491, %v4568
        %v4570 = vsel %vm4216, %v4569, %v4565
        %v4571 = vlaneseq
        %v4572 = vshrl.u32 %v4571, 7
        %v4573 = vsub.s32 %v4206, %v4572
        %v4574 = vrot.slane %v4494, %v4573
        %v4575 = vlaneseq
        %v4576 = vshrl.u32 %v4575, 7
        %v4577 = vsub.s32 %v4211, %v4576
        %v4578 = vrot.slane %v4497, %v4577
        %v4579 = vsel %vm4216, %v4578, %v4574
        %v4580 = vlaneseq
        %v4581 = vshrl.u32 %v4580, 7
        %v4582 = vsub.s32 %v4206, %v4581
        %v4583 = vrot.slane %v4500, %v4582
        %v4584 = vlaneseq
        %v4585 = vshrl.u32 %v4584, 7
        %v4586 = vsub.s32 %v4211, %v4585
        %v4587 = vrot.slane %v4503, %v4586
        %v4588 = vsel %vm4216, %v4587, %v4583
        %v4589 = vlaneseq
        %v4590 = vshrl.u32 %v4589, 7
        %v4591 = vsub.s32 %v4206, %v4590
        %v4592 = vrot.slane %v4506, %v4591
        %v4593 = vlaneseq
        %v4594 = vshrl.u32 %v4593, 7
        %v4595 = vsub.s32 %v4211, %v4594
        %v4596 = vrot.slane %v4509, %v4595
        %v4597 = vsel %vm4216, %v4596, %v4592
        %v4598 = vsel %vm4281, %v4543, %v4534
        %v4599 = vsel %vm4283, %v4552, %v4598
        %v4600 = vsel %vm4285, %v4561, %v4599
        %v4601 = vsel %vm4287, %v4570, %v4600
        %v4602 = vsel %vm4289, %v4579, %v4601
        %v4603 = vsel %vm4291, %v4588, %v4602
        %v4604 = vsel %vm4293, %v4597, %v4603
        %v4606 = vsel %vm4108, %v4604, 0.0
        %4607 = vadd.xlane.f32.xlu0 %v4606
        %v4608 = vpop.xlane.xlu0 %4607
        %v4609 = vmul.f32 %v3546, %v3546
        %v4610 = vmul.f32 %v3547, %v3547
        %v4611 = vmul.f32 %v3626, %v3626
        %v4612 = vmul.f32 %v3627, %v3627
        %v4613 = vmul.f32 %v3706, %v3706
        %v4614 = vmul.f32 %v3707, %v3707
        %v4615 = vmul.f32 %v3786, %v3786
        %v4616 = vmul.f32 %v3787, %v3787
        %v4617 = vmul.f32 %v3866, %v3866
        %v4618 = vmul.f32 %v3867, %v3867
        %v4619 = vmul.f32 %v3946, %v3946
        %v4620 = vmul.f32 %v3947, %v3947
        %v4621 = vmul.f32 %v4026, %v4026
        %v4622 = vmul.f32 %v4027, %v4027
        %v4623 = vmul.f32 %v4106, %v4106
        %v4624 = vmul.f32 %v4107, %v4107
        %v4625 = vsel %vm4108, %v4609, 0.0
        %4626 = vadd.xlane.f32.xlu0 %v4625
        %v4627 = vpop.xlane.xlu0 %4626
        %v4628 = vsel %vm4108, %v4610, 0.0
        %4629 = vadd.xlane.f32.xlu0 %v4628
        %v4630 = vpop.xlane.xlu0 %4629
        %v4631 = vsel %vm4108, %v4611, 0.0
        %4632 = vadd.xlane.f32.xlu0 %v4631
        %v4633 = vpop.xlane.xlu0 %4632
        %v4634 = vsel %vm4108, %v4612, 0.0
        %4635 = vadd.xlane.f32.xlu0 %v4634
        %v4636 = vpop.xlane.xlu0 %4635
        %v4637 = vsel %vm4108, %v4613, 0.0
        %4638 = vadd.xlane.f32.xlu0 %v4637
        %v4639 = vpop.xlane.xlu0 %4638
        %v4640 = vsel %vm4108, %v4614, 0.0
        %4641 = vadd.xlane.f32.xlu0 %v4640
        %v4642 = vpop.xlane.xlu0 %4641
        %v4643 = vsel %vm4108, %v4615, 0.0
        %4644 = vadd.xlane.f32.xlu0 %v4643
        %v4645 = vpop.xlane.xlu0 %4644
        %v4646 = vsel %vm4108, %v4616, 0.0
        %4647 = vadd.xlane.f32.xlu0 %v4646
        %v4648 = vpop.xlane.xlu0 %4647
        %v4649 = vsel %vm4108, %v4617, 0.0
        %4650 = vadd.xlane.f32.xlu0 %v4649
        %v4651 = vpop.xlane.xlu0 %4650
        %v4652 = vsel %vm4108, %v4618, 0.0
        %4653 = vadd.xlane.f32.xlu0 %v4652
        %v4654 = vpop.xlane.xlu0 %4653
        %v4655 = vsel %vm4108, %v4619, 0.0
        %4656 = vadd.xlane.f32.xlu0 %v4655
        %v4657 = vpop.xlane.xlu0 %4656
        %v4658 = vsel %vm4108, %v4620, 0.0
        %4659 = vadd.xlane.f32.xlu0 %v4658
        %v4660 = vpop.xlane.xlu0 %4659
        %v4661 = vsel %vm4108, %v4621, 0.0
        %4662 = vadd.xlane.f32.xlu0 %v4661
        %v4663 = vpop.xlane.xlu0 %4662
        %v4664 = vsel %vm4108, %v4622, 0.0
        %4665 = vadd.xlane.f32.xlu0 %v4664
        %v4666 = vpop.xlane.xlu0 %4665
        %v4667 = vsel %vm4108, %v4623, 0.0
        %4668 = vadd.xlane.f32.xlu0 %v4667
        %v4669 = vpop.xlane.xlu0 %4668
        %v4670 = vsel %vm4108, %v4624, 0.0
        %4671 = vadd.xlane.f32.xlu0 %v4670
        %v4672 = vpop.xlane.xlu0 %4671
        %v4689 = vlaneseq
        %v4690 = vshrl.u32 %v4689, 7
        %v4691 = vsub.s32 %v4206, %v4690
        %v4692 = vrot.slane %v4627, %v4691
        %v4693 = vlaneseq
        %v4694 = vshrl.u32 %v4693, 7
        %v4695 = vsub.s32 %v4211, %v4694
        %v4696 = vrot.slane %v4630, %v4695
        %v4697 = vsel %vm4216, %v4696, %v4692
        %v4698 = vlaneseq
        %v4699 = vshrl.u32 %v4698, 7
        %v4700 = vsub.s32 %v4206, %v4699
        %v4701 = vrot.slane %v4633, %v4700
        %v4702 = vlaneseq
        %v4703 = vshrl.u32 %v4702, 7
        %v4704 = vsub.s32 %v4211, %v4703
        %v4705 = vrot.slane %v4636, %v4704
        %v4706 = vsel %vm4216, %v4705, %v4701
        %v4707 = vlaneseq
        %v4708 = vshrl.u32 %v4707, 7
        %v4709 = vsub.s32 %v4206, %v4708
        %v4710 = vrot.slane %v4639, %v4709
        %v4711 = vlaneseq
        %v4712 = vshrl.u32 %v4711, 7
        %v4713 = vsub.s32 %v4211, %v4712
        %v4714 = vrot.slane %v4642, %v4713
        %v4715 = vsel %vm4216, %v4714, %v4710
        %v4716 = vlaneseq
        %v4717 = vshrl.u32 %v4716, 7
        %v4718 = vsub.s32 %v4206, %v4717
        %v4719 = vrot.slane %v4645, %v4718
        %v4720 = vlaneseq
        %v4721 = vshrl.u32 %v4720, 7
        %v4722 = vsub.s32 %v4211, %v4721
        %v4723 = vrot.slane %v4648, %v4722
        %v4724 = vsel %vm4216, %v4723, %v4719
        %v4725 = vlaneseq
        %v4726 = vshrl.u32 %v4725, 7
        %v4727 = vsub.s32 %v4206, %v4726
        %v4728 = vrot.slane %v4651, %v4727
        %v4729 = vlaneseq
        %v4730 = vshrl.u32 %v4729, 7
        %v4731 = vsub.s32 %v4211, %v4730
        %v4732 = vrot.slane %v4654, %v4731
        %v4733 = vsel %vm4216, %v4732, %v4728
        %v4734 = vlaneseq
        %v4735 = vshrl.u32 %v4734, 7
        %v4736 = vsub.s32 %v4206, %v4735
        %v4737 = vrot.slane %v4657, %v4736
        %v4738 = vlaneseq
        %v4739 = vshrl.u32 %v4738, 7
        %v4740 = vsub.s32 %v4211, %v4739
        %v4741 = vrot.slane %v4660, %v4740
        %v4742 = vsel %vm4216, %v4741, %v4737
        %v4743 = vlaneseq
        %v4744 = vshrl.u32 %v4743, 7
        %v4745 = vsub.s32 %v4206, %v4744
        %v4746 = vrot.slane %v4663, %v4745
        %v4747 = vlaneseq
        %v4748 = vshrl.u32 %v4747, 7
        %v4749 = vsub.s32 %v4211, %v4748
        %v4750 = vrot.slane %v4666, %v4749
        %v4751 = vsel %vm4216, %v4750, %v4746
        %v4752 = vlaneseq
        %v4753 = vshrl.u32 %v4752, 7
        %v4754 = vsub.s32 %v4206, %v4753
        %v4755 = vrot.slane %v4669, %v4754
        %v4756 = vlaneseq
        %v4757 = vshrl.u32 %v4756, 7
        %v4758 = vsub.s32 %v4211, %v4757
        %v4759 = vrot.slane %v4672, %v4758
        %v4760 = vsel %vm4216, %v4759, %v4755
        %v4761 = vsel %vm4281, %v4706, %v4697
        %v4762 = vsel %vm4283, %v4715, %v4761
        %v4763 = vsel %vm4285, %v4724, %v4762
        %v4764 = vsel %vm4287, %v4733, %v4763
        %v4765 = vsel %vm4289, %v4742, %v4764
        %v4766 = vsel %vm4291, %v4751, %v4765
        %v4767 = vsel %vm4293, %v4760, %v4766
        %v4769 = vsel %vm4108, %v4767, 0.0
        %4770 = vadd.xlane.f32.xlu0 %v4769
        %v4771 = vpop.xlane.xlu0 %4770
        %v4772 = vmul.f32 %v3538, %v3546
        %v4773 = vmul.f32 %v3539, %v3547
        %v4774 = vmul.f32 %v3618, %v3626
        %v4775 = vmul.f32 %v3619, %v3627
        %v4776 = vmul.f32 %v3698, %v3706
        %v4777 = vmul.f32 %v3699, %v3707
        %v4778 = vmul.f32 %v3778, %v3786
        %v4779 = vmul.f32 %v3779, %v3787
        %v4780 = vmul.f32 %v3858, %v3866
        %v4781 = vmul.f32 %v3859, %v3867
        %v4782 = vmul.f32 %v3938, %v3946
        %v4783 = vmul.f32 %v3939, %v3947
        %v4784 = vmul.f32 %v4018, %v4026
        %v4785 = vmul.f32 %v4019, %v4027
        %v4786 = vmul.f32 %v4098, %v4106
        %v4787 = vmul.f32 %v4099, %v4107
        %v4788 = vsel %vm4108, %v4772, 0.0
        %4789 = vadd.xlane.f32.xlu0 %v4788
        %v4790 = vpop.xlane.xlu0 %4789
        %v4791 = vsel %vm4108, %v4773, 0.0
        %4792 = vadd.xlane.f32.xlu0 %v4791
        %v4793 = vpop.xlane.xlu0 %4792
        %v4794 = vsel %vm4108, %v4774, 0.0
        %4795 = vadd.xlane.f32.xlu0 %v4794
        %v4796 = vpop.xlane.xlu0 %4795
        %v4797 = vsel %vm4108, %v4775, 0.0
        %4798 = vadd.xlane.f32.xlu0 %v4797
        %v4799 = vpop.xlane.xlu0 %4798
        %v4800 = vsel %vm4108, %v4776, 0.0
        %4801 = vadd.xlane.f32.xlu0 %v4800
        %v4802 = vpop.xlane.xlu0 %4801
        %v4803 = vsel %vm4108, %v4777, 0.0
        %4804 = vadd.xlane.f32.xlu0 %v4803
        %v4805 = vpop.xlane.xlu0 %4804
        %v4806 = vsel %vm4108, %v4778, 0.0
        %4807 = vadd.xlane.f32.xlu0 %v4806
        %v4808 = vpop.xlane.xlu0 %4807
        %v4809 = vsel %vm4108, %v4779, 0.0
        %4810 = vadd.xlane.f32.xlu0 %v4809
        %v4811 = vpop.xlane.xlu0 %4810
        %v4812 = vsel %vm4108, %v4780, 0.0
        %4813 = vadd.xlane.f32.xlu0 %v4812
        %v4814 = vpop.xlane.xlu0 %4813
        %v4815 = vsel %vm4108, %v4781, 0.0
        %4816 = vadd.xlane.f32.xlu0 %v4815
        %v4817 = vpop.xlane.xlu0 %4816
        %v4818 = vsel %vm4108, %v4782, 0.0
        %4819 = vadd.xlane.f32.xlu0 %v4818
        %v4820 = vpop.xlane.xlu0 %4819
        %v4821 = vsel %vm4108, %v4783, 0.0
        %4822 = vadd.xlane.f32.xlu0 %v4821
        %v4823 = vpop.xlane.xlu0 %4822
        %v4824 = vsel %vm4108, %v4784, 0.0
        %4825 = vadd.xlane.f32.xlu0 %v4824
        %v4826 = vpop.xlane.xlu0 %4825
        %v4827 = vsel %vm4108, %v4785, 0.0
        %4828 = vadd.xlane.f32.xlu0 %v4827
        %v4829 = vpop.xlane.xlu0 %4828
        %v4830 = vsel %vm4108, %v4786, 0.0
        %4831 = vadd.xlane.f32.xlu0 %v4830
        %v4832 = vpop.xlane.xlu0 %4831
        %v4833 = vsel %vm4108, %v4787, 0.0
        %4834 = vadd.xlane.f32.xlu0 %v4833
        %v4835 = vpop.xlane.xlu0 %4834
        %v4852 = vlaneseq
        %v4853 = vshrl.u32 %v4852, 7
        %v4854 = vsub.s32 %v4206, %v4853
        %v4855 = vrot.slane %v4790, %v4854
        %v4856 = vlaneseq
        %v4857 = vshrl.u32 %v4856, 7
        %v4858 = vsub.s32 %v4211, %v4857
        %v4859 = vrot.slane %v4793, %v4858
        %v4860 = vsel %vm4216, %v4859, %v4855
        %v4861 = vlaneseq
        %v4862 = vshrl.u32 %v4861, 7
        %v4863 = vsub.s32 %v4206, %v4862
        %v4864 = vrot.slane %v4796, %v4863
        %v4865 = vlaneseq
        %v4866 = vshrl.u32 %v4865, 7
        %v4867 = vsub.s32 %v4211, %v4866
        %v4868 = vrot.slane %v4799, %v4867
        %v4869 = vsel %vm4216, %v4868, %v4864
        %v4870 = vlaneseq
        %v4871 = vshrl.u32 %v4870, 7
        %v4872 = vsub.s32 %v4206, %v4871
        %v4873 = vrot.slane %v4802, %v4872
        %v4874 = vlaneseq
        %v4875 = vshrl.u32 %v4874, 7
        %v4876 = vsub.s32 %v4211, %v4875
        %v4877 = vrot.slane %v4805, %v4876
        %v4878 = vsel %vm4216, %v4877, %v4873
        %v4879 = vlaneseq
        %v4880 = vshrl.u32 %v4879, 7
        %v4881 = vsub.s32 %v4206, %v4880
        %v4882 = vrot.slane %v4808, %v4881
        %v4883 = vlaneseq
        %v4884 = vshrl.u32 %v4883, 7
        %v4885 = vsub.s32 %v4211, %v4884
        %v4886 = vrot.slane %v4811, %v4885
        %v4887 = vsel %vm4216, %v4886, %v4882
        %v4888 = vlaneseq
        %v4889 = vshrl.u32 %v4888, 7
        %v4890 = vsub.s32 %v4206, %v4889
        %v4891 = vrot.slane %v4814, %v4890
        %v4892 = vlaneseq
        %v4893 = vshrl.u32 %v4892, 7
        %v4894 = vsub.s32 %v4211, %v4893
        %v4895 = vrot.slane %v4817, %v4894
        %v4896 = vsel %vm4216, %v4895, %v4891
        %v4897 = vlaneseq
        %v4898 = vshrl.u32 %v4897, 7
        %v4899 = vsub.s32 %v4206, %v4898
        %v4900 = vrot.slane %v4820, %v4899
        %v4901 = vlaneseq
        %v4902 = vshrl.u32 %v4901, 7
        %v4903 = vsub.s32 %v4211, %v4902
        %v4904 = vrot.slane %v4823, %v4903
        %v4905 = vsel %vm4216, %v4904, %v4900
        %v4906 = vlaneseq
        %v4907 = vshrl.u32 %v4906, 7
        %v4908 = vsub.s32 %v4206, %v4907
        %v4909 = vrot.slane %v4826, %v4908
        %v4910 = vlaneseq
        %v4911 = vshrl.u32 %v4910, 7
        %v4912 = vsub.s32 %v4211, %v4911
        %v4913 = vrot.slane %v4829, %v4912
        %v4914 = vsel %vm4216, %v4913, %v4909
        %v4915 = vlaneseq
        %v4916 = vshrl.u32 %v4915, 7
        %v4917 = vsub.s32 %v4206, %v4916
        %v4918 = vrot.slane %v4832, %v4917
        %v4919 = vlaneseq
        %v4920 = vshrl.u32 %v4919, 7
        %v4921 = vsub.s32 %v4211, %v4920
        %v4922 = vrot.slane %v4835, %v4921
        %v4923 = vsel %vm4216, %v4922, %v4918
        %v4924 = vsel %vm4281, %v4869, %v4860
        %v4925 = vsel %vm4283, %v4878, %v4924
        %v4926 = vsel %vm4285, %v4887, %v4925
        %v4927 = vsel %vm4287, %v4896, %v4926
        %v4928 = vsel %vm4289, %v4905, %v4927
        %v4929 = vsel %vm4291, %v4914, %v4928
        %v4930 = vsel %vm4293, %v4923, %v4929
        %v4932 = vsel %vm4108, %v4930, 0.0
        %4933 = vadd.xlane.f32.xlu0 %v4932
        %v4934 = vpop.xlane.xlu0 %4933
        %vm4935 = vcmask 7168
        %v4936 = vsel %vm4935, %v4298, %v4445
        %vm4937 = vcmask 15360
        %v4938 = vsel %vm4937, %v4936, %v4608
        %vm4939 = vcmask 23552
        %v4940 = vsel %vm4939, %v4938, %v4771
        %vm4941 = vcmask 31744
        %v4942 = vsel %vm4941, %v4940, %v4934
        %vm4943 = vcmask 39936
        %v4944 = vsel %vm4943, %v4942, 0.0
        %vm4945 = vcmask 64512
        %4946 = vst.msk [vmem:[%s518] sm:$0xff] %vm4945, %v4944
        %s4947 = sand.u32 %s188, 1
        %s4948 = sand.u32 %s188, 1
        %s4949 = smul.addr %s4948, 128
        %s4950 = scalar_lea.vmem [#allocation10], %s4949
        %s4951 = sand.u32 %s214, 1
        %s4952 = sand.u32 %s214, 1
        %s4953 = smul.addr %s4952, 128
        %s4954 = scalar_lea.vmem [#allocation11], %s4953
        %p4955 = scmp.lt.s32.totalorder %s23, 1
        %s4956 = scalar_select %p4955, %s23, 1
        %s4957 = smul.addr %s4956, 8
        %s4958 = scalar_lea.vmem %s9, %s4957
        // Predicated region
        $region133: #{_lambda_.4} parent=115 // pred_check
          %p4959 = pneg %p198
        $region134: #{_lambda_.4} parent=115 // pred_check_branch
          %4961 = sbr.rel (%p4959) target = $region136
        $region135: #{_lambda_.4} parent=115 // pred_region
          %s4962 = smul.addr %s23, 2
          %s4963 = smul.addr %s4962, 8
          %s4964 = scalar_lea.vmem %s7, %s4963
          // Predicated region
          $region137: #{_lambda_.4} parent=135 // pred_check
            _
          $region138: #{_lambda_.4} parent=135 // pred_check_branch
            %4966 = sbr.rel (0) target = $region140
          $region139: #{_lambda_.4} parent=135 // pred_region
            // Predicated region
            $region141: #{_lambda_.4} parent=139 // pred_check
              _
            $region142: #{_lambda_.4} parent=139 // pred_check_branch
              %4968 = sbr.rel (0) target = $region144
            $region143: #{_lambda_.4} parent=139 // pred_region
              // Predicated region
              $region156: #{_lambda_.4} parent=143 // pred_check
                _
              $region157: #{_lambda_.4} parent=143 // pred_check_branch
                %5014 = sbr.rel (0) target = $region159
              $region158: #{_lambda_.4} parent=143 // pred_region
                loop: start=0, step=1, limit=1
                $region160: #{_lambda_.4} parent=158 // loop_pre_header
                  _
                $region161: #{_lambda_.4} parent=158 // loop_header
                  %s5016 = sphi 0, %s5020
                  %p5017 = scmp.ge.s32.totalorder %s5016, 1
                  %s5021 = sphi %s4950, %s4950
                  %s5022 = sphi %s4964, %s4964
                $region162: #{_lambda_.4} parent=158 // loop_header_branch
                  %5019 = sbr.rel (%p5017) target = $region166
                $region163: #{_lambda_.4} parent=158 // loop_body
                  %v5023 = vld [vmem:[%s5021] sm:$0xff]
                  %5024 = vst [vmem:[%s5022] sm:$0xff] %v5023
                  %v5025 = vld [vmem:[%s5021 + $0x8] sm:$0xff]
                  %5026 = vst [vmem:[%s5022 + $0x8] sm:$0xff] %v5025
                  %v5027 = vld [vmem:[%s5021 + $0x10] sm:$0xff]
                  %5028 = vst [vmem:[%s5022 + $0x20] sm:$0xff] %v5027
                  %v5029 = vld [vmem:[%s5021 + $0x18] sm:$0xff]
                  %5030 = vst [vmem:[%s5022 + $0x28] sm:$0xff] %v5029
                  %v5031 = vld [vmem:[%s5021 + $0x20] sm:$0xff]
                  %5032 = vst [vmem:[%s5022 + $0x40] sm:$0xff] %v5031
                  %v5033 = vld [vmem:[%s5021 + $0x28] sm:$0xff]
                  %5034 = vst [vmem:[%s5022 + $0x48] sm:$0xff] %v5033
                  %v5035 = vld [vmem:[%s5021 + $0x30] sm:$0xff]
                  %5036 = vst [vmem:[%s5022 + $0x60] sm:$0xff] %v5035
                  %v5037 = vld [vmem:[%s5021 + $0x38] sm:$0xff]
                  %5038 = vst [vmem:[%s5022 + $0x68] sm:$0xff] %v5037
                  %v5039 = vld [vmem:[%s5021 + $0x40] sm:$0xff]
                  %5040 = vst [vmem:[%s5022 + $0x80] sm:$0xff] %v5039
                  %v5041 = vld [vmem:[%s5021 + $0x48] sm:$0xff]
                  %5042 = vst [vmem:[%s5022 + $0x88] sm:$0xff] %v5041
                  %v5043 = vld [vmem:[%s5021 + $0x50] sm:$0xff]
                  %5044 = vst [vmem:[%s5022 + $0xa0] sm:$0xff] %v5043
                  %v5045 = vld [vmem:[%s5021 + $0x58] sm:$0xff]
                  %5046 = vst [vmem:[%s5022 + $0xa8] sm:$0xff] %v5045
                  %v5047 = vld [vmem:[%s5021 + $0x60] sm:$0xff]
                  %5048 = vst [vmem:[%s5022 + $0xc0] sm:$0xff] %v5047
                  %v5049 = vld [vmem:[%s5021 + $0x68] sm:$0xff]
                  %5050 = vst [vmem:[%s5022 + $0xc8] sm:$0xff] %v5049
                  %v5051 = vld [vmem:[%s5021 + $0x70] sm:$0xff]
                  %5052 = vst [vmem:[%s5022 + $0xe0] sm:$0xff] %v5051
                  %v5053 = vld [vmem:[%s5021 + $0x78] sm:$0xff]
                  %5054 = vst [vmem:[%s5022 + $0xe8] sm:$0xff] %v5053
                $region164: #{_lambda_.4} parent=158 // loop_footer
                  %s5020 = sadd.s32 1, %s5016
                $region165: #{_lambda_.4} parent=158 // loop_footer_branch
                  %5015 = sbr.rel target = $region161
                $region166: #{_lambda_.4} parent=158 // loop_exit
                  _
              $region159: #{_lambda_.4} parent=143 // pred_fallthru
                _
              // Predicated region
              $region167: #{_lambda_.4} parent=143 // pred_check
                _
              $region168: #{_lambda_.4} parent=143 // pred_check_branch
                %5056 = sbr.rel target = $region170
              $region169: #{_lambda_.4} parent=143 // pred_region
                _
              $region170: #{_lambda_.4} parent=143 // pred_fallthru
                _
            $region144: #{_lambda_.4} parent=139 // pred_fallthru
              _
            // Predicated region
            $region145: #{_lambda_.4} parent=139 // pred_check
              _
            $region146: #{_lambda_.4} parent=139 // pred_check_branch
              %4970 = sbr.rel target = $region148
            $region147: #{_lambda_.4} parent=139 // pred_region
              %s4972 = ssub.s32 256, 1
              loop: start=0, step=1, limit=1
              $region149: #{_lambda_.4} parent=147 // loop_pre_header
                _
              $region150: #{_lambda_.4} parent=147 // loop_header
                %s4974 = sphi 0, %s4978
                %p4975 = scmp.ge.s32.totalorder %s4974, 1
                %s4979 = sphi %s4950, %s4950
                %s4980 = sphi %s4964, %s4964
              $region151: #{_lambda_.4} parent=147 // loop_header_branch
                %4977 = sbr.rel (%p4975) target = $region155
              $region152: #{_lambda_.4} parent=147 // loop_body
                %v4981 = vld [vmem:[%s4979] sm:%s4972]
                %4982 = vst [vmem:[%s4980] sm:%s4972] %v4981
                %v4983 = vld [vmem:[%s4979 + $0x8] sm:%s4972]
                %4984 = vst [vmem:[%s4980 + $0x8] sm:%s4972] %v4983
                %v4985 = vld [vmem:[%s4979 + $0x10] sm:%s4972]
                %4986 = vst [vmem:[%s4980 + $0x20] sm:%s4972] %v4985
                %v4987 = vld [vmem:[%s4979 + $0x18] sm:%s4972]
                %4988 = vst [vmem:[%s4980 + $0x28] sm:%s4972] %v4987
                %v4989 = vld [vmem:[%s4979 + $0x20] sm:%s4972]
                %4990 = vst [vmem:[%s4980 + $0x40] sm:%s4972] %v4989
                %v4991 = vld [vmem:[%s4979 + $0x28] sm:%s4972]
                %4992 = vst [vmem:[%s4980 + $0x48] sm:%s4972] %v4991
                %v4993 = vld [vmem:[%s4979 + $0x30] sm:%s4972]
                %4994 = vst [vmem:[%s4980 + $0x60] sm:%s4972] %v4993
                %v4995 = vld [vmem:[%s4979 + $0x38] sm:%s4972]
                %4996 = vst [vmem:[%s4980 + $0x68] sm:%s4972] %v4995
                %v4997 = vld [vmem:[%s4979 + $0x40] sm:%s4972]
                %4998 = vst [vmem:[%s4980 + $0x80] sm:%s4972] %v4997
                %v4999 = vld [vmem:[%s4979 + $0x48] sm:%s4972]
                %5000 = vst [vmem:[%s4980 + $0x88] sm:%s4972] %v4999
                %v5001 = vld [vmem:[%s4979 + $0x50] sm:%s4972]
                %5002 = vst [vmem:[%s4980 + $0xa0] sm:%s4972] %v5001
                %v5003 = vld [vmem:[%s4979 + $0x58] sm:%s4972]
                %5004 = vst [vmem:[%s4980 + $0xa8] sm:%s4972] %v5003
                %v5005 = vld [vmem:[%s4979 + $0x60] sm:%s4972]
                %5006 = vst [vmem:[%s4980 + $0xc0] sm:%s4972] %v5005
                %v5007 = vld [vmem:[%s4979 + $0x68] sm:%s4972]
                %5008 = vst [vmem:[%s4980 + $0xc8] sm:%s4972] %v5007
                %v5009 = vld [vmem:[%s4979 + $0x70] sm:%s4972]
                %5010 = vst [vmem:[%s4980 + $0xe0] sm:%s4972] %v5009
                %v5011 = vld [vmem:[%s4979 + $0x78] sm:%s4972]
                %5012 = vst [vmem:[%s4980 + $0xe8] sm:%s4972] %v5011
              $region153: #{_lambda_.4} parent=147 // loop_footer
                %s4978 = sadd.s32 1, %s4974
              $region154: #{_lambda_.4} parent=147 // loop_footer_branch
                %4973 = sbr.rel target = $region150
              $region155: #{_lambda_.4} parent=147 // loop_exit
                _
            $region148: #{_lambda_.4} parent=139 // pred_fallthru
              _
          $region140: #{_lambda_.4} parent=135 // pred_fallthru
            _
          %5057 = vnop
        $region136: #{_lambda_.4} parent=115 // pred_fallthru
          _
        // Predicated region
        $region171: #{_lambda_.4} parent=115 // pred_check
          %p5058 = pneg %p224
        $region172: #{_lambda_.4} parent=115 // pred_check_branch
          %5060 = sbr.rel (%p5058) target = $region174
        $region173: #{_lambda_.4} parent=115 // pred_region
          %s5061 = smul.addr %s23, 2
          %s5062 = smul.addr %s5061, 8
          %s5063 = scalar_lea.vmem %s8, %s5062
          // Predicated region
          $region175: #{_lambda_.4} parent=173 // pred_check
            _
          $region176: #{_lambda_.4} parent=173 // pred_check_branch
            %5065 = sbr.rel (0) target = $region178
          $region177: #{_lambda_.4} parent=173 // pred_region
            // Predicated region
            $region179: #{_lambda_.4} parent=177 // pred_check
              _
            $region180: #{_lambda_.4} parent=177 // pred_check_branch
              %5067 = sbr.rel (0) target = $region182
            $region181: #{_lambda_.4} parent=177 // pred_region
              // Predicated region
              $region194: #{_lambda_.4} parent=181 // pred_check
                _
              $region195: #{_lambda_.4} parent=181 // pred_check_branch
                %5113 = sbr.rel (0) target = $region197
              $region196: #{_lambda_.4} parent=181 // pred_region
                loop: start=0, step=1, limit=1
                $region198: #{_lambda_.4} parent=196 // loop_pre_header
                  _
                $region199: #{_lambda_.4} parent=196 // loop_header
                  %s5115 = sphi 0, %s5119
                  %p5116 = scmp.ge.s32.totalorder %s5115, 1
                  %s5120 = sphi %s4954, %s4954
                  %s5121 = sphi %s5063, %s5063
                $region200: #{_lambda_.4} parent=196 // loop_header_branch
                  %5118 = sbr.rel (%p5116) target = $region204
                $region201: #{_lambda_.4} parent=196 // loop_body
                  %v5122 = vld [vmem:[%s5120] sm:$0xff]
                  %5123 = vst [vmem:[%s5121] sm:$0xff] %v5122
                  %v5124 = vld [vmem:[%s5120 + $0x8] sm:$0xff]
                  %5125 = vst [vmem:[%s5121 + $0x8] sm:$0xff] %v5124
                  %v5126 = vld [vmem:[%s5120 + $0x10] sm:$0xff]
                  %5127 = vst [vmem:[%s5121 + $0x20] sm:$0xff] %v5126
                  %v5128 = vld [vmem:[%s5120 + $0x18] sm:$0xff]
                  %5129 = vst [vmem:[%s5121 + $0x28] sm:$0xff] %v5128
                  %v5130 = vld [vmem:[%s5120 + $0x20] sm:$0xff]
                  %5131 = vst [vmem:[%s5121 + $0x40] sm:$0xff] %v5130
                  %v5132 = vld [vmem:[%s5120 + $0x28] sm:$0xff]
                  %5133 = vst [vmem:[%s5121 + $0x48] sm:$0xff] %v5132
                  %v5134 = vld [vmem:[%s5120 + $0x30] sm:$0xff]
                  %5135 = vst [vmem:[%s5121 + $0x60] sm:$0xff] %v5134
                  %v5136 = vld [vmem:[%s5120 + $0x38] sm:$0xff]
                  %5137 = vst [vmem:[%s5121 + $0x68] sm:$0xff] %v5136
                  %v5138 = vld [vmem:[%s5120 + $0x40] sm:$0xff]
                  %5139 = vst [vmem:[%s5121 + $0x80] sm:$0xff] %v5138
                  %v5140 = vld [vmem:[%s5120 + $0x48] sm:$0xff]
                  %5141 = vst [vmem:[%s5121 + $0x88] sm:$0xff] %v5140
                  %v5142 = vld [vmem:[%s5120 + $0x50] sm:$0xff]
                  %5143 = vst [vmem:[%s5121 + $0xa0] sm:$0xff] %v5142
                  %v5144 = vld [vmem:[%s5120 + $0x58] sm:$0xff]
                  %5145 = vst [vmem:[%s5121 + $0xa8] sm:$0xff] %v5144
                  %v5146 = vld [vmem:[%s5120 + $0x60] sm:$0xff]
                  %5147 = vst [vmem:[%s5121 + $0xc0] sm:$0xff] %v5146
                  %v5148 = vld [vmem:[%s5120 + $0x68] sm:$0xff]
                  %5149 = vst [vmem:[%s5121 + $0xc8] sm:$0xff] %v5148
                  %v5150 = vld [vmem:[%s5120 + $0x70] sm:$0xff]
                  %5151 = vst [vmem:[%s5121 + $0xe0] sm:$0xff] %v5150
                  %v5152 = vld [vmem:[%s5120 + $0x78] sm:$0xff]
                  %5153 = vst [vmem:[%s5121 + $0xe8] sm:$0xff] %v5152
                $region202: #{_lambda_.4} parent=196 // loop_footer
                  %s5119 = sadd.s32 1, %s5115
                $region203: #{_lambda_.4} parent=196 // loop_footer_branch
                  %5114 = sbr.rel target = $region199
                $region204: #{_lambda_.4} parent=196 // loop_exit
                  _
              $region197: #{_lambda_.4} parent=181 // pred_fallthru
                _
              // Predicated region
              $region205: #{_lambda_.4} parent=181 // pred_check
                _
              $region206: #{_lambda_.4} parent=181 // pred_check_branch
                %5155 = sbr.rel target = $region208
              $region207: #{_lambda_.4} parent=181 // pred_region
                _
              $region208: #{_lambda_.4} parent=181 // pred_fallthru
                _
            $region182: #{_lambda_.4} parent=177 // pred_fallthru
              _
            // Predicated region
            $region183: #{_lambda_.4} parent=177 // pred_check
              _
            $region184: #{_lambda_.4} parent=177 // pred_check_branch
              %5069 = sbr.rel target = $region186
            $region185: #{_lambda_.4} parent=177 // pred_region
              %s5071 = ssub.s32 256, 1
              loop: start=0, step=1, limit=1
              $region187: #{_lambda_.4} parent=185 // loop_pre_header
                _
              $region188: #{_lambda_.4} parent=185 // loop_header
                %s5073 = sphi 0, %s5077
                %p5074 = scmp.ge.s32.totalorder %s5073, 1
                %s5078 = sphi %s4954, %s4954
                %s5079 = sphi %s5063, %s5063
              $region189: #{_lambda_.4} parent=185 // loop_header_branch
                %5076 = sbr.rel (%p5074) target = $region193
              $region190: #{_lambda_.4} parent=185 // loop_body
                %v5080 = vld [vmem:[%s5078] sm:%s5071]
                %5081 = vst [vmem:[%s5079] sm:%s5071] %v5080
                %v5082 = vld [vmem:[%s5078 + $0x8] sm:%s5071]
                %5083 = vst [vmem:[%s5079 + $0x8] sm:%s5071] %v5082
                %v5084 = vld [vmem:[%s5078 + $0x10] sm:%s5071]
                %5085 = vst [vmem:[%s5079 + $0x20] sm:%s5071] %v5084
                %v5086 = vld [vmem:[%s5078 + $0x18] sm:%s5071]
                %5087 = vst [vmem:[%s5079 + $0x28] sm:%s5071] %v5086
                %v5088 = vld [vmem:[%s5078 + $0x20] sm:%s5071]
                %5089 = vst [vmem:[%s5079 + $0x40] sm:%s5071] %v5088
                %v5090 = vld [vmem:[%s5078 + $0x28] sm:%s5071]
                %5091 = vst [vmem:[%s5079 + $0x48] sm:%s5071] %v5090
                %v5092 = vld [vmem:[%s5078 + $0x30] sm:%s5071]
                %5093 = vst [vmem:[%s5079 + $0x60] sm:%s5071] %v5092
                %v5094 = vld [vmem:[%s5078 + $0x38] sm:%s5071]
                %5095 = vst [vmem:[%s5079 + $0x68] sm:%s5071] %v5094
                %v5096 = vld [vmem:[%s5078 + $0x40] sm:%s5071]
                %5097 = vst [vmem:[%s5079 + $0x80] sm:%s5071] %v5096
                %v5098 = vld [vmem:[%s5078 + $0x48] sm:%s5071]
                %5099 = vst [vmem:[%s5079 + $0x88] sm:%s5071] %v5098
                %v5100 = vld [vmem:[%s5078 + $0x50] sm:%s5071]
                %5101 = vst [vmem:[%s5079 + $0xa0] sm:%s5071] %v5100
                %v5102 = vld [vmem:[%s5078 + $0x58] sm:%s5071]
                %5103 = vst [vmem:[%s5079 + $0xa8] sm:%s5071] %v5102
                %v5104 = vld [vmem:[%s5078 + $0x60] sm:%s5071]
                %5105 = vst [vmem:[%s5079 + $0xc0] sm:%s5071] %v5104
                %v5106 = vld [vmem:[%s5078 + $0x68] sm:%s5071]
                %5107 = vst [vmem:[%s5079 + $0xc8] sm:%s5071] %v5106
                %v5108 = vld [vmem:[%s5078 + $0x70] sm:%s5071]
                %5109 = vst [vmem:[%s5079 + $0xe0] sm:%s5071] %v5108
                %v5110 = vld [vmem:[%s5078 + $0x78] sm:%s5071]
                %5111 = vst [vmem:[%s5079 + $0xe8] sm:%s5071] %v5110
              $region191: #{_lambda_.4} parent=185 // loop_footer
                %s5077 = sadd.s32 1, %s5073
              $region192: #{_lambda_.4} parent=185 // loop_footer_branch
                %5072 = sbr.rel target = $region188
              $region193: #{_lambda_.4} parent=185 // loop_exit
                _
            $region186: #{_lambda_.4} parent=177 // pred_fallthru
              _
          $region178: #{_lambda_.4} parent=173 // pred_fallthru
            _
          %5156 = vnop
        $region174: #{_lambda_.4} parent=115 // pred_fallthru
          _
        // Predicated region
        $region209: #{_lambda_.4} parent=115 // pred_check
          %p5157 = pneg %p250
        $region210: #{_lambda_.4} parent=115 // pred_check_branch
          %5159 = sbr.rel (%p5157) target = $region212
        $region211: #{_lambda_.4} parent=115 // pred_region
          _
        $region212: #{_lambda_.4} parent=115 // pred_fallthru
          _
      $region116: #{_lambda_.4} parent=5 // pred_fallthru
        _
      %p5160 = scmp.le.s32.totalorder 2, %s18
      // Predicated region
      $region213: #{_lambda_.4} parent=5 // pred_check
        %p5161 = pneg %p5160
      $region214: #{_lambda_.4} parent=5 // pred_check_branch
        %5163 = sbr.rel (%p5161) target = $region216
      $region215: #{_lambda_.4} parent=5 // pred_region
        %s5164 = ssub.s32 %s18, 2
        // Predicated region
        $region217: #{_lambda_.4} parent=215 // pred_check
          %p5165 = pneg %p204
        $region218: #{_lambda_.4} parent=215 // pred_check_branch
          %5167 = sbr.rel (%p5165) target = $region220
        $region219: #{_lambda_.4} parent=215 // pred_region
          %s5168 = sand.u32 %s189, 1
          %s5169 = sand.u32 %s189, 1
          %s5170 = smul.addr %s5169, 128
          %s5171 = scalar_lea.vmem [#allocation10], %s5170
        $region220: #{_lambda_.4} parent=215 // pred_fallthru
          _
        // Predicated region
        $region221: #{_lambda_.4} parent=215 // pred_check
          %p5172 = pneg %p230
        $region222: #{_lambda_.4} parent=215 // pred_check_branch
          %5174 = sbr.rel (%p5172) target = $region224
        $region223: #{_lambda_.4} parent=215 // pred_region
          %s5175 = sand.u32 %s215, 1
          %s5176 = sand.u32 %s215, 1
          %s5177 = smul.addr %s5176, 128
          %s5178 = scalar_lea.vmem [#allocation11], %s5177
        $region224: #{_lambda_.4} parent=215 // pred_fallthru
          _
        // Predicated region
        $region225: #{_lambda_.4} parent=215 // pred_check
          %p5179 = pneg %p256
        $region226: #{_lambda_.4} parent=215 // pred_check_branch
          %5181 = sbr.rel (%p5179) target = $region228
        $region227: #{_lambda_.4} parent=215 // pred_region
          %p5182 = scmp.lt.s32.totalorder %s24, 1
          %s5183 = scalar_select %p5182, %s24, 1
          %s5184 = smul.addr %s5183, 8
          %s5185 = scalar_lea.vmem %s9, %s5184
        $region228: #{_lambda_.4} parent=215 // pred_fallthru
          _
      $region216: #{_lambda_.4} parent=5 // pred_fallthru
        _
    $region6: #{_lambda_.4} parent=1 // loop_footer
      %s22 = sadd.s32 1, %s18
    $region7: #{_lambda_.4} parent=1 // loop_footer_branch
      %17 = sbr.rel target = $region3
    $region8: #{_lambda_.4} parent=1 // loop_exit
      _
    %5186 = vsyncpa [#allocation7], 1
    %s5187 = scalar_lea.sflag [#allocation7], 1
    %5188 = vsyncpa %s5187, 1
    %5189 = vsyncpa [#allocation9], 1

</llo_original>
